<compile_context>
chip_gen: v5e
topology: v5e:2x2
jax: 0.10.0
libtpu: 0.0.40
codegen_flags: <defaults>
</compile_context>

<pallas_src>
import math

import jax
import jax.numpy as jnp
from jax import lax
from jax.experimental import pallas as pl
from jax.experimental.pallas import tpu as pltpu

LN_EPS = 1e-5  # torch.nn.LayerNorm default


def _ff_kernel(x_ref, g_ref, b_ref, wa_ref, wg_ref, wd_ref, o_ref,
               xn_ref, acc_ref):
    h_idx = pl.program_id(1)

    # ---- LayerNorm (biased variance, eps=1e-5) once per token tile ----
    @pl.when(h_idx == 0)
    def _():
        x = x_ref[...].astype(jnp.float32)                    # [tm, dim]
        mean = jnp.mean(x, axis=-1, keepdims=True)
        xc = x - mean
        var = jnp.mean(xc * xc, axis=-1, keepdims=True)
        g = g_ref[...].astype(jnp.float32)                    # [1, dim]
        b = b_ref[...].astype(jnp.float32)                    # [1, dim]
        # fold gamma into the rsqrt scale; single broadcast each
        xn = xc * (lax.rsqrt(var + LN_EPS) * g) + b
        xn_ref[...] = xn.astype(xn_ref.dtype)                 # cached for all h
        acc_ref[...] = jnp.zeros_like(acc_ref)

    xn = xn_ref[...]                                          # weight dtype

    # ---- up projection for this hidden tile (weights stay in storage dtype) --
    # NOTE: a single fused [tm, 2*th] dot would halve xn streaming but requires
    # a one-time tile-interleaved weight layout; two dots keep the original
    # [dim, 2H] layout with zero wrapper-side copies.
    a = jnp.dot(xn, wa_ref[...], preferred_element_type=jnp.float32)     # [tm, th]
    gate = jnp.dot(xn, wg_ref[...], preferred_element_type=jnp.float32)  # [tm, th]

    # ---- swiglu: a * silu(gate) (sigmoid goes to the EUP) ----
    hid = a * (gate * jax.nn.sigmoid(gate))                   # [tm, th] f32

    # ---- down projection, accumulate in f32 scratch ----
    acc_ref[...] += jnp.dot(hid.astype(wd_ref.dtype), wd_ref[...],
                            preferred_element_type=jnp.float32)          # [tm, dim]

    @pl.when(h_idx == pl.num_programs(1) - 1)
    def _():
        o_ref[...] = acc_ref[...].astype(o_ref.dtype)


def _round_up(x, m):
    return ((x + m - 1) // m) * m


def _pick_th(hidden_dim, target):
    """Largest divisor of hidden_dim <= target, preferring multiples of 128."""
    target = min(target, hidden_dim)
    divisors = [d for d in range(1, target + 1) if hidden_dim % d == 0]
    mult128 = [d for d in divisors if d % 128 == 0]
    return (mult128 or divisors)[-1]


def _tpu_vmem_and_cores():
    """(vmem capacity bytes, # tensorcores) with safe fallbacks."""
    try:
        info = pltpu.get_tpu_info()
        vmem = int(getattr(info, "vmem_capacity_bytes", 128 << 20))
        cores = int(getattr(info, "num_cores", 1) or 1)
        return vmem, cores
    except Exception:  # interpret mode / old runtime
        return 128 << 20, 1


def feed_forward(x, gamma, beta, w_up_t, w_down_t, *, tm=None, th=None):
    """x: [batch, seq, dim]; w_up_t: [dim, 2*hidden]; w_down_t: [hidden, dim].

    Weights are used in their storage dtype (bf16 recommended); accumulation is
    always f32.
    """
    batch, seq, dim = x.shape
    hidden_dim = w_up_t.shape[1] // 2
    assert w_up_t.shape == (dim, 2 * hidden_dim)
    assert w_down_t.shape == (hidden_dim, dim)

    w_dtype = w_up_t.dtype
    xsz = jnp.dtype(x.dtype).itemsize
    osz = xsz
    wsz = jnp.dtype(w_dtype).itemsize
    gsz = jnp.dtype(gamma.dtype).itemsize

    vmem_cap, num_cores = _tpu_vmem_and_cores()
    vmem_budget = int(vmem_cap * 0.85)

    # ---- hidden tiling: both SwiGLU halves are read straight out of the fused
    #      [dim, 2H] buffer (no per-call split copies) when hidden is
    #      lane-aligned; otherwise fall back to a single full-H tile per half.
    th_target = 512 if th is None else int(th)
    if hidden_dim % 128 == 0:
        th = _pick_th(hidden_dim, max(th_target, 128))   # multiple of 128
        h_tiles = hidden_dim // th
        w_a_arg, w_g_arg = w_up_t, w_up_t                # same HBM buffer, two views
        wa_spec = pl.BlockSpec((dim, th), lambda i, h: (0, h))
        wg_spec = pl.BlockSpec((dim, th), lambda i, h: (0, h + h_tiles))
    else:
        # Lane-unaligned hidden dim: per-call split (extra HBM copy), one H tile.
        th = hidden_dim
        h_tiles = 1
        w_a_arg = w_up_t[:, :hidden_dim]
        w_g_arg = w_up_t[:, hidden_dim:]
        wa_spec = pl.BlockSpec((dim, th), lambda i, h: (0, 0))
        wg_spec = pl.BlockSpec((dim, th), lambda i, h: (0, 0))

    # ---- token tiling ----
    n = batch * seq

    def tile_bytes(tm_):
        return int(
            2 * tm_ * dim * xsz            # x tile (double-buffered)
            + 2 * tm_ * dim * osz          # out tile (double-buffered)
            + 2 * 2 * dim * gsz            # gamma + beta
            + 2 * 2 * dim * th * wsz       # W_a + W_gate tiles (double-buffered)
            + 2 * th * dim * wsz           # W_down tile (double-buffered)
            + tm_ * dim * wsz              # xn scratch
            + tm_ * dim * 4                # f32 accumulator
            + 3 * tm_ * th * 4             # a / gate / hid temporaries
        )

    if tm is None:
        # Past the HBM/MXU roofline crossover on every current generation.
        tm = 768 if vmem_budget >= (96 << 20) else 640
    tm = max(8, min(_round_up(int(tm), 8), _round_up(n, 8)))
    if num_cores >= 2 and n >= 2 * 128:
        # Keep >= 2 token tiles so the "parallel" axis feeds both TensorCores.
        tm = min(tm, _round_up((n + 1) // 2, 8))
    while tm > 128 and tile_bytes(tm) > vmem_budget:
        tm -= 128                          # shrink tm, never th (vld-slot risk)

    n_tiles = -(-n // tm)
    n_pad = n_tiles * tm
    x2 = x.reshape(n, dim)
    if n_pad != n:
        x2 = jnp.pad(x2, ((0, n_pad - n), (0, 0)))

    g2 = gamma.reshape(1, dim)
    b2 = beta.reshape(1, dim)

    vmem_limit = min(max(int(tile_bytes(tm) * 1.3), 32 << 20), vmem_budget)

    cost = pl.CostEstimate(
        flops=6 * n_pad * dim * hidden_dim,              # up (4NdH) + down (2NdH)
        transcendentals=n_pad * hidden_dim,              # sigmoid
        bytes_accessed=int(
            n_pad * dim * (xsz + osz)                    # x in + out
            + n_tiles * 3 * dim * hidden_dim * wsz       # weights re-streamed / token tile
            + 2 * dim * gsz),                            # gamma + beta
    )

    out2 = pl.pallas_call(
        _ff_kernel,
        out_shape=jax.ShapeDtypeStruct((n_pad, dim), x.dtype),
        grid_spec=pltpu.PrefetchScalarGridSpec(
            num_scalar_prefetch=0,
            grid=(n_tiles, h_tiles),
            in_specs=[
                pl.BlockSpec((tm, dim), lambda i, h: (i, 0)),    # x rows
                pl.BlockSpec((1, dim), lambda i, h: (0, 0)),     # gamma
                pl.BlockSpec((1, dim), lambda i, h: (0, 0)),     # beta
                wa_spec,                                         # W_a^T H-tile
                wg_spec,                                         # W_gate^T H-tile
                pl.BlockSpec((th, dim), lambda i, h: (h, 0)),    # W_down^T H-tile
            ],
            out_specs=pl.BlockSpec((tm, dim), lambda i, h: (i, 0)),
            scratch_shapes=[
                pltpu.VMEM((tm, dim), w_dtype),      # cached LayerNorm output
                pltpu.VMEM((tm, dim), jnp.float32),  # down-proj accumulator
            ],
        ),
        compiler_params=pltpu.CompilerParams(
            dimension_semantics=("parallel", "arbitrary"),
            vmem_limit_bytes=vmem_limit),
        cost_estimate=cost,
    )(x2, g2, b2, w_a_arg, w_g_arg, w_down_t)

    if n_pad != n:
        out2 = out2[:n]
    return out2.reshape(batch, seq, dim)


def feed_forward_ref(x, gamma, beta, w_up_t, w_down_t):
    """Pure-JAX reference mirroring the PyTorch forward."""
    hidden_dim = w_up_t.shape[1] // 2
    xf = x.astype(jnp.float32)
    mean = jnp.mean(xf, axis=-1, keepdims=True)
    var = jnp.mean((xf - mean) ** 2, axis=-1, keepdims=True)
    xn = (xf - mean) / jnp.sqrt(var + LN_EPS) * gamma.astype(jnp.float32) \
         + beta.astype(jnp.float32)
    u = xn @ w_up_t.astype(jnp.float32)
    a, gate = u[..., :hidden_dim], u[..., hidden_dim:]
    h = a * (gate * jax.nn.sigmoid(gate))
    return (h @ w_down_t.astype(jnp.float32)).astype(x.dtype)


if __name__ == "__main__":
    # Small but lane-aligned shapes (dim, hidden multiples of 128); exercises
    # multiple hidden tiles (H // th == 2) and (with explicit tm) multiple
    # token tiles plus row padding.
    batch, seq, dim, hidden_dim = 2, 256, 128, 1024

    key = jax.random.PRNGKey(0)
    kx, ku, kd = jax.random.split(key, 3)

    x = jax.random.normal(kx, (batch, seq, dim), dtype=jnp.float32)

    # PyTorch defaults: LayerNorm weight=1, bias=0; up has no bias; down is
    # zero-initialized by the module's __init__.
    gamma = jnp.ones((dim,), jnp.float32)
    beta = jnp.zeros((dim,), jnp.float32)
    w_up_t = (jax.random.normal(ku, (dim, 2 * hidden_dim), jnp.float32)
              * (1.0 / math.sqrt(dim)))
    w_down_zero_t = jnp.zeros((hidden_dim, dim), jnp.float32)   # faithful zero_init
    # Non-zero down weights to actually exercise/verify the final matmul.
    w_down_rand_t = (jax.random.normal(kd, (hidden_dim, dim), jnp.float32)
                     * (1.0 / math.sqrt(hidden_dim)))

    # 1) Faithful run (zero-initialized down projection, like the module).
    out_zero = feed_forward(x, gamma, beta, w_up_t, w_down_zero_t)
    jax.block_until_ready(out_zero)
    assert jnp.allclose(out_zero, 0.0), "zero_init down must produce all-zero output"

    # 2) f32 correctness check against the pure-JAX reference (auto tiling).
    out = feed_forward(x, gamma, beta, w_up_t, w_down_rand_t)
    jax.block_until_ready(out)
    ref = feed_forward_ref(x, gamma, beta, w_up_t, w_down_rand_t)
    assert out.shape == (batch, seq, dim)
    assert jnp.max(jnp.abs(out - ref)) < 1e-3, "kernel mismatch vs reference (f32)"

    # 2b) explicit small tm: exercises multiple token tiles + row padding.
    out_t = feed_forward(x, gamma, beta, w_up_t, w_down_rand_t, tm=192)
    jax.block_until_ready(out_t)
    assert jnp.max(jnp.abs(out_t - ref)) < 1e-3, "kernel mismatch (tm=192 path)"

    # 3) bf16 storage-dtype path (weights stay bf16 into the MXU, f32 accum).
    x_bf = x.astype(jnp.bfloat16)
    wu_bf = w_up_t.astype(jnp.bfloat16)
    wd_bf = w_down_rand_t.astype(jnp.bfloat16)
    g_bf = gamma.astype(jnp.bfloat16)
    b_bf = beta.astype(jnp.bfloat16)
    out_bf = feed_forward(x_bf, g_bf, b_bf, wu_bf, wd_bf)
    jax.block_until_ready(out_bf)
    ref_bf = feed_forward_ref(x_bf, g_bf, b_bf, wu_bf, wd_bf)
    assert jnp.all(jnp.isfinite(out_bf.astype(jnp.float32)))
    assert jnp.max(jnp.abs(out_bf.astype(jnp.float32)
                           - ref_bf.astype(jnp.float32))) < 0.1, \
        "kernel mismatch vs reference (bf16)"

    print("KERNEL_OK")
</pallas_src>

<mosaic_0001>
module attributes {stable_mosaic.version = 11 : i64} {
  func.func @_ff_kernel(%arg0: i32, %arg1: i32, %arg2: memref<512x128xf32, #tpu.memory_space<vmem>>, %arg3: memref<1x128xf32, #tpu.memory_space<vmem>>, %arg4: memref<1x128xf32, #tpu.memory_space<vmem>>, %arg5: memref<128x512xf32, #tpu.memory_space<vmem>>, %arg6: memref<128x512xf32, #tpu.memory_space<vmem>>, %arg7: memref<512x128xf32, #tpu.memory_space<vmem>>, %arg8: memref<512x128xf32, #tpu.memory_space<vmem>>, %arg9: memref<512x128xf32, #tpu.memory_space<vmem>>, %arg10: memref<512x128xf32, #tpu.memory_space<vmem>>) attributes {dimension_semantics = [#tpu.dimension_semantics<parallel>, #tpu.dimension_semantics<arbitrary>], iteration_bounds = array<i64: 1, 2>, scalar_prefetch = 0 : i64, scratch_operands = 2 : i64, tpu.core_type = #tpu.core_type<tc>, window_params = [{transform_indices = @transform_0, window_bounds = array<i64: 512, 128>}, {pipeline_mode = #tpu.pipeline_mode<synchronous>, transform_indices = @transform_1, window_bounds = array<i64: 1, 128>}, {pipeline_mode = #tpu.pipeline_mode<synchronous>, transform_indices = @transform_2, window_bounds = array<i64: 1, 128>}, {transform_indices = @transform_3, window_bounds = array<i64: 128, 512>}, {transform_indices = @transform_4, window_bounds = array<i64: 128, 512>}, {transform_indices = @transform_5, window_bounds = array<i64: 512, 128>}, {transform_indices = @transform_6, window_bounds = array<i64: 512, 128>}]} {
    %c0_i32 = arith.constant 0 : i32
    %0 = arith.cmpi eq, %arg1, %c0_i32 : i32
    %1 = arith.extui %0 : i1 to i32
    %c0_i32_0 = arith.constant 0 : i32
    %2 = arith.cmpi ne, %1, %c0_i32_0 : i32
    scf.if %2 {
      %c0_16 = arith.constant 0 : index
      %c0_17 = arith.constant 0 : index
      %23 = vector.load %arg2[%c0_16, %c0_17] : memref<512x128xf32, #tpu.memory_space<vmem>>, vector<512x128xf32>
      %cst_18 = arith.constant dense<0.000000e+00> : vector<512xf32>
      %24 = vector.multi_reduction <add>, %23, %cst_18 [1] : vector<512x128xf32> to vector<512xf32>
      %25 = vector.shape_cast %24 : vector<512xf32> to vector<512x1xf32>
      %cst_19 = arith.constant 1.280000e+02 : f32
      %26 = vector.broadcast %cst_19 : f32 to vector<512x1xf32>
      %27 = arith.divf %25, %26 : vector<512x1xf32>
      %28 = vector.broadcast %27 : vector<512x1xf32> to vector<512x128xf32>
      %29 = arith.subf %23, %28 : vector<512x128xf32>
      %30 = arith.mulf %29, %29 : vector<512x128xf32>
      %cst_20 = arith.constant dense<0.000000e+00> : vector<512xf32>
      %31 = vector.multi_reduction <add>, %30, %cst_20 [1] : vector<512x128xf32> to vector<512xf32>
      %32 = vector.shape_cast %31 : vector<512xf32> to vector<512x1xf32>
      %cst_21 = arith.constant 1.280000e+02 : f32
      %33 = vector.broadcast %cst_21 : f32 to vector<512x1xf32>
      %34 = arith.divf %32, %33 : vector<512x1xf32>
      %c0_22 = arith.constant 0 : index
      %c0_23 = arith.constant 0 : index
      %35 = vector.load %arg3[%c0_22, %c0_23] : memref<1x128xf32, #tpu.memory_space<vmem>>, vector<1x128xf32>
      %c0_24 = arith.constant 0 : index
      %c0_25 = arith.constant 0 : index
      %36 = vector.load %arg4[%c0_24, %c0_25] : memref<1x128xf32, #tpu.memory_space<vmem>>, vector<1x128xf32>
      %cst_26 = arith.constant 9.99999974E-6 : f32
      %37 = vector.broadcast %cst_26 : f32 to vector<512x1xf32>
      %38 = arith.addf %34, %37 : vector<512x1xf32>
      %39 = math.rsqrt %38 : vector<512x1xf32>
      %40 = vector.broadcast %39 : vector<512x1xf32> to vector<512x128xf32>
      %41 = vector.broadcast %35 : vector<1x128xf32> to vector<512x128xf32>
      %42 = arith.mulf %40, %41 : vector<512x128xf32>
      %43 = arith.mulf %29, %42 : vector<512x128xf32>
      %44 = vector.broadcast %36 : vector<1x128xf32> to vector<512x128xf32>
      %45 = arith.addf %43, %44 : vector<512x128xf32>
      %c0_27 = arith.constant 0 : index
      %c0_28 = arith.constant 0 : index
      %46 = vector.load %arg9[%c0_27, %c0_28] : memref<512x128xf32, #tpu.memory_space<vmem>>, vector<512x128xf32>
      tpu.vector_store %arg9[%c0_27, %c0_28], %45 {strides = array<i32>} : memref<512x128xf32, #tpu.memory_space<vmem>>, vector<512x128xf32>,
      %cst_29 = arith.constant 0.000000e+00 : f32
      %47 = vector.broadcast %cst_29 : f32 to vector<512x128xf32>
      %c0_30 = arith.constant 0 : index
      %c0_31 = arith.constant 0 : index
      %48 = vector.load %arg10[%c0_30, %c0_31] : memref<512x128xf32, #tpu.memory_space<vmem>>, vector<512x128xf32>
      tpu.vector_store %arg10[%c0_30, %c0_31], %47 {strides = array<i32>} : memref<512x128xf32, #tpu.memory_space<vmem>>, vector<512x128xf32>,
    } else {
    }
    %c0 = arith.constant 0 : index
    %c0_1 = arith.constant 0 : index
    %3 = vector.load %arg9[%c0, %c0_1] : memref<512x128xf32, #tpu.memory_space<vmem>>, vector<512x128xf32>
    %c0_2 = arith.constant 0 : index
    %c0_3 = arith.constant 0 : index
    %4 = vector.load %arg5[%c0_2, %c0_3] : memref<128x512xf32, #tpu.memory_space<vmem>>, vector<128x512xf32>
    %cst = arith.constant dense<0.000000e+00> : vector<512x512xf32>
    %5 = tpu.matmul %3, %4, %cst {dimension_numbers = #tpu.dot_dimension_numbers<[1], [0], [0], [1], [0, 0, 1, 1], [], []>} : vector<512x128xf32>, vector<128x512xf32>, vector<512x512xf32> -> vector<512x512xf32>
    %c0_4 = arith.constant 0 : index
    %c0_5 = arith.constant 0 : index
    %6 = vector.load %arg6[%c0_4, %c0_5] : memref<128x512xf32, #tpu.memory_space<vmem>>, vector<128x512xf32>
    %cst_6 = arith.constant dense<0.000000e+00> : vector<512x512xf32>
    %7 = tpu.matmul %3, %6, %cst_6 {dimension_numbers = #tpu.dot_dimension_numbers<[1], [0], [0], [1], [0, 0, 1, 1], [], []>} : vector<512x128xf32>, vector<128x512xf32>, vector<512x512xf32> -> vector<512x512xf32>
    %8 = arith.negf %7 : vector<512x512xf32>
    %9 = math.exp %8 : vector<512x512xf32>
    %cst_7 = arith.constant 1.000000e+00 : f32
    %10 = vector.broadcast %cst_7 : f32 to vector<512x512xf32>
    %11 = arith.addf %10, %9 : vector<512x512xf32>
    %12 = arith.divf %10, %11 : vector<512x512xf32>
    %13 = arith.mulf %7, %12 : vector<512x512xf32>
    %14 = arith.mulf %5, %13 : vector<512x512xf32>
    %c0_8 = arith.constant 0 : index
    %c0_9 = arith.constant 0 : index
    %15 = vector.load %arg10[%c0_8, %c0_9] : memref<512x128xf32, #tpu.memory_space<vmem>>, vector<512x128xf32>
    %c0_10 = arith.constant 0 : index
    %c0_11 = arith.constant 0 : index
    %16 = vector.load %arg7[%c0_10, %c0_11] : memref<512x128xf32, #tpu.memory_space<vmem>>, vector<512x128xf32>
    %cst_12 = arith.constant dense<0.000000e+00> : vector<512x128xf32>
    %17 = tpu.matmul %14, %16, %cst_12 {dimension_numbers = #tpu.dot_dimension_numbers<[1], [0], [0], [1], [0, 0, 1, 1], [], []>} : vector<512x512xf32>, vector<512x128xf32>, vector<512x128xf32> -> vector<512x128xf32>
    %18 = arith.addf %15, %17 : vector<512x128xf32>
    %c0_13 = arith.constant 0 : index
    %c0_14 = arith.constant 0 : index
    %19 = vector.load %arg10[%c0_13, %c0_14] : memref<512x128xf32, #tpu.memory_space<vmem>>, vector<512x128xf32>
    tpu.vector_store %arg10[%c0_13, %c0_14], %18 {strides = array<i32>} : memref<512x128xf32, #tpu.memory_space<vmem>>, vector<512x128xf32>,
    %c1_i32 = arith.constant 1 : i32
    %20 = arith.cmpi eq, %arg1, %c1_i32 : i32
    %21 = arith.extui %20 : i1 to i32
    %c0_i32_15 = arith.constant 0 : i32
    %22 = arith.cmpi ne, %21, %c0_i32_15 : i32
    scf.if %22 {
      %c0_16 = arith.constant 0 : index
      %c0_17 = arith.constant 0 : index
      %23 = vector.load %arg10[%c0_16, %c0_17] : memref<512x128xf32, #tpu.memory_space<vmem>>, vector<512x128xf32>
      %c0_18 = arith.constant 0 : index
      %c0_19 = arith.constant 0 : index
      %24 = vector.load %arg8[%c0_18, %c0_19] : memref<512x128xf32, #tpu.memory_space<vmem>>, vector<512x128xf32>
      tpu.vector_store %arg8[%c0_18, %c0_19], %23 {strides = array<i32>} : memref<512x128xf32, #tpu.memory_space<vmem>>, vector<512x128xf32>,
    } else {
    }
    return
  }
  func.func @transform_0(%arg0: i32, %arg1: i32) -> (i32, i32) {
    %c0_i32 = arith.constant 0 : i32
    %c0_i32_0 = arith.constant 0 : i32
    return %arg0, %c0_i32 : i32, i32
  }
  func.func @transform_1(%arg0: i32, %arg1: i32) -> (i32, i32) {
    %c0_i32 = arith.constant 0 : i32
    %c0_i32_0 = arith.constant 0 : i32
    %c0_i32_1 = arith.constant 0 : i32
    return %c0_i32, %c0_i32_0 : i32, i32
  }
  func.func @transform_2(%arg0: i32, %arg1: i32) -> (i32, i32) {
    %c0_i32 = arith.constant 0 : i32
    %c0_i32_0 = arith.constant 0 : i32
    %c0_i32_1 = arith.constant 0 : i32
    return %c0_i32, %c0_i32_0 : i32, i32
  }
  func.func @transform_3(%arg0: i32, %arg1: i32) -> (i32, i32) {
    %c0_i32 = arith.constant 0 : i32
    %c0_i32_0 = arith.constant 0 : i32
    return %c0_i32, %arg1 : i32, i32
  }
  func.func @transform_4(%arg0: i32, %arg1: i32) -> (i32, i32) {
    %c2_i32 = arith.constant 2 : i32
    %0 = arith.addi %arg1, %c2_i32 : i32
    %c0_i32 = arith.constant 0 : i32
    %c0_i32_0 = arith.constant 0 : i32
    return %c0_i32, %0 : i32, i32
  }
  func.func @transform_5(%arg0: i32, %arg1: i32) -> (i32, i32) {
    %c0_i32 = arith.constant 0 : i32
    %c0_i32_0 = arith.constant 0 : i32
    return %arg1, %c0_i32 : i32, i32
  }
  func.func @transform_6(%arg0: i32, %arg1: i32) -> (i32, i32) {
    %c0_i32 = arith.constant 0 : i32
    %c0_i32_0 = arith.constant 0 : i32
    return %arg0, %c0_i32 : i32, i32
  }
}

</mosaic_0001>

<llo_original>
// kernel: tpu_custom_call.1
$region0: #{tpu_custom_call.1}
  #allocation0 [shape = 'u32[]', space=smem, size = 0x4, offset = 0x4, fixed_abs, tag = 'smem constant byte address 0x4 - core index']
  #allocation1 [shape = 'u32[72,128]{1,0:T(1,128)}', space=vmem, size = 0x9000, scoped, tag = 'internal scratch']
  #allocation2 [shape = 'f32[512,128]{1,0:T(8,128)}', space=vmem, size = 0x40000, scoped, tag = 'scratch operand']
  #allocation3 [shape = 'f32[512,128]{1,0:T(8,128)}', space=vmem, size = 0x40000, scoped, tag = 'scratch operand']
  %s0 = inlined_call_operand.hbm [shape: f32[512,128], index: 0, kind: input, shape index: {}]
  %s1 = inlined_call_operand.hbm [shape: f32[1,128], index: 1, kind: input, shape index: {}]
  %s2 = inlined_call_operand.vmem [shape: f32[1,128], index: 2, kind: input, shape index: {}]
  %s3 = inlined_call_operand.hbm [shape: f32[128,2048], index: 3, kind: input, shape index: {}]
  %s4 = inlined_call_operand.hbm [shape: f32[128,2048], index: 4, kind: input, shape index: {}]
  %s5 = inlined_call_operand.hbm [shape: f32[1024,128], index: 5, kind: input, shape index: {}]
  %s6 = inlined_call_operand.hbm [shape: f32[512,128], index: 6, kind: output, shape index: {}]
  %s7 = sld [smem:[#allocation0]]
  $region85: #{tpu_custom_call.1} parent=0
    _
  %s9 = ssub.s32 1, %s7
  %s10 = scalar_select 0, %s9, %s7
  $region1: #{tpu_custom_call.1} parent=0
    #allocation4 [shape = 'u8[262144]{0}', space=vmem, size = 0x40000, scoped, tag = 'input window, operand 0, single buffered']
    #allocation5 [shape = 's32[2]{0}', space=sflag, size = 0x8, scoped, tag = 'scoped memory for tpu_custom_call.1']
    #allocation6 [shape = 's32[2]{0}', space=sflag, size = 0x8, scoped, tag = 'scoped memory for tpu_custom_call.1']
    #allocation7 [shape = 'u8[512]{0}', space=vmem, size = 0x400, scoped, tag = 'input window, operand 1, single buffered']
    #allocation8 [shape = 's32[1]{0}', space=sflag, size = 0x4, scoped, tag = 'scoped memory for tpu_custom_call.1']
    #allocation9 [shape = 'u8[524288]{0}', space=vmem, size = 0x80000, scoped, tag = 'input window, operand 3']
    #allocation10 [shape = 'u8[524288]{0}', space=vmem, size = 0x80000, scoped, tag = 'input window, operand 4']
    #allocation11 [shape = 'u8[524288]{0}', space=vmem, size = 0x80000, scoped, tag = 'input window, operand 5']
    #allocation12 [shape = 'u8[262144]{0}', space=vmem, size = 0x40000, scoped, tag = 'output window, operand 0, single buffered']
    %11 = vsyncpa [#allocation5], 0
    %12 = vsyncpa [#allocation8], 0
    %13 = vsyncpa [#allocation6], 0
    loop: start=0, step=1, limit=4
    $region2: #{tpu_custom_call.1} parent=1 // loop_pre_header
      _
    $region3: #{tpu_custom_call.1} parent=1 // loop_header
      %s15 = sphi 0, %s19
      %p16 = scmp.ge.s32.totalorder %s15, 4
      %s22 = sphi 0, %s34
      %s23 = sphi 0, %s30
      %s24 = sphi 0, %s22
      %s25 = sphi 0, %s23
      %s26 = sphi 0, %s24
      %s27 = sphi 0, %s25
      %s37 = sphi 0, %s39
      %s40 = sphi 0, %s37
      %s41 = sphi 0, %s40
      %s57 = sphi 0, %s41
      %s61 = sphi 0, %s61
      %s63 = sphi 0, %s61
      %s64 = sphi 0, %s63
      %s78 = sphi 0, %s64
      %s82 = sphi 0, %s82
      %s84 = sphi 0, %s82
      %s85 = sphi 0, %s84
      %s99 = sphi 0, %s85
      %s105 = sphi 0, %s107
      %s108 = sphi 0, %s105
      %s109 = sphi 0, %s108
      %s125 = sphi 0, %s109
      %s133 = sphi 0, %s135
      %s136 = sphi 0, %s133
      %s137 = sphi 0, %s136
      %s153 = sphi 0, %s137
      %s159 = sphi 0, %s161
      %s162 = sphi 0, %s159
      %s163 = sphi 0, %s162
      %s179 = sphi 0, %s163
      %s185 = sphi 0, %s187
      %s188 = sphi 0, %s185
      %s189 = sphi 0, %s188
      %s205 = sphi 0, %s189
    $region4: #{tpu_custom_call.1} parent=1 // loop_header_branch
      %18 = sbr.rel (%p16) target = $region8
    $region5: #{tpu_custom_call.1} parent=1 // loop_body
      %s20 = ssub.s32 %s15, 1
      %s21 = ssub.s32 %s15, 2
      %s28 = sadd.s32 1, %s23
      %p29 = scmp.ge.s32.totalorder %s28, 2
      %s30 = scalar_select %p29, 0, %s28
      %s31 = sadd.s32 1, %s22
      %s32 = scalar_select %p29, %s31, %s22
      %p33 = scmp.ge.s32.totalorder %s32, 1
      %s34 = scalar_select %p33, 0, %s32
      %s35 = ssub.s32 %s22, %s34
      %p36 = scmp.eq.s32.totalorder %s35, 0
      %s38 = sadd.s32 %s37, 1
      %s39 = scalar_select %p36, %s37, %s38
      %p42 = pneg %p36
      %p43 = scmp.eq.s32.totalorder %s15, 1
      %p44 = por %p42, %p43
      %p45 = scmp.ne.s32.totalorder %s37, %s40
      %p46 = scmp.eq.s32.totalorder %s15, 0
      %p47 = por %p45, %p46
      %p48 = scmp.ne.s32.totalorder %s37, %s40
      %p49 = scmp.eq.s32.totalorder %s20, 1
      %p50 = por %p48, %p49
      %p51 = scmp.ne.s32.totalorder %s40, %s41
      %p52 = scmp.eq.s32.totalorder %s20, 0
      %p53 = por %p51, %p52
      %p54 = scmp.ne.s32.totalorder %s40, %s41
      %p55 = scmp.eq.s32.totalorder %s21, 1
      %p56 = por %p54, %p55
      %p58 = scmp.ne.s32.totalorder %s41, %s57
      %p59 = scmp.eq.s32.totalorder %s21, 0
      %p60 = por %p58, %p59
      %s62 = sadd.s32 %s61, 1
      %p65 = scmp.eq.s32.totalorder %s15, 1
      %p66 = scmp.ne.s32.totalorder %s61, %s63
      %p67 = scmp.eq.s32.totalorder %s15, 0
      %p68 = por %p66, %p67
      %p69 = scmp.ne.s32.totalorder %s61, %s63
      %p70 = scmp.eq.s32.totalorder %s20, 1
      %p71 = por %p69, %p70
      %p72 = scmp.ne.s32.totalorder %s63, %s64
      %p73 = scmp.eq.s32.totalorder %s20, 0
      %p74 = por %p72, %p73
      %p75 = scmp.ne.s32.totalorder %s63, %s64
      %p76 = scmp.eq.s32.totalorder %s21, 1
      %p77 = por %p75, %p76
      %p79 = scmp.ne.s32.totalorder %s64, %s78
      %p80 = scmp.eq.s32.totalorder %s21, 0
      %p81 = por %p79, %p80
      %s83 = sadd.s32 %s82, 1
      %p86 = scmp.eq.s32.totalorder %s15, 1
      %p87 = scmp.ne.s32.totalorder %s82, %s84
      %p88 = scmp.eq.s32.totalorder %s15, 0
      %p89 = por %p87, %p88
      %p90 = scmp.ne.s32.totalorder %s82, %s84
      %p91 = scmp.eq.s32.totalorder %s20, 1
      %p92 = por %p90, %p91
      %p93 = scmp.ne.s32.totalorder %s84, %s85
      %p94 = scmp.eq.s32.totalorder %s20, 0
      %p95 = por %p93, %p94
      %p96 = scmp.ne.s32.totalorder %s84, %s85
      %p97 = scmp.eq.s32.totalorder %s21, 1
      %p98 = por %p96, %p97
      %p100 = scmp.ne.s32.totalorder %s85, %s99
      %p101 = scmp.eq.s32.totalorder %s21, 0
      %p102 = por %p100, %p101
      %s103 = ssub.s32 %s23, %s30
      %p104 = scmp.eq.s32.totalorder %s103, 0
      %s106 = sadd.s32 %s105, 1
      %s107 = scalar_select %p104, %s105, %s106
      %p110 = pneg %p104
      %p111 = scmp.eq.s32.totalorder %s15, 1
      %p112 = por %p110, %p111
      %p113 = scmp.ne.s32.totalorder %s105, %s108
      %p114 = scmp.eq.s32.totalorder %s15, 0
      %p115 = por %p113, %p114
      %p116 = scmp.ne.s32.totalorder %s105, %s108
      %p117 = scmp.eq.s32.totalorder %s20, 1
      %p118 = por %p116, %p117
      %p119 = scmp.ne.s32.totalorder %s108, %s109
      %p120 = scmp.eq.s32.totalorder %s20, 0
      %p121 = por %p119, %p120
      %p122 = scmp.ne.s32.totalorder %s108, %s109
      %p123 = scmp.eq.s32.totalorder %s21, 1
      %p124 = por %p122, %p123
      %p126 = scmp.ne.s32.totalorder %s109, %s125
      %p127 = scmp.eq.s32.totalorder %s21, 0
      %p128 = por %p126, %p127
      %s129 = sadd.s32 %s23, 2
      %s130 = sadd.s32 %s30, 2
      %s131 = ssub.s32 %s129, %s130
      %p132 = scmp.eq.s32.totalorder %s131, 0
      %s134 = sadd.s32 %s133, 1
      %s135 = scalar_select %p132, %s133, %s134
      %p138 = pneg %p132
      %p139 = scmp.eq.s32.totalorder %s15, 1
      %p140 = por %p138, %p139
      %p141 = scmp.ne.s32.totalorder %s133, %s136
      %p142 = scmp.eq.s32.totalorder %s15, 0
      %p143 = por %p141, %p142
      %p144 = scmp.ne.s32.totalorder %s133, %s136
      %p145 = scmp.eq.s32.totalorder %s20, 1
      %p146 = por %p144, %p145
      %p147 = scmp.ne.s32.totalorder %s136, %s137
      %p148 = scmp.eq.s32.totalorder %s20, 0
      %p149 = por %p147, %p148
      %p150 = scmp.ne.s32.totalorder %s136, %s137
      %p151 = scmp.eq.s32.totalorder %s21, 1
      %p152 = por %p150, %p151
      %p154 = scmp.ne.s32.totalorder %s137, %s153
      %p155 = scmp.eq.s32.totalorder %s21, 0
      %p156 = por %p154, %p155
      %s157 = ssub.s32 %s23, %s30
      %p158 = scmp.eq.s32.totalorder %s157, 0
      %s160 = sadd.s32 %s159, 1
      %s161 = scalar_select %p158, %s159, %s160
      %p164 = pneg %p158
      %p165 = scmp.eq.s32.totalorder %s15, 1
      %p166 = por %p164, %p165
      %p167 = scmp.ne.s32.totalorder %s159, %s162
      %p168 = scmp.eq.s32.totalorder %s15, 0
      %p169 = por %p167, %p168
      %p170 = scmp.ne.s32.totalorder %s159, %s162
      %p171 = scmp.eq.s32.totalorder %s20, 1
      %p172 = por %p170, %p171
      %p173 = scmp.ne.s32.totalorder %s162, %s163
      %p174 = scmp.eq.s32.totalorder %s20, 0
      %p175 = por %p173, %p174
      %p176 = scmp.ne.s32.totalorder %s162, %s163
      %p177 = scmp.eq.s32.totalorder %s21, 1
      %p178 = por %p176, %p177
      %p180 = scmp.ne.s32.totalorder %s163, %s179
      %p181 = scmp.eq.s32.totalorder %s21, 0
      %p182 = por %p180, %p181
      %s183 = ssub.s32 %s22, %s34
      %p184 = scmp.eq.s32.totalorder %s183, 0
      %s186 = sadd.s32 %s185, 1
      %s187 = scalar_select %p184, %s185, %s186
      %p190 = pneg %p184
      %p191 = scmp.eq.s32.totalorder %s15, 1
      %p192 = por %p190, %p191
      %p193 = scmp.ne.s32.totalorder %s185, %s188
      %p194 = scmp.eq.s32.totalorder %s15, 0
      %p195 = por %p193, %p194
      %p196 = scmp.ne.s32.totalorder %s185, %s188
      %p197 = scmp.eq.s32.totalorder %s20, 1
      %p198 = por %p196, %p197
      %p199 = scmp.ne.s32.totalorder %s188, %s189
      %p200 = scmp.eq.s32.totalorder %s20, 0
      %p201 = por %p199, %p200
      %p202 = scmp.ne.s32.totalorder %s188, %s189
      %p203 = scmp.eq.s32.totalorder %s21, 1
      %p204 = por %p202, %p203
      %p206 = scmp.ne.s32.totalorder %s189, %s205
      %p207 = scmp.eq.s32.totalorder %s21, 0
      %p208 = por %p206, %p207
      %p209 = scmp.le.s32.totalorder 1, %s15
      %p210 = scmp.lt.s32.totalorder %s15, 3
      %p211 = pnand %p209, %p210
      %p212 = pneg %p211
      // Predicated region
      $region9: #{tpu_custom_call.1} parent=5 // pred_check
        _
      $region10: #{tpu_custom_call.1} parent=5 // pred_check_branch
        %214 = sbr.rel (%p211) target = $region12
      $region11: #{tpu_custom_call.1} parent=5 // pred_region
        %s215 = ssub.s32 %s15, 1
        // Predicated region
        $region13: #{tpu_custom_call.1} parent=11 // pred_check
          %p216 = pneg %p53
        $region14: #{tpu_custom_call.1} parent=11 // pred_check_branch
          %218 = sbr.rel (%p216) target = $region16
        $region15: #{tpu_custom_call.1} parent=11 // pred_region
          %s219 = smul.u32 64, %s24
          %221 = vsyncadd [#allocation5], 0
          %s222 = smul.addr %s219, 8
          %s223 = scalar_lea.hbm %s0, %s222
          %s224 = sshll.u32 %s223, 4
          %s225 = int_to_ptr.hbm [resolvable:$true] %s224
          %s226 = sshll.u32 [#allocation4], 4
          %s227 = int_to_ptr.vmem [resolvable:$true] %s226
          %232 = dma.hbm_to_vmem [thread:$0]  %s225, 8192, %s227, [#allocation5], 128, 128, 8
        $region16: #{tpu_custom_call.1} parent=11 // pred_fallthru
          _
        // Predicated region
        $region17: #{tpu_custom_call.1} parent=11 // pred_check
          %p233 = pneg %p74
        $region18: #{tpu_custom_call.1} parent=11 // pred_check_branch
          %235 = sbr.rel (%p233) target = $region20
        $region19: #{tpu_custom_call.1} parent=11 // pred_region
          %237 = vsyncadd [#allocation8], 0
          %s239 = sshll.u32 %s1, 4
          %s240 = int_to_ptr.hbm [resolvable:$true] %s239
          %s241 = sshll.u32 [#allocation7], 4
          %s242 = int_to_ptr.vmem [resolvable:$true] %s241
          %244 = dma.hbm_to_vmem [thread:$0]  %s240, 16, %s242, [#allocation8]
        $region20: #{tpu_custom_call.1} parent=11 // pred_fallthru
          _
        // Predicated region
        $region21: #{tpu_custom_call.1} parent=11 // pred_check
          %p245 = pneg %p95
        $region22: #{tpu_custom_call.1} parent=11 // pred_check_branch
          %247 = sbr.rel (%p245) target = $region24
        $region23: #{tpu_custom_call.1} parent=11 // pred_region
          _
        $region24: #{tpu_custom_call.1} parent=11 // pred_fallthru
          _
      $region12: #{tpu_custom_call.1} parent=5 // pred_fallthru
        _
      %p248 = scmp.lt.s32.totalorder %s15, 2
      // Predicated region
      $region25: #{tpu_custom_call.1} parent=5 // pred_check
        %p249 = pneg %p248
      $region26: #{tpu_custom_call.1} parent=5 // pred_check_branch
        %251 = sbr.rel (%p249) target = $region28
      $region27: #{tpu_custom_call.1} parent=5 // pred_region
        // Predicated region
        $region29: #{tpu_custom_call.1} parent=27 // pred_check
          %p252 = pneg %p115
        $region30: #{tpu_custom_call.1} parent=27 // pred_check_branch
          %254 = sbr.rel (%p252) target = $region32
        $region31: #{tpu_custom_call.1} parent=27 // pred_region
          %s255 = sand.u32 %s15, 1
          %s256 = scalar_lea.sflag [#allocation5], %s255
          %s257 = sand.u32 %s105, 1
          %s258 = smul.addr %s257, 512
          %s259 = scalar_lea.vmem [#allocation9], %s258
          %s260 = smul.u32 4, %s23
          %262 = vsyncadd %s256, 0
          %s263 = smul.addr %s260, 8
          %s264 = scalar_lea.hbm %s3, %s263
          %s265 = sshll.u32 %s264, 4
          %s266 = int_to_ptr.hbm [resolvable:$true] %s265
          %s267 = sshll.u32 %s259, 4
          %s268 = int_to_ptr.vmem [resolvable:$true] %s267
          %273 = dma.hbm_to_vmem [thread:$0]  %s266, 8192, %s268, %s256, 2048, 512, 32
        $region32: #{tpu_custom_call.1} parent=27 // pred_fallthru
          _
        // Predicated region
        $region33: #{tpu_custom_call.1} parent=27 // pred_check
          %p274 = pneg %p143
        $region34: #{tpu_custom_call.1} parent=27 // pred_check_branch
          %276 = sbr.rel (%p274) target = $region36
        $region35: #{tpu_custom_call.1} parent=27 // pred_region
          %s277 = sand.u32 %s15, 1
          %s278 = scalar_lea.sflag [#allocation5], %s277
          %s279 = sand.u32 %s133, 1
          %s280 = smul.addr %s279, 512
          %s281 = scalar_lea.vmem [#allocation10], %s280
          %s282 = sadd.s32 %s23, 2
          %s283 = smul.u32 4, %s282
          %285 = vsyncadd %s278, 0
          %s286 = smul.addr %s283, 8
          %s287 = scalar_lea.hbm %s4, %s286
          %s288 = sshll.u32 %s287, 4
          %s289 = int_to_ptr.hbm [resolvable:$true] %s288
          %s290 = sshll.u32 %s281, 4
          %s291 = int_to_ptr.vmem [resolvable:$true] %s290
          %296 = dma.hbm_to_vmem [thread:$0]  %s289, 8192, %s291, %s278, 2048, 512, 32
        $region36: #{tpu_custom_call.1} parent=27 // pred_fallthru
          _
        // Predicated region
        $region37: #{tpu_custom_call.1} parent=27 // pred_check
          %p297 = pneg %p169
        $region38: #{tpu_custom_call.1} parent=27 // pred_check_branch
          %299 = sbr.rel (%p297) target = $region40
        $region39: #{tpu_custom_call.1} parent=27 // pred_region
          %s300 = sand.u32 %s15, 1
          %s301 = scalar_lea.sflag [#allocation5], %s300
          %s302 = sand.u32 %s159, 1
          %s303 = smul.addr %s302, 512
          %s304 = scalar_lea.vmem [#allocation11], %s303
          %s305 = smul.u32 64, %s23
          %307 = vsyncadd %s301, 0
          %s308 = smul.addr %s305, 8
          %s309 = scalar_lea.hbm %s5, %s308
          %s310 = sshll.u32 %s309, 4
          %s311 = int_to_ptr.hbm [resolvable:$true] %s310
          %s312 = sshll.u32 %s304, 4
          %s313 = int_to_ptr.vmem [resolvable:$true] %s312
          %318 = dma.hbm_to_vmem [thread:$0]  %s311, 8192, %s313, %s301, 128, 128, 8
        $region40: #{tpu_custom_call.1} parent=27 // pred_fallthru
          _
      $region28: #{tpu_custom_call.1} parent=5 // pred_fallthru
        _
      %p319 = scmp.le.s32.totalorder 1, %s15
      %p320 = scmp.lt.s32.totalorder %s15, 3
      %p321 = pnand %p319, %p320
      %p322 = pneg %p321
      // Predicated region
      $region41: #{tpu_custom_call.1} parent=5 // pred_check
        _
      $region42: #{tpu_custom_call.1} parent=5 // pred_check_branch
        %324 = sbr.rel (%p321) target = $region44
      $region43: #{tpu_custom_call.1} parent=5 // pred_region
        %s325 = ssub.s32 %s15, 1
        // Predicated region
        $region45: #{tpu_custom_call.1} parent=43 // pred_check
          %p326 = pneg %p53
        $region46: #{tpu_custom_call.1} parent=43 // pred_check_branch
          %328 = sbr.rel (%p326) target = $region48
        $region47: #{tpu_custom_call.1} parent=43 // pred_region
          %330 = dma.done [#allocation5], 8192
        $region48: #{tpu_custom_call.1} parent=43 // pred_fallthru
          _
        // Predicated region
        $region49: #{tpu_custom_call.1} parent=43 // pred_check
          %p331 = pneg %p74
        $region50: #{tpu_custom_call.1} parent=43 // pred_check_branch
          %333 = sbr.rel (%p331) target = $region52
        $region51: #{tpu_custom_call.1} parent=43 // pred_region
          %335 = dma.done [#allocation8], 16
        $region52: #{tpu_custom_call.1} parent=43 // pred_fallthru
          _
        %s336 = sand.u32 %s20, 1
        %s337 = scalar_lea.sflag [#allocation5], %s336
        %s338 = sand.u32 %s108, 1
        %s339 = smul.addr %s338, 512
        %s340 = scalar_lea.vmem [#allocation9], %s339
        // Predicated region
        $region53: #{tpu_custom_call.1} parent=43 // pred_check
          %p341 = pneg %p121
        $region54: #{tpu_custom_call.1} parent=43 // pred_check_branch
          %343 = sbr.rel (%p341) target = $region56
        $region55: #{tpu_custom_call.1} parent=43 // pred_region
          %345 = dma.done %s337, 8192
        $region56: #{tpu_custom_call.1} parent=43 // pred_fallthru
          _
        %s346 = sand.u32 %s20, 1
        %s347 = scalar_lea.sflag [#allocation5], %s346
        %s348 = sand.u32 %s136, 1
        %s349 = smul.addr %s348, 512
        %s350 = scalar_lea.vmem [#allocation10], %s349
        // Predicated region
        $region57: #{tpu_custom_call.1} parent=43 // pred_check
          %p351 = pneg %p149
        $region58: #{tpu_custom_call.1} parent=43 // pred_check_branch
          %353 = sbr.rel (%p351) target = $region60
        $region59: #{tpu_custom_call.1} parent=43 // pred_region
          %355 = dma.done %s347, 8192
        $region60: #{tpu_custom_call.1} parent=43 // pred_fallthru
          _
        %s356 = sand.u32 %s20, 1
        %s357 = scalar_lea.sflag [#allocation5], %s356
        %s358 = sand.u32 %s162, 1
        %s359 = smul.addr %s358, 512
        %s360 = scalar_lea.vmem [#allocation11], %s359
        // Predicated region
        $region61: #{tpu_custom_call.1} parent=43 // pred_check
          %p361 = pneg %p175
        $region62: #{tpu_custom_call.1} parent=43 // pred_check_branch
          %363 = sbr.rel (%p361) target = $region64
        $region63: #{tpu_custom_call.1} parent=43 // pred_region
          %365 = dma.done %s357, 8192
        $region64: #{tpu_custom_call.1} parent=43 // pred_fallthru
          _
        %p366 = pneg %p53
        %p367 = pneg %p50
        %p368 = pneg %p74
        %p369 = pneg %p71
        %p370 = pneg %p95
        %p371 = pneg %p92
        %s372 = sand.u32 %s20, 1
        %s373 = scalar_lea.sflag [#allocation5], %s372
        %s374 = sand.u32 %s108, 1
        %s375 = smul.addr %s374, 512
        %s376 = scalar_lea.vmem [#allocation9], %s375
        %p377 = pneg %p121
        %p378 = pneg %p118
        %s379 = sand.u32 %s20, 1
        %s380 = scalar_lea.sflag [#allocation5], %s379
        %s381 = sand.u32 %s136, 1
        %s382 = smul.addr %s381, 512
        %s383 = scalar_lea.vmem [#allocation10], %s382
        %p384 = pneg %p149
        %p385 = pneg %p146
        %s386 = sand.u32 %s20, 1
        %s387 = scalar_lea.sflag [#allocation5], %s386
        %s388 = sand.u32 %s162, 1
        %s389 = smul.addr %s388, 512
        %s390 = scalar_lea.vmem [#allocation11], %s389
        %p391 = pneg %p175
        %p392 = pneg %p172
        %p393 = pneg %p201
        %p394 = pneg %p198
        %s395 = smul.u32 64, %s24
        %s396 = smul.u32 4, %s25
        %s397 = sadd.s32 %s25, 2
        %s398 = smul.u32 4, %s397
        %s399 = smul.u32 64, %s25
        %s400 = smul.u32 64, %s24
        %p401 = scmp.eq.s32.totalorder %s25, 0
        // Predicated region
        $region65: #{tpu_custom_call.1} parent=43 // pred_check
          %p402 = pneg %p401
        $region66: #{tpu_custom_call.1} parent=43 // pred_check_branch
          %404 = sbr.rel (%p402) target = $region68
        $region67: #{tpu_custom_call.1} parent=43 // pred_region
          %v405 = vld [vmem:[#allocation4] sm:$0xff]
          %v406 = vld [vmem:[#allocation4 + $0x8] sm:$0xff]
          %v407 = vld [vmem:[#allocation4 + $0x10] sm:$0xff]
          %v408 = vld [vmem:[#allocation4 + $0x18] sm:$0xff]
          %v409 = vld [vmem:[#allocation4 + $0x20] sm:$0xff]
          %v410 = vld [vmem:[#allocation4 + $0x28] sm:$0xff]
          %v411 = vld [vmem:[#allocation4 + $0x30] sm:$0xff]
          %v412 = vld [vmem:[#allocation4 + $0x38] sm:$0xff]
          %v413 = vld [vmem:[#allocation4 + $0x40] sm:$0xff]
          %v414 = vld [vmem:[#allocation4 + $0x48] sm:$0xff]
          %v415 = vld [vmem:[#allocation4 + $0x50] sm:$0xff]
          %v416 = vld [vmem:[#allocation4 + $0x58] sm:$0xff]
          %v417 = vld [vmem:[#allocation4 + $0x60] sm:$0xff]
          %v418 = vld [vmem:[#allocation4 + $0x68] sm:$0xff]
          %v419 = vld [vmem:[#allocation4 + $0x70] sm:$0xff]
          %v420 = vld [vmem:[#allocation4 + $0x78] sm:$0xff]
          %v421 = vld [vmem:[#allocation4 + $0x80] sm:$0xff]
          %v422 = vld [vmem:[#allocation4 + $0x88] sm:$0xff]
          %v423 = vld [vmem:[#allocation4 + $0x90] sm:$0xff]
          %v424 = vld [vmem:[#allocation4 + $0x98] sm:$0xff]
          %v425 = vld [vmem:[#allocation4 + $0xa0] sm:$0xff]
          %v426 = vld [vmem:[#allocation4 + $0xa8] sm:$0xff]
          %v427 = vld [vmem:[#allocation4 + $0xb0] sm:$0xff]
          %v428 = vld [vmem:[#allocation4 + $0xb8] sm:$0xff]
          %v429 = vld [vmem:[#allocation4 + $0xc0] sm:$0xff]
          %v430 = vld [vmem:[#allocation4 + $0xc8] sm:$0xff]
          %v431 = vld [vmem:[#allocation4 + $0xd0] sm:$0xff]
          %v432 = vld [vmem:[#allocation4 + $0xd8] sm:$0xff]
          %v433 = vld [vmem:[#allocation4 + $0xe0] sm:$0xff]
          %v434 = vld [vmem:[#allocation4 + $0xe8] sm:$0xff]
          %v435 = vld [vmem:[#allocation4 + $0xf0] sm:$0xff]
          %v436 = vld [vmem:[#allocation4 + $0xf8] sm:$0xff]
          %v437 = vld [vmem:[#allocation4 + $0x100] sm:$0xff]
          %v438 = vld [vmem:[#allocation4 + $0x108] sm:$0xff]
          %v439 = vld [vmem:[#allocation4 + $0x110] sm:$0xff]
          %v440 = vld [vmem:[#allocation4 + $0x118] sm:$0xff]
          %v441 = vld [vmem:[#allocation4 + $0x120] sm:$0xff]
          %v442 = vld [vmem:[#allocation4 + $0x128] sm:$0xff]
          %v443 = vld [vmem:[#allocation4 + $0x130] sm:$0xff]
          %v444 = vld [vmem:[#allocation4 + $0x138] sm:$0xff]
          %v445 = vld [vmem:[#allocation4 + $0x140] sm:$0xff]
          %v446 = vld [vmem:[#allocation4 + $0x148] sm:$0xff]
          %v447 = vld [vmem:[#allocation4 + $0x150] sm:$0xff]
          %v448 = vld [vmem:[#allocation4 + $0x158] sm:$0xff]
          %v449 = vld [vmem:[#allocation4 + $0x160] sm:$0xff]
          %v450 = vld [vmem:[#allocation4 + $0x168] sm:$0xff]
          %v451 = vld [vmem:[#allocation4 + $0x170] sm:$0xff]
          %v452 = vld [vmem:[#allocation4 + $0x178] sm:$0xff]
          %v453 = vld [vmem:[#allocation4 + $0x180] sm:$0xff]
          %v454 = vld [vmem:[#allocation4 + $0x188] sm:$0xff]
          %v455 = vld [vmem:[#allocation4 + $0x190] sm:$0xff]
          %v456 = vld [vmem:[#allocation4 + $0x198] sm:$0xff]
          %v457 = vld [vmem:[#allocation4 + $0x1a0] sm:$0xff]
          %v458 = vld [vmem:[#allocation4 + $0x1a8] sm:$0xff]
          %v459 = vld [vmem:[#allocation4 + $0x1b0] sm:$0xff]
          %v460 = vld [vmem:[#allocation4 + $0x1b8] sm:$0xff]
          %v461 = vld [vmem:[#allocation4 + $0x1c0] sm:$0xff]
          %v462 = vld [vmem:[#allocation4 + $0x1c8] sm:$0xff]
          %v463 = vld [vmem:[#allocation4 + $0x1d0] sm:$0xff]
          %v464 = vld [vmem:[#allocation4 + $0x1d8] sm:$0xff]
          %v465 = vld [vmem:[#allocation4 + $0x1e0] sm:$0xff]
          %v466 = vld [vmem:[#allocation4 + $0x1e8] sm:$0xff]
          %v467 = vld [vmem:[#allocation4 + $0x1f0] sm:$0xff]
          %v468 = vld [vmem:[#allocation4 + $0x1f8] sm:$0xff]
          %469 = vadd.xlane.f32.xlu0 %v405
          %v470 = vpop.xlane.xlu0 %469
          %471 = vadd.xlane.f32.xlu0 %v406
          %v472 = vpop.xlane.xlu0 %471
          %473 = vadd.xlane.f32.xlu0 %v407
          %v474 = vpop.xlane.xlu0 %473
          %475 = vadd.xlane.f32.xlu0 %v408
          %v476 = vpop.xlane.xlu0 %475
          %477 = vadd.xlane.f32.xlu0 %v409
          %v478 = vpop.xlane.xlu0 %477
          %479 = vadd.xlane.f32.xlu0 %v410
          %v480 = vpop.xlane.xlu0 %479
          %481 = vadd.xlane.f32.xlu0 %v411
          %v482 = vpop.xlane.xlu0 %481
          %483 = vadd.xlane.f32.xlu0 %v412
          %v484 = vpop.xlane.xlu0 %483
          %485 = vadd.xlane.f32.xlu0 %v413
          %v486 = vpop.xlane.xlu0 %485
          %487 = vadd.xlane.f32.xlu0 %v414
          %v488 = vpop.xlane.xlu0 %487
          %489 = vadd.xlane.f32.xlu0 %v415
          %v490 = vpop.xlane.xlu0 %489
          %491 = vadd.xlane.f32.xlu0 %v416
          %v492 = vpop.xlane.xlu0 %491
          %493 = vadd.xlane.f32.xlu0 %v417
          %v494 = vpop.xlane.xlu0 %493
          %495 = vadd.xlane.f32.xlu0 %v418
          %v496 = vpop.xlane.xlu0 %495
          %497 = vadd.xlane.f32.xlu0 %v419
          %v498 = vpop.xlane.xlu0 %497
          %499 = vadd.xlane.f32.xlu0 %v420
          %v500 = vpop.xlane.xlu0 %499
          %501 = vadd.xlane.f32.xlu0 %v421
          %v502 = vpop.xlane.xlu0 %501
          %503 = vadd.xlane.f32.xlu0 %v422
          %v504 = vpop.xlane.xlu0 %503
          %505 = vadd.xlane.f32.xlu0 %v423
          %v506 = vpop.xlane.xlu0 %505
          %507 = vadd.xlane.f32.xlu0 %v424
          %v508 = vpop.xlane.xlu0 %507
          %509 = vadd.xlane.f32.xlu0 %v425
          %v510 = vpop.xlane.xlu0 %509
          %511 = vadd.xlane.f32.xlu0 %v426
          %v512 = vpop.xlane.xlu0 %511
          %513 = vadd.xlane.f32.xlu0 %v427
          %v514 = vpop.xlane.xlu0 %513
          %515 = vadd.xlane.f32.xlu0 %v428
          %v516 = vpop.xlane.xlu0 %515
          %517 = vadd.xlane.f32.xlu0 %v429
          %v518 = vpop.xlane.xlu0 %517
          %519 = vadd.xlane.f32.xlu0 %v430
          %v520 = vpop.xlane.xlu0 %519
          %521 = vadd.xlane.f32.xlu0 %v431
          %v522 = vpop.xlane.xlu0 %521
          %523 = vadd.xlane.f32.xlu0 %v432
          %v524 = vpop.xlane.xlu0 %523
          %525 = vadd.xlane.f32.xlu0 %v433
          %v526 = vpop.xlane.xlu0 %525
          %527 = vadd.xlane.f32.xlu0 %v434
          %v528 = vpop.xlane.xlu0 %527
          %529 = vadd.xlane.f32.xlu0 %v435
          %v530 = vpop.xlane.xlu0 %529
          %531 = vadd.xlane.f32.xlu0 %v436
          %v532 = vpop.xlane.xlu0 %531
          %533 = vadd.xlane.f32.xlu0 %v437
          %v534 = vpop.xlane.xlu0 %533
          %535 = vadd.xlane.f32.xlu0 %v438
          %v536 = vpop.xlane.xlu0 %535
          %537 = vadd.xlane.f32.xlu0 %v439
          %v538 = vpop.xlane.xlu0 %537
          %539 = vadd.xlane.f32.xlu0 %v440
          %v540 = vpop.xlane.xlu0 %539
          %541 = vadd.xlane.f32.xlu0 %v441
          %v542 = vpop.xlane.xlu0 %541
          %543 = vadd.xlane.f32.xlu0 %v442
          %v544 = vpop.xlane.xlu0 %543
          %545 = vadd.xlane.f32.xlu0 %v443
          %v546 = vpop.xlane.xlu0 %545
          %547 = vadd.xlane.f32.xlu0 %v444
          %v548 = vpop.xlane.xlu0 %547
          %549 = vadd.xlane.f32.xlu0 %v445
          %v550 = vpop.xlane.xlu0 %549
          %551 = vadd.xlane.f32.xlu0 %v446
          %v552 = vpop.xlane.xlu0 %551
          %553 = vadd.xlane.f32.xlu0 %v447
          %v554 = vpop.xlane.xlu0 %553
          %555 = vadd.xlane.f32.xlu0 %v448
          %v556 = vpop.xlane.xlu0 %555
          %557 = vadd.xlane.f32.xlu0 %v449
          %v558 = vpop.xlane.xlu0 %557
          %559 = vadd.xlane.f32.xlu0 %v450
          %v560 = vpop.xlane.xlu0 %559
          %561 = vadd.xlane.f32.xlu0 %v451
          %v562 = vpop.xlane.xlu0 %561
          %563 = vadd.xlane.f32.xlu0 %v452
          %v564 = vpop.xlane.xlu0 %563
          %565 = vadd.xlane.f32.xlu0 %v453
          %v566 = vpop.xlane.xlu0 %565
          %567 = vadd.xlane.f32.xlu0 %v454
          %v568 = vpop.xlane.xlu0 %567
          %569 = vadd.xlane.f32.xlu0 %v455
          %v570 = vpop.xlane.xlu0 %569
          %571 = vadd.xlane.f32.xlu0 %v456
          %v572 = vpop.xlane.xlu0 %571
          %573 = vadd.xlane.f32.xlu0 %v457
          %v574 = vpop.xlane.xlu0 %573
          %575 = vadd.xlane.f32.xlu0 %v458
          %v576 = vpop.xlane.xlu0 %575
          %577 = vadd.xlane.f32.xlu0 %v459
          %v578 = vpop.xlane.xlu0 %577
          %579 = vadd.xlane.f32.xlu0 %v460
          %v580 = vpop.xlane.xlu0 %579
          %581 = vadd.xlane.f32.xlu0 %v461
          %v582 = vpop.xlane.xlu0 %581
          %583 = vadd.xlane.f32.xlu0 %v462
          %v584 = vpop.xlane.xlu0 %583
          %585 = vadd.xlane.f32.xlu0 %v463
          %v586 = vpop.xlane.xlu0 %585
          %587 = vadd.xlane.f32.xlu0 %v464
          %v588 = vpop.xlane.xlu0 %587
          %589 = vadd.xlane.f32.xlu0 %v465
          %v590 = vpop.xlane.xlu0 %589
          %591 = vadd.xlane.f32.xlu0 %v466
          %v592 = vpop.xlane.xlu0 %591
          %593 = vadd.xlane.f32.xlu0 %v467
          %v594 = vpop.xlane.xlu0 %593
          %595 = vadd.xlane.f32.xlu0 %v468
          %v596 = vpop.xlane.xlu0 %595
          %v597 = vrcp.pop 128.0
          %v598 = vmul.f32 128.0, %v597
          %v599 = vsub.f32 1.0, %v598
          %v600 = vmul.f32 %v597, %v599
          %v601 = vadd.f32 %v597, %v600
          %vm602 = vweird.f32 %v597
          %v603 = vsel %vm602, %v597, %v601
          %v604 = vmul.f32 %v470, %v603
          %v605 = vmul.f32 %v472, %v603
          %v606 = vmul.f32 %v474, %v603
          %v607 = vmul.f32 %v476, %v603
          %v608 = vmul.f32 %v478, %v603
          %v609 = vmul.f32 %v480, %v603
          %v610 = vmul.f32 %v482, %v603
          %v611 = vmul.f32 %v484, %v603
          %v612 = vmul.f32 %v486, %v603
          %v613 = vmul.f32 %v488, %v603
          %v614 = vmul.f32 %v490, %v603
          %v615 = vmul.f32 %v492, %v603
          %v616 = vmul.f32 %v494, %v603
          %v617 = vmul.f32 %v496, %v603
          %v618 = vmul.f32 %v498, %v603
          %v619 = vmul.f32 %v500, %v603
          %v620 = vmul.f32 %v502, %v603
          %v621 = vmul.f32 %v504, %v603
          %v622 = vmul.f32 %v506, %v603
          %v623 = vmul.f32 %v508, %v603
          %v624 = vmul.f32 %v510, %v603
          %v625 = vmul.f32 %v512, %v603
          %v626 = vmul.f32 %v514, %v603
          %v627 = vmul.f32 %v516, %v603
          %v628 = vmul.f32 %v518, %v603
          %v629 = vmul.f32 %v520, %v603
          %v630 = vmul.f32 %v522, %v603
          %v631 = vmul.f32 %v524, %v603
          %v632 = vmul.f32 %v526, %v603
          %v633 = vmul.f32 %v528, %v603
          %v634 = vmul.f32 %v530, %v603
          %v635 = vmul.f32 %v532, %v603
          %v636 = vmul.f32 %v534, %v603
          %v637 = vmul.f32 %v536, %v603
          %v638 = vmul.f32 %v538, %v603
          %v639 = vmul.f32 %v540, %v603
          %v640 = vmul.f32 %v542, %v603
          %v641 = vmul.f32 %v544, %v603
          %v642 = vmul.f32 %v546, %v603
          %v643 = vmul.f32 %v548, %v603
          %v644 = vmul.f32 %v550, %v603
          %v645 = vmul.f32 %v552, %v603
          %v646 = vmul.f32 %v554, %v603
          %v647 = vmul.f32 %v556, %v603
          %v648 = vmul.f32 %v558, %v603
          %v649 = vmul.f32 %v560, %v603
          %v650 = vmul.f32 %v562, %v603
          %v651 = vmul.f32 %v564, %v603
          %v652 = vmul.f32 %v566, %v603
          %v653 = vmul.f32 %v568, %v603
          %v654 = vmul.f32 %v570, %v603
          %v655 = vmul.f32 %v572, %v603
          %v656 = vmul.f32 %v574, %v603
          %v657 = vmul.f32 %v576, %v603
          %v658 = vmul.f32 %v578, %v603
          %v659 = vmul.f32 %v580, %v603
          %v660 = vmul.f32 %v582, %v603
          %v661 = vmul.f32 %v584, %v603
          %v662 = vmul.f32 %v586, %v603
          %v663 = vmul.f32 %v588, %v603
          %v664 = vmul.f32 %v590, %v603
          %v665 = vmul.f32 %v592, %v603
          %v666 = vmul.f32 %v594, %v603
          %v667 = vmul.f32 %v596, %v603
          %v668 = vsub.f32 %v405, %v604
          %v669 = vsub.f32 %v406, %v605
          %v670 = vsub.f32 %v407, %v606
          %v671 = vsub.f32 %v408, %v607
          %v672 = vsub.f32 %v409, %v608
          %v673 = vsub.f32 %v410, %v609
          %v674 = vsub.f32 %v411, %v610
          %v675 = vsub.f32 %v412, %v611
          %v676 = vsub.f32 %v413, %v612
          %v677 = vsub.f32 %v414, %v613
          %v678 = vsub.f32 %v415, %v614
          %v679 = vsub.f32 %v416, %v615
          %v680 = vsub.f32 %v417, %v616
          %v681 = vsub.f32 %v418, %v617
          %v682 = vsub.f32 %v419, %v618
          %v683 = vsub.f32 %v420, %v619
          %v684 = vsub.f32 %v421, %v620
          %v685 = vsub.f32 %v422, %v621
          %v686 = vsub.f32 %v423, %v622
          %v687 = vsub.f32 %v424, %v623
          %v688 = vsub.f32 %v425, %v624
          %v689 = vsub.f32 %v426, %v625
          %v690 = vsub.f32 %v427, %v626
          %v691 = vsub.f32 %v428, %v627
          %v692 = vsub.f32 %v429, %v628
          %v693 = vsub.f32 %v430, %v629
          %v694 = vsub.f32 %v431, %v630
          %v695 = vsub.f32 %v432, %v631
          %v696 = vsub.f32 %v433, %v632
          %v697 = vsub.f32 %v434, %v633
          %v698 = vsub.f32 %v435, %v634
          %v699 = vsub.f32 %v436, %v635
          %v700 = vsub.f32 %v437, %v636
          %v701 = vsub.f32 %v438, %v637
          %v702 = vsub.f32 %v439, %v638
          %v703 = vsub.f32 %v440, %v639
          %v704 = vsub.f32 %v441, %v640
          %v705 = vsub.f32 %v442, %v641
          %v706 = vsub.f32 %v443, %v642
          %v707 = vsub.f32 %v444, %v643
          %v708 = vsub.f32 %v445, %v644
          %v709 = vsub.f32 %v446, %v645
          %v710 = vsub.f32 %v447, %v646
          %v711 = vsub.f32 %v448, %v647
          %v712 = vsub.f32 %v449, %v648
          %v713 = vsub.f32 %v450, %v649
          %v714 = vsub.f32 %v451, %v650
          %v715 = vsub.f32 %v452, %v651
          %v716 = vsub.f32 %v453, %v652
          %v717 = vsub.f32 %v454, %v653
          %v718 = vsub.f32 %v455, %v654
          %v719 = vsub.f32 %v456, %v655
          %v720 = vsub.f32 %v457, %v656
          %v721 = vsub.f32 %v458, %v657
          %v722 = vsub.f32 %v459, %v658
          %v723 = vsub.f32 %v460, %v659
          %v724 = vsub.f32 %v461, %v660
          %v725 = vsub.f32 %v462, %v661
          %v726 = vsub.f32 %v463, %v662
          %v727 = vsub.f32 %v464, %v663
          %v728 = vsub.f32 %v465, %v664
          %v729 = vsub.f32 %v466, %v665
          %v730 = vsub.f32 %v467, %v666
          %v731 = vsub.f32 %v468, %v667
          %v732 = vmul.f32 %v668, %v668
          %v733 = vmul.f32 %v669, %v669
          %v734 = vmul.f32 %v670, %v670
          %v735 = vmul.f32 %v671, %v671
          %v736 = vmul.f32 %v672, %v672
          %v737 = vmul.f32 %v673, %v673
          %v738 = vmul.f32 %v674, %v674
          %v739 = vmul.f32 %v675, %v675
          %v740 = vmul.f32 %v676, %v676
          %v741 = vmul.f32 %v677, %v677
          %v742 = vmul.f32 %v678, %v678
          %v743 = vmul.f32 %v679, %v679
          %v744 = vmul.f32 %v680, %v680
          %v745 = vmul.f32 %v681, %v681
          %v746 = vmul.f32 %v682, %v682
          %v747 = vmul.f32 %v683, %v683
          %v748 = vmul.f32 %v684, %v684
          %v749 = vmul.f32 %v685, %v685
          %v750 = vmul.f32 %v686, %v686
          %v751 = vmul.f32 %v687, %v687
          %v752 = vmul.f32 %v688, %v688
          %v753 = vmul.f32 %v689, %v689
          %v754 = vmul.f32 %v690, %v690
          %v755 = vmul.f32 %v691, %v691
          %v756 = vmul.f32 %v692, %v692
          %v757 = vmul.f32 %v693, %v693
          %v758 = vmul.f32 %v694, %v694
          %v759 = vmul.f32 %v695, %v695
          %v760 = vmul.f32 %v696, %v696
          %v761 = vmul.f32 %v697, %v697
          %v762 = vmul.f32 %v698, %v698
          %v763 = vmul.f32 %v699, %v699
          %v764 = vmul.f32 %v700, %v700
          %v765 = vmul.f32 %v701, %v701
          %v766 = vmul.f32 %v702, %v702
          %v767 = vmul.f32 %v703, %v703
          %v768 = vmul.f32 %v704, %v704
          %v769 = vmul.f32 %v705, %v705
          %v770 = vmul.f32 %v706, %v706
          %v771 = vmul.f32 %v707, %v707
          %v772 = vmul.f32 %v708, %v708
          %v773 = vmul.f32 %v709, %v709
          %v774 = vmul.f32 %v710, %v710
          %v775 = vmul.f32 %v711, %v711
          %v776 = vmul.f32 %v712, %v712
          %v777 = vmul.f32 %v713, %v713
          %v778 = vmul.f32 %v714, %v714
          %v779 = vmul.f32 %v715, %v715
          %v780 = vmul.f32 %v716, %v716
          %v781 = vmul.f32 %v717, %v717
          %v782 = vmul.f32 %v718, %v718
          %v783 = vmul.f32 %v719, %v719
          %v784 = vmul.f32 %v720, %v720
          %v785 = vmul.f32 %v721, %v721
          %v786 = vmul.f32 %v722, %v722
          %v787 = vmul.f32 %v723, %v723
          %v788 = vmul.f32 %v724, %v724
          %v789 = vmul.f32 %v725, %v725
          %v790 = vmul.f32 %v726, %v726
          %v791 = vmul.f32 %v727, %v727
          %v792 = vmul.f32 %v728, %v728
          %v793 = vmul.f32 %v729, %v729
          %v794 = vmul.f32 %v730, %v730
          %v795 = vmul.f32 %v731, %v731
          %796 = vadd.xlane.f32.xlu0 %v732
          %v797 = vpop.xlane.xlu0 %796
          %798 = vadd.xlane.f32.xlu0 %v733
          %v799 = vpop.xlane.xlu0 %798
          %800 = vadd.xlane.f32.xlu0 %v734
          %v801 = vpop.xlane.xlu0 %800
          %802 = vadd.xlane.f32.xlu0 %v735
          %v803 = vpop.xlane.xlu0 %802
          %804 = vadd.xlane.f32.xlu0 %v736
          %v805 = vpop.xlane.xlu0 %804
          %806 = vadd.xlane.f32.xlu0 %v737
          %v807 = vpop.xlane.xlu0 %806
          %808 = vadd.xlane.f32.xlu0 %v738
          %v809 = vpop.xlane.xlu0 %808
          %810 = vadd.xlane.f32.xlu0 %v739
          %v811 = vpop.xlane.xlu0 %810
          %812 = vadd.xlane.f32.xlu0 %v740
          %v813 = vpop.xlane.xlu0 %812
          %814 = vadd.xlane.f32.xlu0 %v741
          %v815 = vpop.xlane.xlu0 %814
          %816 = vadd.xlane.f32.xlu0 %v742
          %v817 = vpop.xlane.xlu0 %816
          %818 = vadd.xlane.f32.xlu0 %v743
          %v819 = vpop.xlane.xlu0 %818
          %820 = vadd.xlane.f32.xlu0 %v744
          %v821 = vpop.xlane.xlu0 %820
          %822 = vadd.xlane.f32.xlu0 %v745
          %v823 = vpop.xlane.xlu0 %822
          %824 = vadd.xlane.f32.xlu0 %v746
          %v825 = vpop.xlane.xlu0 %824
          %826 = vadd.xlane.f32.xlu0 %v747
          %v827 = vpop.xlane.xlu0 %826
          %828 = vadd.xlane.f32.xlu0 %v748
          %v829 = vpop.xlane.xlu0 %828
          %830 = vadd.xlane.f32.xlu0 %v749
          %v831 = vpop.xlane.xlu0 %830
          %832 = vadd.xlane.f32.xlu0 %v750
          %v833 = vpop.xlane.xlu0 %832
          %834 = vadd.xlane.f32.xlu0 %v751
          %v835 = vpop.xlane.xlu0 %834
          %836 = vadd.xlane.f32.xlu0 %v752
          %v837 = vpop.xlane.xlu0 %836
          %838 = vadd.xlane.f32.xlu0 %v753
          %v839 = vpop.xlane.xlu0 %838
          %840 = vadd.xlane.f32.xlu0 %v754
          %v841 = vpop.xlane.xlu0 %840
          %842 = vadd.xlane.f32.xlu0 %v755
          %v843 = vpop.xlane.xlu0 %842
          %844 = vadd.xlane.f32.xlu0 %v756
          %v845 = vpop.xlane.xlu0 %844
          %846 = vadd.xlane.f32.xlu0 %v757
          %v847 = vpop.xlane.xlu0 %846
          %848 = vadd.xlane.f32.xlu0 %v758
          %v849 = vpop.xlane.xlu0 %848
          %850 = vadd.xlane.f32.xlu0 %v759
          %v851 = vpop.xlane.xlu0 %850
          %852 = vadd.xlane.f32.xlu0 %v760
          %v853 = vpop.xlane.xlu0 %852
          %854 = vadd.xlane.f32.xlu0 %v761
          %v855 = vpop.xlane.xlu0 %854
          %856 = vadd.xlane.f32.xlu0 %v762
          %v857 = vpop.xlane.xlu0 %856
          %858 = vadd.xlane.f32.xlu0 %v763
          %v859 = vpop.xlane.xlu0 %858
          %860 = vadd.xlane.f32.xlu0 %v764
          %v861 = vpop.xlane.xlu0 %860
          %862 = vadd.xlane.f32.xlu0 %v765
          %v863 = vpop.xlane.xlu0 %862
          %864 = vadd.xlane.f32.xlu0 %v766
          %v865 = vpop.xlane.xlu0 %864
          %866 = vadd.xlane.f32.xlu0 %v767
          %v867 = vpop.xlane.xlu0 %866
          %868 = vadd.xlane.f32.xlu0 %v768
          %v869 = vpop.xlane.xlu0 %868
          %870 = vadd.xlane.f32.xlu0 %v769
          %v871 = vpop.xlane.xlu0 %870
          %872 = vadd.xlane.f32.xlu0 %v770
          %v873 = vpop.xlane.xlu0 %872
          %874 = vadd.xlane.f32.xlu0 %v771
          %v875 = vpop.xlane.xlu0 %874
          %876 = vadd.xlane.f32.xlu0 %v772
          %v877 = vpop.xlane.xlu0 %876
          %878 = vadd.xlane.f32.xlu0 %v773
          %v879 = vpop.xlane.xlu0 %878
          %880 = vadd.xlane.f32.xlu0 %v774
          %v881 = vpop.xlane.xlu0 %880
          %882 = vadd.xlane.f32.xlu0 %v775
          %v883 = vpop.xlane.xlu0 %882
          %884 = vadd.xlane.f32.xlu0 %v776
          %v885 = vpop.xlane.xlu0 %884
          %886 = vadd.xlane.f32.xlu0 %v777
          %v887 = vpop.xlane.xlu0 %886
          %888 = vadd.xlane.f32.xlu0 %v778
          %v889 = vpop.xlane.xlu0 %888
          %890 = vadd.xlane.f32.xlu0 %v779
          %v891 = vpop.xlane.xlu0 %890
          %892 = vadd.xlane.f32.xlu0 %v780
          %v893 = vpop.xlane.xlu0 %892
          %894 = vadd.xlane.f32.xlu0 %v781
          %v895 = vpop.xlane.xlu0 %894
          %896 = vadd.xlane.f32.xlu0 %v782
          %v897 = vpop.xlane.xlu0 %896
          %898 = vadd.xlane.f32.xlu0 %v783
          %v899 = vpop.xlane.xlu0 %898
          %900 = vadd.xlane.f32.xlu0 %v784
          %v901 = vpop.xlane.xlu0 %900
          %902 = vadd.xlane.f32.xlu0 %v785
          %v903 = vpop.xlane.xlu0 %902
          %904 = vadd.xlane.f32.xlu0 %v786
          %v905 = vpop.xlane.xlu0 %904
          %906 = vadd.xlane.f32.xlu0 %v787
          %v907 = vpop.xlane.xlu0 %906
          %908 = vadd.xlane.f32.xlu0 %v788
          %v909 = vpop.xlane.xlu0 %908
          %910 = vadd.xlane.f32.xlu0 %v789
          %v911 = vpop.xlane.xlu0 %910
          %912 = vadd.xlane.f32.xlu0 %v790
          %v913 = vpop.xlane.xlu0 %912
          %914 = vadd.xlane.f32.xlu0 %v791
          %v915 = vpop.xlane.xlu0 %914
          %916 = vadd.xlane.f32.xlu0 %v792
          %v917 = vpop.xlane.xlu0 %916
          %918 = vadd.xlane.f32.xlu0 %v793
          %v919 = vpop.xlane.xlu0 %918
          %920 = vadd.xlane.f32.xlu0 %v794
          %v921 = vpop.xlane.xlu0 %920
          %922 = vadd.xlane.f32.xlu0 %v795
          %v923 = vpop.xlane.xlu0 %922
          %v924 = vmul.f32 %v797, %v603
          %v925 = vmul.f32 %v799, %v603
          %v926 = vmul.f32 %v801, %v603
          %v927 = vmul.f32 %v803, %v603
          %v928 = vmul.f32 %v805, %v603
          %v929 = vmul.f32 %v807, %v603
          %v930 = vmul.f32 %v809, %v603
          %v931 = vmul.f32 %v811, %v603
          %v932 = vmul.f32 %v813, %v603
          %v933 = vmul.f32 %v815, %v603
          %v934 = vmul.f32 %v817, %v603
          %v935 = vmul.f32 %v819, %v603
          %v936 = vmul.f32 %v821, %v603
          %v937 = vmul.f32 %v823, %v603
          %v938 = vmul.f32 %v825, %v603
          %v939 = vmul.f32 %v827, %v603
          %v940 = vmul.f32 %v829, %v603
          %v941 = vmul.f32 %v831, %v603
          %v942 = vmul.f32 %v833, %v603
          %v943 = vmul.f32 %v835, %v603
          %v944 = vmul.f32 %v837, %v603
          %v945 = vmul.f32 %v839, %v603
          %v946 = vmul.f32 %v841, %v603
          %v947 = vmul.f32 %v843, %v603
          %v948 = vmul.f32 %v845, %v603
          %v949 = vmul.f32 %v847, %v603
          %v950 = vmul.f32 %v849, %v603
          %v951 = vmul.f32 %v851, %v603
          %v952 = vmul.f32 %v853, %v603
          %v953 = vmul.f32 %v855, %v603
          %v954 = vmul.f32 %v857, %v603
          %v955 = vmul.f32 %v859, %v603
          %v956 = vmul.f32 %v861, %v603
          %v957 = vmul.f32 %v863, %v603
          %v958 = vmul.f32 %v865, %v603
          %v959 = vmul.f32 %v867, %v603
          %v960 = vmul.f32 %v869, %v603
          %v961 = vmul.f32 %v871, %v603
          %v962 = vmul.f32 %v873, %v603
          %v963 = vmul.f32 %v875, %v603
          %v964 = vmul.f32 %v877, %v603
          %v965 = vmul.f32 %v879, %v603
          %v966 = vmul.f32 %v881, %v603
          %v967 = vmul.f32 %v883, %v603
          %v968 = vmul.f32 %v885, %v603
          %v969 = vmul.f32 %v887, %v603
          %v970 = vmul.f32 %v889, %v603
          %v971 = vmul.f32 %v891, %v603
          %v972 = vmul.f32 %v893, %v603
          %v973 = vmul.f32 %v895, %v603
          %v974 = vmul.f32 %v897, %v603
          %v975 = vmul.f32 %v899, %v603
          %v976 = vmul.f32 %v901, %v603
          %v977 = vmul.f32 %v903, %v603
          %v978 = vmul.f32 %v905, %v603
          %v979 = vmul.f32 %v907, %v603
          %v980 = vmul.f32 %v909, %v603
          %v981 = vmul.f32 %v911, %v603
          %v982 = vmul.f32 %v913, %v603
          %v983 = vmul.f32 %v915, %v603
          %v984 = vmul.f32 %v917, %v603
          %v985 = vmul.f32 %v919, %v603
          %v986 = vmul.f32 %v921, %v603
          %v987 = vmul.f32 %v923, %v603
          %v988 = vld [vmem:[#allocation7] sm:$0x1]
          %v989 = vld [vmem:[%s2] sm:$0x1]
          %v990 = vadd.f32 %v924, 1e-05
          %v991 = vadd.f32 %v925, 1e-05
          %v992 = vadd.f32 %v926, 1e-05
          %v993 = vadd.f32 %v927, 1e-05
          %v994 = vadd.f32 %v928, 1e-05
          %v995 = vadd.f32 %v929, 1e-05
          %v996 = vadd.f32 %v930, 1e-05
          %v997 = vadd.f32 %v931, 1e-05
          %v998 = vadd.f32 %v932, 1e-05
          %v999 = vadd.f32 %v933, 1e-05
          %v1000 = vadd.f32 %v934, 1e-05
          %v1001 = vadd.f32 %v935, 1e-05
          %v1002 = vadd.f32 %v936, 1e-05
          %v1003 = vadd.f32 %v937, 1e-05
          %v1004 = vadd.f32 %v938, 1e-05
          %v1005 = vadd.f32 %v939, 1e-05
          %v1006 = vadd.f32 %v940, 1e-05
          %v1007 = vadd.f32 %v941, 1e-05
          %v1008 = vadd.f32 %v942, 1e-05
          %v1009 = vadd.f32 %v943, 1e-05
          %v1010 = vadd.f32 %v944, 1e-05
          %v1011 = vadd.f32 %v945, 1e-05
          %v1012 = vadd.f32 %v946, 1e-05
          %v1013 = vadd.f32 %v947, 1e-05
          %v1014 = vadd.f32 %v948, 1e-05
          %v1015 = vadd.f32 %v949, 1e-05
          %v1016 = vadd.f32 %v950, 1e-05
          %v1017 = vadd.f32 %v951, 1e-05
          %v1018 = vadd.f32 %v952, 1e-05
          %v1019 = vadd.f32 %v953, 1e-05
          %v1020 = vadd.f32 %v954, 1e-05
          %v1021 = vadd.f32 %v955, 1e-05
          %v1022 = vadd.f32 %v956, 1e-05
          %v1023 = vadd.f32 %v957, 1e-05
          %v1024 = vadd.f32 %v958, 1e-05
          %v1025 = vadd.f32 %v959, 1e-05
          %v1026 = vadd.f32 %v960, 1e-05
          %v1027 = vadd.f32 %v961, 1e-05
          %v1028 = vadd.f32 %v962, 1e-05
          %v1029 = vadd.f32 %v963, 1e-05
          %v1030 = vadd.f32 %v964, 1e-05
          %v1031 = vadd.f32 %v965, 1e-05
          %v1032 = vadd.f32 %v966, 1e-05
          %v1033 = vadd.f32 %v967, 1e-05
          %v1034 = vadd.f32 %v968, 1e-05
          %v1035 = vadd.f32 %v969, 1e-05
          %v1036 = vadd.f32 %v970, 1e-05
          %v1037 = vadd.f32 %v971, 1e-05
          %v1038 = vadd.f32 %v972, 1e-05
          %v1039 = vadd.f32 %v973, 1e-05
          %v1040 = vadd.f32 %v974, 1e-05
          %v1041 = vadd.f32 %v975, 1e-05
          %v1042 = vadd.f32 %v976, 1e-05
          %v1043 = vadd.f32 %v977, 1e-05
          %v1044 = vadd.f32 %v978, 1e-05
          %v1045 = vadd.f32 %v979, 1e-05
          %v1046 = vadd.f32 %v980, 1e-05
          %v1047 = vadd.f32 %v981, 1e-05
          %v1048 = vadd.f32 %v982, 1e-05
          %v1049 = vadd.f32 %v983, 1e-05
          %v1050 = vadd.f32 %v984, 1e-05
          %v1051 = vadd.f32 %v985, 1e-05
          %v1052 = vadd.f32 %v986, 1e-05
          %v1053 = vadd.f32 %v987, 1e-05
          %v1054 = vrsqrt.pop %v990
          %v1055 = vmul.f32 %v1054, %v990
          %v1056 = vmul.f32 %v1055, %v1054
          %v1057 = vmul.f32 0.5, %v1056
          %v1058 = vsub.f32 1.5, %v1057
          %v1059 = vmul.f32 %v1054, %v1058
          %vm1060 = vweird.f32 %v990
          %vm1061 = vweird.f32 %v1054
          %vm1062 = vmor %vm1060, %vm1061
          %v1063 = vsel %vm1062, %v1054, %v1059
          %v1064 = vrsqrt.pop %v991
          %v1065 = vmul.f32 %v1064, %v991
          %v1066 = vmul.f32 %v1065, %v1064
          %v1067 = vmul.f32 0.5, %v1066
          %v1068 = vsub.f32 1.5, %v1067
          %v1069 = vmul.f32 %v1064, %v1068
          %vm1070 = vweird.f32 %v991
          %vm1071 = vweird.f32 %v1064
          %vm1072 = vmor %vm1070, %vm1071
          %v1073 = vsel %vm1072, %v1064, %v1069
          %v1074 = vrsqrt.pop %v992
          %v1075 = vmul.f32 %v1074, %v992
          %v1076 = vmul.f32 %v1075, %v1074
          %v1077 = vmul.f32 0.5, %v1076
          %v1078 = vsub.f32 1.5, %v1077
          %v1079 = vmul.f32 %v1074, %v1078
          %vm1080 = vweird.f32 %v992
          %vm1081 = vweird.f32 %v1074
          %vm1082 = vmor %vm1080, %vm1081
          %v1083 = vsel %vm1082, %v1074, %v1079
          %v1084 = vrsqrt.pop %v993
          %v1085 = vmul.f32 %v1084, %v993
          %v1086 = vmul.f32 %v1085, %v1084
          %v1087 = vmul.f32 0.5, %v1086
          %v1088 = vsub.f32 1.5, %v1087
          %v1089 = vmul.f32 %v1084, %v1088
          %vm1090 = vweird.f32 %v993
          %vm1091 = vweird.f32 %v1084
          %vm1092 = vmor %vm1090, %vm1091
          %v1093 = vsel %vm1092, %v1084, %v1089
          %v1094 = vrsqrt.pop %v994
          %v1095 = vmul.f32 %v1094, %v994
          %v1096 = vmul.f32 %v1095, %v1094
          %v1097 = vmul.f32 0.5, %v1096
          %v1098 = vsub.f32 1.5, %v1097
          %v1099 = vmul.f32 %v1094, %v1098
          %vm1100 = vweird.f32 %v994
          %vm1101 = vweird.f32 %v1094
          %vm1102 = vmor %vm1100, %vm1101
          %v1103 = vsel %vm1102, %v1094, %v1099
          %v1104 = vrsqrt.pop %v995
          %v1105 = vmul.f32 %v1104, %v995
          %v1106 = vmul.f32 %v1105, %v1104
          %v1107 = vmul.f32 0.5, %v1106
          %v1108 = vsub.f32 1.5, %v1107
          %v1109 = vmul.f32 %v1104, %v1108
          %vm1110 = vweird.f32 %v995
          %vm1111 = vweird.f32 %v1104
          %vm1112 = vmor %vm1110, %vm1111
          %v1113 = vsel %vm1112, %v1104, %v1109
          %v1114 = vrsqrt.pop %v996
          %v1115 = vmul.f32 %v1114, %v996
          %v1116 = vmul.f32 %v1115, %v1114
          %v1117 = vmul.f32 0.5, %v1116
          %v1118 = vsub.f32 1.5, %v1117
          %v1119 = vmul.f32 %v1114, %v1118
          %vm1120 = vweird.f32 %v996
          %vm1121 = vweird.f32 %v1114
          %vm1122 = vmor %vm1120, %vm1121
          %v1123 = vsel %vm1122, %v1114, %v1119
          %v1124 = vrsqrt.pop %v997
          %v1125 = vmul.f32 %v1124, %v997
          %v1126 = vmul.f32 %v1125, %v1124
          %v1127 = vmul.f32 0.5, %v1126
          %v1128 = vsub.f32 1.5, %v1127
          %v1129 = vmul.f32 %v1124, %v1128
          %vm1130 = vweird.f32 %v997
          %vm1131 = vweird.f32 %v1124
          %vm1132 = vmor %vm1130, %vm1131
          %v1133 = vsel %vm1132, %v1124, %v1129
          %v1134 = vrsqrt.pop %v998
          %v1135 = vmul.f32 %v1134, %v998
          %v1136 = vmul.f32 %v1135, %v1134
          %v1137 = vmul.f32 0.5, %v1136
          %v1138 = vsub.f32 1.5, %v1137
          %v1139 = vmul.f32 %v1134, %v1138
          %vm1140 = vweird.f32 %v998
          %vm1141 = vweird.f32 %v1134
          %vm1142 = vmor %vm1140, %vm1141
          %v1143 = vsel %vm1142, %v1134, %v1139
          %v1144 = vrsqrt.pop %v999
          %v1145 = vmul.f32 %v1144, %v999
          %v1146 = vmul.f32 %v1145, %v1144
          %v1147 = vmul.f32 0.5, %v1146
          %v1148 = vsub.f32 1.5, %v1147
          %v1149 = vmul.f32 %v1144, %v1148
          %vm1150 = vweird.f32 %v999
          %vm1151 = vweird.f32 %v1144
          %vm1152 = vmor %vm1150, %vm1151
          %v1153 = vsel %vm1152, %v1144, %v1149
          %v1154 = vrsqrt.pop %v1000
          %v1155 = vmul.f32 %v1154, %v1000
          %v1156 = vmul.f32 %v1155, %v1154
          %v1157 = vmul.f32 0.5, %v1156
          %v1158 = vsub.f32 1.5, %v1157
          %v1159 = vmul.f32 %v1154, %v1158
          %vm1160 = vweird.f32 %v1000
          %vm1161 = vweird.f32 %v1154
          %vm1162 = vmor %vm1160, %vm1161
          %v1163 = vsel %vm1162, %v1154, %v1159
          %v1164 = vrsqrt.pop %v1001
          %v1165 = vmul.f32 %v1164, %v1001
          %v1166 = vmul.f32 %v1165, %v1164
          %v1167 = vmul.f32 0.5, %v1166
          %v1168 = vsub.f32 1.5, %v1167
          %v1169 = vmul.f32 %v1164, %v1168
          %vm1170 = vweird.f32 %v1001
          %vm1171 = vweird.f32 %v1164
          %vm1172 = vmor %vm1170, %vm1171
          %v1173 = vsel %vm1172, %v1164, %v1169
          %v1174 = vrsqrt.pop %v1002
          %v1175 = vmul.f32 %v1174, %v1002
          %v1176 = vmul.f32 %v1175, %v1174
          %v1177 = vmul.f32 0.5, %v1176
          %v1178 = vsub.f32 1.5, %v1177
          %v1179 = vmul.f32 %v1174, %v1178
          %vm1180 = vweird.f32 %v1002
          %vm1181 = vweird.f32 %v1174
          %vm1182 = vmor %vm1180, %vm1181
          %v1183 = vsel %vm1182, %v1174, %v1179
          %v1184 = vrsqrt.pop %v1003
          %v1185 = vmul.f32 %v1184, %v1003
          %v1186 = vmul.f32 %v1185, %v1184
          %v1187 = vmul.f32 0.5, %v1186
          %v1188 = vsub.f32 1.5, %v1187
          %v1189 = vmul.f32 %v1184, %v1188
          %vm1190 = vweird.f32 %v1003
          %vm1191 = vweird.f32 %v1184
          %vm1192 = vmor %vm1190, %vm1191
          %v1193 = vsel %vm1192, %v1184, %v1189
          %v1194 = vrsqrt.pop %v1004
          %v1195 = vmul.f32 %v1194, %v1004
          %v1196 = vmul.f32 %v1195, %v1194
          %v1197 = vmul.f32 0.5, %v1196
          %v1198 = vsub.f32 1.5, %v1197
          %v1199 = vmul.f32 %v1194, %v1198
          %vm1200 = vweird.f32 %v1004
          %vm1201 = vweird.f32 %v1194
          %vm1202 = vmor %vm1200, %vm1201
          %v1203 = vsel %vm1202, %v1194, %v1199
          %v1204 = vrsqrt.pop %v1005
          %v1205 = vmul.f32 %v1204, %v1005
          %v1206 = vmul.f32 %v1205, %v1204
          %v1207 = vmul.f32 0.5, %v1206
          %v1208 = vsub.f32 1.5, %v1207
          %v1209 = vmul.f32 %v1204, %v1208
          %vm1210 = vweird.f32 %v1005
          %vm1211 = vweird.f32 %v1204
          %vm1212 = vmor %vm1210, %vm1211
          %v1213 = vsel %vm1212, %v1204, %v1209
          %v1214 = vrsqrt.pop %v1006
          %v1215 = vmul.f32 %v1214, %v1006
          %v1216 = vmul.f32 %v1215, %v1214
          %v1217 = vmul.f32 0.5, %v1216
          %v1218 = vsub.f32 1.5, %v1217
          %v1219 = vmul.f32 %v1214, %v1218
          %vm1220 = vweird.f32 %v1006
          %vm1221 = vweird.f32 %v1214
          %vm1222 = vmor %vm1220, %vm1221
          %v1223 = vsel %vm1222, %v1214, %v1219
          %v1224 = vrsqrt.pop %v1007
          %v1225 = vmul.f32 %v1224, %v1007
          %v1226 = vmul.f32 %v1225, %v1224
          %v1227 = vmul.f32 0.5, %v1226
          %v1228 = vsub.f32 1.5, %v1227
          %v1229 = vmul.f32 %v1224, %v1228
          %vm1230 = vweird.f32 %v1007
          %vm1231 = vweird.f32 %v1224
          %vm1232 = vmor %vm1230, %vm1231
          %v1233 = vsel %vm1232, %v1224, %v1229
          %v1234 = vrsqrt.pop %v1008
          %v1235 = vmul.f32 %v1234, %v1008
          %v1236 = vmul.f32 %v1235, %v1234
          %v1237 = vmul.f32 0.5, %v1236
          %v1238 = vsub.f32 1.5, %v1237
          %v1239 = vmul.f32 %v1234, %v1238
          %vm1240 = vweird.f32 %v1008
          %vm1241 = vweird.f32 %v1234
          %vm1242 = vmor %vm1240, %vm1241
          %v1243 = vsel %vm1242, %v1234, %v1239
          %v1244 = vrsqrt.pop %v1009
          %v1245 = vmul.f32 %v1244, %v1009
          %v1246 = vmul.f32 %v1245, %v1244
          %v1247 = vmul.f32 0.5, %v1246
          %v1248 = vsub.f32 1.5, %v1247
          %v1249 = vmul.f32 %v1244, %v1248
          %vm1250 = vweird.f32 %v1009
          %vm1251 = vweird.f32 %v1244
          %vm1252 = vmor %vm1250, %vm1251
          %v1253 = vsel %vm1252, %v1244, %v1249
          %v1254 = vrsqrt.pop %v1010
          %v1255 = vmul.f32 %v1254, %v1010
          %v1256 = vmul.f32 %v1255, %v1254
          %v1257 = vmul.f32 0.5, %v1256
          %v1258 = vsub.f32 1.5, %v1257
          %v1259 = vmul.f32 %v1254, %v1258
          %vm1260 = vweird.f32 %v1010
          %vm1261 = vweird.f32 %v1254
          %vm1262 = vmor %vm1260, %vm1261
          %v1263 = vsel %vm1262, %v1254, %v1259
          %v1264 = vrsqrt.pop %v1011
          %v1265 = vmul.f32 %v1264, %v1011
          %v1266 = vmul.f32 %v1265, %v1264
          %v1267 = vmul.f32 0.5, %v1266
          %v1268 = vsub.f32 1.5, %v1267
          %v1269 = vmul.f32 %v1264, %v1268
          %vm1270 = vweird.f32 %v1011
          %vm1271 = vweird.f32 %v1264
          %vm1272 = vmor %vm1270, %vm1271
          %v1273 = vsel %vm1272, %v1264, %v1269
          %v1274 = vrsqrt.pop %v1012
          %v1275 = vmul.f32 %v1274, %v1012
          %v1276 = vmul.f32 %v1275, %v1274
          %v1277 = vmul.f32 0.5, %v1276
          %v1278 = vsub.f32 1.5, %v1277
          %v1279 = vmul.f32 %v1274, %v1278
          %vm1280 = vweird.f32 %v1012
          %vm1281 = vweird.f32 %v1274
          %vm1282 = vmor %vm1280, %vm1281
          %v1283 = vsel %vm1282, %v1274, %v1279
          %v1284 = vrsqrt.pop %v1013
          %v1285 = vmul.f32 %v1284, %v1013
          %v1286 = vmul.f32 %v1285, %v1284
          %v1287 = vmul.f32 0.5, %v1286
          %v1288 = vsub.f32 1.5, %v1287
          %v1289 = vmul.f32 %v1284, %v1288
          %vm1290 = vweird.f32 %v1013
          %vm1291 = vweird.f32 %v1284
          %vm1292 = vmor %vm1290, %vm1291
          %v1293 = vsel %vm1292, %v1284, %v1289
          %v1294 = vrsqrt.pop %v1014
          %v1295 = vmul.f32 %v1294, %v1014
          %v1296 = vmul.f32 %v1295, %v1294
          %v1297 = vmul.f32 0.5, %v1296
          %v1298 = vsub.f32 1.5, %v1297
          %v1299 = vmul.f32 %v1294, %v1298
          %vm1300 = vweird.f32 %v1014
          %vm1301 = vweird.f32 %v1294
          %vm1302 = vmor %vm1300, %vm1301
          %v1303 = vsel %vm1302, %v1294, %v1299
          %v1304 = vrsqrt.pop %v1015
          %v1305 = vmul.f32 %v1304, %v1015
          %v1306 = vmul.f32 %v1305, %v1304
          %v1307 = vmul.f32 0.5, %v1306
          %v1308 = vsub.f32 1.5, %v1307
          %v1309 = vmul.f32 %v1304, %v1308
          %vm1310 = vweird.f32 %v1015
          %vm1311 = vweird.f32 %v1304
          %vm1312 = vmor %vm1310, %vm1311
          %v1313 = vsel %vm1312, %v1304, %v1309
          %v1314 = vrsqrt.pop %v1016
          %v1315 = vmul.f32 %v1314, %v1016
          %v1316 = vmul.f32 %v1315, %v1314
          %v1317 = vmul.f32 0.5, %v1316
          %v1318 = vsub.f32 1.5, %v1317
          %v1319 = vmul.f32 %v1314, %v1318
          %vm1320 = vweird.f32 %v1016
          %vm1321 = vweird.f32 %v1314
          %vm1322 = vmor %vm1320, %vm1321
          %v1323 = vsel %vm1322, %v1314, %v1319
          %v1324 = vrsqrt.pop %v1017
          %v1325 = vmul.f32 %v1324, %v1017
          %v1326 = vmul.f32 %v1325, %v1324
          %v1327 = vmul.f32 0.5, %v1326
          %v1328 = vsub.f32 1.5, %v1327
          %v1329 = vmul.f32 %v1324, %v1328
          %vm1330 = vweird.f32 %v1017
          %vm1331 = vweird.f32 %v1324
          %vm1332 = vmor %vm1330, %vm1331
          %v1333 = vsel %vm1332, %v1324, %v1329
          %v1334 = vrsqrt.pop %v1018
          %v1335 = vmul.f32 %v1334, %v1018
          %v1336 = vmul.f32 %v1335, %v1334
          %v1337 = vmul.f32 0.5, %v1336
          %v1338 = vsub.f32 1.5, %v1337
          %v1339 = vmul.f32 %v1334, %v1338
          %vm1340 = vweird.f32 %v1018
          %vm1341 = vweird.f32 %v1334
          %vm1342 = vmor %vm1340, %vm1341
          %v1343 = vsel %vm1342, %v1334, %v1339
          %v1344 = vrsqrt.pop %v1019
          %v1345 = vmul.f32 %v1344, %v1019
          %v1346 = vmul.f32 %v1345, %v1344
          %v1347 = vmul.f32 0.5, %v1346
          %v1348 = vsub.f32 1.5, %v1347
          %v1349 = vmul.f32 %v1344, %v1348
          %vm1350 = vweird.f32 %v1019
          %vm1351 = vweird.f32 %v1344
          %vm1352 = vmor %vm1350, %vm1351
          %v1353 = vsel %vm1352, %v1344, %v1349
          %v1354 = vrsqrt.pop %v1020
          %v1355 = vmul.f32 %v1354, %v1020
          %v1356 = vmul.f32 %v1355, %v1354
          %v1357 = vmul.f32 0.5, %v1356
          %v1358 = vsub.f32 1.5, %v1357
          %v1359 = vmul.f32 %v1354, %v1358
          %vm1360 = vweird.f32 %v1020
          %vm1361 = vweird.f32 %v1354
          %vm1362 = vmor %vm1360, %vm1361
          %v1363 = vsel %vm1362, %v1354, %v1359
          %v1364 = vrsqrt.pop %v1021
          %v1365 = vmul.f32 %v1364, %v1021
          %v1366 = vmul.f32 %v1365, %v1364
          %v1367 = vmul.f32 0.5, %v1366
          %v1368 = vsub.f32 1.5, %v1367
          %v1369 = vmul.f32 %v1364, %v1368
          %vm1370 = vweird.f32 %v1021
          %vm1371 = vweird.f32 %v1364
          %vm1372 = vmor %vm1370, %vm1371
          %v1373 = vsel %vm1372, %v1364, %v1369
          %v1374 = vrsqrt.pop %v1022
          %v1375 = vmul.f32 %v1374, %v1022
          %v1376 = vmul.f32 %v1375, %v1374
          %v1377 = vmul.f32 0.5, %v1376
          %v1378 = vsub.f32 1.5, %v1377
          %v1379 = vmul.f32 %v1374, %v1378
          %vm1380 = vweird.f32 %v1022
          %vm1381 = vweird.f32 %v1374
          %vm1382 = vmor %vm1380, %vm1381
          %v1383 = vsel %vm1382, %v1374, %v1379
          %v1384 = vrsqrt.pop %v1023
          %v1385 = vmul.f32 %v1384, %v1023
          %v1386 = vmul.f32 %v1385, %v1384
          %v1387 = vmul.f32 0.5, %v1386
          %v1388 = vsub.f32 1.5, %v1387
          %v1389 = vmul.f32 %v1384, %v1388
          %vm1390 = vweird.f32 %v1023
          %vm1391 = vweird.f32 %v1384
          %vm1392 = vmor %vm1390, %vm1391
          %v1393 = vsel %vm1392, %v1384, %v1389
          %v1394 = vrsqrt.pop %v1024
          %v1395 = vmul.f32 %v1394, %v1024
          %v1396 = vmul.f32 %v1395, %v1394
          %v1397 = vmul.f32 0.5, %v1396
          %v1398 = vsub.f32 1.5, %v1397
          %v1399 = vmul.f32 %v1394, %v1398
          %vm1400 = vweird.f32 %v1024
          %vm1401 = vweird.f32 %v1394
          %vm1402 = vmor %vm1400, %vm1401
          %v1403 = vsel %vm1402, %v1394, %v1399
          %v1404 = vrsqrt.pop %v1025
          %v1405 = vmul.f32 %v1404, %v1025
          %v1406 = vmul.f32 %v1405, %v1404
          %v1407 = vmul.f32 0.5, %v1406
          %v1408 = vsub.f32 1.5, %v1407
          %v1409 = vmul.f32 %v1404, %v1408
          %vm1410 = vweird.f32 %v1025
          %vm1411 = vweird.f32 %v1404
          %vm1412 = vmor %vm1410, %vm1411
          %v1413 = vsel %vm1412, %v1404, %v1409
          %v1414 = vrsqrt.pop %v1026
          %v1415 = vmul.f32 %v1414, %v1026
          %v1416 = vmul.f32 %v1415, %v1414
          %v1417 = vmul.f32 0.5, %v1416
          %v1418 = vsub.f32 1.5, %v1417
          %v1419 = vmul.f32 %v1414, %v1418
          %vm1420 = vweird.f32 %v1026
          %vm1421 = vweird.f32 %v1414
          %vm1422 = vmor %vm1420, %vm1421
          %v1423 = vsel %vm1422, %v1414, %v1419
          %v1424 = vrsqrt.pop %v1027
          %v1425 = vmul.f32 %v1424, %v1027
          %v1426 = vmul.f32 %v1425, %v1424
          %v1427 = vmul.f32 0.5, %v1426
          %v1428 = vsub.f32 1.5, %v1427
          %v1429 = vmul.f32 %v1424, %v1428
          %vm1430 = vweird.f32 %v1027
          %vm1431 = vweird.f32 %v1424
          %vm1432 = vmor %vm1430, %vm1431
          %v1433 = vsel %vm1432, %v1424, %v1429
          %v1434 = vrsqrt.pop %v1028
          %v1435 = vmul.f32 %v1434, %v1028
          %v1436 = vmul.f32 %v1435, %v1434
          %v1437 = vmul.f32 0.5, %v1436
          %v1438 = vsub.f32 1.5, %v1437
          %v1439 = vmul.f32 %v1434, %v1438
          %vm1440 = vweird.f32 %v1028
          %vm1441 = vweird.f32 %v1434
          %vm1442 = vmor %vm1440, %vm1441
          %v1443 = vsel %vm1442, %v1434, %v1439
          %v1444 = vrsqrt.pop %v1029
          %v1445 = vmul.f32 %v1444, %v1029
          %v1446 = vmul.f32 %v1445, %v1444
          %v1447 = vmul.f32 0.5, %v1446
          %v1448 = vsub.f32 1.5, %v1447
          %v1449 = vmul.f32 %v1444, %v1448
          %vm1450 = vweird.f32 %v1029
          %vm1451 = vweird.f32 %v1444
          %vm1452 = vmor %vm1450, %vm1451
          %v1453 = vsel %vm1452, %v1444, %v1449
          %v1454 = vrsqrt.pop %v1030
          %v1455 = vmul.f32 %v1454, %v1030
          %v1456 = vmul.f32 %v1455, %v1454
          %v1457 = vmul.f32 0.5, %v1456
          %v1458 = vsub.f32 1.5, %v1457
          %v1459 = vmul.f32 %v1454, %v1458
          %vm1460 = vweird.f32 %v1030
          %vm1461 = vweird.f32 %v1454
          %vm1462 = vmor %vm1460, %vm1461
          %v1463 = vsel %vm1462, %v1454, %v1459
          %v1464 = vrsqrt.pop %v1031
          %v1465 = vmul.f32 %v1464, %v1031
          %v1466 = vmul.f32 %v1465, %v1464
          %v1467 = vmul.f32 0.5, %v1466
          %v1468 = vsub.f32 1.5, %v1467
          %v1469 = vmul.f32 %v1464, %v1468
          %vm1470 = vweird.f32 %v1031
          %vm1471 = vweird.f32 %v1464
          %vm1472 = vmor %vm1470, %vm1471
          %v1473 = vsel %vm1472, %v1464, %v1469
          %v1474 = vrsqrt.pop %v1032
          %v1475 = vmul.f32 %v1474, %v1032
          %v1476 = vmul.f32 %v1475, %v1474
          %v1477 = vmul.f32 0.5, %v1476
          %v1478 = vsub.f32 1.5, %v1477
          %v1479 = vmul.f32 %v1474, %v1478
          %vm1480 = vweird.f32 %v1032
          %vm1481 = vweird.f32 %v1474
          %vm1482 = vmor %vm1480, %vm1481
          %v1483 = vsel %vm1482, %v1474, %v1479
          %v1484 = vrsqrt.pop %v1033
          %v1485 = vmul.f32 %v1484, %v1033
          %v1486 = vmul.f32 %v1485, %v1484
          %v1487 = vmul.f32 0.5, %v1486
          %v1488 = vsub.f32 1.5, %v1487
          %v1489 = vmul.f32 %v1484, %v1488
          %vm1490 = vweird.f32 %v1033
          %vm1491 = vweird.f32 %v1484
          %vm1492 = vmor %vm1490, %vm1491
          %v1493 = vsel %vm1492, %v1484, %v1489
          %v1494 = vrsqrt.pop %v1034
          %v1495 = vmul.f32 %v1494, %v1034
          %v1496 = vmul.f32 %v1495, %v1494
          %v1497 = vmul.f32 0.5, %v1496
          %v1498 = vsub.f32 1.5, %v1497
          %v1499 = vmul.f32 %v1494, %v1498
          %vm1500 = vweird.f32 %v1034
          %vm1501 = vweird.f32 %v1494
          %vm1502 = vmor %vm1500, %vm1501
          %v1503 = vsel %vm1502, %v1494, %v1499
          %v1504 = vrsqrt.pop %v1035
          %v1505 = vmul.f32 %v1504, %v1035
          %v1506 = vmul.f32 %v1505, %v1504
          %v1507 = vmul.f32 0.5, %v1506
          %v1508 = vsub.f32 1.5, %v1507
          %v1509 = vmul.f32 %v1504, %v1508
          %vm1510 = vweird.f32 %v1035
          %vm1511 = vweird.f32 %v1504
          %vm1512 = vmor %vm1510, %vm1511
          %v1513 = vsel %vm1512, %v1504, %v1509
          %v1514 = vrsqrt.pop %v1036
          %v1515 = vmul.f32 %v1514, %v1036
          %v1516 = vmul.f32 %v1515, %v1514
          %v1517 = vmul.f32 0.5, %v1516
          %v1518 = vsub.f32 1.5, %v1517
          %v1519 = vmul.f32 %v1514, %v1518
          %vm1520 = vweird.f32 %v1036
          %vm1521 = vweird.f32 %v1514
          %vm1522 = vmor %vm1520, %vm1521
          %v1523 = vsel %vm1522, %v1514, %v1519
          %v1524 = vrsqrt.pop %v1037
          %v1525 = vmul.f32 %v1524, %v1037
          %v1526 = vmul.f32 %v1525, %v1524
          %v1527 = vmul.f32 0.5, %v1526
          %v1528 = vsub.f32 1.5, %v1527
          %v1529 = vmul.f32 %v1524, %v1528
          %vm1530 = vweird.f32 %v1037
          %vm1531 = vweird.f32 %v1524
          %vm1532 = vmor %vm1530, %vm1531
          %v1533 = vsel %vm1532, %v1524, %v1529
          %v1534 = vrsqrt.pop %v1038
          %v1535 = vmul.f32 %v1534, %v1038
          %v1536 = vmul.f32 %v1535, %v1534
          %v1537 = vmul.f32 0.5, %v1536
          %v1538 = vsub.f32 1.5, %v1537
          %v1539 = vmul.f32 %v1534, %v1538
          %vm1540 = vweird.f32 %v1038
          %vm1541 = vweird.f32 %v1534
          %vm1542 = vmor %vm1540, %vm1541
          %v1543 = vsel %vm1542, %v1534, %v1539
          %v1544 = vrsqrt.pop %v1039
          %v1545 = vmul.f32 %v1544, %v1039
          %v1546 = vmul.f32 %v1545, %v1544
          %v1547 = vmul.f32 0.5, %v1546
          %v1548 = vsub.f32 1.5, %v1547
          %v1549 = vmul.f32 %v1544, %v1548
          %vm1550 = vweird.f32 %v1039
          %vm1551 = vweird.f32 %v1544
          %vm1552 = vmor %vm1550, %vm1551
          %v1553 = vsel %vm1552, %v1544, %v1549
          %v1554 = vrsqrt.pop %v1040
          %v1555 = vmul.f32 %v1554, %v1040
          %v1556 = vmul.f32 %v1555, %v1554
          %v1557 = vmul.f32 0.5, %v1556
          %v1558 = vsub.f32 1.5, %v1557
          %v1559 = vmul.f32 %v1554, %v1558
          %vm1560 = vweird.f32 %v1040
          %vm1561 = vweird.f32 %v1554
          %vm1562 = vmor %vm1560, %vm1561
          %v1563 = vsel %vm1562, %v1554, %v1559
          %v1564 = vrsqrt.pop %v1041
          %v1565 = vmul.f32 %v1564, %v1041
          %v1566 = vmul.f32 %v1565, %v1564
          %v1567 = vmul.f32 0.5, %v1566
          %v1568 = vsub.f32 1.5, %v1567
          %v1569 = vmul.f32 %v1564, %v1568
          %vm1570 = vweird.f32 %v1041
          %vm1571 = vweird.f32 %v1564
          %vm1572 = vmor %vm1570, %vm1571
          %v1573 = vsel %vm1572, %v1564, %v1569
          %v1574 = vrsqrt.pop %v1042
          %v1575 = vmul.f32 %v1574, %v1042
          %v1576 = vmul.f32 %v1575, %v1574
          %v1577 = vmul.f32 0.5, %v1576
          %v1578 = vsub.f32 1.5, %v1577
          %v1579 = vmul.f32 %v1574, %v1578
          %vm1580 = vweird.f32 %v1042
          %vm1581 = vweird.f32 %v1574
          %vm1582 = vmor %vm1580, %vm1581
          %v1583 = vsel %vm1582, %v1574, %v1579
          %v1584 = vrsqrt.pop %v1043
          %v1585 = vmul.f32 %v1584, %v1043
          %v1586 = vmul.f32 %v1585, %v1584
          %v1587 = vmul.f32 0.5, %v1586
          %v1588 = vsub.f32 1.5, %v1587
          %v1589 = vmul.f32 %v1584, %v1588
          %vm1590 = vweird.f32 %v1043
          %vm1591 = vweird.f32 %v1584
          %vm1592 = vmor %vm1590, %vm1591
          %v1593 = vsel %vm1592, %v1584, %v1589
          %v1594 = vrsqrt.pop %v1044
          %v1595 = vmul.f32 %v1594, %v1044
          %v1596 = vmul.f32 %v1595, %v1594
          %v1597 = vmul.f32 0.5, %v1596
          %v1598 = vsub.f32 1.5, %v1597
          %v1599 = vmul.f32 %v1594, %v1598
          %vm1600 = vweird.f32 %v1044
          %vm1601 = vweird.f32 %v1594
          %vm1602 = vmor %vm1600, %vm1601
          %v1603 = vsel %vm1602, %v1594, %v1599
          %v1604 = vrsqrt.pop %v1045
          %v1605 = vmul.f32 %v1604, %v1045
          %v1606 = vmul.f32 %v1605, %v1604
          %v1607 = vmul.f32 0.5, %v1606
          %v1608 = vsub.f32 1.5, %v1607
          %v1609 = vmul.f32 %v1604, %v1608
          %vm1610 = vweird.f32 %v1045
          %vm1611 = vweird.f32 %v1604
          %vm1612 = vmor %vm1610, %vm1611
          %v1613 = vsel %vm1612, %v1604, %v1609
          %v1614 = vrsqrt.pop %v1046
          %v1615 = vmul.f32 %v1614, %v1046
          %v1616 = vmul.f32 %v1615, %v1614
          %v1617 = vmul.f32 0.5, %v1616
          %v1618 = vsub.f32 1.5, %v1617
          %v1619 = vmul.f32 %v1614, %v1618
          %vm1620 = vweird.f32 %v1046
          %vm1621 = vweird.f32 %v1614
          %vm1622 = vmor %vm1620, %vm1621
          %v1623 = vsel %vm1622, %v1614, %v1619
          %v1624 = vrsqrt.pop %v1047
          %v1625 = vmul.f32 %v1624, %v1047
          %v1626 = vmul.f32 %v1625, %v1624
          %v1627 = vmul.f32 0.5, %v1626
          %v1628 = vsub.f32 1.5, %v1627
          %v1629 = vmul.f32 %v1624, %v1628
          %vm1630 = vweird.f32 %v1047
          %vm1631 = vweird.f32 %v1624
          %vm1632 = vmor %vm1630, %vm1631
          %v1633 = vsel %vm1632, %v1624, %v1629
          %v1634 = vrsqrt.pop %v1048
          %v1635 = vmul.f32 %v1634, %v1048
          %v1636 = vmul.f32 %v1635, %v1634
          %v1637 = vmul.f32 0.5, %v1636
          %v1638 = vsub.f32 1.5, %v1637
          %v1639 = vmul.f32 %v1634, %v1638
          %vm1640 = vweird.f32 %v1048
          %vm1641 = vweird.f32 %v1634
          %vm1642 = vmor %vm1640, %vm1641
          %v1643 = vsel %vm1642, %v1634, %v1639
          %v1644 = vrsqrt.pop %v1049
          %v1645 = vmul.f32 %v1644, %v1049
          %v1646 = vmul.f32 %v1645, %v1644
          %v1647 = vmul.f32 0.5, %v1646
          %v1648 = vsub.f32 1.5, %v1647
          %v1649 = vmul.f32 %v1644, %v1648
          %vm1650 = vweird.f32 %v1049
          %vm1651 = vweird.f32 %v1644
          %vm1652 = vmor %vm1650, %vm1651
          %v1653 = vsel %vm1652, %v1644, %v1649
          %v1654 = vrsqrt.pop %v1050
          %v1655 = vmul.f32 %v1654, %v1050
          %v1656 = vmul.f32 %v1655, %v1654
          %v1657 = vmul.f32 0.5, %v1656
          %v1658 = vsub.f32 1.5, %v1657
          %v1659 = vmul.f32 %v1654, %v1658
          %vm1660 = vweird.f32 %v1050
          %vm1661 = vweird.f32 %v1654
          %vm1662 = vmor %vm1660, %vm1661
          %v1663 = vsel %vm1662, %v1654, %v1659
          %v1664 = vrsqrt.pop %v1051
          %v1665 = vmul.f32 %v1664, %v1051
          %v1666 = vmul.f32 %v1665, %v1664
          %v1667 = vmul.f32 0.5, %v1666
          %v1668 = vsub.f32 1.5, %v1667
          %v1669 = vmul.f32 %v1664, %v1668
          %vm1670 = vweird.f32 %v1051
          %vm1671 = vweird.f32 %v1664
          %vm1672 = vmor %vm1670, %vm1671
          %v1673 = vsel %vm1672, %v1664, %v1669
          %v1674 = vrsqrt.pop %v1052
          %v1675 = vmul.f32 %v1674, %v1052
          %v1676 = vmul.f32 %v1675, %v1674
          %v1677 = vmul.f32 0.5, %v1676
          %v1678 = vsub.f32 1.5, %v1677
          %v1679 = vmul.f32 %v1674, %v1678
          %vm1680 = vweird.f32 %v1052
          %vm1681 = vweird.f32 %v1674
          %vm1682 = vmor %vm1680, %vm1681
          %v1683 = vsel %vm1682, %v1674, %v1679
          %v1684 = vrsqrt.pop %v1053
          %v1685 = vmul.f32 %v1684, %v1053
          %v1686 = vmul.f32 %v1685, %v1684
          %v1687 = vmul.f32 0.5, %v1686
          %v1688 = vsub.f32 1.5, %v1687
          %v1689 = vmul.f32 %v1684, %v1688
          %vm1690 = vweird.f32 %v1053
          %vm1691 = vweird.f32 %v1684
          %vm1692 = vmor %vm1690, %vm1691
          %v1693 = vsel %vm1692, %v1684, %v1689
          %v1695 = vperm.slane %v988, 0
          %v1697 = vmul.f32 %v1063, %v1695
          %v1698 = vmul.f32 %v1073, %v1695
          %v1699 = vmul.f32 %v1083, %v1695
          %v1700 = vmul.f32 %v1093, %v1695
          %v1701 = vmul.f32 %v1103, %v1695
          %v1702 = vmul.f32 %v1113, %v1695
          %v1703 = vmul.f32 %v1123, %v1695
          %v1704 = vmul.f32 %v1133, %v1695
          %v1705 = vmul.f32 %v1143, %v1695
          %v1706 = vmul.f32 %v1153, %v1695
          %v1707 = vmul.f32 %v1163, %v1695
          %v1708 = vmul.f32 %v1173, %v1695
          %v1709 = vmul.f32 %v1183, %v1695
          %v1710 = vmul.f32 %v1193, %v1695
          %v1711 = vmul.f32 %v1203, %v1695
          %v1712 = vmul.f32 %v1213, %v1695
          %v1713 = vmul.f32 %v1223, %v1695
          %v1714 = vmul.f32 %v1233, %v1695
          %v1715 = vmul.f32 %v1243, %v1695
          %v1716 = vmul.f32 %v1253, %v1695
          %v1717 = vmul.f32 %v1263, %v1695
          %v1718 = vmul.f32 %v1273, %v1695
          %v1719 = vmul.f32 %v1283, %v1695
          %v1720 = vmul.f32 %v1293, %v1695
          %v1721 = vmul.f32 %v1303, %v1695
          %v1722 = vmul.f32 %v1313, %v1695
          %v1723 = vmul.f32 %v1323, %v1695
          %v1724 = vmul.f32 %v1333, %v1695
          %v1725 = vmul.f32 %v1343, %v1695
          %v1726 = vmul.f32 %v1353, %v1695
          %v1727 = vmul.f32 %v1363, %v1695
          %v1728 = vmul.f32 %v1373, %v1695
          %v1729 = vmul.f32 %v1383, %v1695
          %v1730 = vmul.f32 %v1393, %v1695
          %v1731 = vmul.f32 %v1403, %v1695
          %v1732 = vmul.f32 %v1413, %v1695
          %v1733 = vmul.f32 %v1423, %v1695
          %v1734 = vmul.f32 %v1433, %v1695
          %v1735 = vmul.f32 %v1443, %v1695
          %v1736 = vmul.f32 %v1453, %v1695
          %v1737 = vmul.f32 %v1463, %v1695
          %v1738 = vmul.f32 %v1473, %v1695
          %v1739 = vmul.f32 %v1483, %v1695
          %v1740 = vmul.f32 %v1493, %v1695
          %v1741 = vmul.f32 %v1503, %v1695
          %v1742 = vmul.f32 %v1513, %v1695
          %v1743 = vmul.f32 %v1523, %v1695
          %v1744 = vmul.f32 %v1533, %v1695
          %v1745 = vmul.f32 %v1543, %v1695
          %v1746 = vmul.f32 %v1553, %v1695
          %v1747 = vmul.f32 %v1563, %v1695
          %v1748 = vmul.f32 %v1573, %v1695
          %v1749 = vmul.f32 %v1583, %v1695
          %v1750 = vmul.f32 %v1593, %v1695
          %v1751 = vmul.f32 %v1603, %v1695
          %v1752 = vmul.f32 %v1613, %v1695
          %v1753 = vmul.f32 %v1623, %v1695
          %v1754 = vmul.f32 %v1633, %v1695
          %v1755 = vmul.f32 %v1643, %v1695
          %v1756 = vmul.f32 %v1653, %v1695
          %v1757 = vmul.f32 %v1663, %v1695
          %v1758 = vmul.f32 %v1673, %v1695
          %v1759 = vmul.f32 %v1683, %v1695
          %v1760 = vmul.f32 %v1693, %v1695
          %v1761 = vmul.f32 %v668, %v1697
          %v1762 = vmul.f32 %v669, %v1698
          %v1763 = vmul.f32 %v670, %v1699
          %v1764 = vmul.f32 %v671, %v1700
          %v1765 = vmul.f32 %v672, %v1701
          %v1766 = vmul.f32 %v673, %v1702
          %v1767 = vmul.f32 %v674, %v1703
          %v1768 = vmul.f32 %v675, %v1704
          %v1769 = vmul.f32 %v676, %v1705
          %v1770 = vmul.f32 %v677, %v1706
          %v1771 = vmul.f32 %v678, %v1707
          %v1772 = vmul.f32 %v679, %v1708
          %v1773 = vmul.f32 %v680, %v1709
          %v1774 = vmul.f32 %v681, %v1710
          %v1775 = vmul.f32 %v682, %v1711
          %v1776 = vmul.f32 %v683, %v1712
          %v1777 = vmul.f32 %v684, %v1713
          %v1778 = vmul.f32 %v685, %v1714
          %v1779 = vmul.f32 %v686, %v1715
          %v1780 = vmul.f32 %v687, %v1716
          %v1781 = vmul.f32 %v688, %v1717
          %v1782 = vmul.f32 %v689, %v1718
          %v1783 = vmul.f32 %v690, %v1719
          %v1784 = vmul.f32 %v691, %v1720
          %v1785 = vmul.f32 %v692, %v1721
          %v1786 = vmul.f32 %v693, %v1722
          %v1787 = vmul.f32 %v694, %v1723
          %v1788 = vmul.f32 %v695, %v1724
          %v1789 = vmul.f32 %v696, %v1725
          %v1790 = vmul.f32 %v697, %v1726
          %v1791 = vmul.f32 %v698, %v1727
          %v1792 = vmul.f32 %v699, %v1728
          %v1793 = vmul.f32 %v700, %v1729
          %v1794 = vmul.f32 %v701, %v1730
          %v1795 = vmul.f32 %v702, %v1731
          %v1796 = vmul.f32 %v703, %v1732
          %v1797 = vmul.f32 %v704, %v1733
          %v1798 = vmul.f32 %v705, %v1734
          %v1799 = vmul.f32 %v706, %v1735
          %v1800 = vmul.f32 %v707, %v1736
          %v1801 = vmul.f32 %v708, %v1737
          %v1802 = vmul.f32 %v709, %v1738
          %v1803 = vmul.f32 %v710, %v1739
          %v1804 = vmul.f32 %v711, %v1740
          %v1805 = vmul.f32 %v712, %v1741
          %v1806 = vmul.f32 %v713, %v1742
          %v1807 = vmul.f32 %v714, %v1743
          %v1808 = vmul.f32 %v715, %v1744
          %v1809 = vmul.f32 %v716, %v1745
          %v1810 = vmul.f32 %v717, %v1746
          %v1811 = vmul.f32 %v718, %v1747
          %v1812 = vmul.f32 %v719, %v1748
          %v1813 = vmul.f32 %v720, %v1749
          %v1814 = vmul.f32 %v721, %v1750
          %v1815 = vmul.f32 %v722, %v1751
          %v1816 = vmul.f32 %v723, %v1752
          %v1817 = vmul.f32 %v724, %v1753
          %v1818 = vmul.f32 %v725, %v1754
          %v1819 = vmul.f32 %v726, %v1755
          %v1820 = vmul.f32 %v727, %v1756
          %v1821 = vmul.f32 %v728, %v1757
          %v1822 = vmul.f32 %v729, %v1758
          %v1823 = vmul.f32 %v730, %v1759
          %v1824 = vmul.f32 %v731, %v1760
          %v1826 = vperm.slane %v989, 0
          %v1828 = vadd.f32 %v1761, %v1826
          %v1829 = vadd.f32 %v1762, %v1826
          %v1830 = vadd.f32 %v1763, %v1826
          %v1831 = vadd.f32 %v1764, %v1826
          %v1832 = vadd.f32 %v1765, %v1826
          %v1833 = vadd.f32 %v1766, %v1826
          %v1834 = vadd.f32 %v1767, %v1826
          %v1835 = vadd.f32 %v1768, %v1826
          %v1836 = vadd.f32 %v1769, %v1826
          %v1837 = vadd.f32 %v1770, %v1826
          %v1838 = vadd.f32 %v1771, %v1826
          %v1839 = vadd.f32 %v1772, %v1826
          %v1840 = vadd.f32 %v1773, %v1826
          %v1841 = vadd.f32 %v1774, %v1826
          %v1842 = vadd.f32 %v1775, %v1826
          %v1843 = vadd.f32 %v1776, %v1826
          %v1844 = vadd.f32 %v1777, %v1826
          %v1845 = vadd.f32 %v1778, %v1826
          %v1846 = vadd.f32 %v1779, %v1826
          %v1847 = vadd.f32 %v1780, %v1826
          %v1848 = vadd.f32 %v1781, %v1826
          %v1849 = vadd.f32 %v1782, %v1826
          %v1850 = vadd.f32 %v1783, %v1826
          %v1851 = vadd.f32 %v1784, %v1826
          %v1852 = vadd.f32 %v1785, %v1826
          %v1853 = vadd.f32 %v1786, %v1826
          %v1854 = vadd.f32 %v1787, %v1826
          %v1855 = vadd.f32 %v1788, %v1826
          %v1856 = vadd.f32 %v1789, %v1826
          %v1857 = vadd.f32 %v1790, %v1826
          %v1858 = vadd.f32 %v1791, %v1826
          %v1859 = vadd.f32 %v1792, %v1826
          %v1860 = vadd.f32 %v1793, %v1826
          %v1861 = vadd.f32 %v1794, %v1826
          %v1862 = vadd.f32 %v1795, %v1826
          %v1863 = vadd.f32 %v1796, %v1826
          %v1864 = vadd.f32 %v1797, %v1826
          %v1865 = vadd.f32 %v1798, %v1826
          %v1866 = vadd.f32 %v1799, %v1826
          %v1867 = vadd.f32 %v1800, %v1826
          %v1868 = vadd.f32 %v1801, %v1826
          %v1869 = vadd.f32 %v1802, %v1826
          %v1870 = vadd.f32 %v1803, %v1826
          %v1871 = vadd.f32 %v1804, %v1826
          %v1872 = vadd.f32 %v1805, %v1826
          %v1873 = vadd.f32 %v1806, %v1826
          %v1874 = vadd.f32 %v1807, %v1826
          %v1875 = vadd.f32 %v1808, %v1826
          %v1876 = vadd.f32 %v1809, %v1826
          %v1877 = vadd.f32 %v1810, %v1826
          %v1878 = vadd.f32 %v1811, %v1826
          %v1879 = vadd.f32 %v1812, %v1826
          %v1880 = vadd.f32 %v1813, %v1826
          %v1881 = vadd.f32 %v1814, %v1826
          %v1882 = vadd.f32 %v1815, %v1826
          %v1883 = vadd.f32 %v1816, %v1826
          %v1884 = vadd.f32 %v1817, %v1826
          %v1885 = vadd.f32 %v1818, %v1826
          %v1886 = vadd.f32 %v1819, %v1826
          %v1887 = vadd.f32 %v1820, %v1826
          %v1888 = vadd.f32 %v1821, %v1826
          %v1889 = vadd.f32 %v1822, %v1826
          %v1890 = vadd.f32 %v1823, %v1826
          %v1891 = vadd.f32 %v1824, %v1826
          %1892 = vst [vmem:[#allocation2] sm:$0xff] %v1828
          %1893 = vst [vmem:[#allocation2 + $0x8] sm:$0xff] %v1829
          %1894 = vst [vmem:[#allocation2 + $0x10] sm:$0xff] %v1830
          %1895 = vst [vmem:[#allocation2 + $0x18] sm:$0xff] %v1831
          %1896 = vst [vmem:[#allocation2 + $0x20] sm:$0xff] %v1832
          %1897 = vst [vmem:[#allocation2 + $0x28] sm:$0xff] %v1833
          %1898 = vst [vmem:[#allocation2 + $0x30] sm:$0xff] %v1834
          %1899 = vst [vmem:[#allocation2 + $0x38] sm:$0xff] %v1835
          %1900 = vst [vmem:[#allocation2 + $0x40] sm:$0xff] %v1836
          %1901 = vst [vmem:[#allocation2 + $0x48] sm:$0xff] %v1837
          %1902 = vst [vmem:[#allocation2 + $0x50] sm:$0xff] %v1838
          %1903 = vst [vmem:[#allocation2 + $0x58] sm:$0xff] %v1839
          %1904 = vst [vmem:[#allocation2 + $0x60] sm:$0xff] %v1840
          %1905 = vst [vmem:[#allocation2 + $0x68] sm:$0xff] %v1841
          %1906 = vst [vmem:[#allocation2 + $0x70] sm:$0xff] %v1842
          %1907 = vst [vmem:[#allocation2 + $0x78] sm:$0xff] %v1843
          %1908 = vst [vmem:[#allocation2 + $0x80] sm:$0xff] %v1844
          %1909 = vst [vmem:[#allocation2 + $0x88] sm:$0xff] %v1845
          %1910 = vst [vmem:[#allocation2 + $0x90] sm:$0xff] %v1846
          %1911 = vst [vmem:[#allocation2 + $0x98] sm:$0xff] %v1847
          %1912 = vst [vmem:[#allocation2 + $0xa0] sm:$0xff] %v1848
          %1913 = vst [vmem:[#allocation2 + $0xa8] sm:$0xff] %v1849
          %1914 = vst [vmem:[#allocation2 + $0xb0] sm:$0xff] %v1850
          %1915 = vst [vmem:[#allocation2 + $0xb8] sm:$0xff] %v1851
          %1916 = vst [vmem:[#allocation2 + $0xc0] sm:$0xff] %v1852
          %1917 = vst [vmem:[#allocation2 + $0xc8] sm:$0xff] %v1853
          %1918 = vst [vmem:[#allocation2 + $0xd0] sm:$0xff] %v1854
          %1919 = vst [vmem:[#allocation2 + $0xd8] sm:$0xff] %v1855
          %1920 = vst [vmem:[#allocation2 + $0xe0] sm:$0xff] %v1856
          %1921 = vst [vmem:[#allocation2 + $0xe8] sm:$0xff] %v1857
          %1922 = vst [vmem:[#allocation2 + $0xf0] sm:$0xff] %v1858
          %1923 = vst [vmem:[#allocation2 + $0xf8] sm:$0xff] %v1859
          %1924 = vst [vmem:[#allocation2 + $0x100] sm:$0xff] %v1860
          %1925 = vst [vmem:[#allocation2 + $0x108] sm:$0xff] %v1861
          %1926 = vst [vmem:[#allocation2 + $0x110] sm:$0xff] %v1862
          %1927 = vst [vmem:[#allocation2 + $0x118] sm:$0xff] %v1863
          %1928 = vst [vmem:[#allocation2 + $0x120] sm:$0xff] %v1864
          %1929 = vst [vmem:[#allocation2 + $0x128] sm:$0xff] %v1865
          %1930 = vst [vmem:[#allocation2 + $0x130] sm:$0xff] %v1866
          %1931 = vst [vmem:[#allocation2 + $0x138] sm:$0xff] %v1867
          %1932 = vst [vmem:[#allocation2 + $0x140] sm:$0xff] %v1868
          %1933 = vst [vmem:[#allocation2 + $0x148] sm:$0xff] %v1869
          %1934 = vst [vmem:[#allocation2 + $0x150] sm:$0xff] %v1870
          %1935 = vst [vmem:[#allocation2 + $0x158] sm:$0xff] %v1871
          %1936 = vst [vmem:[#allocation2 + $0x160] sm:$0xff] %v1872
          %1937 = vst [vmem:[#allocation2 + $0x168] sm:$0xff] %v1873
          %1938 = vst [vmem:[#allocation2 + $0x170] sm:$0xff] %v1874
          %1939 = vst [vmem:[#allocation2 + $0x178] sm:$0xff] %v1875
          %1940 = vst [vmem:[#allocation2 + $0x180] sm:$0xff] %v1876
          %1941 = vst [vmem:[#allocation2 + $0x188] sm:$0xff] %v1877
          %1942 = vst [vmem:[#allocation2 + $0x190] sm:$0xff] %v1878
          %1943 = vst [vmem:[#allocation2 + $0x198] sm:$0xff] %v1879
          %1944 = vst [vmem:[#allocation2 + $0x1a0] sm:$0xff] %v1880
          %1945 = vst [vmem:[#allocation2 + $0x1a8] sm:$0xff] %v1881
          %1946 = vst [vmem:[#allocation2 + $0x1b0] sm:$0xff] %v1882
          %1947 = vst [vmem:[#allocation2 + $0x1b8] sm:$0xff] %v1883
          %1948 = vst [vmem:[#allocation2 + $0x1c0] sm:$0xff] %v1884
          %1949 = vst [vmem:[#allocation2 + $0x1c8] sm:$0xff] %v1885
          %1950 = vst [vmem:[#allocation2 + $0x1d0] sm:$0xff] %v1886
          %1951 = vst [vmem:[#allocation2 + $0x1d8] sm:$0xff] %v1887
          %1952 = vst [vmem:[#allocation2 + $0x1e0] sm:$0xff] %v1888
          %1953 = vst [vmem:[#allocation2 + $0x1e8] sm:$0xff] %v1889
          %1954 = vst [vmem:[#allocation2 + $0x1f0] sm:$0xff] %v1890
          %1955 = vst [vmem:[#allocation2 + $0x1f8] sm:$0xff] %v1891
          %1956 = vst [vmem:[#allocation3] sm:$0xff] 0.0
          %1957 = vst [vmem:[#allocation3 + $0x8] sm:$0xff] 0.0
          %1958 = vst [vmem:[#allocation3 + $0x10] sm:$0xff] 0.0
          %1959 = vst [vmem:[#allocation3 + $0x18] sm:$0xff] 0.0
          %1960 = vst [vmem:[#allocation3 + $0x20] sm:$0xff] 0.0
          %1961 = vst [vmem:[#allocation3 + $0x28] sm:$0xff] 0.0
          %1962 = vst [vmem:[#allocation3 + $0x30] sm:$0xff] 0.0
          %1963 = vst [vmem:[#allocation3 + $0x38] sm:$0xff] 0.0
          %1964 = vst [vmem:[#allocation3 + $0x40] sm:$0xff] 0.0
          %1965 = vst [vmem:[#allocation3 + $0x48] sm:$0xff] 0.0
          %1966 = vst [vmem:[#allocation3 + $0x50] sm:$0xff] 0.0
          %1967 = vst [vmem:[#allocation3 + $0x58] sm:$0xff] 0.0
          %1968 = vst [vmem:[#allocation3 + $0x60] sm:$0xff] 0.0
          %1969 = vst [vmem:[#allocation3 + $0x68] sm:$0xff] 0.0
          %1970 = vst [vmem:[#allocation3 + $0x70] sm:$0xff] 0.0
          %1971 = vst [vmem:[#allocation3 + $0x78] sm:$0xff] 0.0
          %1972 = vst [vmem:[#allocation3 + $0x80] sm:$0xff] 0.0
          %1973 = vst [vmem:[#allocation3 + $0x88] sm:$0xff] 0.0
          %1974 = vst [vmem:[#allocation3 + $0x90] sm:$0xff] 0.0
          %1975 = vst [vmem:[#allocation3 + $0x98] sm:$0xff] 0.0
          %1976 = vst [vmem:[#allocation3 + $0xa0] sm:$0xff] 0.0
          %1977 = vst [vmem:[#allocation3 + $0xa8] sm:$0xff] 0.0
          %1978 = vst [vmem:[#allocation3 + $0xb0] sm:$0xff] 0.0
          %1979 = vst [vmem:[#allocation3 + $0xb8] sm:$0xff] 0.0
          %1980 = vst [vmem:[#allocation3 + $0xc0] sm:$0xff] 0.0
          %1981 = vst [vmem:[#allocation3 + $0xc8] sm:$0xff] 0.0
          %1982 = vst [vmem:[#allocation3 + $0xd0] sm:$0xff] 0.0
          %1983 = vst [vmem:[#allocation3 + $0xd8] sm:$0xff] 0.0
          %1984 = vst [vmem:[#allocation3 + $0xe0] sm:$0xff] 0.0
          %1985 = vst [vmem:[#allocation3 + $0xe8] sm:$0xff] 0.0
          %1986 = vst [vmem:[#allocation3 + $0xf0] sm:$0xff] 0.0
          %1987 = vst [vmem:[#allocation3 + $0xf8] sm:$0xff] 0.0
          %1988 = vst [vmem:[#allocation3 + $0x100] sm:$0xff] 0.0
          %1989 = vst [vmem:[#allocation3 + $0x108] sm:$0xff] 0.0
          %1990 = vst [vmem:[#allocation3 + $0x110] sm:$0xff] 0.0
          %1991 = vst [vmem:[#allocation3 + $0x118] sm:$0xff] 0.0
          %1992 = vst [vmem:[#allocation3 + $0x120] sm:$0xff] 0.0
          %1993 = vst [vmem:[#allocation3 + $0x128] sm:$0xff] 0.0
          %1994 = vst [vmem:[#allocation3 + $0x130] sm:$0xff] 0.0
          %1995 = vst [vmem:[#allocation3 + $0x138] sm:$0xff] 0.0
          %1996 = vst [vmem:[#allocation3 + $0x140] sm:$0xff] 0.0
          %1997 = vst [vmem:[#allocation3 + $0x148] sm:$0xff] 0.0
          %1998 = vst [vmem:[#allocation3 + $0x150] sm:$0xff] 0.0
          %1999 = vst [vmem:[#allocation3 + $0x158] sm:$0xff] 0.0
          %2000 = vst [vmem:[#allocation3 + $0x160] sm:$0xff] 0.0
          %2001 = vst [vmem:[#allocation3 + $0x168] sm:$0xff] 0.0
          %2002 = vst [vmem:[#allocation3 + $0x170] sm:$0xff] 0.0
          %2003 = vst [vmem:[#allocation3 + $0x178] sm:$0xff] 0.0
          %2004 = vst [vmem:[#allocation3 + $0x180] sm:$0xff] 0.0
          %2005 = vst [vmem:[#allocation3 + $0x188] sm:$0xff] 0.0
          %2006 = vst [vmem:[#allocation3 + $0x190] sm:$0xff] 0.0
          %2007 = vst [vmem:[#allocation3 + $0x198] sm:$0xff] 0.0
          %2008 = vst [vmem:[#allocation3 + $0x1a0] sm:$0xff] 0.0
          %2009 = vst [vmem:[#allocation3 + $0x1a8] sm:$0xff] 0.0
          %2010 = vst [vmem:[#allocation3 + $0x1b0] sm:$0xff] 0.0
          %2011 = vst [vmem:[#allocation3 + $0x1b8] sm:$0xff] 0.0
          %2012 = vst [vmem:[#allocation3 + $0x1c0] sm:$0xff] 0.0
          %2013 = vst [vmem:[#allocation3 + $0x1c8] sm:$0xff] 0.0
          %2014 = vst [vmem:[#allocation3 + $0x1d0] sm:$0xff] 0.0
          %2015 = vst [vmem:[#allocation3 + $0x1d8] sm:$0xff] 0.0
          %2016 = vst [vmem:[#allocation3 + $0x1e0] sm:$0xff] 0.0
          %2017 = vst [vmem:[#allocation3 + $0x1e8] sm:$0xff] 0.0
          %2018 = vst [vmem:[#allocation3 + $0x1f0] sm:$0xff] 0.0
          %2019 = vst [vmem:[#allocation3 + $0x1f8] sm:$0xff] 0.0
        $region68: #{tpu_custom_call.1} parent=43 // pred_fallthru
          _
        %v2020 = vld [vmem:[#allocation2] sm:$0xff]
        %v2021 = vld [vmem:[#allocation2 + $0x8] sm:$0xff]
        %v2022 = vld [vmem:[#allocation2 + $0x10] sm:$0xff]
        %v2023 = vld [vmem:[#allocation2 + $0x18] sm:$0xff]
        %v2024 = vld [vmem:[#allocation2 + $0x20] sm:$0xff]
        %v2025 = vld [vmem:[#allocation2 + $0x28] sm:$0xff]
        %v2026 = vld [vmem:[#allocation2 + $0x30] sm:$0xff]
        %v2027 = vld [vmem:[#allocation2 + $0x38] sm:$0xff]
        %v2028 = vld [vmem:[#allocation2 + $0x40] sm:$0xff]
        %v2029 = vld [vmem:[#allocation2 + $0x48] sm:$0xff]
        %v2030 = vld [vmem:[#allocation2 + $0x50] sm:$0xff]
        %v2031 = vld [vmem:[#allocation2 + $0x58] sm:$0xff]
        %v2032 = vld [vmem:[#allocation2 + $0x60] sm:$0xff]
        %v2033 = vld [vmem:[#allocation2 + $0x68] sm:$0xff]
        %v2034 = vld [vmem:[#allocation2 + $0x70] sm:$0xff]
        %v2035 = vld [vmem:[#allocation2 + $0x78] sm:$0xff]
        %v2036 = vld [vmem:[#allocation2 + $0x80] sm:$0xff]
        %v2037 = vld [vmem:[#allocation2 + $0x88] sm:$0xff]
        %v2038 = vld [vmem:[#allocation2 + $0x90] sm:$0xff]
        %v2039 = vld [vmem:[#allocation2 + $0x98] sm:$0xff]
        %v2040 = vld [vmem:[#allocation2 + $0xa0] sm:$0xff]
        %v2041 = vld [vmem:[#allocation2 + $0xa8] sm:$0xff]
        %v2042 = vld [vmem:[#allocation2 + $0xb0] sm:$0xff]
        %v2043 = vld [vmem:[#allocation2 + $0xb8] sm:$0xff]
        %v2044 = vld [vmem:[#allocation2 + $0xc0] sm:$0xff]
        %v2045 = vld [vmem:[#allocation2 + $0xc8] sm:$0xff]
        %v2046 = vld [vmem:[#allocation2 + $0xd0] sm:$0xff]
        %v2047 = vld [vmem:[#allocation2 + $0xd8] sm:$0xff]
        %v2048 = vld [vmem:[#allocation2 + $0xe0] sm:$0xff]
        %v2049 = vld [vmem:[#allocation2 + $0xe8] sm:$0xff]
        %v2050 = vld [vmem:[#allocation2 + $0xf0] sm:$0xff]
        %v2051 = vld [vmem:[#allocation2 + $0xf8] sm:$0xff]
        %v2052 = vld [vmem:[#allocation2 + $0x100] sm:$0xff]
        %v2053 = vld [vmem:[#allocation2 + $0x108] sm:$0xff]
        %v2054 = vld [vmem:[#allocation2 + $0x110] sm:$0xff]
        %v2055 = vld [vmem:[#allocation2 + $0x118] sm:$0xff]
        %v2056 = vld [vmem:[#allocation2 + $0x120] sm:$0xff]
        %v2057 = vld [vmem:[#allocation2 + $0x128] sm:$0xff]
        %v2058 = vld [vmem:[#allocation2 + $0x130] sm:$0xff]
        %v2059 = vld [vmem:[#allocation2 + $0x138] sm:$0xff]
        %v2060 = vld [vmem:[#allocation2 + $0x140] sm:$0xff]
        %v2061 = vld [vmem:[#allocation2 + $0x148] sm:$0xff]
        %v2062 = vld [vmem:[#allocation2 + $0x150] sm:$0xff]
        %v2063 = vld [vmem:[#allocation2 + $0x158] sm:$0xff]
        %v2064 = vld [vmem:[#allocation2 + $0x160] sm:$0xff]
        %v2065 = vld [vmem:[#allocation2 + $0x168] sm:$0xff]
        %v2066 = vld [vmem:[#allocation2 + $0x170] sm:$0xff]
        %v2067 = vld [vmem:[#allocation2 + $0x178] sm:$0xff]
        %v2068 = vld [vmem:[#allocation2 + $0x180] sm:$0xff]
        %v2069 = vld [vmem:[#allocation2 + $0x188] sm:$0xff]
        %v2070 = vld [vmem:[#allocation2 + $0x190] sm:$0xff]
        %v2071 = vld [vmem:[#allocation2 + $0x198] sm:$0xff]
        %v2072 = vld [vmem:[#allocation2 + $0x1a0] sm:$0xff]
        %v2073 = vld [vmem:[#allocation2 + $0x1a8] sm:$0xff]
        %v2074 = vld [vmem:[#allocation2 + $0x1b0] sm:$0xff]
        %v2075 = vld [vmem:[#allocation2 + $0x1b8] sm:$0xff]
        %v2076 = vld [vmem:[#allocation2 + $0x1c0] sm:$0xff]
        %v2077 = vld [vmem:[#allocation2 + $0x1c8] sm:$0xff]
        %v2078 = vld [vmem:[#allocation2 + $0x1d0] sm:$0xff]
        %v2079 = vld [vmem:[#allocation2 + $0x1d8] sm:$0xff]
        %v2080 = vld [vmem:[#allocation2 + $0x1e0] sm:$0xff]
        %v2081 = vld [vmem:[#allocation2 + $0x1e8] sm:$0xff]
        %v2082 = vld [vmem:[#allocation2 + $0x1f0] sm:$0xff]
        %v2083 = vld [vmem:[#allocation2 + $0x1f8] sm:$0xff]
        %v2084 = vld [vmem:[%s340] sm:$0xff]
        %v2085 = vld [vmem:[%s340 + $0x8] sm:$0xff]
        %v2086 = vld [vmem:[%s340 + $0x10] sm:$0xff]
        %v2087 = vld [vmem:[%s340 + $0x18] sm:$0xff]
        %v2088 = vld [vmem:[%s340 + $0x20] sm:$0xff]
        %v2089 = vld [vmem:[%s340 + $0x28] sm:$0xff]
        %v2090 = vld [vmem:[%s340 + $0x30] sm:$0xff]
        %v2091 = vld [vmem:[%s340 + $0x38] sm:$0xff]
        %v2092 = vld [vmem:[%s340 + $0x40] sm:$0xff]
        %v2093 = vld [vmem:[%s340 + $0x48] sm:$0xff]
        %v2094 = vld [vmem:[%s340 + $0x50] sm:$0xff]
        %v2095 = vld [vmem:[%s340 + $0x58] sm:$0xff]
        %v2096 = vld [vmem:[%s340 + $0x60] sm:$0xff]
        %v2097 = vld [vmem:[%s340 + $0x68] sm:$0xff]
        %v2098 = vld [vmem:[%s340 + $0x70] sm:$0xff]
        %v2099 = vld [vmem:[%s340 + $0x78] sm:$0xff]
        %v2100 = vld [vmem:[%s340 + $0x80] sm:$0xff]
        %v2101 = vld [vmem:[%s340 + $0x88] sm:$0xff]
        %v2102 = vld [vmem:[%s340 + $0x90] sm:$0xff]
        %v2103 = vld [vmem:[%s340 + $0x98] sm:$0xff]
        %v2104 = vld [vmem:[%s340 + $0xa0] sm:$0xff]
        %v2105 = vld [vmem:[%s340 + $0xa8] sm:$0xff]
        %v2106 = vld [vmem:[%s340 + $0xb0] sm:$0xff]
        %v2107 = vld [vmem:[%s340 + $0xb8] sm:$0xff]
        %v2108 = vld [vmem:[%s340 + $0xc0] sm:$0xff]
        %v2109 = vld [vmem:[%s340 + $0xc8] sm:$0xff]
        %v2110 = vld [vmem:[%s340 + $0xd0] sm:$0xff]
        %v2111 = vld [vmem:[%s340 + $0xd8] sm:$0xff]
        %v2112 = vld [vmem:[%s340 + $0xe0] sm:$0xff]
        %v2113 = vld [vmem:[%s340 + $0xe8] sm:$0xff]
        %v2114 = vld [vmem:[%s340 + $0xf0] sm:$0xff]
        %v2115 = vld [vmem:[%s340 + $0xf8] sm:$0xff]
        %v2116 = vld [vmem:[%s340 + $0x100] sm:$0xff]
        %v2117 = vld [vmem:[%s340 + $0x108] sm:$0xff]
        %v2118 = vld [vmem:[%s340 + $0x110] sm:$0xff]
        %v2119 = vld [vmem:[%s340 + $0x118] sm:$0xff]
        %v2120 = vld [vmem:[%s340 + $0x120] sm:$0xff]
        %v2121 = vld [vmem:[%s340 + $0x128] sm:$0xff]
        %v2122 = vld [vmem:[%s340 + $0x130] sm:$0xff]
        %v2123 = vld [vmem:[%s340 + $0x138] sm:$0xff]
        %v2124 = vld [vmem:[%s340 + $0x140] sm:$0xff]
        %v2125 = vld [vmem:[%s340 + $0x148] sm:$0xff]
        %v2126 = vld [vmem:[%s340 + $0x150] sm:$0xff]
        %v2127 = vld [vmem:[%s340 + $0x158] sm:$0xff]
        %v2128 = vld [vmem:[%s340 + $0x160] sm:$0xff]
        %v2129 = vld [vmem:[%s340 + $0x168] sm:$0xff]
        %v2130 = vld [vmem:[%s340 + $0x170] sm:$0xff]
        %v2131 = vld [vmem:[%s340 + $0x178] sm:$0xff]
        %v2132 = vld [vmem:[%s340 + $0x180] sm:$0xff]
        %v2133 = vld [vmem:[%s340 + $0x188] sm:$0xff]
        %v2134 = vld [vmem:[%s340 + $0x190] sm:$0xff]
        %v2135 = vld [vmem:[%s340 + $0x198] sm:$0xff]
        %v2136 = vld [vmem:[%s340 + $0x1a0] sm:$0xff]
        %v2137 = vld [vmem:[%s340 + $0x1a8] sm:$0xff]
        %v2138 = vld [vmem:[%s340 + $0x1b0] sm:$0xff]
        %v2139 = vld [vmem:[%s340 + $0x1b8] sm:$0xff]
        %v2140 = vld [vmem:[%s340 + $0x1c0] sm:$0xff]
        %v2141 = vld [vmem:[%s340 + $0x1c8] sm:$0xff]
        %v2142 = vld [vmem:[%s340 + $0x1d0] sm:$0xff]
        %v2143 = vld [vmem:[%s340 + $0x1d8] sm:$0xff]
        %v2144 = vld [vmem:[%s340 + $0x1e0] sm:$0xff]
        %v2145 = vld [vmem:[%s340 + $0x1e8] sm:$0xff]
        %v2146 = vld [vmem:[%s340 + $0x1f0] sm:$0xff]
        %v2147 = vld [vmem:[%s340 + $0x1f8] sm:$0xff]
        %2148 = vmatpush.msra.mxu0 %v2144
        %2149 = vmatpush.msra.mxu0 %v2140
        %2150 = vmatpush.msra.mxu0 %v2136
        %2151 = vmatpush.msra.mxu0 %v2132
        %2152 = vmatpush.msra.mxu0 %v2128
        %2153 = vmatpush.msra.mxu0 %v2124
        %2154 = vmatpush.msra.mxu0 %v2120
        %2155 = vmatpush.msra.mxu0 %v2116
        %2156 = vmatpush.msra.mxu0 %v2112
        %2157 = vmatpush.msra.mxu0 %v2108
        %2158 = vmatpush.msra.mxu0 %v2104
        %2159 = vmatpush.msra.mxu0 %v2100
        %2160 = vmatpush.msra.mxu0 %v2096
        %2161 = vmatpush.msra.mxu0 %v2092
        %2162 = vmatpush.msra.mxu0 %v2088
        %2163 = vmatpush.msra.mxu0 %v2084
        %2164 = vmatmul.f32.gmra.mxu0 %v2020
        %v2165 = vpop.f32.mrf.mxu0
        %v2166 = vadd.f32 0.0, %v2165
        %2167 = vmatmul.f32.gmra.mxu0 %v2021
        %v2168 = vpop.f32.mrf.mxu0
        %v2169 = vadd.f32 0.0, %v2168
        %2170 = vmatmul.f32.gmra.mxu0 %v2022
        %v2171 = vpop.f32.mrf.mxu0
        %v2172 = vadd.f32 0.0, %v2171
        %2173 = vmatmul.f32.gmra.mxu0 %v2023
        %v2174 = vpop.f32.mrf.mxu0
        %v2175 = vadd.f32 0.0, %v2174
        %2176 = vmatmul.f32.gmra.mxu0 %v2024
        %v2177 = vpop.f32.mrf.mxu0
        %v2178 = vadd.f32 0.0, %v2177
        %2179 = vmatmul.f32.gmra.mxu0 %v2025
        %v2180 = vpop.f32.mrf.mxu0
        %v2181 = vadd.f32 0.0, %v2180
        %2182 = vmatmul.f32.gmra.mxu0 %v2026
        %v2183 = vpop.f32.mrf.mxu0
        %v2184 = vadd.f32 0.0, %v2183
        %2185 = vmatmul.f32.gmra.mxu0 %v2027
        %v2186 = vpop.f32.mrf.mxu0
        %v2187 = vadd.f32 0.0, %v2186
        %2188 = vmatmul.f32.gmra.mxu0 %v2028
        %v2189 = vpop.f32.mrf.mxu0
        %v2190 = vadd.f32 0.0, %v2189
        %2191 = vmatmul.f32.gmra.mxu0 %v2029
        %v2192 = vpop.f32.mrf.mxu0
        %v2193 = vadd.f32 0.0, %v2192
        %2194 = vmatmul.f32.gmra.mxu0 %v2030
        %v2195 = vpop.f32.mrf.mxu0
        %v2196 = vadd.f32 0.0, %v2195
        %2197 = vmatmul.f32.gmra.mxu0 %v2031
        %v2198 = vpop.f32.mrf.mxu0
        %v2199 = vadd.f32 0.0, %v2198
        %2200 = vmatmul.f32.gmra.mxu0 %v2032
        %v2201 = vpop.f32.mrf.mxu0
        %v2202 = vadd.f32 0.0, %v2201
        %2203 = vmatmul.f32.gmra.mxu0 %v2033
        %v2204 = vpop.f32.mrf.mxu0
        %v2205 = vadd.f32 0.0, %v2204
        %2206 = vmatmul.f32.gmra.mxu0 %v2034
        %v2207 = vpop.f32.mrf.mxu0
        %v2208 = vadd.f32 0.0, %v2207
        %2209 = vmatmul.f32.gmra.mxu0 %v2035
        %v2210 = vpop.f32.mrf.mxu0
        %v2211 = vadd.f32 0.0, %v2210
        %2212 = vmatmul.f32.gmra.mxu0 %v2036
        %v2213 = vpop.f32.mrf.mxu0
        %v2214 = vadd.f32 0.0, %v2213
        %2215 = vmatmul.f32.gmra.mxu0 %v2037
        %v2216 = vpop.f32.mrf.mxu0
        %v2217 = vadd.f32 0.0, %v2216
        %2218 = vmatmul.f32.gmra.mxu0 %v2038
        %v2219 = vpop.f32.mrf.mxu0
        %v2220 = vadd.f32 0.0, %v2219
        %2221 = vmatmul.f32.gmra.mxu0 %v2039
        %v2222 = vpop.f32.mrf.mxu0
        %v2223 = vadd.f32 0.0, %v2222
        %2224 = vmatmul.f32.gmra.mxu0 %v2040
        %v2225 = vpop.f32.mrf.mxu0
        %v2226 = vadd.f32 0.0, %v2225
        %2227 = vmatmul.f32.gmra.mxu0 %v2041
        %v2228 = vpop.f32.mrf.mxu0
        %v2229 = vadd.f32 0.0, %v2228
        %2230 = vmatmul.f32.gmra.mxu0 %v2042
        %v2231 = vpop.f32.mrf.mxu0
        %v2232 = vadd.f32 0.0, %v2231
        %2233 = vmatmul.f32.gmra.mxu0 %v2043
        %v2234 = vpop.f32.mrf.mxu0
        %v2235 = vadd.f32 0.0, %v2234
        %2236 = vmatmul.f32.gmra.mxu0 %v2044
        %v2237 = vpop.f32.mrf.mxu0
        %v2238 = vadd.f32 0.0, %v2237
        %2239 = vmatmul.f32.gmra.mxu0 %v2045
        %v2240 = vpop.f32.mrf.mxu0
        %v2241 = vadd.f32 0.0, %v2240
        %2242 = vmatmul.f32.gmra.mxu0 %v2046
        %v2243 = vpop.f32.mrf.mxu0
        %v2244 = vadd.f32 0.0, %v2243
        %2245 = vmatmul.f32.gmra.mxu0 %v2047
        %v2246 = vpop.f32.mrf.mxu0
        %v2247 = vadd.f32 0.0, %v2246
        %2248 = vmatmul.f32.gmra.mxu0 %v2048
        %v2249 = vpop.f32.mrf.mxu0
        %v2250 = vadd.f32 0.0, %v2249
        %2251 = vmatmul.f32.gmra.mxu0 %v2049
        %v2252 = vpop.f32.mrf.mxu0
        %v2253 = vadd.f32 0.0, %v2252
        %2254 = vmatmul.f32.gmra.mxu0 %v2050
        %v2255 = vpop.f32.mrf.mxu0
        %v2256 = vadd.f32 0.0, %v2255
        %2257 = vmatmul.f32.gmra.mxu0 %v2051
        %v2258 = vpop.f32.mrf.mxu0
        %v2259 = vadd.f32 0.0, %v2258
        %2260 = vmatmul.f32.gmra.mxu0 %v2052
        %v2261 = vpop.f32.mrf.mxu0
        %v2262 = vadd.f32 0.0, %v2261
        %2263 = vmatmul.f32.gmra.mxu0 %v2053
        %v2264 = vpop.f32.mrf.mxu0
        %v2265 = vadd.f32 0.0, %v2264
        %2266 = vmatmul.f32.gmra.mxu0 %v2054
        %v2267 = vpop.f32.mrf.mxu0
        %v2268 = vadd.f32 0.0, %v2267
        %2269 = vmatmul.f32.gmra.mxu0 %v2055
        %v2270 = vpop.f32.mrf.mxu0
        %v2271 = vadd.f32 0.0, %v2270
        %2272 = vmatmul.f32.gmra.mxu0 %v2056
        %v2273 = vpop.f32.mrf.mxu0
        %v2274 = vadd.f32 0.0, %v2273
        %2275 = vmatmul.f32.gmra.mxu0 %v2057
        %v2276 = vpop.f32.mrf.mxu0
        %v2277 = vadd.f32 0.0, %v2276
        %2278 = vmatmul.f32.gmra.mxu0 %v2058
        %v2279 = vpop.f32.mrf.mxu0
        %v2280 = vadd.f32 0.0, %v2279
        %2281 = vmatmul.f32.gmra.mxu0 %v2059
        %v2282 = vpop.f32.mrf.mxu0
        %v2283 = vadd.f32 0.0, %v2282
        %2284 = vmatmul.f32.gmra.mxu0 %v2060
        %v2285 = vpop.f32.mrf.mxu0
        %v2286 = vadd.f32 0.0, %v2285
        %2287 = vmatmul.f32.gmra.mxu0 %v2061
        %v2288 = vpop.f32.mrf.mxu0
        %v2289 = vadd.f32 0.0, %v2288
        %2290 = vmatmul.f32.gmra.mxu0 %v2062
        %v2291 = vpop.f32.mrf.mxu0
        %v2292 = vadd.f32 0.0, %v2291
        %2293 = vmatmul.f32.gmra.mxu0 %v2063
        %v2294 = vpop.f32.mrf.mxu0
        %v2295 = vadd.f32 0.0, %v2294
        %2296 = vmatmul.f32.gmra.mxu0 %v2064
        %v2297 = vpop.f32.mrf.mxu0
        %v2298 = vadd.f32 0.0, %v2297
        %2299 = vmatmul.f32.gmra.mxu0 %v2065
        %v2300 = vpop.f32.mrf.mxu0
        %v2301 = vadd.f32 0.0, %v2300
        %2302 = vmatmul.f32.gmra.mxu0 %v2066
        %v2303 = vpop.f32.mrf.mxu0
        %v2304 = vadd.f32 0.0, %v2303
        %2305 = vmatmul.f32.gmra.mxu0 %v2067
        %v2306 = vpop.f32.mrf.mxu0
        %v2307 = vadd.f32 0.0, %v2306
        %2308 = vmatmul.f32.gmra.mxu0 %v2068
        %v2309 = vpop.f32.mrf.mxu0
        %v2310 = vadd.f32 0.0, %v2309
        %2311 = vmatmul.f32.gmra.mxu0 %v2069
        %v2312 = vpop.f32.mrf.mxu0
        %v2313 = vadd.f32 0.0, %v2312
        %2314 = vmatmul.f32.gmra.mxu0 %v2070
        %v2315 = vpop.f32.mrf.mxu0
        %v2316 = vadd.f32 0.0, %v2315
        %2317 = vmatmul.f32.gmra.mxu0 %v2071
        %v2318 = vpop.f32.mrf.mxu0
        %v2319 = vadd.f32 0.0, %v2318
        %2320 = vmatmul.f32.gmra.mxu0 %v2072
        %v2321 = vpop.f32.mrf.mxu0
        %v2322 = vadd.f32 0.0, %v2321
        %2323 = vmatmul.f32.gmra.mxu0 %v2073
        %v2324 = vpop.f32.mrf.mxu0
        %v2325 = vadd.f32 0.0, %v2324
        %2326 = vmatmul.f32.gmra.mxu0 %v2074
        %v2327 = vpop.f32.mrf.mxu0
        %v2328 = vadd.f32 0.0, %v2327
        %2329 = vmatmul.f32.gmra.mxu0 %v2075
        %v2330 = vpop.f32.mrf.mxu0
        %v2331 = vadd.f32 0.0, %v2330
        %2332 = vmatmul.f32.gmra.mxu0 %v2076
        %v2333 = vpop.f32.mrf.mxu0
        %v2334 = vadd.f32 0.0, %v2333
        %2335 = vmatmul.f32.gmra.mxu0 %v2077
        %v2336 = vpop.f32.mrf.mxu0
        %v2337 = vadd.f32 0.0, %v2336
        %2338 = vmatmul.f32.gmra.mxu0 %v2078
        %v2339 = vpop.f32.mrf.mxu0
        %v2340 = vadd.f32 0.0, %v2339
        %2341 = vmatmul.f32.gmra.mxu0 %v2079
        %v2342 = vpop.f32.mrf.mxu0
        %v2343 = vadd.f32 0.0, %v2342
        %2344 = vmatmul.f32.gmra.mxu0 %v2080
        %v2345 = vpop.f32.mrf.mxu0
        %v2346 = vadd.f32 0.0, %v2345
        %2347 = vmatmul.f32.gmra.mxu0 %v2081
        %v2348 = vpop.f32.mrf.mxu0
        %v2349 = vadd.f32 0.0, %v2348
        %2350 = vmatmul.f32.gmra.mxu0 %v2082
        %v2351 = vpop.f32.mrf.mxu0
        %v2352 = vadd.f32 0.0, %v2351
        %2353 = vmatmul.f32.gmra.mxu0 %v2083
        %v2354 = vpop.f32.mrf.mxu0
        %v2355 = vadd.f32 0.0, %v2354
        %2356 = vdwg.mxu0
        %2357 = vmatpush.msra.mxu0 %v2145
        %2358 = vmatpush.msra.mxu0 %v2141
        %2359 = vmatpush.msra.mxu0 %v2137
        %2360 = vmatpush.msra.mxu0 %v2133
        %2361 = vmatpush.msra.mxu0 %v2129
        %2362 = vmatpush.msra.mxu0 %v2125
        %2363 = vmatpush.msra.mxu0 %v2121
        %2364 = vmatpush.msra.mxu0 %v2117
        %2365 = vmatpush.msra.mxu0 %v2113
        %2366 = vmatpush.msra.mxu0 %v2109
        %2367 = vmatpush.msra.mxu0 %v2105
        %2368 = vmatpush.msra.mxu0 %v2101
        %2369 = vmatpush.msra.mxu0 %v2097
        %2370 = vmatpush.msra.mxu0 %v2093
        %2371 = vmatpush.msra.mxu0 %v2089
        %2372 = vmatpush.msra.mxu0 %v2085
        %2373 = vmatmul.f32.gmra.mxu0 %v2020
        %v2374 = vpop.f32.mrf.mxu0
        %v2375 = vadd.f32 0.0, %v2374
        %2376 = vmatmul.f32.gmra.mxu0 %v2021
        %v2377 = vpop.f32.mrf.mxu0
        %v2378 = vadd.f32 0.0, %v2377
        %2379 = vmatmul.f32.gmra.mxu0 %v2022
        %v2380 = vpop.f32.mrf.mxu0
        %v2381 = vadd.f32 0.0, %v2380
        %2382 = vmatmul.f32.gmra.mxu0 %v2023
        %v2383 = vpop.f32.mrf.mxu0
        %v2384 = vadd.f32 0.0, %v2383
        %2385 = vmatmul.f32.gmra.mxu0 %v2024
        %v2386 = vpop.f32.mrf.mxu0
        %v2387 = vadd.f32 0.0, %v2386
        %2388 = vmatmul.f32.gmra.mxu0 %v2025
        %v2389 = vpop.f32.mrf.mxu0
        %v2390 = vadd.f32 0.0, %v2389
        %2391 = vmatmul.f32.gmra.mxu0 %v2026
        %v2392 = vpop.f32.mrf.mxu0
        %v2393 = vadd.f32 0.0, %v2392
        %2394 = vmatmul.f32.gmra.mxu0 %v2027
        %v2395 = vpop.f32.mrf.mxu0
        %v2396 = vadd.f32 0.0, %v2395
        %2397 = vmatmul.f32.gmra.mxu0 %v2028
        %v2398 = vpop.f32.mrf.mxu0
        %v2399 = vadd.f32 0.0, %v2398
        %2400 = vmatmul.f32.gmra.mxu0 %v2029
        %v2401 = vpop.f32.mrf.mxu0
        %v2402 = vadd.f32 0.0, %v2401
        %2403 = vmatmul.f32.gmra.mxu0 %v2030
        %v2404 = vpop.f32.mrf.mxu0
        %v2405 = vadd.f32 0.0, %v2404
        %2406 = vmatmul.f32.gmra.mxu0 %v2031
        %v2407 = vpop.f32.mrf.mxu0
        %v2408 = vadd.f32 0.0, %v2407
        %2409 = vmatmul.f32.gmra.mxu0 %v2032
        %v2410 = vpop.f32.mrf.mxu0
        %v2411 = vadd.f32 0.0, %v2410
        %2412 = vmatmul.f32.gmra.mxu0 %v2033
        %v2413 = vpop.f32.mrf.mxu0
        %v2414 = vadd.f32 0.0, %v2413
        %2415 = vmatmul.f32.gmra.mxu0 %v2034
        %v2416 = vpop.f32.mrf.mxu0
        %v2417 = vadd.f32 0.0, %v2416
        %2418 = vmatmul.f32.gmra.mxu0 %v2035
        %v2419 = vpop.f32.mrf.mxu0
        %v2420 = vadd.f32 0.0, %v2419
        %2421 = vmatmul.f32.gmra.mxu0 %v2036
        %v2422 = vpop.f32.mrf.mxu0
        %v2423 = vadd.f32 0.0, %v2422
        %2424 = vmatmul.f32.gmra.mxu0 %v2037
        %v2425 = vpop.f32.mrf.mxu0
        %v2426 = vadd.f32 0.0, %v2425
        %2427 = vmatmul.f32.gmra.mxu0 %v2038
        %v2428 = vpop.f32.mrf.mxu0
        %v2429 = vadd.f32 0.0, %v2428
        %2430 = vmatmul.f32.gmra.mxu0 %v2039
        %v2431 = vpop.f32.mrf.mxu0
        %v2432 = vadd.f32 0.0, %v2431
        %2433 = vmatmul.f32.gmra.mxu0 %v2040
        %v2434 = vpop.f32.mrf.mxu0
        %v2435 = vadd.f32 0.0, %v2434
        %2436 = vmatmul.f32.gmra.mxu0 %v2041
        %v2437 = vpop.f32.mrf.mxu0
        %v2438 = vadd.f32 0.0, %v2437
        %2439 = vmatmul.f32.gmra.mxu0 %v2042
        %v2440 = vpop.f32.mrf.mxu0
        %v2441 = vadd.f32 0.0, %v2440
        %2442 = vmatmul.f32.gmra.mxu0 %v2043
        %v2443 = vpop.f32.mrf.mxu0
        %v2444 = vadd.f32 0.0, %v2443
        %2445 = vmatmul.f32.gmra.mxu0 %v2044
        %v2446 = vpop.f32.mrf.mxu0
        %v2447 = vadd.f32 0.0, %v2446
        %2448 = vmatmul.f32.gmra.mxu0 %v2045
        %v2449 = vpop.f32.mrf.mxu0
        %v2450 = vadd.f32 0.0, %v2449
        %2451 = vmatmul.f32.gmra.mxu0 %v2046
        %v2452 = vpop.f32.mrf.mxu0
        %v2453 = vadd.f32 0.0, %v2452
        %2454 = vmatmul.f32.gmra.mxu0 %v2047
        %v2455 = vpop.f32.mrf.mxu0
        %v2456 = vadd.f32 0.0, %v2455
        %2457 = vmatmul.f32.gmra.mxu0 %v2048
        %v2458 = vpop.f32.mrf.mxu0
        %v2459 = vadd.f32 0.0, %v2458
        %2460 = vmatmul.f32.gmra.mxu0 %v2049
        %v2461 = vpop.f32.mrf.mxu0
        %v2462 = vadd.f32 0.0, %v2461
        %2463 = vmatmul.f32.gmra.mxu0 %v2050
        %v2464 = vpop.f32.mrf.mxu0
        %v2465 = vadd.f32 0.0, %v2464
        %2466 = vmatmul.f32.gmra.mxu0 %v2051
        %v2467 = vpop.f32.mrf.mxu0
        %v2468 = vadd.f32 0.0, %v2467
        %2469 = vmatmul.f32.gmra.mxu0 %v2052
        %v2470 = vpop.f32.mrf.mxu0
        %v2471 = vadd.f32 0.0, %v2470
        %2472 = vmatmul.f32.gmra.mxu0 %v2053
        %v2473 = vpop.f32.mrf.mxu0
        %v2474 = vadd.f32 0.0, %v2473
        %2475 = vmatmul.f32.gmra.mxu0 %v2054
        %v2476 = vpop.f32.mrf.mxu0
        %v2477 = vadd.f32 0.0, %v2476
        %2478 = vmatmul.f32.gmra.mxu0 %v2055
        %v2479 = vpop.f32.mrf.mxu0
        %v2480 = vadd.f32 0.0, %v2479
        %2481 = vmatmul.f32.gmra.mxu0 %v2056
        %v2482 = vpop.f32.mrf.mxu0
        %v2483 = vadd.f32 0.0, %v2482
        %2484 = vmatmul.f32.gmra.mxu0 %v2057
        %v2485 = vpop.f32.mrf.mxu0
        %v2486 = vadd.f32 0.0, %v2485
        %2487 = vmatmul.f32.gmra.mxu0 %v2058
        %v2488 = vpop.f32.mrf.mxu0
        %v2489 = vadd.f32 0.0, %v2488
        %2490 = vmatmul.f32.gmra.mxu0 %v2059
        %v2491 = vpop.f32.mrf.mxu0
        %v2492 = vadd.f32 0.0, %v2491
        %2493 = vmatmul.f32.gmra.mxu0 %v2060
        %v2494 = vpop.f32.mrf.mxu0
        %v2495 = vadd.f32 0.0, %v2494
        %2496 = vmatmul.f32.gmra.mxu0 %v2061
        %v2497 = vpop.f32.mrf.mxu0
        %v2498 = vadd.f32 0.0, %v2497
        %2499 = vmatmul.f32.gmra.mxu0 %v2062
        %v2500 = vpop.f32.mrf.mxu0
        %v2501 = vadd.f32 0.0, %v2500
        %2502 = vmatmul.f32.gmra.mxu0 %v2063
        %v2503 = vpop.f32.mrf.mxu0
        %v2504 = vadd.f32 0.0, %v2503
        %2505 = vmatmul.f32.gmra.mxu0 %v2064
        %v2506 = vpop.f32.mrf.mxu0
        %v2507 = vadd.f32 0.0, %v2506
        %2508 = vmatmul.f32.gmra.mxu0 %v2065
        %v2509 = vpop.f32.mrf.mxu0
        %v2510 = vadd.f32 0.0, %v2509
        %2511 = vmatmul.f32.gmra.mxu0 %v2066
        %v2512 = vpop.f32.mrf.mxu0
        %v2513 = vadd.f32 0.0, %v2512
        %2514 = vmatmul.f32.gmra.mxu0 %v2067
        %v2515 = vpop.f32.mrf.mxu0
        %v2516 = vadd.f32 0.0, %v2515
        %2517 = vmatmul.f32.gmra.mxu0 %v2068
        %v2518 = vpop.f32.mrf.mxu0
        %v2519 = vadd.f32 0.0, %v2518
        %2520 = vmatmul.f32.gmra.mxu0 %v2069
        %v2521 = vpop.f32.mrf.mxu0
        %v2522 = vadd.f32 0.0, %v2521
        %2523 = vmatmul.f32.gmra.mxu0 %v2070
        %v2524 = vpop.f32.mrf.mxu0
        %v2525 = vadd.f32 0.0, %v2524
        %2526 = vmatmul.f32.gmra.mxu0 %v2071
        %v2527 = vpop.f32.mrf.mxu0
        %v2528 = vadd.f32 0.0, %v2527
        %2529 = vmatmul.f32.gmra.mxu0 %v2072
        %v2530 = vpop.f32.mrf.mxu0
        %v2531 = vadd.f32 0.0, %v2530
        %2532 = vmatmul.f32.gmra.mxu0 %v2073
        %v2533 = vpop.f32.mrf.mxu0
        %v2534 = vadd.f32 0.0, %v2533
        %2535 = vmatmul.f32.gmra.mxu0 %v2074
        %v2536 = vpop.f32.mrf.mxu0
        %v2537 = vadd.f32 0.0, %v2536
        %2538 = vmatmul.f32.gmra.mxu0 %v2075
        %v2539 = vpop.f32.mrf.mxu0
        %v2540 = vadd.f32 0.0, %v2539
        %2541 = vmatmul.f32.gmra.mxu0 %v2076
        %v2542 = vpop.f32.mrf.mxu0
        %v2543 = vadd.f32 0.0, %v2542
        %2544 = vmatmul.f32.gmra.mxu0 %v2077
        %v2545 = vpop.f32.mrf.mxu0
        %v2546 = vadd.f32 0.0, %v2545
        %2547 = vmatmul.f32.gmra.mxu0 %v2078
        %v2548 = vpop.f32.mrf.mxu0
        %v2549 = vadd.f32 0.0, %v2548
        %2550 = vmatmul.f32.gmra.mxu0 %v2079
        %v2551 = vpop.f32.mrf.mxu0
        %v2552 = vadd.f32 0.0, %v2551
        %2553 = vmatmul.f32.gmra.mxu0 %v2080
        %v2554 = vpop.f32.mrf.mxu0
        %v2555 = vadd.f32 0.0, %v2554
        %2556 = vmatmul.f32.gmra.mxu0 %v2081
        %v2557 = vpop.f32.mrf.mxu0
        %v2558 = vadd.f32 0.0, %v2557
        %2559 = vmatmul.f32.gmra.mxu0 %v2082
        %v2560 = vpop.f32.mrf.mxu0
        %v2561 = vadd.f32 0.0, %v2560
        %2562 = vmatmul.f32.gmra.mxu0 %v2083
        %v2563 = vpop.f32.mrf.mxu0
        %v2564 = vadd.f32 0.0, %v2563
        %2565 = vdwg.mxu0
        %2566 = vmatpush.msra.mxu0 %v2146
        %2567 = vmatpush.msra.mxu0 %v2142
        %2568 = vmatpush.msra.mxu0 %v2138
        %2569 = vmatpush.msra.mxu0 %v2134
        %2570 = vmatpush.msra.mxu0 %v2130
        %2571 = vmatpush.msra.mxu0 %v2126
        %2572 = vmatpush.msra.mxu0 %v2122
        %2573 = vmatpush.msra.mxu0 %v2118
        %2574 = vmatpush.msra.mxu0 %v2114
        %2575 = vmatpush.msra.mxu0 %v2110
        %2576 = vmatpush.msra.mxu0 %v2106
        %2577 = vmatpush.msra.mxu0 %v2102
        %2578 = vmatpush.msra.mxu0 %v2098
        %2579 = vmatpush.msra.mxu0 %v2094
        %2580 = vmatpush.msra.mxu0 %v2090
        %2581 = vmatpush.msra.mxu0 %v2086
        %2582 = vmatmul.f32.gmra.mxu0 %v2020
        %v2583 = vpop.f32.mrf.mxu0
        %v2584 = vadd.f32 0.0, %v2583
        %2585 = vmatmul.f32.gmra.mxu0 %v2021
        %v2586 = vpop.f32.mrf.mxu0
        %v2587 = vadd.f32 0.0, %v2586
        %2588 = vmatmul.f32.gmra.mxu0 %v2022
        %v2589 = vpop.f32.mrf.mxu0
        %v2590 = vadd.f32 0.0, %v2589
        %2591 = vmatmul.f32.gmra.mxu0 %v2023
        %v2592 = vpop.f32.mrf.mxu0
        %v2593 = vadd.f32 0.0, %v2592
        %2594 = vmatmul.f32.gmra.mxu0 %v2024
        %v2595 = vpop.f32.mrf.mxu0
        %v2596 = vadd.f32 0.0, %v2595
        %2597 = vmatmul.f32.gmra.mxu0 %v2025
        %v2598 = vpop.f32.mrf.mxu0
        %v2599 = vadd.f32 0.0, %v2598
        %2600 = vmatmul.f32.gmra.mxu0 %v2026
        %v2601 = vpop.f32.mrf.mxu0
        %v2602 = vadd.f32 0.0, %v2601
        %2603 = vmatmul.f32.gmra.mxu0 %v2027
        %v2604 = vpop.f32.mrf.mxu0
        %v2605 = vadd.f32 0.0, %v2604
        %2606 = vmatmul.f32.gmra.mxu0 %v2028
        %v2607 = vpop.f32.mrf.mxu0
        %v2608 = vadd.f32 0.0, %v2607
        %2609 = vmatmul.f32.gmra.mxu0 %v2029
        %v2610 = vpop.f32.mrf.mxu0
        %v2611 = vadd.f32 0.0, %v2610
        %2612 = vmatmul.f32.gmra.mxu0 %v2030
        %v2613 = vpop.f32.mrf.mxu0
        %v2614 = vadd.f32 0.0, %v2613
        %2615 = vmatmul.f32.gmra.mxu0 %v2031
        %v2616 = vpop.f32.mrf.mxu0
        %v2617 = vadd.f32 0.0, %v2616
        %2618 = vmatmul.f32.gmra.mxu0 %v2032
        %v2619 = vpop.f32.mrf.mxu0
        %v2620 = vadd.f32 0.0, %v2619
        %2621 = vmatmul.f32.gmra.mxu0 %v2033
        %v2622 = vpop.f32.mrf.mxu0
        %v2623 = vadd.f32 0.0, %v2622
        %2624 = vmatmul.f32.gmra.mxu0 %v2034
        %v2625 = vpop.f32.mrf.mxu0
        %v2626 = vadd.f32 0.0, %v2625
        %2627 = vmatmul.f32.gmra.mxu0 %v2035
        %v2628 = vpop.f32.mrf.mxu0
        %v2629 = vadd.f32 0.0, %v2628
        %2630 = vmatmul.f32.gmra.mxu0 %v2036
        %v2631 = vpop.f32.mrf.mxu0
        %v2632 = vadd.f32 0.0, %v2631
        %2633 = vmatmul.f32.gmra.mxu0 %v2037
        %v2634 = vpop.f32.mrf.mxu0
        %v2635 = vadd.f32 0.0, %v2634
        %2636 = vmatmul.f32.gmra.mxu0 %v2038
        %v2637 = vpop.f32.mrf.mxu0
        %v2638 = vadd.f32 0.0, %v2637
        %2639 = vmatmul.f32.gmra.mxu0 %v2039
        %v2640 = vpop.f32.mrf.mxu0
        %v2641 = vadd.f32 0.0, %v2640
        %2642 = vmatmul.f32.gmra.mxu0 %v2040
        %v2643 = vpop.f32.mrf.mxu0
        %v2644 = vadd.f32 0.0, %v2643
        %2645 = vmatmul.f32.gmra.mxu0 %v2041
        %v2646 = vpop.f32.mrf.mxu0
        %v2647 = vadd.f32 0.0, %v2646
        %2648 = vmatmul.f32.gmra.mxu0 %v2042
        %v2649 = vpop.f32.mrf.mxu0
        %v2650 = vadd.f32 0.0, %v2649
        %2651 = vmatmul.f32.gmra.mxu0 %v2043
        %v2652 = vpop.f32.mrf.mxu0
        %v2653 = vadd.f32 0.0, %v2652
        %2654 = vmatmul.f32.gmra.mxu0 %v2044
        %v2655 = vpop.f32.mrf.mxu0
        %v2656 = vadd.f32 0.0, %v2655
        %2657 = vmatmul.f32.gmra.mxu0 %v2045
        %v2658 = vpop.f32.mrf.mxu0
        %v2659 = vadd.f32 0.0, %v2658
        %2660 = vmatmul.f32.gmra.mxu0 %v2046
        %v2661 = vpop.f32.mrf.mxu0
        %v2662 = vadd.f32 0.0, %v2661
        %2663 = vmatmul.f32.gmra.mxu0 %v2047
        %v2664 = vpop.f32.mrf.mxu0
        %v2665 = vadd.f32 0.0, %v2664
        %2666 = vmatmul.f32.gmra.mxu0 %v2048
        %v2667 = vpop.f32.mrf.mxu0
        %v2668 = vadd.f32 0.0, %v2667
        %2669 = vmatmul.f32.gmra.mxu0 %v2049
        %v2670 = vpop.f32.mrf.mxu0
        %v2671 = vadd.f32 0.0, %v2670
        %2672 = vmatmul.f32.gmra.mxu0 %v2050
        %v2673 = vpop.f32.mrf.mxu0
        %v2674 = vadd.f32 0.0, %v2673
        %2675 = vmatmul.f32.gmra.mxu0 %v2051
        %v2676 = vpop.f32.mrf.mxu0
        %v2677 = vadd.f32 0.0, %v2676
        %2678 = vmatmul.f32.gmra.mxu0 %v2052
        %v2679 = vpop.f32.mrf.mxu0
        %v2680 = vadd.f32 0.0, %v2679
        %2681 = vmatmul.f32.gmra.mxu0 %v2053
        %v2682 = vpop.f32.mrf.mxu0
        %v2683 = vadd.f32 0.0, %v2682
        %2684 = vmatmul.f32.gmra.mxu0 %v2054
        %v2685 = vpop.f32.mrf.mxu0
        %v2686 = vadd.f32 0.0, %v2685
        %2687 = vmatmul.f32.gmra.mxu0 %v2055
        %v2688 = vpop.f32.mrf.mxu0
        %v2689 = vadd.f32 0.0, %v2688
        %2690 = vmatmul.f32.gmra.mxu0 %v2056
        %v2691 = vpop.f32.mrf.mxu0
        %v2692 = vadd.f32 0.0, %v2691
        %2693 = vmatmul.f32.gmra.mxu0 %v2057
        %v2694 = vpop.f32.mrf.mxu0
        %v2695 = vadd.f32 0.0, %v2694
        %2696 = vmatmul.f32.gmra.mxu0 %v2058
        %v2697 = vpop.f32.mrf.mxu0
        %v2698 = vadd.f32 0.0, %v2697
        %2699 = vmatmul.f32.gmra.mxu0 %v2059
        %v2700 = vpop.f32.mrf.mxu0
        %v2701 = vadd.f32 0.0, %v2700
        %2702 = vmatmul.f32.gmra.mxu0 %v2060
        %v2703 = vpop.f32.mrf.mxu0
        %v2704 = vadd.f32 0.0, %v2703
        %2705 = vmatmul.f32.gmra.mxu0 %v2061
        %v2706 = vpop.f32.mrf.mxu0
        %v2707 = vadd.f32 0.0, %v2706
        %2708 = vmatmul.f32.gmra.mxu0 %v2062
        %v2709 = vpop.f32.mrf.mxu0
        %v2710 = vadd.f32 0.0, %v2709
        %2711 = vmatmul.f32.gmra.mxu0 %v2063
        %v2712 = vpop.f32.mrf.mxu0
        %v2713 = vadd.f32 0.0, %v2712
        %2714 = vmatmul.f32.gmra.mxu0 %v2064
        %v2715 = vpop.f32.mrf.mxu0
        %v2716 = vadd.f32 0.0, %v2715
        %2717 = vmatmul.f32.gmra.mxu0 %v2065
        %v2718 = vpop.f32.mrf.mxu0
        %v2719 = vadd.f32 0.0, %v2718
        %2720 = vmatmul.f32.gmra.mxu0 %v2066
        %v2721 = vpop.f32.mrf.mxu0
        %v2722 = vadd.f32 0.0, %v2721
        %2723 = vmatmul.f32.gmra.mxu0 %v2067
        %v2724 = vpop.f32.mrf.mxu0
        %v2725 = vadd.f32 0.0, %v2724
        %2726 = vmatmul.f32.gmra.mxu0 %v2068
        %v2727 = vpop.f32.mrf.mxu0
        %v2728 = vadd.f32 0.0, %v2727
        %2729 = vmatmul.f32.gmra.mxu0 %v2069
        %v2730 = vpop.f32.mrf.mxu0
        %v2731 = vadd.f32 0.0, %v2730
        %2732 = vmatmul.f32.gmra.mxu0 %v2070
        %v2733 = vpop.f32.mrf.mxu0
        %v2734 = vadd.f32 0.0, %v2733
        %2735 = vmatmul.f32.gmra.mxu0 %v2071
        %v2736 = vpop.f32.mrf.mxu0
        %v2737 = vadd.f32 0.0, %v2736
        %2738 = vmatmul.f32.gmra.mxu0 %v2072
        %v2739 = vpop.f32.mrf.mxu0
        %v2740 = vadd.f32 0.0, %v2739
        %2741 = vmatmul.f32.gmra.mxu0 %v2073
        %v2742 = vpop.f32.mrf.mxu0
        %v2743 = vadd.f32 0.0, %v2742
        %2744 = vmatmul.f32.gmra.mxu0 %v2074
        %v2745 = vpop.f32.mrf.mxu0
        %v2746 = vadd.f32 0.0, %v2745
        %2747 = vmatmul.f32.gmra.mxu0 %v2075
        %v2748 = vpop.f32.mrf.mxu0
        %v2749 = vadd.f32 0.0, %v2748
        %2750 = vmatmul.f32.gmra.mxu0 %v2076
        %v2751 = vpop.f32.mrf.mxu0
        %v2752 = vadd.f32 0.0, %v2751
        %2753 = vmatmul.f32.gmra.mxu0 %v2077
        %v2754 = vpop.f32.mrf.mxu0
        %v2755 = vadd.f32 0.0, %v2754
        %2756 = vmatmul.f32.gmra.mxu0 %v2078
        %v2757 = vpop.f32.mrf.mxu0
        %v2758 = vadd.f32 0.0, %v2757
        %2759 = vmatmul.f32.gmra.mxu0 %v2079
        %v2760 = vpop.f32.mrf.mxu0
        %v2761 = vadd.f32 0.0, %v2760
        %2762 = vmatmul.f32.gmra.mxu0 %v2080
        %v2763 = vpop.f32.mrf.mxu0
        %v2764 = vadd.f32 0.0, %v2763
        %2765 = vmatmul.f32.gmra.mxu0 %v2081
        %v2766 = vpop.f32.mrf.mxu0
        %v2767 = vadd.f32 0.0, %v2766
        %2768 = vmatmul.f32.gmra.mxu0 %v2082
        %v2769 = vpop.f32.mrf.mxu0
        %v2770 = vadd.f32 0.0, %v2769
        %2771 = vmatmul.f32.gmra.mxu0 %v2083
        %v2772 = vpop.f32.mrf.mxu0
        %v2773 = vadd.f32 0.0, %v2772
        %2774 = vdwg.mxu0
        %2775 = vmatpush.msra.mxu0 %v2147
        %2776 = vmatpush.msra.mxu0 %v2143
        %2777 = vmatpush.msra.mxu0 %v2139
        %2778 = vmatpush.msra.mxu0 %v2135
        %2779 = vmatpush.msra.mxu0 %v2131
        %2780 = vmatpush.msra.mxu0 %v2127
        %2781 = vmatpush.msra.mxu0 %v2123
        %2782 = vmatpush.msra.mxu0 %v2119
        %2783 = vmatpush.msra.mxu0 %v2115
        %2784 = vmatpush.msra.mxu0 %v2111
        %2785 = vmatpush.msra.mxu0 %v2107
        %2786 = vmatpush.msra.mxu0 %v2103
        %2787 = vmatpush.msra.mxu0 %v2099
        %2788 = vmatpush.msra.mxu0 %v2095
        %2789 = vmatpush.msra.mxu0 %v2091
        %2790 = vmatpush.msra.mxu0 %v2087
        %2791 = vmatmul.f32.gmra.mxu0 %v2020
        %v2792 = vpop.f32.mrf.mxu0
        %v2793 = vadd.f32 0.0, %v2792
        %2794 = vmatmul.f32.gmra.mxu0 %v2021
        %v2795 = vpop.f32.mrf.mxu0
        %v2796 = vadd.f32 0.0, %v2795
        %2797 = vmatmul.f32.gmra.mxu0 %v2022
        %v2798 = vpop.f32.mrf.mxu0
        %v2799 = vadd.f32 0.0, %v2798
        %2800 = vmatmul.f32.gmra.mxu0 %v2023
        %v2801 = vpop.f32.mrf.mxu0
        %v2802 = vadd.f32 0.0, %v2801
        %2803 = vmatmul.f32.gmra.mxu0 %v2024
        %v2804 = vpop.f32.mrf.mxu0
        %v2805 = vadd.f32 0.0, %v2804
        %2806 = vmatmul.f32.gmra.mxu0 %v2025
        %v2807 = vpop.f32.mrf.mxu0
        %v2808 = vadd.f32 0.0, %v2807
        %2809 = vmatmul.f32.gmra.mxu0 %v2026
        %v2810 = vpop.f32.mrf.mxu0
        %v2811 = vadd.f32 0.0, %v2810
        %2812 = vmatmul.f32.gmra.mxu0 %v2027
        %v2813 = vpop.f32.mrf.mxu0
        %v2814 = vadd.f32 0.0, %v2813
        %2815 = vmatmul.f32.gmra.mxu0 %v2028
        %v2816 = vpop.f32.mrf.mxu0
        %v2817 = vadd.f32 0.0, %v2816
        %2818 = vmatmul.f32.gmra.mxu0 %v2029
        %v2819 = vpop.f32.mrf.mxu0
        %v2820 = vadd.f32 0.0, %v2819
        %2821 = vmatmul.f32.gmra.mxu0 %v2030
        %v2822 = vpop.f32.mrf.mxu0
        %v2823 = vadd.f32 0.0, %v2822
        %2824 = vmatmul.f32.gmra.mxu0 %v2031
        %v2825 = vpop.f32.mrf.mxu0
        %v2826 = vadd.f32 0.0, %v2825
        %2827 = vmatmul.f32.gmra.mxu0 %v2032
        %v2828 = vpop.f32.mrf.mxu0
        %v2829 = vadd.f32 0.0, %v2828
        %2830 = vmatmul.f32.gmra.mxu0 %v2033
        %v2831 = vpop.f32.mrf.mxu0
        %v2832 = vadd.f32 0.0, %v2831
        %2833 = vmatmul.f32.gmra.mxu0 %v2034
        %v2834 = vpop.f32.mrf.mxu0
        %v2835 = vadd.f32 0.0, %v2834
        %2836 = vmatmul.f32.gmra.mxu0 %v2035
        %v2837 = vpop.f32.mrf.mxu0
        %v2838 = vadd.f32 0.0, %v2837
        %2839 = vmatmul.f32.gmra.mxu0 %v2036
        %v2840 = vpop.f32.mrf.mxu0
        %v2841 = vadd.f32 0.0, %v2840
        %2842 = vmatmul.f32.gmra.mxu0 %v2037
        %v2843 = vpop.f32.mrf.mxu0
        %v2844 = vadd.f32 0.0, %v2843
        %2845 = vmatmul.f32.gmra.mxu0 %v2038
        %v2846 = vpop.f32.mrf.mxu0
        %v2847 = vadd.f32 0.0, %v2846
        %2848 = vmatmul.f32.gmra.mxu0 %v2039
        %v2849 = vpop.f32.mrf.mxu0
        %v2850 = vadd.f32 0.0, %v2849
        %2851 = vmatmul.f32.gmra.mxu0 %v2040
        %v2852 = vpop.f32.mrf.mxu0
        %v2853 = vadd.f32 0.0, %v2852
        %2854 = vmatmul.f32.gmra.mxu0 %v2041
        %v2855 = vpop.f32.mrf.mxu0
        %v2856 = vadd.f32 0.0, %v2855
        %2857 = vmatmul.f32.gmra.mxu0 %v2042
        %v2858 = vpop.f32.mrf.mxu0
        %v2859 = vadd.f32 0.0, %v2858
        %2860 = vmatmul.f32.gmra.mxu0 %v2043
        %v2861 = vpop.f32.mrf.mxu0
        %v2862 = vadd.f32 0.0, %v2861
        %2863 = vmatmul.f32.gmra.mxu0 %v2044
        %v2864 = vpop.f32.mrf.mxu0
        %v2865 = vadd.f32 0.0, %v2864
        %2866 = vmatmul.f32.gmra.mxu0 %v2045
        %v2867 = vpop.f32.mrf.mxu0
        %v2868 = vadd.f32 0.0, %v2867
        %2869 = vmatmul.f32.gmra.mxu0 %v2046
        %v2870 = vpop.f32.mrf.mxu0
        %v2871 = vadd.f32 0.0, %v2870
        %2872 = vmatmul.f32.gmra.mxu0 %v2047
        %v2873 = vpop.f32.mrf.mxu0
        %v2874 = vadd.f32 0.0, %v2873
        %2875 = vmatmul.f32.gmra.mxu0 %v2048
        %v2876 = vpop.f32.mrf.mxu0
        %v2877 = vadd.f32 0.0, %v2876
        %2878 = vmatmul.f32.gmra.mxu0 %v2049
        %v2879 = vpop.f32.mrf.mxu0
        %v2880 = vadd.f32 0.0, %v2879
        %2881 = vmatmul.f32.gmra.mxu0 %v2050
        %v2882 = vpop.f32.mrf.mxu0
        %v2883 = vadd.f32 0.0, %v2882
        %2884 = vmatmul.f32.gmra.mxu0 %v2051
        %v2885 = vpop.f32.mrf.mxu0
        %v2886 = vadd.f32 0.0, %v2885
        %2887 = vmatmul.f32.gmra.mxu0 %v2052
        %v2888 = vpop.f32.mrf.mxu0
        %v2889 = vadd.f32 0.0, %v2888
        %2890 = vmatmul.f32.gmra.mxu0 %v2053
        %v2891 = vpop.f32.mrf.mxu0
        %v2892 = vadd.f32 0.0, %v2891
        %2893 = vmatmul.f32.gmra.mxu0 %v2054
        %v2894 = vpop.f32.mrf.mxu0
        %v2895 = vadd.f32 0.0, %v2894
        %2896 = vmatmul.f32.gmra.mxu0 %v2055
        %v2897 = vpop.f32.mrf.mxu0
        %v2898 = vadd.f32 0.0, %v2897
        %2899 = vmatmul.f32.gmra.mxu0 %v2056
        %v2900 = vpop.f32.mrf.mxu0
        %v2901 = vadd.f32 0.0, %v2900
        %2902 = vmatmul.f32.gmra.mxu0 %v2057
        %v2903 = vpop.f32.mrf.mxu0
        %v2904 = vadd.f32 0.0, %v2903
        %2905 = vmatmul.f32.gmra.mxu0 %v2058
        %v2906 = vpop.f32.mrf.mxu0
        %v2907 = vadd.f32 0.0, %v2906
        %2908 = vmatmul.f32.gmra.mxu0 %v2059
        %v2909 = vpop.f32.mrf.mxu0
        %v2910 = vadd.f32 0.0, %v2909
        %2911 = vmatmul.f32.gmra.mxu0 %v2060
        %v2912 = vpop.f32.mrf.mxu0
        %v2913 = vadd.f32 0.0, %v2912
        %2914 = vmatmul.f32.gmra.mxu0 %v2061
        %v2915 = vpop.f32.mrf.mxu0
        %v2916 = vadd.f32 0.0, %v2915
        %2917 = vmatmul.f32.gmra.mxu0 %v2062
        %v2918 = vpop.f32.mrf.mxu0
        %v2919 = vadd.f32 0.0, %v2918
        %2920 = vmatmul.f32.gmra.mxu0 %v2063
        %v2921 = vpop.f32.mrf.mxu0
        %v2922 = vadd.f32 0.0, %v2921
        %2923 = vmatmul.f32.gmra.mxu0 %v2064
        %v2924 = vpop.f32.mrf.mxu0
        %v2925 = vadd.f32 0.0, %v2924
        %2926 = vmatmul.f32.gmra.mxu0 %v2065
        %v2927 = vpop.f32.mrf.mxu0
        %v2928 = vadd.f32 0.0, %v2927
        %2929 = vmatmul.f32.gmra.mxu0 %v2066
        %v2930 = vpop.f32.mrf.mxu0
        %v2931 = vadd.f32 0.0, %v2930
        %2932 = vmatmul.f32.gmra.mxu0 %v2067
        %v2933 = vpop.f32.mrf.mxu0
        %v2934 = vadd.f32 0.0, %v2933
        %2935 = vmatmul.f32.gmra.mxu0 %v2068
        %v2936 = vpop.f32.mrf.mxu0
        %v2937 = vadd.f32 0.0, %v2936
        %2938 = vmatmul.f32.gmra.mxu0 %v2069
        %v2939 = vpop.f32.mrf.mxu0
        %v2940 = vadd.f32 0.0, %v2939
        %2941 = vmatmul.f32.gmra.mxu0 %v2070
        %v2942 = vpop.f32.mrf.mxu0
        %v2943 = vadd.f32 0.0, %v2942
        %2944 = vmatmul.f32.gmra.mxu0 %v2071
        %v2945 = vpop.f32.mrf.mxu0
        %v2946 = vadd.f32 0.0, %v2945
        %2947 = vmatmul.f32.gmra.mxu0 %v2072
        %v2948 = vpop.f32.mrf.mxu0
        %v2949 = vadd.f32 0.0, %v2948
        %2950 = vmatmul.f32.gmra.mxu0 %v2073
        %v2951 = vpop.f32.mrf.mxu0
        %v2952 = vadd.f32 0.0, %v2951
        %2953 = vmatmul.f32.gmra.mxu0 %v2074
        %v2954 = vpop.f32.mrf.mxu0
        %v2955 = vadd.f32 0.0, %v2954
        %2956 = vmatmul.f32.gmra.mxu0 %v2075
        %v2957 = vpop.f32.mrf.mxu0
        %v2958 = vadd.f32 0.0, %v2957
        %2959 = vmatmul.f32.gmra.mxu0 %v2076
        %v2960 = vpop.f32.mrf.mxu0
        %v2961 = vadd.f32 0.0, %v2960
        %2962 = vmatmul.f32.gmra.mxu0 %v2077
        %v2963 = vpop.f32.mrf.mxu0
        %v2964 = vadd.f32 0.0, %v2963
        %2965 = vmatmul.f32.gmra.mxu0 %v2078
        %v2966 = vpop.f32.mrf.mxu0
        %v2967 = vadd.f32 0.0, %v2966
        %2968 = vmatmul.f32.gmra.mxu0 %v2079
        %v2969 = vpop.f32.mrf.mxu0
        %v2970 = vadd.f32 0.0, %v2969
        %2971 = vmatmul.f32.gmra.mxu0 %v2080
        %v2972 = vpop.f32.mrf.mxu0
        %v2973 = vadd.f32 0.0, %v2972
        %2974 = vmatmul.f32.gmra.mxu0 %v2081
        %v2975 = vpop.f32.mrf.mxu0
        %v2976 = vadd.f32 0.0, %v2975
        %2977 = vmatmul.f32.gmra.mxu0 %v2082
        %v2978 = vpop.f32.mrf.mxu0
        %v2979 = vadd.f32 0.0, %v2978
        %2980 = vmatmul.f32.gmra.mxu0 %v2083
        %v2981 = vpop.f32.mrf.mxu0
        %v2982 = vadd.f32 0.0, %v2981
        %2983 = vdwg.mxu0
        %v2984 = vld [vmem:[%s350] sm:$0xff]
        %v2985 = vld [vmem:[%s350 + $0x8] sm:$0xff]
        %v2986 = vld [vmem:[%s350 + $0x10] sm:$0xff]
        %v2987 = vld [vmem:[%s350 + $0x18] sm:$0xff]
        %v2988 = vld [vmem:[%s350 + $0x20] sm:$0xff]
        %v2989 = vld [vmem:[%s350 + $0x28] sm:$0xff]
        %v2990 = vld [vmem:[%s350 + $0x30] sm:$0xff]
        %v2991 = vld [vmem:[%s350 + $0x38] sm:$0xff]
        %v2992 = vld [vmem:[%s350 + $0x40] sm:$0xff]
        %v2993 = vld [vmem:[%s350 + $0x48] sm:$0xff]
        %v2994 = vld [vmem:[%s350 + $0x50] sm:$0xff]
        %v2995 = vld [vmem:[%s350 + $0x58] sm:$0xff]
        %v2996 = vld [vmem:[%s350 + $0x60] sm:$0xff]
        %v2997 = vld [vmem:[%s350 + $0x68] sm:$0xff]
        %v2998 = vld [vmem:[%s350 + $0x70] sm:$0xff]
        %v2999 = vld [vmem:[%s350 + $0x78] sm:$0xff]
        %v3000 = vld [vmem:[%s350 + $0x80] sm:$0xff]
        %v3001 = vld [vmem:[%s350 + $0x88] sm:$0xff]
        %v3002 = vld [vmem:[%s350 + $0x90] sm:$0xff]
        %v3003 = vld [vmem:[%s350 + $0x98] sm:$0xff]
        %v3004 = vld [vmem:[%s350 + $0xa0] sm:$0xff]
        %v3005 = vld [vmem:[%s350 + $0xa8] sm:$0xff]
        %v3006 = vld [vmem:[%s350 + $0xb0] sm:$0xff]
        %v3007 = vld [vmem:[%s350 + $0xb8] sm:$0xff]
        %v3008 = vld [vmem:[%s350 + $0xc0] sm:$0xff]
        %v3009 = vld [vmem:[%s350 + $0xc8] sm:$0xff]
        %v3010 = vld [vmem:[%s350 + $0xd0] sm:$0xff]
        %v3011 = vld [vmem:[%s350 + $0xd8] sm:$0xff]
        %v3012 = vld [vmem:[%s350 + $0xe0] sm:$0xff]
        %v3013 = vld [vmem:[%s350 + $0xe8] sm:$0xff]
        %v3014 = vld [vmem:[%s350 + $0xf0] sm:$0xff]
        %v3015 = vld [vmem:[%s350 + $0xf8] sm:$0xff]
        %v3016 = vld [vmem:[%s350 + $0x100] sm:$0xff]
        %v3017 = vld [vmem:[%s350 + $0x108] sm:$0xff]
        %v3018 = vld [vmem:[%s350 + $0x110] sm:$0xff]
        %v3019 = vld [vmem:[%s350 + $0x118] sm:$0xff]
        %v3020 = vld [vmem:[%s350 + $0x120] sm:$0xff]
        %v3021 = vld [vmem:[%s350 + $0x128] sm:$0xff]
        %v3022 = vld [vmem:[%s350 + $0x130] sm:$0xff]
        %v3023 = vld [vmem:[%s350 + $0x138] sm:$0xff]
        %v3024 = vld [vmem:[%s350 + $0x140] sm:$0xff]
        %v3025 = vld [vmem:[%s350 + $0x148] sm:$0xff]
        %v3026 = vld [vmem:[%s350 + $0x150] sm:$0xff]
        %v3027 = vld [vmem:[%s350 + $0x158] sm:$0xff]
        %v3028 = vld [vmem:[%s350 + $0x160] sm:$0xff]
        %v3029 = vld [vmem:[%s350 + $0x168] sm:$0xff]
        %v3030 = vld [vmem:[%s350 + $0x170] sm:$0xff]
        %v3031 = vld [vmem:[%s350 + $0x178] sm:$0xff]
        %v3032 = vld [vmem:[%s350 + $0x180] sm:$0xff]
        %v3033 = vld [vmem:[%s350 + $0x188] sm:$0xff]
        %v3034 = vld [vmem:[%s350 + $0x190] sm:$0xff]
        %v3035 = vld [vmem:[%s350 + $0x198] sm:$0xff]
        %v3036 = vld [vmem:[%s350 + $0x1a0] sm:$0xff]
        %v3037 = vld [vmem:[%s350 + $0x1a8] sm:$0xff]
        %v3038 = vld [vmem:[%s350 + $0x1b0] sm:$0xff]
        %v3039 = vld [vmem:[%s350 + $0x1b8] sm:$0xff]
        %v3040 = vld [vmem:[%s350 + $0x1c0] sm:$0xff]
        %v3041 = vld [vmem:[%s350 + $0x1c8] sm:$0xff]
        %v3042 = vld [vmem:[%s350 + $0x1d0] sm:$0xff]
        %v3043 = vld [vmem:[%s350 + $0x1d8] sm:$0xff]
        %v3044 = vld [vmem:[%s350 + $0x1e0] sm:$0xff]
        %v3045 = vld [vmem:[%s350 + $0x1e8] sm:$0xff]
        %v3046 = vld [vmem:[%s350 + $0x1f0] sm:$0xff]
        %v3047 = vld [vmem:[%s350 + $0x1f8] sm:$0xff]
        %3048 = vmatpush.msra.mxu0 %v3044
        %3049 = vmatpush.msra.mxu0 %v3040
        %3050 = vmatpush.msra.mxu0 %v3036
        %3051 = vmatpush.msra.mxu0 %v3032
        %3052 = vmatpush.msra.mxu0 %v3028
        %3053 = vmatpush.msra.mxu0 %v3024
        %3054 = vmatpush.msra.mxu0 %v3020
        %3055 = vmatpush.msra.mxu0 %v3016
        %3056 = vmatpush.msra.mxu0 %v3012
        %3057 = vmatpush.msra.mxu0 %v3008
        %3058 = vmatpush.msra.mxu0 %v3004
        %3059 = vmatpush.msra.mxu0 %v3000
        %3060 = vmatpush.msra.mxu0 %v2996
        %3061 = vmatpush.msra.mxu0 %v2992
        %3062 = vmatpush.msra.mxu0 %v2988
        %3063 = vmatpush.msra.mxu0 %v2984
        %3064 = vmatmul.f32.gmra.mxu0 %v2020
        %v3065 = vpop.f32.mrf.mxu0
        %v3066 = vadd.f32 0.0, %v3065
        %3067 = vmatmul.f32.gmra.mxu0 %v2021
        %v3068 = vpop.f32.mrf.mxu0
        %v3069 = vadd.f32 0.0, %v3068
        %3070 = vmatmul.f32.gmra.mxu0 %v2022
        %v3071 = vpop.f32.mrf.mxu0
        %v3072 = vadd.f32 0.0, %v3071
        %3073 = vmatmul.f32.gmra.mxu0 %v2023
        %v3074 = vpop.f32.mrf.mxu0
        %v3075 = vadd.f32 0.0, %v3074
        %3076 = vmatmul.f32.gmra.mxu0 %v2024
        %v3077 = vpop.f32.mrf.mxu0
        %v3078 = vadd.f32 0.0, %v3077
        %3079 = vmatmul.f32.gmra.mxu0 %v2025
        %v3080 = vpop.f32.mrf.mxu0
        %v3081 = vadd.f32 0.0, %v3080
        %3082 = vmatmul.f32.gmra.mxu0 %v2026
        %v3083 = vpop.f32.mrf.mxu0
        %v3084 = vadd.f32 0.0, %v3083
        %3085 = vmatmul.f32.gmra.mxu0 %v2027
        %v3086 = vpop.f32.mrf.mxu0
        %v3087 = vadd.f32 0.0, %v3086
        %3088 = vmatmul.f32.gmra.mxu0 %v2028
        %v3089 = vpop.f32.mrf.mxu0
        %v3090 = vadd.f32 0.0, %v3089
        %3091 = vmatmul.f32.gmra.mxu0 %v2029
        %v3092 = vpop.f32.mrf.mxu0
        %v3093 = vadd.f32 0.0, %v3092
        %3094 = vmatmul.f32.gmra.mxu0 %v2030
        %v3095 = vpop.f32.mrf.mxu0
        %v3096 = vadd.f32 0.0, %v3095
        %3097 = vmatmul.f32.gmra.mxu0 %v2031
        %v3098 = vpop.f32.mrf.mxu0
        %v3099 = vadd.f32 0.0, %v3098
        %3100 = vmatmul.f32.gmra.mxu0 %v2032
        %v3101 = vpop.f32.mrf.mxu0
        %v3102 = vadd.f32 0.0, %v3101
        %3103 = vmatmul.f32.gmra.mxu0 %v2033
        %v3104 = vpop.f32.mrf.mxu0
        %v3105 = vadd.f32 0.0, %v3104
        %3106 = vmatmul.f32.gmra.mxu0 %v2034
        %v3107 = vpop.f32.mrf.mxu0
        %v3108 = vadd.f32 0.0, %v3107
        %3109 = vmatmul.f32.gmra.mxu0 %v2035
        %v3110 = vpop.f32.mrf.mxu0
        %v3111 = vadd.f32 0.0, %v3110
        %3112 = vmatmul.f32.gmra.mxu0 %v2036
        %v3113 = vpop.f32.mrf.mxu0
        %v3114 = vadd.f32 0.0, %v3113
        %3115 = vmatmul.f32.gmra.mxu0 %v2037
        %v3116 = vpop.f32.mrf.mxu0
        %v3117 = vadd.f32 0.0, %v3116
        %3118 = vmatmul.f32.gmra.mxu0 %v2038
        %v3119 = vpop.f32.mrf.mxu0
        %v3120 = vadd.f32 0.0, %v3119
        %3121 = vmatmul.f32.gmra.mxu0 %v2039
        %v3122 = vpop.f32.mrf.mxu0
        %v3123 = vadd.f32 0.0, %v3122
        %3124 = vmatmul.f32.gmra.mxu0 %v2040
        %v3125 = vpop.f32.mrf.mxu0
        %v3126 = vadd.f32 0.0, %v3125
        %3127 = vmatmul.f32.gmra.mxu0 %v2041
        %v3128 = vpop.f32.mrf.mxu0
        %v3129 = vadd.f32 0.0, %v3128
        %3130 = vmatmul.f32.gmra.mxu0 %v2042
        %v3131 = vpop.f32.mrf.mxu0
        %v3132 = vadd.f32 0.0, %v3131
        %3133 = vmatmul.f32.gmra.mxu0 %v2043
        %v3134 = vpop.f32.mrf.mxu0
        %v3135 = vadd.f32 0.0, %v3134
        %3136 = vmatmul.f32.gmra.mxu0 %v2044
        %v3137 = vpop.f32.mrf.mxu0
        %v3138 = vadd.f32 0.0, %v3137
        %3139 = vmatmul.f32.gmra.mxu0 %v2045
        %v3140 = vpop.f32.mrf.mxu0
        %v3141 = vadd.f32 0.0, %v3140
        %3142 = vmatmul.f32.gmra.mxu0 %v2046
        %v3143 = vpop.f32.mrf.mxu0
        %v3144 = vadd.f32 0.0, %v3143
        %3145 = vmatmul.f32.gmra.mxu0 %v2047
        %v3146 = vpop.f32.mrf.mxu0
        %v3147 = vadd.f32 0.0, %v3146
        %3148 = vmatmul.f32.gmra.mxu0 %v2048
        %v3149 = vpop.f32.mrf.mxu0
        %v3150 = vadd.f32 0.0, %v3149
        %3151 = vmatmul.f32.gmra.mxu0 %v2049
        %v3152 = vpop.f32.mrf.mxu0
        %v3153 = vadd.f32 0.0, %v3152
        %3154 = vmatmul.f32.gmra.mxu0 %v2050
        %v3155 = vpop.f32.mrf.mxu0
        %v3156 = vadd.f32 0.0, %v3155
        %3157 = vmatmul.f32.gmra.mxu0 %v2051
        %v3158 = vpop.f32.mrf.mxu0
        %v3159 = vadd.f32 0.0, %v3158
        %3160 = vmatmul.f32.gmra.mxu0 %v2052
        %v3161 = vpop.f32.mrf.mxu0
        %v3162 = vadd.f32 0.0, %v3161
        %3163 = vmatmul.f32.gmra.mxu0 %v2053
        %v3164 = vpop.f32.mrf.mxu0
        %v3165 = vadd.f32 0.0, %v3164
        %3166 = vmatmul.f32.gmra.mxu0 %v2054
        %v3167 = vpop.f32.mrf.mxu0
        %v3168 = vadd.f32 0.0, %v3167
        %3169 = vmatmul.f32.gmra.mxu0 %v2055
        %v3170 = vpop.f32.mrf.mxu0
        %v3171 = vadd.f32 0.0, %v3170
        %3172 = vmatmul.f32.gmra.mxu0 %v2056
        %v3173 = vpop.f32.mrf.mxu0
        %v3174 = vadd.f32 0.0, %v3173
        %3175 = vmatmul.f32.gmra.mxu0 %v2057
        %v3176 = vpop.f32.mrf.mxu0
        %v3177 = vadd.f32 0.0, %v3176
        %3178 = vmatmul.f32.gmra.mxu0 %v2058
        %v3179 = vpop.f32.mrf.mxu0
        %v3180 = vadd.f32 0.0, %v3179
        %3181 = vmatmul.f32.gmra.mxu0 %v2059
        %v3182 = vpop.f32.mrf.mxu0
        %v3183 = vadd.f32 0.0, %v3182
        %3184 = vmatmul.f32.gmra.mxu0 %v2060
        %v3185 = vpop.f32.mrf.mxu0
        %v3186 = vadd.f32 0.0, %v3185
        %3187 = vmatmul.f32.gmra.mxu0 %v2061
        %v3188 = vpop.f32.mrf.mxu0
        %v3189 = vadd.f32 0.0, %v3188
        %3190 = vmatmul.f32.gmra.mxu0 %v2062
        %v3191 = vpop.f32.mrf.mxu0
        %v3192 = vadd.f32 0.0, %v3191
        %3193 = vmatmul.f32.gmra.mxu0 %v2063
        %v3194 = vpop.f32.mrf.mxu0
        %v3195 = vadd.f32 0.0, %v3194
        %3196 = vmatmul.f32.gmra.mxu0 %v2064
        %v3197 = vpop.f32.mrf.mxu0
        %v3198 = vadd.f32 0.0, %v3197
        %3199 = vmatmul.f32.gmra.mxu0 %v2065
        %v3200 = vpop.f32.mrf.mxu0
        %v3201 = vadd.f32 0.0, %v3200
        %3202 = vmatmul.f32.gmra.mxu0 %v2066
        %v3203 = vpop.f32.mrf.mxu0
        %v3204 = vadd.f32 0.0, %v3203
        %3205 = vmatmul.f32.gmra.mxu0 %v2067
        %v3206 = vpop.f32.mrf.mxu0
        %v3207 = vadd.f32 0.0, %v3206
        %3208 = vmatmul.f32.gmra.mxu0 %v2068
        %v3209 = vpop.f32.mrf.mxu0
        %v3210 = vadd.f32 0.0, %v3209
        %3211 = vmatmul.f32.gmra.mxu0 %v2069
        %v3212 = vpop.f32.mrf.mxu0
        %v3213 = vadd.f32 0.0, %v3212
        %3214 = vmatmul.f32.gmra.mxu0 %v2070
        %v3215 = vpop.f32.mrf.mxu0
        %v3216 = vadd.f32 0.0, %v3215
        %3217 = vmatmul.f32.gmra.mxu0 %v2071
        %v3218 = vpop.f32.mrf.mxu0
        %v3219 = vadd.f32 0.0, %v3218
        %3220 = vmatmul.f32.gmra.mxu0 %v2072
        %v3221 = vpop.f32.mrf.mxu0
        %v3222 = vadd.f32 0.0, %v3221
        %3223 = vmatmul.f32.gmra.mxu0 %v2073
        %v3224 = vpop.f32.mrf.mxu0
        %v3225 = vadd.f32 0.0, %v3224
        %3226 = vmatmul.f32.gmra.mxu0 %v2074
        %v3227 = vpop.f32.mrf.mxu0
        %v3228 = vadd.f32 0.0, %v3227
        %3229 = vmatmul.f32.gmra.mxu0 %v2075
        %v3230 = vpop.f32.mrf.mxu0
        %v3231 = vadd.f32 0.0, %v3230
        %3232 = vmatmul.f32.gmra.mxu0 %v2076
        %v3233 = vpop.f32.mrf.mxu0
        %v3234 = vadd.f32 0.0, %v3233
        %3235 = vmatmul.f32.gmra.mxu0 %v2077
        %v3236 = vpop.f32.mrf.mxu0
        %v3237 = vadd.f32 0.0, %v3236
        %3238 = vmatmul.f32.gmra.mxu0 %v2078
        %v3239 = vpop.f32.mrf.mxu0
        %v3240 = vadd.f32 0.0, %v3239
        %3241 = vmatmul.f32.gmra.mxu0 %v2079
        %v3242 = vpop.f32.mrf.mxu0
        %v3243 = vadd.f32 0.0, %v3242
        %3244 = vmatmul.f32.gmra.mxu0 %v2080
        %v3245 = vpop.f32.mrf.mxu0
        %v3246 = vadd.f32 0.0, %v3245
        %3247 = vmatmul.f32.gmra.mxu0 %v2081
        %v3248 = vpop.f32.mrf.mxu0
        %v3249 = vadd.f32 0.0, %v3248
        %3250 = vmatmul.f32.gmra.mxu0 %v2082
        %v3251 = vpop.f32.mrf.mxu0
        %v3252 = vadd.f32 0.0, %v3251
        %3253 = vmatmul.f32.gmra.mxu0 %v2083
        %v3254 = vpop.f32.mrf.mxu0
        %v3255 = vadd.f32 0.0, %v3254
        %3256 = vdwg.mxu0
        %3257 = vmatpush.msra.mxu0 %v3045
        %3258 = vmatpush.msra.mxu0 %v3041
        %3259 = vmatpush.msra.mxu0 %v3037
        %3260 = vmatpush.msra.mxu0 %v3033
        %3261 = vmatpush.msra.mxu0 %v3029
        %3262 = vmatpush.msra.mxu0 %v3025
        %3263 = vmatpush.msra.mxu0 %v3021
        %3264 = vmatpush.msra.mxu0 %v3017
        %3265 = vmatpush.msra.mxu0 %v3013
        %3266 = vmatpush.msra.mxu0 %v3009
        %3267 = vmatpush.msra.mxu0 %v3005
        %3268 = vmatpush.msra.mxu0 %v3001
        %3269 = vmatpush.msra.mxu0 %v2997
        %3270 = vmatpush.msra.mxu0 %v2993
        %3271 = vmatpush.msra.mxu0 %v2989
        %3272 = vmatpush.msra.mxu0 %v2985
        %3273 = vmatmul.f32.gmra.mxu0 %v2020
        %v3274 = vpop.f32.mrf.mxu0
        %v3275 = vadd.f32 0.0, %v3274
        %3276 = vmatmul.f32.gmra.mxu0 %v2021
        %v3277 = vpop.f32.mrf.mxu0
        %v3278 = vadd.f32 0.0, %v3277
        %3279 = vmatmul.f32.gmra.mxu0 %v2022
        %v3280 = vpop.f32.mrf.mxu0
        %v3281 = vadd.f32 0.0, %v3280
        %3282 = vmatmul.f32.gmra.mxu0 %v2023
        %v3283 = vpop.f32.mrf.mxu0
        %v3284 = vadd.f32 0.0, %v3283
        %3285 = vmatmul.f32.gmra.mxu0 %v2024
        %v3286 = vpop.f32.mrf.mxu0
        %v3287 = vadd.f32 0.0, %v3286
        %3288 = vmatmul.f32.gmra.mxu0 %v2025
        %v3289 = vpop.f32.mrf.mxu0
        %v3290 = vadd.f32 0.0, %v3289
        %3291 = vmatmul.f32.gmra.mxu0 %v2026
        %v3292 = vpop.f32.mrf.mxu0
        %v3293 = vadd.f32 0.0, %v3292
        %3294 = vmatmul.f32.gmra.mxu0 %v2027
        %v3295 = vpop.f32.mrf.mxu0
        %v3296 = vadd.f32 0.0, %v3295
        %3297 = vmatmul.f32.gmra.mxu0 %v2028
        %v3298 = vpop.f32.mrf.mxu0
        %v3299 = vadd.f32 0.0, %v3298
        %3300 = vmatmul.f32.gmra.mxu0 %v2029
        %v3301 = vpop.f32.mrf.mxu0
        %v3302 = vadd.f32 0.0, %v3301
        %3303 = vmatmul.f32.gmra.mxu0 %v2030
        %v3304 = vpop.f32.mrf.mxu0
        %v3305 = vadd.f32 0.0, %v3304
        %3306 = vmatmul.f32.gmra.mxu0 %v2031
        %v3307 = vpop.f32.mrf.mxu0
        %v3308 = vadd.f32 0.0, %v3307
        %3309 = vmatmul.f32.gmra.mxu0 %v2032
        %v3310 = vpop.f32.mrf.mxu0
        %v3311 = vadd.f32 0.0, %v3310
        %3312 = vmatmul.f32.gmra.mxu0 %v2033
        %v3313 = vpop.f32.mrf.mxu0
        %v3314 = vadd.f32 0.0, %v3313
        %3315 = vmatmul.f32.gmra.mxu0 %v2034
        %v3316 = vpop.f32.mrf.mxu0
        %v3317 = vadd.f32 0.0, %v3316
        %3318 = vmatmul.f32.gmra.mxu0 %v2035
        %v3319 = vpop.f32.mrf.mxu0
        %v3320 = vadd.f32 0.0, %v3319
        %3321 = vmatmul.f32.gmra.mxu0 %v2036
        %v3322 = vpop.f32.mrf.mxu0
        %v3323 = vadd.f32 0.0, %v3322
        %3324 = vmatmul.f32.gmra.mxu0 %v2037
        %v3325 = vpop.f32.mrf.mxu0
        %v3326 = vadd.f32 0.0, %v3325
        %3327 = vmatmul.f32.gmra.mxu0 %v2038
        %v3328 = vpop.f32.mrf.mxu0
        %v3329 = vadd.f32 0.0, %v3328
        %3330 = vmatmul.f32.gmra.mxu0 %v2039
        %v3331 = vpop.f32.mrf.mxu0
        %v3332 = vadd.f32 0.0, %v3331
        %3333 = vmatmul.f32.gmra.mxu0 %v2040
        %v3334 = vpop.f32.mrf.mxu0
        %v3335 = vadd.f32 0.0, %v3334
        %3336 = vmatmul.f32.gmra.mxu0 %v2041
        %v3337 = vpop.f32.mrf.mxu0
        %v3338 = vadd.f32 0.0, %v3337
        %3339 = vmatmul.f32.gmra.mxu0 %v2042
        %v3340 = vpop.f32.mrf.mxu0
        %v3341 = vadd.f32 0.0, %v3340
        %3342 = vmatmul.f32.gmra.mxu0 %v2043
        %v3343 = vpop.f32.mrf.mxu0
        %v3344 = vadd.f32 0.0, %v3343
        %3345 = vmatmul.f32.gmra.mxu0 %v2044
        %v3346 = vpop.f32.mrf.mxu0
        %v3347 = vadd.f32 0.0, %v3346
        %3348 = vmatmul.f32.gmra.mxu0 %v2045
        %v3349 = vpop.f32.mrf.mxu0
        %v3350 = vadd.f32 0.0, %v3349
        %3351 = vmatmul.f32.gmra.mxu0 %v2046
        %v3352 = vpop.f32.mrf.mxu0
        %v3353 = vadd.f32 0.0, %v3352
        %3354 = vmatmul.f32.gmra.mxu0 %v2047
        %v3355 = vpop.f32.mrf.mxu0
        %v3356 = vadd.f32 0.0, %v3355
        %3357 = vmatmul.f32.gmra.mxu0 %v2048
        %v3358 = vpop.f32.mrf.mxu0
        %v3359 = vadd.f32 0.0, %v3358
        %3360 = vmatmul.f32.gmra.mxu0 %v2049
        %v3361 = vpop.f32.mrf.mxu0
        %v3362 = vadd.f32 0.0, %v3361
        %3363 = vmatmul.f32.gmra.mxu0 %v2050
        %v3364 = vpop.f32.mrf.mxu0
        %v3365 = vadd.f32 0.0, %v3364
        %3366 = vmatmul.f32.gmra.mxu0 %v2051
        %v3367 = vpop.f32.mrf.mxu0
        %v3368 = vadd.f32 0.0, %v3367
        %3369 = vmatmul.f32.gmra.mxu0 %v2052
        %v3370 = vpop.f32.mrf.mxu0
        %v3371 = vadd.f32 0.0, %v3370
        %3372 = vmatmul.f32.gmra.mxu0 %v2053
        %v3373 = vpop.f32.mrf.mxu0
        %v3374 = vadd.f32 0.0, %v3373
        %3375 = vmatmul.f32.gmra.mxu0 %v2054
        %v3376 = vpop.f32.mrf.mxu0
        %v3377 = vadd.f32 0.0, %v3376
        %3378 = vmatmul.f32.gmra.mxu0 %v2055
        %v3379 = vpop.f32.mrf.mxu0
        %v3380 = vadd.f32 0.0, %v3379
        %3381 = vmatmul.f32.gmra.mxu0 %v2056
        %v3382 = vpop.f32.mrf.mxu0
        %v3383 = vadd.f32 0.0, %v3382
        %3384 = vmatmul.f32.gmra.mxu0 %v2057
        %v3385 = vpop.f32.mrf.mxu0
        %v3386 = vadd.f32 0.0, %v3385
        %3387 = vmatmul.f32.gmra.mxu0 %v2058
        %v3388 = vpop.f32.mrf.mxu0
        %v3389 = vadd.f32 0.0, %v3388
        %3390 = vmatmul.f32.gmra.mxu0 %v2059
        %v3391 = vpop.f32.mrf.mxu0
        %v3392 = vadd.f32 0.0, %v3391
        %3393 = vmatmul.f32.gmra.mxu0 %v2060
        %v3394 = vpop.f32.mrf.mxu0
        %v3395 = vadd.f32 0.0, %v3394
        %3396 = vmatmul.f32.gmra.mxu0 %v2061
        %v3397 = vpop.f32.mrf.mxu0
        %v3398 = vadd.f32 0.0, %v3397
        %3399 = vmatmul.f32.gmra.mxu0 %v2062
        %v3400 = vpop.f32.mrf.mxu0
        %v3401 = vadd.f32 0.0, %v3400
        %3402 = vmatmul.f32.gmra.mxu0 %v2063
        %v3403 = vpop.f32.mrf.mxu0
        %v3404 = vadd.f32 0.0, %v3403
        %3405 = vmatmul.f32.gmra.mxu0 %v2064
        %v3406 = vpop.f32.mrf.mxu0
        %v3407 = vadd.f32 0.0, %v3406
        %3408 = vmatmul.f32.gmra.mxu0 %v2065
        %v3409 = vpop.f32.mrf.mxu0
        %v3410 = vadd.f32 0.0, %v3409
        %3411 = vmatmul.f32.gmra.mxu0 %v2066
        %v3412 = vpop.f32.mrf.mxu0
        %v3413 = vadd.f32 0.0, %v3412
        %3414 = vmatmul.f32.gmra.mxu0 %v2067
        %v3415 = vpop.f32.mrf.mxu0
        %v3416 = vadd.f32 0.0, %v3415
        %3417 = vmatmul.f32.gmra.mxu0 %v2068
        %v3418 = vpop.f32.mrf.mxu0
        %v3419 = vadd.f32 0.0, %v3418
        %3420 = vmatmul.f32.gmra.mxu0 %v2069
        %v3421 = vpop.f32.mrf.mxu0
        %v3422 = vadd.f32 0.0, %v3421
        %3423 = vmatmul.f32.gmra.mxu0 %v2070
        %v3424 = vpop.f32.mrf.mxu0
        %v3425 = vadd.f32 0.0, %v3424
        %3426 = vmatmul.f32.gmra.mxu0 %v2071
        %v3427 = vpop.f32.mrf.mxu0
        %v3428 = vadd.f32 0.0, %v3427
        %3429 = vmatmul.f32.gmra.mxu0 %v2072
        %v3430 = vpop.f32.mrf.mxu0
        %v3431 = vadd.f32 0.0, %v3430
        %3432 = vmatmul.f32.gmra.mxu0 %v2073
        %v3433 = vpop.f32.mrf.mxu0
        %v3434 = vadd.f32 0.0, %v3433
        %3435 = vmatmul.f32.gmra.mxu0 %v2074
        %v3436 = vpop.f32.mrf.mxu0
        %v3437 = vadd.f32 0.0, %v3436
        %3438 = vmatmul.f32.gmra.mxu0 %v2075
        %v3439 = vpop.f32.mrf.mxu0
        %v3440 = vadd.f32 0.0, %v3439
        %3441 = vmatmul.f32.gmra.mxu0 %v2076
        %v3442 = vpop.f32.mrf.mxu0
        %v3443 = vadd.f32 0.0, %v3442
        %3444 = vmatmul.f32.gmra.mxu0 %v2077
        %v3445 = vpop.f32.mrf.mxu0
        %v3446 = vadd.f32 0.0, %v3445
        %3447 = vmatmul.f32.gmra.mxu0 %v2078
        %v3448 = vpop.f32.mrf.mxu0
        %v3449 = vadd.f32 0.0, %v3448
        %3450 = vmatmul.f32.gmra.mxu0 %v2079
        %v3451 = vpop.f32.mrf.mxu0
        %v3452 = vadd.f32 0.0, %v3451
        %3453 = vmatmul.f32.gmra.mxu0 %v2080
        %v3454 = vpop.f32.mrf.mxu0
        %v3455 = vadd.f32 0.0, %v3454
        %3456 = vmatmul.f32.gmra.mxu0 %v2081
        %v3457 = vpop.f32.mrf.mxu0
        %v3458 = vadd.f32 0.0, %v3457
        %3459 = vmatmul.f32.gmra.mxu0 %v2082
        %v3460 = vpop.f32.mrf.mxu0
        %v3461 = vadd.f32 0.0, %v3460
        %3462 = vmatmul.f32.gmra.mxu0 %v2083
        %v3463 = vpop.f32.mrf.mxu0
        %v3464 = vadd.f32 0.0, %v3463
        %3465 = vdwg.mxu0
        %3466 = vmatpush.msra.mxu0 %v3046
        %3467 = vmatpush.msra.mxu0 %v3042
        %3468 = vmatpush.msra.mxu0 %v3038
        %3469 = vmatpush.msra.mxu0 %v3034
        %3470 = vmatpush.msra.mxu0 %v3030
        %3471 = vmatpush.msra.mxu0 %v3026
        %3472 = vmatpush.msra.mxu0 %v3022
        %3473 = vmatpush.msra.mxu0 %v3018
        %3474 = vmatpush.msra.mxu0 %v3014
        %3475 = vmatpush.msra.mxu0 %v3010
        %3476 = vmatpush.msra.mxu0 %v3006
        %3477 = vmatpush.msra.mxu0 %v3002
        %3478 = vmatpush.msra.mxu0 %v2998
        %3479 = vmatpush.msra.mxu0 %v2994
        %3480 = vmatpush.msra.mxu0 %v2990
        %3481 = vmatpush.msra.mxu0 %v2986
        %3482 = vmatmul.f32.gmra.mxu0 %v2020
        %v3483 = vpop.f32.mrf.mxu0
        %v3484 = vadd.f32 0.0, %v3483
        %3485 = vmatmul.f32.gmra.mxu0 %v2021
        %v3486 = vpop.f32.mrf.mxu0
        %v3487 = vadd.f32 0.0, %v3486
        %3488 = vmatmul.f32.gmra.mxu0 %v2022
        %v3489 = vpop.f32.mrf.mxu0
        %v3490 = vadd.f32 0.0, %v3489
        %3491 = vmatmul.f32.gmra.mxu0 %v2023
        %v3492 = vpop.f32.mrf.mxu0
        %v3493 = vadd.f32 0.0, %v3492
        %3494 = vmatmul.f32.gmra.mxu0 %v2024
        %v3495 = vpop.f32.mrf.mxu0
        %v3496 = vadd.f32 0.0, %v3495
        %3497 = vmatmul.f32.gmra.mxu0 %v2025
        %v3498 = vpop.f32.mrf.mxu0
        %v3499 = vadd.f32 0.0, %v3498
        %3500 = vmatmul.f32.gmra.mxu0 %v2026
        %v3501 = vpop.f32.mrf.mxu0
        %v3502 = vadd.f32 0.0, %v3501
        %3503 = vmatmul.f32.gmra.mxu0 %v2027
        %v3504 = vpop.f32.mrf.mxu0
        %v3505 = vadd.f32 0.0, %v3504
        %3506 = vmatmul.f32.gmra.mxu0 %v2028
        %v3507 = vpop.f32.mrf.mxu0
        %v3508 = vadd.f32 0.0, %v3507
        %3509 = vmatmul.f32.gmra.mxu0 %v2029
        %v3510 = vpop.f32.mrf.mxu0
        %v3511 = vadd.f32 0.0, %v3510
        %3512 = vmatmul.f32.gmra.mxu0 %v2030
        %v3513 = vpop.f32.mrf.mxu0
        %v3514 = vadd.f32 0.0, %v3513
        %3515 = vmatmul.f32.gmra.mxu0 %v2031
        %v3516 = vpop.f32.mrf.mxu0
        %v3517 = vadd.f32 0.0, %v3516
        %3518 = vmatmul.f32.gmra.mxu0 %v2032
        %v3519 = vpop.f32.mrf.mxu0
        %v3520 = vadd.f32 0.0, %v3519
        %3521 = vmatmul.f32.gmra.mxu0 %v2033
        %v3522 = vpop.f32.mrf.mxu0
        %v3523 = vadd.f32 0.0, %v3522
        %3524 = vmatmul.f32.gmra.mxu0 %v2034
        %v3525 = vpop.f32.mrf.mxu0
        %v3526 = vadd.f32 0.0, %v3525
        %3527 = vmatmul.f32.gmra.mxu0 %v2035
        %v3528 = vpop.f32.mrf.mxu0
        %v3529 = vadd.f32 0.0, %v3528
        %3530 = vmatmul.f32.gmra.mxu0 %v2036
        %v3531 = vpop.f32.mrf.mxu0
        %v3532 = vadd.f32 0.0, %v3531
        %3533 = vmatmul.f32.gmra.mxu0 %v2037
        %v3534 = vpop.f32.mrf.mxu0
        %v3535 = vadd.f32 0.0, %v3534
        %3536 = vmatmul.f32.gmra.mxu0 %v2038
        %v3537 = vpop.f32.mrf.mxu0
        %v3538 = vadd.f32 0.0, %v3537
        %3539 = vmatmul.f32.gmra.mxu0 %v2039
        %v3540 = vpop.f32.mrf.mxu0
        %v3541 = vadd.f32 0.0, %v3540
        %3542 = vmatmul.f32.gmra.mxu0 %v2040
        %v3543 = vpop.f32.mrf.mxu0
        %v3544 = vadd.f32 0.0, %v3543
        %3545 = vmatmul.f32.gmra.mxu0 %v2041
        %v3546 = vpop.f32.mrf.mxu0
        %v3547 = vadd.f32 0.0, %v3546
        %3548 = vmatmul.f32.gmra.mxu0 %v2042
        %v3549 = vpop.f32.mrf.mxu0
        %v3550 = vadd.f32 0.0, %v3549
        %3551 = vmatmul.f32.gmra.mxu0 %v2043
        %v3552 = vpop.f32.mrf.mxu0
        %v3553 = vadd.f32 0.0, %v3552
        %3554 = vmatmul.f32.gmra.mxu0 %v2044
        %v3555 = vpop.f32.mrf.mxu0
        %v3556 = vadd.f32 0.0, %v3555
        %3557 = vmatmul.f32.gmra.mxu0 %v2045
        %v3558 = vpop.f32.mrf.mxu0
        %v3559 = vadd.f32 0.0, %v3558
        %3560 = vmatmul.f32.gmra.mxu0 %v2046
        %v3561 = vpop.f32.mrf.mxu0
        %v3562 = vadd.f32 0.0, %v3561
        %3563 = vmatmul.f32.gmra.mxu0 %v2047
        %v3564 = vpop.f32.mrf.mxu0
        %v3565 = vadd.f32 0.0, %v3564
        %3566 = vmatmul.f32.gmra.mxu0 %v2048
        %v3567 = vpop.f32.mrf.mxu0
        %v3568 = vadd.f32 0.0, %v3567
        %3569 = vmatmul.f32.gmra.mxu0 %v2049
        %v3570 = vpop.f32.mrf.mxu0
        %v3571 = vadd.f32 0.0, %v3570
        %3572 = vmatmul.f32.gmra.mxu0 %v2050
        %v3573 = vpop.f32.mrf.mxu0
        %v3574 = vadd.f32 0.0, %v3573
        %3575 = vmatmul.f32.gmra.mxu0 %v2051
        %v3576 = vpop.f32.mrf.mxu0
        %v3577 = vadd.f32 0.0, %v3576
        %3578 = vmatmul.f32.gmra.mxu0 %v2052
        %v3579 = vpop.f32.mrf.mxu0
        %v3580 = vadd.f32 0.0, %v3579
        %3581 = vmatmul.f32.gmra.mxu0 %v2053
        %v3582 = vpop.f32.mrf.mxu0
        %v3583 = vadd.f32 0.0, %v3582
        %3584 = vmatmul.f32.gmra.mxu0 %v2054
        %v3585 = vpop.f32.mrf.mxu0
        %v3586 = vadd.f32 0.0, %v3585
        %3587 = vmatmul.f32.gmra.mxu0 %v2055
        %v3588 = vpop.f32.mrf.mxu0
        %v3589 = vadd.f32 0.0, %v3588
        %3590 = vmatmul.f32.gmra.mxu0 %v2056
        %v3591 = vpop.f32.mrf.mxu0
        %v3592 = vadd.f32 0.0, %v3591
        %3593 = vmatmul.f32.gmra.mxu0 %v2057
        %v3594 = vpop.f32.mrf.mxu0
        %v3595 = vadd.f32 0.0, %v3594
        %3596 = vmatmul.f32.gmra.mxu0 %v2058
        %v3597 = vpop.f32.mrf.mxu0
        %v3598 = vadd.f32 0.0, %v3597
        %3599 = vmatmul.f32.gmra.mxu0 %v2059
        %v3600 = vpop.f32.mrf.mxu0
        %v3601 = vadd.f32 0.0, %v3600
        %3602 = vmatmul.f32.gmra.mxu0 %v2060
        %v3603 = vpop.f32.mrf.mxu0
        %v3604 = vadd.f32 0.0, %v3603
        %3605 = vmatmul.f32.gmra.mxu0 %v2061
        %v3606 = vpop.f32.mrf.mxu0
        %v3607 = vadd.f32 0.0, %v3606
        %3608 = vmatmul.f32.gmra.mxu0 %v2062
        %v3609 = vpop.f32.mrf.mxu0
        %v3610 = vadd.f32 0.0, %v3609
        %3611 = vmatmul.f32.gmra.mxu0 %v2063
        %v3612 = vpop.f32.mrf.mxu0
        %v3613 = vadd.f32 0.0, %v3612
        %3614 = vmatmul.f32.gmra.mxu0 %v2064
        %v3615 = vpop.f32.mrf.mxu0
        %v3616 = vadd.f32 0.0, %v3615
        %3617 = vmatmul.f32.gmra.mxu0 %v2065
        %v3618 = vpop.f32.mrf.mxu0
        %v3619 = vadd.f32 0.0, %v3618
        %3620 = vmatmul.f32.gmra.mxu0 %v2066
        %v3621 = vpop.f32.mrf.mxu0
        %v3622 = vadd.f32 0.0, %v3621
        %3623 = vmatmul.f32.gmra.mxu0 %v2067
        %v3624 = vpop.f32.mrf.mxu0
        %v3625 = vadd.f32 0.0, %v3624
        %3626 = vmatmul.f32.gmra.mxu0 %v2068
        %v3627 = vpop.f32.mrf.mxu0
        %v3628 = vadd.f32 0.0, %v3627
        %3629 = vmatmul.f32.gmra.mxu0 %v2069
        %v3630 = vpop.f32.mrf.mxu0
        %v3631 = vadd.f32 0.0, %v3630
        %3632 = vmatmul.f32.gmra.mxu0 %v2070
        %v3633 = vpop.f32.mrf.mxu0
        %v3634 = vadd.f32 0.0, %v3633
        %3635 = vmatmul.f32.gmra.mxu0 %v2071
        %v3636 = vpop.f32.mrf.mxu0
        %v3637 = vadd.f32 0.0, %v3636
        %3638 = vmatmul.f32.gmra.mxu0 %v2072
        %v3639 = vpop.f32.mrf.mxu0
        %v3640 = vadd.f32 0.0, %v3639
        %3641 = vmatmul.f32.gmra.mxu0 %v2073
        %v3642 = vpop.f32.mrf.mxu0
        %v3643 = vadd.f32 0.0, %v3642
        %3644 = vmatmul.f32.gmra.mxu0 %v2074
        %v3645 = vpop.f32.mrf.mxu0
        %v3646 = vadd.f32 0.0, %v3645
        %3647 = vmatmul.f32.gmra.mxu0 %v2075
        %v3648 = vpop.f32.mrf.mxu0
        %v3649 = vadd.f32 0.0, %v3648
        %3650 = vmatmul.f32.gmra.mxu0 %v2076
        %v3651 = vpop.f32.mrf.mxu0
        %v3652 = vadd.f32 0.0, %v3651
        %3653 = vmatmul.f32.gmra.mxu0 %v2077
        %v3654 = vpop.f32.mrf.mxu0
        %v3655 = vadd.f32 0.0, %v3654
        %3656 = vmatmul.f32.gmra.mxu0 %v2078
        %v3657 = vpop.f32.mrf.mxu0
        %v3658 = vadd.f32 0.0, %v3657
        %3659 = vmatmul.f32.gmra.mxu0 %v2079
        %v3660 = vpop.f32.mrf.mxu0
        %v3661 = vadd.f32 0.0, %v3660
        %3662 = vmatmul.f32.gmra.mxu0 %v2080
        %v3663 = vpop.f32.mrf.mxu0
        %v3664 = vadd.f32 0.0, %v3663
        %3665 = vmatmul.f32.gmra.mxu0 %v2081
        %v3666 = vpop.f32.mrf.mxu0
        %v3667 = vadd.f32 0.0, %v3666
        %3668 = vmatmul.f32.gmra.mxu0 %v2082
        %v3669 = vpop.f32.mrf.mxu0
        %v3670 = vadd.f32 0.0, %v3669
        %3671 = vmatmul.f32.gmra.mxu0 %v2083
        %v3672 = vpop.f32.mrf.mxu0
        %v3673 = vadd.f32 0.0, %v3672
        %3674 = vdwg.mxu0
        %3675 = vmatpush.msra.mxu0 %v3047
        %3676 = vmatpush.msra.mxu0 %v3043
        %3677 = vmatpush.msra.mxu0 %v3039
        %3678 = vmatpush.msra.mxu0 %v3035
        %3679 = vmatpush.msra.mxu0 %v3031
        %3680 = vmatpush.msra.mxu0 %v3027
        %3681 = vmatpush.msra.mxu0 %v3023
        %3682 = vmatpush.msra.mxu0 %v3019
        %3683 = vmatpush.msra.mxu0 %v3015
        %3684 = vmatpush.msra.mxu0 %v3011
        %3685 = vmatpush.msra.mxu0 %v3007
        %3686 = vmatpush.msra.mxu0 %v3003
        %3687 = vmatpush.msra.mxu0 %v2999
        %3688 = vmatpush.msra.mxu0 %v2995
        %3689 = vmatpush.msra.mxu0 %v2991
        %3690 = vmatpush.msra.mxu0 %v2987
        %3691 = vmatmul.f32.gmra.mxu0 %v2020
        %v3692 = vpop.f32.mrf.mxu0
        %v3693 = vadd.f32 0.0, %v3692
        %3694 = vmatmul.f32.gmra.mxu0 %v2021
        %v3695 = vpop.f32.mrf.mxu0
        %v3696 = vadd.f32 0.0, %v3695
        %3697 = vmatmul.f32.gmra.mxu0 %v2022
        %v3698 = vpop.f32.mrf.mxu0
        %v3699 = vadd.f32 0.0, %v3698
        %3700 = vmatmul.f32.gmra.mxu0 %v2023
        %v3701 = vpop.f32.mrf.mxu0
        %v3702 = vadd.f32 0.0, %v3701
        %3703 = vmatmul.f32.gmra.mxu0 %v2024
        %v3704 = vpop.f32.mrf.mxu0
        %v3705 = vadd.f32 0.0, %v3704
        %3706 = vmatmul.f32.gmra.mxu0 %v2025
        %v3707 = vpop.f32.mrf.mxu0
        %v3708 = vadd.f32 0.0, %v3707
        %3709 = vmatmul.f32.gmra.mxu0 %v2026
        %v3710 = vpop.f32.mrf.mxu0
        %v3711 = vadd.f32 0.0, %v3710
        %3712 = vmatmul.f32.gmra.mxu0 %v2027
        %v3713 = vpop.f32.mrf.mxu0
        %v3714 = vadd.f32 0.0, %v3713
        %3715 = vmatmul.f32.gmra.mxu0 %v2028
        %v3716 = vpop.f32.mrf.mxu0
        %v3717 = vadd.f32 0.0, %v3716
        %3718 = vmatmul.f32.gmra.mxu0 %v2029
        %v3719 = vpop.f32.mrf.mxu0
        %v3720 = vadd.f32 0.0, %v3719
        %3721 = vmatmul.f32.gmra.mxu0 %v2030
        %v3722 = vpop.f32.mrf.mxu0
        %v3723 = vadd.f32 0.0, %v3722
        %3724 = vmatmul.f32.gmra.mxu0 %v2031
        %v3725 = vpop.f32.mrf.mxu0
        %v3726 = vadd.f32 0.0, %v3725
        %3727 = vmatmul.f32.gmra.mxu0 %v2032
        %v3728 = vpop.f32.mrf.mxu0
        %v3729 = vadd.f32 0.0, %v3728
        %3730 = vmatmul.f32.gmra.mxu0 %v2033
        %v3731 = vpop.f32.mrf.mxu0
        %v3732 = vadd.f32 0.0, %v3731
        %3733 = vmatmul.f32.gmra.mxu0 %v2034
        %v3734 = vpop.f32.mrf.mxu0
        %v3735 = vadd.f32 0.0, %v3734
        %3736 = vmatmul.f32.gmra.mxu0 %v2035
        %v3737 = vpop.f32.mrf.mxu0
        %v3738 = vadd.f32 0.0, %v3737
        %3739 = vmatmul.f32.gmra.mxu0 %v2036
        %v3740 = vpop.f32.mrf.mxu0
        %v3741 = vadd.f32 0.0, %v3740
        %3742 = vmatmul.f32.gmra.mxu0 %v2037
        %v3743 = vpop.f32.mrf.mxu0
        %v3744 = vadd.f32 0.0, %v3743
        %3745 = vmatmul.f32.gmra.mxu0 %v2038
        %v3746 = vpop.f32.mrf.mxu0
        %v3747 = vadd.f32 0.0, %v3746
        %3748 = vmatmul.f32.gmra.mxu0 %v2039
        %v3749 = vpop.f32.mrf.mxu0
        %v3750 = vadd.f32 0.0, %v3749
        %3751 = vmatmul.f32.gmra.mxu0 %v2040
        %v3752 = vpop.f32.mrf.mxu0
        %v3753 = vadd.f32 0.0, %v3752
        %3754 = vmatmul.f32.gmra.mxu0 %v2041
        %v3755 = vpop.f32.mrf.mxu0
        %v3756 = vadd.f32 0.0, %v3755
        %3757 = vmatmul.f32.gmra.mxu0 %v2042
        %v3758 = vpop.f32.mrf.mxu0
        %v3759 = vadd.f32 0.0, %v3758
        %3760 = vmatmul.f32.gmra.mxu0 %v2043
        %v3761 = vpop.f32.mrf.mxu0
        %v3762 = vadd.f32 0.0, %v3761
        %3763 = vmatmul.f32.gmra.mxu0 %v2044
        %v3764 = vpop.f32.mrf.mxu0
        %v3765 = vadd.f32 0.0, %v3764
        %3766 = vmatmul.f32.gmra.mxu0 %v2045
        %v3767 = vpop.f32.mrf.mxu0
        %v3768 = vadd.f32 0.0, %v3767
        %3769 = vmatmul.f32.gmra.mxu0 %v2046
        %v3770 = vpop.f32.mrf.mxu0
        %v3771 = vadd.f32 0.0, %v3770
        %3772 = vmatmul.f32.gmra.mxu0 %v2047
        %v3773 = vpop.f32.mrf.mxu0
        %v3774 = vadd.f32 0.0, %v3773
        %3775 = vmatmul.f32.gmra.mxu0 %v2048
        %v3776 = vpop.f32.mrf.mxu0
        %v3777 = vadd.f32 0.0, %v3776
        %3778 = vmatmul.f32.gmra.mxu0 %v2049
        %v3779 = vpop.f32.mrf.mxu0
        %v3780 = vadd.f32 0.0, %v3779
        %3781 = vmatmul.f32.gmra.mxu0 %v2050
        %v3782 = vpop.f32.mrf.mxu0
        %v3783 = vadd.f32 0.0, %v3782
        %3784 = vmatmul.f32.gmra.mxu0 %v2051
        %v3785 = vpop.f32.mrf.mxu0
        %v3786 = vadd.f32 0.0, %v3785
        %3787 = vmatmul.f32.gmra.mxu0 %v2052
        %v3788 = vpop.f32.mrf.mxu0
        %v3789 = vadd.f32 0.0, %v3788
        %3790 = vmatmul.f32.gmra.mxu0 %v2053
        %v3791 = vpop.f32.mrf.mxu0
        %v3792 = vadd.f32 0.0, %v3791
        %3793 = vmatmul.f32.gmra.mxu0 %v2054
        %v3794 = vpop.f32.mrf.mxu0
        %v3795 = vadd.f32 0.0, %v3794
        %3796 = vmatmul.f32.gmra.mxu0 %v2055
        %v3797 = vpop.f32.mrf.mxu0
        %v3798 = vadd.f32 0.0, %v3797
        %3799 = vmatmul.f32.gmra.mxu0 %v2056
        %v3800 = vpop.f32.mrf.mxu0
        %v3801 = vadd.f32 0.0, %v3800
        %3802 = vmatmul.f32.gmra.mxu0 %v2057
        %v3803 = vpop.f32.mrf.mxu0
        %v3804 = vadd.f32 0.0, %v3803
        %3805 = vmatmul.f32.gmra.mxu0 %v2058
        %v3806 = vpop.f32.mrf.mxu0
        %v3807 = vadd.f32 0.0, %v3806
        %3808 = vmatmul.f32.gmra.mxu0 %v2059
        %v3809 = vpop.f32.mrf.mxu0
        %v3810 = vadd.f32 0.0, %v3809
        %3811 = vmatmul.f32.gmra.mxu0 %v2060
        %v3812 = vpop.f32.mrf.mxu0
        %v3813 = vadd.f32 0.0, %v3812
        %3814 = vmatmul.f32.gmra.mxu0 %v2061
        %v3815 = vpop.f32.mrf.mxu0
        %v3816 = vadd.f32 0.0, %v3815
        %3817 = vmatmul.f32.gmra.mxu0 %v2062
        %v3818 = vpop.f32.mrf.mxu0
        %v3819 = vadd.f32 0.0, %v3818
        %3820 = vmatmul.f32.gmra.mxu0 %v2063
        %v3821 = vpop.f32.mrf.mxu0
        %v3822 = vadd.f32 0.0, %v3821
        %3823 = vmatmul.f32.gmra.mxu0 %v2064
        %v3824 = vpop.f32.mrf.mxu0
        %v3825 = vadd.f32 0.0, %v3824
        %3826 = vmatmul.f32.gmra.mxu0 %v2065
        %v3827 = vpop.f32.mrf.mxu0
        %v3828 = vadd.f32 0.0, %v3827
        %3829 = vmatmul.f32.gmra.mxu0 %v2066
        %v3830 = vpop.f32.mrf.mxu0
        %v3831 = vadd.f32 0.0, %v3830
        %3832 = vmatmul.f32.gmra.mxu0 %v2067
        %v3833 = vpop.f32.mrf.mxu0
        %v3834 = vadd.f32 0.0, %v3833
        %3835 = vmatmul.f32.gmra.mxu0 %v2068
        %v3836 = vpop.f32.mrf.mxu0
        %v3837 = vadd.f32 0.0, %v3836
        %3838 = vmatmul.f32.gmra.mxu0 %v2069
        %v3839 = vpop.f32.mrf.mxu0
        %v3840 = vadd.f32 0.0, %v3839
        %3841 = vmatmul.f32.gmra.mxu0 %v2070
        %v3842 = vpop.f32.mrf.mxu0
        %v3843 = vadd.f32 0.0, %v3842
        %3844 = vmatmul.f32.gmra.mxu0 %v2071
        %v3845 = vpop.f32.mrf.mxu0
        %v3846 = vadd.f32 0.0, %v3845
        %3847 = vmatmul.f32.gmra.mxu0 %v2072
        %v3848 = vpop.f32.mrf.mxu0
        %v3849 = vadd.f32 0.0, %v3848
        %3850 = vmatmul.f32.gmra.mxu0 %v2073
        %v3851 = vpop.f32.mrf.mxu0
        %v3852 = vadd.f32 0.0, %v3851
        %3853 = vmatmul.f32.gmra.mxu0 %v2074
        %v3854 = vpop.f32.mrf.mxu0
        %v3855 = vadd.f32 0.0, %v3854
        %3856 = vmatmul.f32.gmra.mxu0 %v2075
        %v3857 = vpop.f32.mrf.mxu0
        %v3858 = vadd.f32 0.0, %v3857
        %3859 = vmatmul.f32.gmra.mxu0 %v2076
        %v3860 = vpop.f32.mrf.mxu0
        %v3861 = vadd.f32 0.0, %v3860
        %3862 = vmatmul.f32.gmra.mxu0 %v2077
        %v3863 = vpop.f32.mrf.mxu0
        %v3864 = vadd.f32 0.0, %v3863
        %3865 = vmatmul.f32.gmra.mxu0 %v2078
        %v3866 = vpop.f32.mrf.mxu0
        %v3867 = vadd.f32 0.0, %v3866
        %3868 = vmatmul.f32.gmra.mxu0 %v2079
        %v3869 = vpop.f32.mrf.mxu0
        %v3870 = vadd.f32 0.0, %v3869
        %3871 = vmatmul.f32.gmra.mxu0 %v2080
        %v3872 = vpop.f32.mrf.mxu0
        %v3873 = vadd.f32 0.0, %v3872
        %3874 = vmatmul.f32.gmra.mxu0 %v2081
        %v3875 = vpop.f32.mrf.mxu0
        %v3876 = vadd.f32 0.0, %v3875
        %3877 = vmatmul.f32.gmra.mxu0 %v2082
        %v3878 = vpop.f32.mrf.mxu0
        %v3879 = vadd.f32 0.0, %v3878
        %3880 = vmatmul.f32.gmra.mxu0 %v2083
        %v3881 = vpop.f32.mrf.mxu0
        %v3882 = vadd.f32 0.0, %v3881
        %3883 = vdwg.mxu0
        %v3884 = vxor.u32 %v3066, 2147483648
        %v3885 = vxor.u32 %v3275, 2147483648
        %v3886 = vxor.u32 %v3484, 2147483648
        %v3887 = vxor.u32 %v3693, 2147483648
        %v3888 = vxor.u32 %v3069, 2147483648
        %v3889 = vxor.u32 %v3278, 2147483648
        %v3890 = vxor.u32 %v3487, 2147483648
        %v3891 = vxor.u32 %v3696, 2147483648
        %v3892 = vxor.u32 %v3072, 2147483648
        %v3893 = vxor.u32 %v3281, 2147483648
        %v3894 = vxor.u32 %v3490, 2147483648
        %v3895 = vxor.u32 %v3699, 2147483648
        %v3896 = vxor.u32 %v3075, 2147483648
        %v3897 = vxor.u32 %v3284, 2147483648
        %v3898 = vxor.u32 %v3493, 2147483648
        %v3899 = vxor.u32 %v3702, 2147483648
        %v3900 = vxor.u32 %v3078, 2147483648
        %v3901 = vxor.u32 %v3287, 2147483648
        %v3902 = vxor.u32 %v3496, 2147483648
        %v3903 = vxor.u32 %v3705, 2147483648
        %v3904 = vxor.u32 %v3081, 2147483648
        %v3905 = vxor.u32 %v3290, 2147483648
        %v3906 = vxor.u32 %v3499, 2147483648
        %v3907 = vxor.u32 %v3708, 2147483648
        %v3908 = vxor.u32 %v3084, 2147483648
        %v3909 = vxor.u32 %v3293, 2147483648
        %v3910 = vxor.u32 %v3502, 2147483648
        %v3911 = vxor.u32 %v3711, 2147483648
        %v3912 = vxor.u32 %v3087, 2147483648
        %v3913 = vxor.u32 %v3296, 2147483648
        %v3914 = vxor.u32 %v3505, 2147483648
        %v3915 = vxor.u32 %v3714, 2147483648
        %v3916 = vxor.u32 %v3090, 2147483648
        %v3917 = vxor.u32 %v3299, 2147483648
        %v3918 = vxor.u32 %v3508, 2147483648
        %v3919 = vxor.u32 %v3717, 2147483648
        %v3920 = vxor.u32 %v3093, 2147483648
        %v3921 = vxor.u32 %v3302, 2147483648
        %v3922 = vxor.u32 %v3511, 2147483648
        %v3923 = vxor.u32 %v3720, 2147483648
        %v3924 = vxor.u32 %v3096, 2147483648
        %v3925 = vxor.u32 %v3305, 2147483648
        %v3926 = vxor.u32 %v3514, 2147483648
        %v3927 = vxor.u32 %v3723, 2147483648
        %v3928 = vxor.u32 %v3099, 2147483648
        %v3929 = vxor.u32 %v3308, 2147483648
        %v3930 = vxor.u32 %v3517, 2147483648
        %v3931 = vxor.u32 %v3726, 2147483648
        %v3932 = vxor.u32 %v3102, 2147483648
        %v3933 = vxor.u32 %v3311, 2147483648
        %v3934 = vxor.u32 %v3520, 2147483648
        %v3935 = vxor.u32 %v3729, 2147483648
        %v3936 = vxor.u32 %v3105, 2147483648
        %v3937 = vxor.u32 %v3314, 2147483648
        %v3938 = vxor.u32 %v3523, 2147483648
        %v3939 = vxor.u32 %v3732, 2147483648
        %v3940 = vxor.u32 %v3108, 2147483648
        %v3941 = vxor.u32 %v3317, 2147483648
        %v3942 = vxor.u32 %v3526, 2147483648
        %v3943 = vxor.u32 %v3735, 2147483648
        %v3944 = vxor.u32 %v3111, 2147483648
        %v3945 = vxor.u32 %v3320, 2147483648
        %v3946 = vxor.u32 %v3529, 2147483648
        %v3947 = vxor.u32 %v3738, 2147483648
        %v3948 = vxor.u32 %v3114, 2147483648
        %v3949 = vxor.u32 %v3323, 2147483648
        %v3950 = vxor.u32 %v3532, 2147483648
        %v3951 = vxor.u32 %v3741, 2147483648
        %v3952 = vxor.u32 %v3117, 2147483648
        %v3953 = vxor.u32 %v3326, 2147483648
        %v3954 = vxor.u32 %v3535, 2147483648
        %v3955 = vxor.u32 %v3744, 2147483648
        %v3956 = vxor.u32 %v3120, 2147483648
        %v3957 = vxor.u32 %v3329, 2147483648
        %v3958 = vxor.u32 %v3538, 2147483648
        %v3959 = vxor.u32 %v3747, 2147483648
        %v3960 = vxor.u32 %v3123, 2147483648
        %v3961 = vxor.u32 %v3332, 2147483648
        %v3962 = vxor.u32 %v3541, 2147483648
        %v3963 = vxor.u32 %v3750, 2147483648
        %v3964 = vxor.u32 %v3126, 2147483648
        %v3965 = vxor.u32 %v3335, 2147483648
        %v3966 = vxor.u32 %v3544, 2147483648
        %v3967 = vxor.u32 %v3753, 2147483648
        %v3968 = vxor.u32 %v3129, 2147483648
        %v3969 = vxor.u32 %v3338, 2147483648
        %v3970 = vxor.u32 %v3547, 2147483648
        %v3971 = vxor.u32 %v3756, 2147483648
        %v3972 = vxor.u32 %v3132, 2147483648
        %v3973 = vxor.u32 %v3341, 2147483648
        %v3974 = vxor.u32 %v3550, 2147483648
        %v3975 = vxor.u32 %v3759, 2147483648
        %v3976 = vxor.u32 %v3135, 2147483648
        %v3977 = vxor.u32 %v3344, 2147483648
        %v3978 = vxor.u32 %v3553, 2147483648
        %v3979 = vxor.u32 %v3762, 2147483648
        %v3980 = vxor.u32 %v3138, 2147483648
        %v3981 = vxor.u32 %v3347, 2147483648
        %v3982 = vxor.u32 %v3556, 2147483648
        %v3983 = vxor.u32 %v3765, 2147483648
        %v3984 = vxor.u32 %v3141, 2147483648
        %v3985 = vxor.u32 %v3350, 2147483648
        %v3986 = vxor.u32 %v3559, 2147483648
        %v3987 = vxor.u32 %v3768, 2147483648
        %v3988 = vxor.u32 %v3144, 2147483648
        %v3989 = vxor.u32 %v3353, 2147483648
        %v3990 = vxor.u32 %v3562, 2147483648
        %v3991 = vxor.u32 %v3771, 2147483648
        %v3992 = vxor.u32 %v3147, 2147483648
        %v3993 = vxor.u32 %v3356, 2147483648
        %v3994 = vxor.u32 %v3565, 2147483648
        %v3995 = vxor.u32 %v3774, 2147483648
        %v3996 = vxor.u32 %v3150, 2147483648
        %v3997 = vxor.u32 %v3359, 2147483648
        %v3998 = vxor.u32 %v3568, 2147483648
        %v3999 = vxor.u32 %v3777, 2147483648
        %v4000 = vxor.u32 %v3153, 2147483648
        %v4001 = vxor.u32 %v3362, 2147483648
        %v4002 = vxor.u32 %v3571, 2147483648
        %v4003 = vxor.u32 %v3780, 2147483648
        %v4004 = vxor.u32 %v3156, 2147483648
        %v4005 = vxor.u32 %v3365, 2147483648
        %v4006 = vxor.u32 %v3574, 2147483648
        %v4007 = vxor.u32 %v3783, 2147483648
        %v4008 = vxor.u32 %v3159, 2147483648
        %v4009 = vxor.u32 %v3368, 2147483648
        %v4010 = vxor.u32 %v3577, 2147483648
        %v4011 = vxor.u32 %v3786, 2147483648
        %v4012 = vxor.u32 %v3162, 2147483648
        %v4013 = vxor.u32 %v3371, 2147483648
        %v4014 = vxor.u32 %v3580, 2147483648
        %v4015 = vxor.u32 %v3789, 2147483648
        %v4016 = vxor.u32 %v3165, 2147483648
        %v4017 = vxor.u32 %v3374, 2147483648
        %v4018 = vxor.u32 %v3583, 2147483648
        %v4019 = vxor.u32 %v3792, 2147483648
        %v4020 = vxor.u32 %v3168, 2147483648
        %v4021 = vxor.u32 %v3377, 2147483648
        %v4022 = vxor.u32 %v3586, 2147483648
        %v4023 = vxor.u32 %v3795, 2147483648
        %v4024 = vxor.u32 %v3171, 2147483648
        %v4025 = vxor.u32 %v3380, 2147483648
        %v4026 = vxor.u32 %v3589, 2147483648
        %v4027 = vxor.u32 %v3798, 2147483648
        %v4028 = vxor.u32 %v3174, 2147483648
        %v4029 = vxor.u32 %v3383, 2147483648
        %v4030 = vxor.u32 %v3592, 2147483648
        %v4031 = vxor.u32 %v3801, 2147483648
        %v4032 = vxor.u32 %v3177, 2147483648
        %v4033 = vxor.u32 %v3386, 2147483648
        %v4034 = vxor.u32 %v3595, 2147483648
        %v4035 = vxor.u32 %v3804, 2147483648
        %v4036 = vxor.u32 %v3180, 2147483648
        %v4037 = vxor.u32 %v3389, 2147483648
        %v4038 = vxor.u32 %v3598, 2147483648
        %v4039 = vxor.u32 %v3807, 2147483648
        %v4040 = vxor.u32 %v3183, 2147483648
        %v4041 = vxor.u32 %v3392, 2147483648
        %v4042 = vxor.u32 %v3601, 2147483648
        %v4043 = vxor.u32 %v3810, 2147483648
        %v4044 = vxor.u32 %v3186, 2147483648
        %v4045 = vxor.u32 %v3395, 2147483648
        %v4046 = vxor.u32 %v3604, 2147483648
        %v4047 = vxor.u32 %v3813, 2147483648
        %v4048 = vxor.u32 %v3189, 2147483648
        %v4049 = vxor.u32 %v3398, 2147483648
        %v4050 = vxor.u32 %v3607, 2147483648
        %v4051 = vxor.u32 %v3816, 2147483648
        %v4052 = vxor.u32 %v3192, 2147483648
        %v4053 = vxor.u32 %v3401, 2147483648
        %v4054 = vxor.u32 %v3610, 2147483648
        %v4055 = vxor.u32 %v3819, 2147483648
        %v4056 = vxor.u32 %v3195, 2147483648
        %v4057 = vxor.u32 %v3404, 2147483648
        %v4058 = vxor.u32 %v3613, 2147483648
        %v4059 = vxor.u32 %v3822, 2147483648
        %v4060 = vxor.u32 %v3198, 2147483648
        %v4061 = vxor.u32 %v3407, 2147483648
        %v4062 = vxor.u32 %v3616, 2147483648
        %v4063 = vxor.u32 %v3825, 2147483648
        %v4064 = vxor.u32 %v3201, 2147483648
        %v4065 = vxor.u32 %v3410, 2147483648
        %v4066 = vxor.u32 %v3619, 2147483648
        %v4067 = vxor.u32 %v3828, 2147483648
        %v4068 = vxor.u32 %v3204, 2147483648
        %v4069 = vxor.u32 %v3413, 2147483648
        %v4070 = vxor.u32 %v3622, 2147483648
        %v4071 = vxor.u32 %v3831, 2147483648
        %v4072 = vxor.u32 %v3207, 2147483648
        %v4073 = vxor.u32 %v3416, 2147483648
        %v4074 = vxor.u32 %v3625, 2147483648
        %v4075 = vxor.u32 %v3834, 2147483648
        %v4076 = vxor.u32 %v3210, 2147483648
        %v4077 = vxor.u32 %v3419, 2147483648
        %v4078 = vxor.u32 %v3628, 2147483648
        %v4079 = vxor.u32 %v3837, 2147483648
        %v4080 = vxor.u32 %v3213, 2147483648
        %v4081 = vxor.u32 %v3422, 2147483648
        %v4082 = vxor.u32 %v3631, 2147483648
        %v4083 = vxor.u32 %v3840, 2147483648
        %v4084 = vxor.u32 %v3216, 2147483648
        %v4085 = vxor.u32 %v3425, 2147483648
        %v4086 = vxor.u32 %v3634, 2147483648
        %v4087 = vxor.u32 %v3843, 2147483648
        %v4088 = vxor.u32 %v3219, 2147483648
        %v4089 = vxor.u32 %v3428, 2147483648
        %v4090 = vxor.u32 %v3637, 2147483648
        %v4091 = vxor.u32 %v3846, 2147483648
        %v4092 = vxor.u32 %v3222, 2147483648
        %v4093 = vxor.u32 %v3431, 2147483648
        %v4094 = vxor.u32 %v3640, 2147483648
        %v4095 = vxor.u32 %v3849, 2147483648
        %v4096 = vxor.u32 %v3225, 2147483648
        %v4097 = vxor.u32 %v3434, 2147483648
        %v4098 = vxor.u32 %v3643, 2147483648
        %v4099 = vxor.u32 %v3852, 2147483648
        %v4100 = vxor.u32 %v3228, 2147483648
        %v4101 = vxor.u32 %v3437, 2147483648
        %v4102 = vxor.u32 %v3646, 2147483648
        %v4103 = vxor.u32 %v3855, 2147483648
        %v4104 = vxor.u32 %v3231, 2147483648
        %v4105 = vxor.u32 %v3440, 2147483648
        %v4106 = vxor.u32 %v3649, 2147483648
        %v4107 = vxor.u32 %v3858, 2147483648
        %v4108 = vxor.u32 %v3234, 2147483648
        %v4109 = vxor.u32 %v3443, 2147483648
        %v4110 = vxor.u32 %v3652, 2147483648
        %v4111 = vxor.u32 %v3861, 2147483648
        %v4112 = vxor.u32 %v3237, 2147483648
        %v4113 = vxor.u32 %v3446, 2147483648
        %v4114 = vxor.u32 %v3655, 2147483648
        %v4115 = vxor.u32 %v3864, 2147483648
        %v4116 = vxor.u32 %v3240, 2147483648
        %v4117 = vxor.u32 %v3449, 2147483648
        %v4118 = vxor.u32 %v3658, 2147483648
        %v4119 = vxor.u32 %v3867, 2147483648
        %v4120 = vxor.u32 %v3243, 2147483648
        %v4121 = vxor.u32 %v3452, 2147483648
        %v4122 = vxor.u32 %v3661, 2147483648
        %v4123 = vxor.u32 %v3870, 2147483648
        %v4124 = vxor.u32 %v3246, 2147483648
        %v4125 = vxor.u32 %v3455, 2147483648
        %v4126 = vxor.u32 %v3664, 2147483648
        %v4127 = vxor.u32 %v3873, 2147483648
        %v4128 = vxor.u32 %v3249, 2147483648
        %v4129 = vxor.u32 %v3458, 2147483648
        %v4130 = vxor.u32 %v3667, 2147483648
        %v4131 = vxor.u32 %v3876, 2147483648
        %v4132 = vxor.u32 %v3252, 2147483648
        %v4133 = vxor.u32 %v3461, 2147483648
        %v4134 = vxor.u32 %v3670, 2147483648
        %v4135 = vxor.u32 %v3879, 2147483648
        %v4136 = vxor.u32 %v3255, 2147483648
        %v4137 = vxor.u32 %v3464, 2147483648
        %v4138 = vxor.u32 %v3673, 2147483648
        %v4139 = vxor.u32 %v3882, 2147483648
        %v4140 = vmul.f32 %v3884, 1.442695
        %v4141 = vpow.pop %v4140
        %v4142 = vmul.f32 %v3885, 1.442695
        %v4143 = vpow.pop %v4142
        %v4144 = vmul.f32 %v3886, 1.442695
        %v4145 = vpow.pop %v4144
        %v4146 = vmul.f32 %v3887, 1.442695
        %v4147 = vpow.pop %v4146
        %v4148 = vmul.f32 %v3888, 1.442695
        %v4149 = vpow.pop %v4148
        %v4150 = vmul.f32 %v3889, 1.442695
        %v4151 = vpow.pop %v4150
        %v4152 = vmul.f32 %v3890, 1.442695
        %v4153 = vpow.pop %v4152
        %v4154 = vmul.f32 %v3891, 1.442695
        %v4155 = vpow.pop %v4154
        %v4156 = vmul.f32 %v3892, 1.442695
        %v4157 = vpow.pop %v4156
        %v4158 = vmul.f32 %v3893, 1.442695
        %v4159 = vpow.pop %v4158
        %v4160 = vmul.f32 %v3894, 1.442695
        %v4161 = vpow.pop %v4160
        %v4162 = vmul.f32 %v3895, 1.442695
        %v4163 = vpow.pop %v4162
        %v4164 = vmul.f32 %v3896, 1.442695
        %v4165 = vpow.pop %v4164
        %v4166 = vmul.f32 %v3897, 1.442695
        %v4167 = vpow.pop %v4166
        %v4168 = vmul.f32 %v3898, 1.442695
        %v4169 = vpow.pop %v4168
        %v4170 = vmul.f32 %v3899, 1.442695
        %v4171 = vpow.pop %v4170
        %v4172 = vmul.f32 %v3900, 1.442695
        %v4173 = vpow.pop %v4172
        %v4174 = vmul.f32 %v3901, 1.442695
        %v4175 = vpow.pop %v4174
        %v4176 = vmul.f32 %v3902, 1.442695
        %v4177 = vpow.pop %v4176
        %v4178 = vmul.f32 %v3903, 1.442695
        %v4179 = vpow.pop %v4178
        %v4180 = vmul.f32 %v3904, 1.442695
        %v4181 = vpow.pop %v4180
        %v4182 = vmul.f32 %v3905, 1.442695
        %v4183 = vpow.pop %v4182
        %v4184 = vmul.f32 %v3906, 1.442695
        %v4185 = vpow.pop %v4184
        %v4186 = vmul.f32 %v3907, 1.442695
        %v4187 = vpow.pop %v4186
        %v4188 = vmul.f32 %v3908, 1.442695
        %v4189 = vpow.pop %v4188
        %v4190 = vmul.f32 %v3909, 1.442695
        %v4191 = vpow.pop %v4190
        %v4192 = vmul.f32 %v3910, 1.442695
        %v4193 = vpow.pop %v4192
        %v4194 = vmul.f32 %v3911, 1.442695
        %v4195 = vpow.pop %v4194
        %v4196 = vmul.f32 %v3912, 1.442695
        %v4197 = vpow.pop %v4196
        %v4198 = vmul.f32 %v3913, 1.442695
        %v4199 = vpow.pop %v4198
        %v4200 = vmul.f32 %v3914, 1.442695
        %v4201 = vpow.pop %v4200
        %v4202 = vmul.f32 %v3915, 1.442695
        %v4203 = vpow.pop %v4202
        %v4204 = vmul.f32 %v3916, 1.442695
        %v4205 = vpow.pop %v4204
        %v4206 = vmul.f32 %v3917, 1.442695
        %v4207 = vpow.pop %v4206
        %v4208 = vmul.f32 %v3918, 1.442695
        %v4209 = vpow.pop %v4208
        %v4210 = vmul.f32 %v3919, 1.442695
        %v4211 = vpow.pop %v4210
        %v4212 = vmul.f32 %v3920, 1.442695
        %v4213 = vpow.pop %v4212
        %v4214 = vmul.f32 %v3921, 1.442695
        %v4215 = vpow.pop %v4214
        %v4216 = vmul.f32 %v3922, 1.442695
        %v4217 = vpow.pop %v4216
        %v4218 = vmul.f32 %v3923, 1.442695
        %v4219 = vpow.pop %v4218
        %v4220 = vmul.f32 %v3924, 1.442695
        %v4221 = vpow.pop %v4220
        %v4222 = vmul.f32 %v3925, 1.442695
        %v4223 = vpow.pop %v4222
        %v4224 = vmul.f32 %v3926, 1.442695
        %v4225 = vpow.pop %v4224
        %v4226 = vmul.f32 %v3927, 1.442695
        %v4227 = vpow.pop %v4226
        %v4228 = vmul.f32 %v3928, 1.442695
        %v4229 = vpow.pop %v4228
        %v4230 = vmul.f32 %v3929, 1.442695
        %v4231 = vpow.pop %v4230
        %v4232 = vmul.f32 %v3930, 1.442695
        %v4233 = vpow.pop %v4232
        %v4234 = vmul.f32 %v3931, 1.442695
        %v4235 = vpow.pop %v4234
        %v4236 = vmul.f32 %v3932, 1.442695
        %v4237 = vpow.pop %v4236
        %v4238 = vmul.f32 %v3933, 1.442695
        %v4239 = vpow.pop %v4238
        %v4240 = vmul.f32 %v3934, 1.442695
        %v4241 = vpow.pop %v4240
        %v4242 = vmul.f32 %v3935, 1.442695
        %v4243 = vpow.pop %v4242
        %v4244 = vmul.f32 %v3936, 1.442695
        %v4245 = vpow.pop %v4244
        %v4246 = vmul.f32 %v3937, 1.442695
        %v4247 = vpow.pop %v4246
        %v4248 = vmul.f32 %v3938, 1.442695
        %v4249 = vpow.pop %v4248
        %v4250 = vmul.f32 %v3939, 1.442695
        %v4251 = vpow.pop %v4250
        %v4252 = vmul.f32 %v3940, 1.442695
        %v4253 = vpow.pop %v4252
        %v4254 = vmul.f32 %v3941, 1.442695
        %v4255 = vpow.pop %v4254
        %v4256 = vmul.f32 %v3942, 1.442695
        %v4257 = vpow.pop %v4256
        %v4258 = vmul.f32 %v3943, 1.442695
        %v4259 = vpow.pop %v4258
        %v4260 = vmul.f32 %v3944, 1.442695
        %v4261 = vpow.pop %v4260
        %v4262 = vmul.f32 %v3945, 1.442695
        %v4263 = vpow.pop %v4262
        %v4264 = vmul.f32 %v3946, 1.442695
        %v4265 = vpow.pop %v4264
        %v4266 = vmul.f32 %v3947, 1.442695
        %v4267 = vpow.pop %v4266
        %v4268 = vmul.f32 %v3948, 1.442695
        %v4269 = vpow.pop %v4268
        %v4270 = vmul.f32 %v3949, 1.442695
        %v4271 = vpow.pop %v4270
        %v4272 = vmul.f32 %v3950, 1.442695
        %v4273 = vpow.pop %v4272
        %v4274 = vmul.f32 %v3951, 1.442695
        %v4275 = vpow.pop %v4274
        %v4276 = vmul.f32 %v3952, 1.442695
        %v4277 = vpow.pop %v4276
        %v4278 = vmul.f32 %v3953, 1.442695
        %v4279 = vpow.pop %v4278
        %v4280 = vmul.f32 %v3954, 1.442695
        %v4281 = vpow.pop %v4280
        %v4282 = vmul.f32 %v3955, 1.442695
        %v4283 = vpow.pop %v4282
        %v4284 = vmul.f32 %v3956, 1.442695
        %v4285 = vpow.pop %v4284
        %v4286 = vmul.f32 %v3957, 1.442695
        %v4287 = vpow.pop %v4286
        %v4288 = vmul.f32 %v3958, 1.442695
        %v4289 = vpow.pop %v4288
        %v4290 = vmul.f32 %v3959, 1.442695
        %v4291 = vpow.pop %v4290
        %v4292 = vmul.f32 %v3960, 1.442695
        %v4293 = vpow.pop %v4292
        %v4294 = vmul.f32 %v3961, 1.442695
        %v4295 = vpow.pop %v4294
        %v4296 = vmul.f32 %v3962, 1.442695
        %v4297 = vpow.pop %v4296
        %v4298 = vmul.f32 %v3963, 1.442695
        %v4299 = vpow.pop %v4298
        %v4300 = vmul.f32 %v3964, 1.442695
        %v4301 = vpow.pop %v4300
        %v4302 = vmul.f32 %v3965, 1.442695
        %v4303 = vpow.pop %v4302
        %v4304 = vmul.f32 %v3966, 1.442695
        %v4305 = vpow.pop %v4304
        %v4306 = vmul.f32 %v3967, 1.442695
        %v4307 = vpow.pop %v4306
        %v4308 = vmul.f32 %v3968, 1.442695
        %v4309 = vpow.pop %v4308
        %v4310 = vmul.f32 %v3969, 1.442695
        %v4311 = vpow.pop %v4310
        %v4312 = vmul.f32 %v3970, 1.442695
        %v4313 = vpow.pop %v4312
        %v4314 = vmul.f32 %v3971, 1.442695
        %v4315 = vpow.pop %v4314
        %v4316 = vmul.f32 %v3972, 1.442695
        %v4317 = vpow.pop %v4316
        %v4318 = vmul.f32 %v3973, 1.442695
        %v4319 = vpow.pop %v4318
        %v4320 = vmul.f32 %v3974, 1.442695
        %v4321 = vpow.pop %v4320
        %v4322 = vmul.f32 %v3975, 1.442695
        %v4323 = vpow.pop %v4322
        %v4324 = vmul.f32 %v3976, 1.442695
        %v4325 = vpow.pop %v4324
        %v4326 = vmul.f32 %v3977, 1.442695
        %v4327 = vpow.pop %v4326
        %v4328 = vmul.f32 %v3978, 1.442695
        %v4329 = vpow.pop %v4328
        %v4330 = vmul.f32 %v3979, 1.442695
        %v4331 = vpow.pop %v4330
        %v4332 = vmul.f32 %v3980, 1.442695
        %v4333 = vpow.pop %v4332
        %v4334 = vmul.f32 %v3981, 1.442695
        %v4335 = vpow.pop %v4334
        %v4336 = vmul.f32 %v3982, 1.442695
        %v4337 = vpow.pop %v4336
        %v4338 = vmul.f32 %v3983, 1.442695
        %v4339 = vpow.pop %v4338
        %v4340 = vmul.f32 %v3984, 1.442695
        %v4341 = vpow.pop %v4340
        %v4342 = vmul.f32 %v3985, 1.442695
        %v4343 = vpow.pop %v4342
        %v4344 = vmul.f32 %v3986, 1.442695
        %v4345 = vpow.pop %v4344
        %v4346 = vmul.f32 %v3987, 1.442695
        %v4347 = vpow.pop %v4346
        %v4348 = vmul.f32 %v3988, 1.442695
        %v4349 = vpow.pop %v4348
        %v4350 = vmul.f32 %v3989, 1.442695
        %v4351 = vpow.pop %v4350
        %v4352 = vmul.f32 %v3990, 1.442695
        %v4353 = vpow.pop %v4352
        %v4354 = vmul.f32 %v3991, 1.442695
        %v4355 = vpow.pop %v4354
        %v4356 = vmul.f32 %v3992, 1.442695
        %v4357 = vpow.pop %v4356
        %v4358 = vmul.f32 %v3993, 1.442695
        %v4359 = vpow.pop %v4358
        %v4360 = vmul.f32 %v3994, 1.442695
        %v4361 = vpow.pop %v4360
        %v4362 = vmul.f32 %v3995, 1.442695
        %v4363 = vpow.pop %v4362
        %v4364 = vmul.f32 %v3996, 1.442695
        %v4365 = vpow.pop %v4364
        %v4366 = vmul.f32 %v3997, 1.442695
        %v4367 = vpow.pop %v4366
        %v4368 = vmul.f32 %v3998, 1.442695
        %v4369 = vpow.pop %v4368
        %v4370 = vmul.f32 %v3999, 1.442695
        %v4371 = vpow.pop %v4370
        %v4372 = vmul.f32 %v4000, 1.442695
        %v4373 = vpow.pop %v4372
        %v4374 = vmul.f32 %v4001, 1.442695
        %v4375 = vpow.pop %v4374
        %v4376 = vmul.f32 %v4002, 1.442695
        %v4377 = vpow.pop %v4376
        %v4378 = vmul.f32 %v4003, 1.442695
        %v4379 = vpow.pop %v4378
        %v4380 = vmul.f32 %v4004, 1.442695
        %v4381 = vpow.pop %v4380
        %v4382 = vmul.f32 %v4005, 1.442695
        %v4383 = vpow.pop %v4382
        %v4384 = vmul.f32 %v4006, 1.442695
        %v4385 = vpow.pop %v4384
        %v4386 = vmul.f32 %v4007, 1.442695
        %v4387 = vpow.pop %v4386
        %v4388 = vmul.f32 %v4008, 1.442695
        %v4389 = vpow.pop %v4388
        %v4390 = vmul.f32 %v4009, 1.442695
        %v4391 = vpow.pop %v4390
        %v4392 = vmul.f32 %v4010, 1.442695
        %v4393 = vpow.pop %v4392
        %v4394 = vmul.f32 %v4011, 1.442695
        %v4395 = vpow.pop %v4394
        %v4396 = vmul.f32 %v4012, 1.442695
        %v4397 = vpow.pop %v4396
        %v4398 = vmul.f32 %v4013, 1.442695
        %v4399 = vpow.pop %v4398
        %v4400 = vmul.f32 %v4014, 1.442695
        %v4401 = vpow.pop %v4400
        %v4402 = vmul.f32 %v4015, 1.442695
        %v4403 = vpow.pop %v4402
        %v4404 = vmul.f32 %v4016, 1.442695
        %v4405 = vpow.pop %v4404
        %v4406 = vmul.f32 %v4017, 1.442695
        %v4407 = vpow.pop %v4406
        %v4408 = vmul.f32 %v4018, 1.442695
        %v4409 = vpow.pop %v4408
        %v4410 = vmul.f32 %v4019, 1.442695
        %v4411 = vpow.pop %v4410
        %v4412 = vmul.f32 %v4020, 1.442695
        %v4413 = vpow.pop %v4412
        %v4414 = vmul.f32 %v4021, 1.442695
        %v4415 = vpow.pop %v4414
        %v4416 = vmul.f32 %v4022, 1.442695
        %v4417 = vpow.pop %v4416
        %v4418 = vmul.f32 %v4023, 1.442695
        %v4419 = vpow.pop %v4418
        %v4420 = vmul.f32 %v4024, 1.442695
        %v4421 = vpow.pop %v4420
        %v4422 = vmul.f32 %v4025, 1.442695
        %v4423 = vpow.pop %v4422
        %v4424 = vmul.f32 %v4026, 1.442695
        %v4425 = vpow.pop %v4424
        %v4426 = vmul.f32 %v4027, 1.442695
        %v4427 = vpow.pop %v4426
        %v4428 = vmul.f32 %v4028, 1.442695
        %v4429 = vpow.pop %v4428
        %v4430 = vmul.f32 %v4029, 1.442695
        %v4431 = vpow.pop %v4430
        %v4432 = vmul.f32 %v4030, 1.442695
        %v4433 = vpow.pop %v4432
        %v4434 = vmul.f32 %v4031, 1.442695
        %v4435 = vpow.pop %v4434
        %v4436 = vmul.f32 %v4032, 1.442695
        %v4437 = vpow.pop %v4436
        %v4438 = vmul.f32 %v4033, 1.442695
        %v4439 = vpow.pop %v4438
        %v4440 = vmul.f32 %v4034, 1.442695
        %v4441 = vpow.pop %v4440
        %v4442 = vmul.f32 %v4035, 1.442695
        %v4443 = vpow.pop %v4442
        %v4444 = vmul.f32 %v4036, 1.442695
        %v4445 = vpow.pop %v4444
        %v4446 = vmul.f32 %v4037, 1.442695
        %v4447 = vpow.pop %v4446
        %v4448 = vmul.f32 %v4038, 1.442695
        %v4449 = vpow.pop %v4448
        %v4450 = vmul.f32 %v4039, 1.442695
        %v4451 = vpow.pop %v4450
        %v4452 = vmul.f32 %v4040, 1.442695
        %v4453 = vpow.pop %v4452
        %v4454 = vmul.f32 %v4041, 1.442695
        %v4455 = vpow.pop %v4454
        %v4456 = vmul.f32 %v4042, 1.442695
        %v4457 = vpow.pop %v4456
        %v4458 = vmul.f32 %v4043, 1.442695
        %v4459 = vpow.pop %v4458
        %v4460 = vmul.f32 %v4044, 1.442695
        %v4461 = vpow.pop %v4460
        %v4462 = vmul.f32 %v4045, 1.442695
        %v4463 = vpow.pop %v4462
        %v4464 = vmul.f32 %v4046, 1.442695
        %v4465 = vpow.pop %v4464
        %v4466 = vmul.f32 %v4047, 1.442695
        %v4467 = vpow.pop %v4466
        %v4468 = vmul.f32 %v4048, 1.442695
        %v4469 = vpow.pop %v4468
        %v4470 = vmul.f32 %v4049, 1.442695
        %v4471 = vpow.pop %v4470
        %v4472 = vmul.f32 %v4050, 1.442695
        %v4473 = vpow.pop %v4472
        %v4474 = vmul.f32 %v4051, 1.442695
        %v4475 = vpow.pop %v4474
        %v4476 = vmul.f32 %v4052, 1.442695
        %v4477 = vpow.pop %v4476
        %v4478 = vmul.f32 %v4053, 1.442695
        %v4479 = vpow.pop %v4478
        %v4480 = vmul.f32 %v4054, 1.442695
        %v4481 = vpow.pop %v4480
        %v4482 = vmul.f32 %v4055, 1.442695
        %v4483 = vpow.pop %v4482
        %v4484 = vmul.f32 %v4056, 1.442695
        %v4485 = vpow.pop %v4484
        %v4486 = vmul.f32 %v4057, 1.442695
        %v4487 = vpow.pop %v4486
        %v4488 = vmul.f32 %v4058, 1.442695
        %v4489 = vpow.pop %v4488
        %v4490 = vmul.f32 %v4059, 1.442695
        %v4491 = vpow.pop %v4490
        %v4492 = vmul.f32 %v4060, 1.442695
        %v4493 = vpow.pop %v4492
        %v4494 = vmul.f32 %v4061, 1.442695
        %v4495 = vpow.pop %v4494
        %v4496 = vmul.f32 %v4062, 1.442695
        %v4497 = vpow.pop %v4496
        %v4498 = vmul.f32 %v4063, 1.442695
        %v4499 = vpow.pop %v4498
        %v4500 = vmul.f32 %v4064, 1.442695
        %v4501 = vpow.pop %v4500
        %v4502 = vmul.f32 %v4065, 1.442695
        %v4503 = vpow.pop %v4502
        %v4504 = vmul.f32 %v4066, 1.442695
        %v4505 = vpow.pop %v4504
        %v4506 = vmul.f32 %v4067, 1.442695
        %v4507 = vpow.pop %v4506
        %v4508 = vmul.f32 %v4068, 1.442695
        %v4509 = vpow.pop %v4508
        %v4510 = vmul.f32 %v4069, 1.442695
        %v4511 = vpow.pop %v4510
        %v4512 = vmul.f32 %v4070, 1.442695
        %v4513 = vpow.pop %v4512
        %v4514 = vmul.f32 %v4071, 1.442695
        %v4515 = vpow.pop %v4514
        %v4516 = vmul.f32 %v4072, 1.442695
        %v4517 = vpow.pop %v4516
        %v4518 = vmul.f32 %v4073, 1.442695
        %v4519 = vpow.pop %v4518
        %v4520 = vmul.f32 %v4074, 1.442695
        %v4521 = vpow.pop %v4520
        %v4522 = vmul.f32 %v4075, 1.442695
        %v4523 = vpow.pop %v4522
        %v4524 = vmul.f32 %v4076, 1.442695
        %v4525 = vpow.pop %v4524
        %v4526 = vmul.f32 %v4077, 1.442695
        %v4527 = vpow.pop %v4526
        %v4528 = vmul.f32 %v4078, 1.442695
        %v4529 = vpow.pop %v4528
        %v4530 = vmul.f32 %v4079, 1.442695
        %v4531 = vpow.pop %v4530
        %v4532 = vmul.f32 %v4080, 1.442695
        %v4533 = vpow.pop %v4532
        %v4534 = vmul.f32 %v4081, 1.442695
        %v4535 = vpow.pop %v4534
        %v4536 = vmul.f32 %v4082, 1.442695
        %v4537 = vpow.pop %v4536
        %v4538 = vmul.f32 %v4083, 1.442695
        %v4539 = vpow.pop %v4538
        %v4540 = vmul.f32 %v4084, 1.442695
        %v4541 = vpow.pop %v4540
        %v4542 = vmul.f32 %v4085, 1.442695
        %v4543 = vpow.pop %v4542
        %v4544 = vmul.f32 %v4086, 1.442695
        %v4545 = vpow.pop %v4544
        %v4546 = vmul.f32 %v4087, 1.442695
        %v4547 = vpow.pop %v4546
        %v4548 = vmul.f32 %v4088, 1.442695
        %v4549 = vpow.pop %v4548
        %v4550 = vmul.f32 %v4089, 1.442695
        %v4551 = vpow.pop %v4550
        %v4552 = vmul.f32 %v4090, 1.442695
        %v4553 = vpow.pop %v4552
        %v4554 = vmul.f32 %v4091, 1.442695
        %v4555 = vpow.pop %v4554
        %v4556 = vmul.f32 %v4092, 1.442695
        %v4557 = vpow.pop %v4556
        %v4558 = vmul.f32 %v4093, 1.442695
        %v4559 = vpow.pop %v4558
        %v4560 = vmul.f32 %v4094, 1.442695
        %v4561 = vpow.pop %v4560
        %v4562 = vmul.f32 %v4095, 1.442695
        %v4563 = vpow.pop %v4562
        %v4564 = vmul.f32 %v4096, 1.442695
        %v4565 = vpow.pop %v4564
        %v4566 = vmul.f32 %v4097, 1.442695
        %v4567 = vpow.pop %v4566
        %v4568 = vmul.f32 %v4098, 1.442695
        %v4569 = vpow.pop %v4568
        %v4570 = vmul.f32 %v4099, 1.442695
        %v4571 = vpow.pop %v4570
        %v4572 = vmul.f32 %v4100, 1.442695
        %v4573 = vpow.pop %v4572
        %v4574 = vmul.f32 %v4101, 1.442695
        %v4575 = vpow.pop %v4574
        %v4576 = vmul.f32 %v4102, 1.442695
        %v4577 = vpow.pop %v4576
        %v4578 = vmul.f32 %v4103, 1.442695
        %v4579 = vpow.pop %v4578
        %v4580 = vmul.f32 %v4104, 1.442695
        %v4581 = vpow.pop %v4580
        %v4582 = vmul.f32 %v4105, 1.442695
        %v4583 = vpow.pop %v4582
        %v4584 = vmul.f32 %v4106, 1.442695
        %v4585 = vpow.pop %v4584
        %v4586 = vmul.f32 %v4107, 1.442695
        %v4587 = vpow.pop %v4586
        %v4588 = vmul.f32 %v4108, 1.442695
        %v4589 = vpow.pop %v4588
        %v4590 = vmul.f32 %v4109, 1.442695
        %v4591 = vpow.pop %v4590
        %v4592 = vmul.f32 %v4110, 1.442695
        %v4593 = vpow.pop %v4592
        %v4594 = vmul.f32 %v4111, 1.442695
        %v4595 = vpow.pop %v4594
        %v4596 = vmul.f32 %v4112, 1.442695
        %v4597 = vpow.pop %v4596
        %v4598 = vmul.f32 %v4113, 1.442695
        %v4599 = vpow.pop %v4598
        %v4600 = vmul.f32 %v4114, 1.442695
        %v4601 = vpow.pop %v4600
        %v4602 = vmul.f32 %v4115, 1.442695
        %v4603 = vpow.pop %v4602
        %v4604 = vmul.f32 %v4116, 1.442695
        %v4605 = vpow.pop %v4604
        %v4606 = vmul.f32 %v4117, 1.442695
        %v4607 = vpow.pop %v4606
        %v4608 = vmul.f32 %v4118, 1.442695
        %v4609 = vpow.pop %v4608
        %v4610 = vmul.f32 %v4119, 1.442695
        %v4611 = vpow.pop %v4610
        %v4612 = vmul.f32 %v4120, 1.442695
        %v4613 = vpow.pop %v4612
        %v4614 = vmul.f32 %v4121, 1.442695
        %v4615 = vpow.pop %v4614
        %v4616 = vmul.f32 %v4122, 1.442695
        %v4617 = vpow.pop %v4616
        %v4618 = vmul.f32 %v4123, 1.442695
        %v4619 = vpow.pop %v4618
        %v4620 = vmul.f32 %v4124, 1.442695
        %v4621 = vpow.pop %v4620
        %v4622 = vmul.f32 %v4125, 1.442695
        %v4623 = vpow.pop %v4622
        %v4624 = vmul.f32 %v4126, 1.442695
        %v4625 = vpow.pop %v4624
        %v4626 = vmul.f32 %v4127, 1.442695
        %v4627 = vpow.pop %v4626
        %v4628 = vmul.f32 %v4128, 1.442695
        %v4629 = vpow.pop %v4628
        %v4630 = vmul.f32 %v4129, 1.442695
        %v4631 = vpow.pop %v4630
        %v4632 = vmul.f32 %v4130, 1.442695
        %v4633 = vpow.pop %v4632
        %v4634 = vmul.f32 %v4131, 1.442695
        %v4635 = vpow.pop %v4634
        %v4636 = vmul.f32 %v4132, 1.442695
        %v4637 = vpow.pop %v4636
        %v4638 = vmul.f32 %v4133, 1.442695
        %v4639 = vpow.pop %v4638
        %v4640 = vmul.f32 %v4134, 1.442695
        %v4641 = vpow.pop %v4640
        %v4642 = vmul.f32 %v4135, 1.442695
        %v4643 = vpow.pop %v4642
        %v4644 = vmul.f32 %v4136, 1.442695
        %v4645 = vpow.pop %v4644
        %v4646 = vmul.f32 %v4137, 1.442695
        %v4647 = vpow.pop %v4646
        %v4648 = vmul.f32 %v4138, 1.442695
        %v4649 = vpow.pop %v4648
        %v4650 = vmul.f32 %v4139, 1.442695
        %v4651 = vpow.pop %v4650
        %v4652 = vadd.f32 %v4141, 1.0
        %v4653 = vadd.f32 %v4143, 1.0
        %v4654 = vadd.f32 %v4145, 1.0
        %v4655 = vadd.f32 %v4147, 1.0
        %v4656 = vadd.f32 %v4149, 1.0
        %v4657 = vadd.f32 %v4151, 1.0
        %v4658 = vadd.f32 %v4153, 1.0
        %v4659 = vadd.f32 %v4155, 1.0
        %v4660 = vadd.f32 %v4157, 1.0
        %v4661 = vadd.f32 %v4159, 1.0
        %v4662 = vadd.f32 %v4161, 1.0
        %v4663 = vadd.f32 %v4163, 1.0
        %v4664 = vadd.f32 %v4165, 1.0
        %v4665 = vadd.f32 %v4167, 1.0
        %v4666 = vadd.f32 %v4169, 1.0
        %v4667 = vadd.f32 %v4171, 1.0
        %v4668 = vadd.f32 %v4173, 1.0
        %v4669 = vadd.f32 %v4175, 1.0
        %v4670 = vadd.f32 %v4177, 1.0
        %v4671 = vadd.f32 %v4179, 1.0
        %v4672 = vadd.f32 %v4181, 1.0
        %v4673 = vadd.f32 %v4183, 1.0
        %v4674 = vadd.f32 %v4185, 1.0
        %v4675 = vadd.f32 %v4187, 1.0
        %v4676 = vadd.f32 %v4189, 1.0
        %v4677 = vadd.f32 %v4191, 1.0
        %v4678 = vadd.f32 %v4193, 1.0
        %v4679 = vadd.f32 %v4195, 1.0
        %v4680 = vadd.f32 %v4197, 1.0
        %v4681 = vadd.f32 %v4199, 1.0
        %v4682 = vadd.f32 %v4201, 1.0
        %v4683 = vadd.f32 %v4203, 1.0
        %v4684 = vadd.f32 %v4205, 1.0
        %v4685 = vadd.f32 %v4207, 1.0
        %v4686 = vadd.f32 %v4209, 1.0
        %v4687 = vadd.f32 %v4211, 1.0
        %v4688 = vadd.f32 %v4213, 1.0
        %v4689 = vadd.f32 %v4215, 1.0
        %v4690 = vadd.f32 %v4217, 1.0
        %v4691 = vadd.f32 %v4219, 1.0
        %v4692 = vadd.f32 %v4221, 1.0
        %v4693 = vadd.f32 %v4223, 1.0
        %v4694 = vadd.f32 %v4225, 1.0
        %v4695 = vadd.f32 %v4227, 1.0
        %v4696 = vadd.f32 %v4229, 1.0
        %v4697 = vadd.f32 %v4231, 1.0
        %v4698 = vadd.f32 %v4233, 1.0
        %v4699 = vadd.f32 %v4235, 1.0
        %v4700 = vadd.f32 %v4237, 1.0
        %v4701 = vadd.f32 %v4239, 1.0
        %v4702 = vadd.f32 %v4241, 1.0
        %v4703 = vadd.f32 %v4243, 1.0
        %v4704 = vadd.f32 %v4245, 1.0
        %v4705 = vadd.f32 %v4247, 1.0
        %v4706 = vadd.f32 %v4249, 1.0
        %v4707 = vadd.f32 %v4251, 1.0
        %v4708 = vadd.f32 %v4253, 1.0
        %v4709 = vadd.f32 %v4255, 1.0
        %v4710 = vadd.f32 %v4257, 1.0
        %v4711 = vadd.f32 %v4259, 1.0
        %v4712 = vadd.f32 %v4261, 1.0
        %v4713 = vadd.f32 %v4263, 1.0
        %v4714 = vadd.f32 %v4265, 1.0
        %v4715 = vadd.f32 %v4267, 1.0
        %v4716 = vadd.f32 %v4269, 1.0
        %v4717 = vadd.f32 %v4271, 1.0
        %v4718 = vadd.f32 %v4273, 1.0
        %v4719 = vadd.f32 %v4275, 1.0
        %v4720 = vadd.f32 %v4277, 1.0
        %v4721 = vadd.f32 %v4279, 1.0
        %v4722 = vadd.f32 %v4281, 1.0
        %v4723 = vadd.f32 %v4283, 1.0
        %v4724 = vadd.f32 %v4285, 1.0
        %v4725 = vadd.f32 %v4287, 1.0
        %v4726 = vadd.f32 %v4289, 1.0
        %v4727 = vadd.f32 %v4291, 1.0
        %v4728 = vadd.f32 %v4293, 1.0
        %v4729 = vadd.f32 %v4295, 1.0
        %v4730 = vadd.f32 %v4297, 1.0
        %v4731 = vadd.f32 %v4299, 1.0
        %v4732 = vadd.f32 %v4301, 1.0
        %v4733 = vadd.f32 %v4303, 1.0
        %v4734 = vadd.f32 %v4305, 1.0
        %v4735 = vadd.f32 %v4307, 1.0
        %v4736 = vadd.f32 %v4309, 1.0
        %v4737 = vadd.f32 %v4311, 1.0
        %v4738 = vadd.f32 %v4313, 1.0
        %v4739 = vadd.f32 %v4315, 1.0
        %v4740 = vadd.f32 %v4317, 1.0
        %v4741 = vadd.f32 %v4319, 1.0
        %v4742 = vadd.f32 %v4321, 1.0
        %v4743 = vadd.f32 %v4323, 1.0
        %v4744 = vadd.f32 %v4325, 1.0
        %v4745 = vadd.f32 %v4327, 1.0
        %v4746 = vadd.f32 %v4329, 1.0
        %v4747 = vadd.f32 %v4331, 1.0
        %v4748 = vadd.f32 %v4333, 1.0
        %v4749 = vadd.f32 %v4335, 1.0
        %v4750 = vadd.f32 %v4337, 1.0
        %v4751 = vadd.f32 %v4339, 1.0
        %v4752 = vadd.f32 %v4341, 1.0
        %v4753 = vadd.f32 %v4343, 1.0
        %v4754 = vadd.f32 %v4345, 1.0
        %v4755 = vadd.f32 %v4347, 1.0
        %v4756 = vadd.f32 %v4349, 1.0
        %v4757 = vadd.f32 %v4351, 1.0
        %v4758 = vadd.f32 %v4353, 1.0
        %v4759 = vadd.f32 %v4355, 1.0
        %v4760 = vadd.f32 %v4357, 1.0
        %v4761 = vadd.f32 %v4359, 1.0
        %v4762 = vadd.f32 %v4361, 1.0
        %v4763 = vadd.f32 %v4363, 1.0
        %v4764 = vadd.f32 %v4365, 1.0
        %v4765 = vadd.f32 %v4367, 1.0
        %v4766 = vadd.f32 %v4369, 1.0
        %v4767 = vadd.f32 %v4371, 1.0
        %v4768 = vadd.f32 %v4373, 1.0
        %v4769 = vadd.f32 %v4375, 1.0
        %v4770 = vadd.f32 %v4377, 1.0
        %v4771 = vadd.f32 %v4379, 1.0
        %v4772 = vadd.f32 %v4381, 1.0
        %v4773 = vadd.f32 %v4383, 1.0
        %v4774 = vadd.f32 %v4385, 1.0
        %v4775 = vadd.f32 %v4387, 1.0
        %v4776 = vadd.f32 %v4389, 1.0
        %v4777 = vadd.f32 %v4391, 1.0
        %v4778 = vadd.f32 %v4393, 1.0
        %v4779 = vadd.f32 %v4395, 1.0
        %v4780 = vadd.f32 %v4397, 1.0
        %v4781 = vadd.f32 %v4399, 1.0
        %v4782 = vadd.f32 %v4401, 1.0
        %v4783 = vadd.f32 %v4403, 1.0
        %v4784 = vadd.f32 %v4405, 1.0
        %v4785 = vadd.f32 %v4407, 1.0
        %v4786 = vadd.f32 %v4409, 1.0
        %v4787 = vadd.f32 %v4411, 1.0
        %v4788 = vadd.f32 %v4413, 1.0
        %v4789 = vadd.f32 %v4415, 1.0
        %v4790 = vadd.f32 %v4417, 1.0
        %v4791 = vadd.f32 %v4419, 1.0
        %v4792 = vadd.f32 %v4421, 1.0
        %v4793 = vadd.f32 %v4423, 1.0
        %v4794 = vadd.f32 %v4425, 1.0
        %v4795 = vadd.f32 %v4427, 1.0
        %v4796 = vadd.f32 %v4429, 1.0
        %v4797 = vadd.f32 %v4431, 1.0
        %v4798 = vadd.f32 %v4433, 1.0
        %v4799 = vadd.f32 %v4435, 1.0
        %v4800 = vadd.f32 %v4437, 1.0
        %v4801 = vadd.f32 %v4439, 1.0
        %v4802 = vadd.f32 %v4441, 1.0
        %v4803 = vadd.f32 %v4443, 1.0
        %v4804 = vadd.f32 %v4445, 1.0
        %v4805 = vadd.f32 %v4447, 1.0
        %v4806 = vadd.f32 %v4449, 1.0
        %v4807 = vadd.f32 %v4451, 1.0
        %v4808 = vadd.f32 %v4453, 1.0
        %v4809 = vadd.f32 %v4455, 1.0
        %v4810 = vadd.f32 %v4457, 1.0
        %v4811 = vadd.f32 %v4459, 1.0
        %v4812 = vadd.f32 %v4461, 1.0
        %v4813 = vadd.f32 %v4463, 1.0
        %v4814 = vadd.f32 %v4465, 1.0
        %v4815 = vadd.f32 %v4467, 1.0
        %v4816 = vadd.f32 %v4469, 1.0
        %v4817 = vadd.f32 %v4471, 1.0
        %v4818 = vadd.f32 %v4473, 1.0
        %v4819 = vadd.f32 %v4475, 1.0
        %v4820 = vadd.f32 %v4477, 1.0
        %v4821 = vadd.f32 %v4479, 1.0
        %v4822 = vadd.f32 %v4481, 1.0
        %v4823 = vadd.f32 %v4483, 1.0
        %v4824 = vadd.f32 %v4485, 1.0
        %v4825 = vadd.f32 %v4487, 1.0
        %v4826 = vadd.f32 %v4489, 1.0
        %v4827 = vadd.f32 %v4491, 1.0
        %v4828 = vadd.f32 %v4493, 1.0
        %v4829 = vadd.f32 %v4495, 1.0
        %v4830 = vadd.f32 %v4497, 1.0
        %v4831 = vadd.f32 %v4499, 1.0
        %v4832 = vadd.f32 %v4501, 1.0
        %v4833 = vadd.f32 %v4503, 1.0
        %v4834 = vadd.f32 %v4505, 1.0
        %v4835 = vadd.f32 %v4507, 1.0
        %v4836 = vadd.f32 %v4509, 1.0
        %v4837 = vadd.f32 %v4511, 1.0
        %v4838 = vadd.f32 %v4513, 1.0
        %v4839 = vadd.f32 %v4515, 1.0
        %v4840 = vadd.f32 %v4517, 1.0
        %v4841 = vadd.f32 %v4519, 1.0
        %v4842 = vadd.f32 %v4521, 1.0
        %v4843 = vadd.f32 %v4523, 1.0
        %v4844 = vadd.f32 %v4525, 1.0
        %v4845 = vadd.f32 %v4527, 1.0
        %v4846 = vadd.f32 %v4529, 1.0
        %v4847 = vadd.f32 %v4531, 1.0
        %v4848 = vadd.f32 %v4533, 1.0
        %v4849 = vadd.f32 %v4535, 1.0
        %v4850 = vadd.f32 %v4537, 1.0
        %v4851 = vadd.f32 %v4539, 1.0
        %v4852 = vadd.f32 %v4541, 1.0
        %v4853 = vadd.f32 %v4543, 1.0
        %v4854 = vadd.f32 %v4545, 1.0
        %v4855 = vadd.f32 %v4547, 1.0
        %v4856 = vadd.f32 %v4549, 1.0
        %v4857 = vadd.f32 %v4551, 1.0
        %v4858 = vadd.f32 %v4553, 1.0
        %v4859 = vadd.f32 %v4555, 1.0
        %v4860 = vadd.f32 %v4557, 1.0
        %v4861 = vadd.f32 %v4559, 1.0
        %v4862 = vadd.f32 %v4561, 1.0
        %v4863 = vadd.f32 %v4563, 1.0
        %v4864 = vadd.f32 %v4565, 1.0
        %v4865 = vadd.f32 %v4567, 1.0
        %v4866 = vadd.f32 %v4569, 1.0
        %v4867 = vadd.f32 %v4571, 1.0
        %v4868 = vadd.f32 %v4573, 1.0
        %v4869 = vadd.f32 %v4575, 1.0
        %v4870 = vadd.f32 %v4577, 1.0
        %v4871 = vadd.f32 %v4579, 1.0
        %v4872 = vadd.f32 %v4581, 1.0
        %v4873 = vadd.f32 %v4583, 1.0
        %v4874 = vadd.f32 %v4585, 1.0
        %v4875 = vadd.f32 %v4587, 1.0
        %v4876 = vadd.f32 %v4589, 1.0
        %v4877 = vadd.f32 %v4591, 1.0
        %v4878 = vadd.f32 %v4593, 1.0
        %v4879 = vadd.f32 %v4595, 1.0
        %v4880 = vadd.f32 %v4597, 1.0
        %v4881 = vadd.f32 %v4599, 1.0
        %v4882 = vadd.f32 %v4601, 1.0
        %v4883 = vadd.f32 %v4603, 1.0
        %v4884 = vadd.f32 %v4605, 1.0
        %v4885 = vadd.f32 %v4607, 1.0
        %v4886 = vadd.f32 %v4609, 1.0
        %v4887 = vadd.f32 %v4611, 1.0
        %v4888 = vadd.f32 %v4613, 1.0
        %v4889 = vadd.f32 %v4615, 1.0
        %v4890 = vadd.f32 %v4617, 1.0
        %v4891 = vadd.f32 %v4619, 1.0
        %v4892 = vadd.f32 %v4621, 1.0
        %v4893 = vadd.f32 %v4623, 1.0
        %v4894 = vadd.f32 %v4625, 1.0
        %v4895 = vadd.f32 %v4627, 1.0
        %v4896 = vadd.f32 %v4629, 1.0
        %v4897 = vadd.f32 %v4631, 1.0
        %v4898 = vadd.f32 %v4633, 1.0
        %v4899 = vadd.f32 %v4635, 1.0
        %v4900 = vadd.f32 %v4637, 1.0
        %v4901 = vadd.f32 %v4639, 1.0
        %v4902 = vadd.f32 %v4641, 1.0
        %v4903 = vadd.f32 %v4643, 1.0
        %v4904 = vadd.f32 %v4645, 1.0
        %v4905 = vadd.f32 %v4647, 1.0
        %v4906 = vadd.f32 %v4649, 1.0
        %v4907 = vadd.f32 %v4651, 1.0
        %v4908 = vrcp.pop %v4652
        %v4909 = vmul.f32 %v4652, %v4908
        %v4910 = vsub.f32 1.0, %v4909
        %v4911 = vmul.f32 %v4908, %v4910
        %v4912 = vadd.f32 %v4908, %v4911
        %vm4913 = vweird.f32 %v4652
        %vm4914 = vweird.f32 %v4908
        %vm4915 = vmor %vm4913, %vm4914
        %v4916 = vsel %vm4915, %v4908, %v4912
        %v4917 = vand.u32 2147483647, %v4652
        %vm4918 = vcmp.eq.f32.partialorder %v4917, 8.507059e+37
        %v4919 = vand.u32 %v4652, 2147483648
        %v4920 = vor.u32 1.1754944e-38, %v4919
        %v4921 = vsel %vm4918, %v4920, %v4916
        %v4922 = vmul.f32 1.0, %v4921
        %v4923 = vrcp.pop %v4653
        %v4924 = vmul.f32 %v4653, %v4923
        %v4925 = vsub.f32 1.0, %v4924
        %v4926 = vmul.f32 %v4923, %v4925
        %v4927 = vadd.f32 %v4923, %v4926
        %vm4928 = vweird.f32 %v4653
        %vm4929 = vweird.f32 %v4923
        %vm4930 = vmor %vm4928, %vm4929
        %v4931 = vsel %vm4930, %v4923, %v4927
        %v4932 = vand.u32 2147483647, %v4653
        %vm4933 = vcmp.eq.f32.partialorder %v4932, 8.507059e+37
        %v4934 = vand.u32 %v4653, 2147483648
        %v4935 = vor.u32 1.1754944e-38, %v4934
        %v4936 = vsel %vm4933, %v4935, %v4931
        %v4937 = vmul.f32 1.0, %v4936
        %v4938 = vrcp.pop %v4654
        %v4939 = vmul.f32 %v4654, %v4938
        %v4940 = vsub.f32 1.0, %v4939
        %v4941 = vmul.f32 %v4938, %v4940
        %v4942 = vadd.f32 %v4938, %v4941
        %vm4943 = vweird.f32 %v4654
        %vm4944 = vweird.f32 %v4938
        %vm4945 = vmor %vm4943, %vm4944
        %v4946 = vsel %vm4945, %v4938, %v4942
        %v4947 = vand.u32 2147483647, %v4654
        %vm4948 = vcmp.eq.f32.partialorder %v4947, 8.507059e+37
        %v4949 = vand.u32 %v4654, 2147483648
        %v4950 = vor.u32 1.1754944e-38, %v4949
        %v4951 = vsel %vm4948, %v4950, %v4946
        %v4952 = vmul.f32 1.0, %v4951
        %v4953 = vrcp.pop %v4655
        %v4954 = vmul.f32 %v4655, %v4953
        %v4955 = vsub.f32 1.0, %v4954
        %v4956 = vmul.f32 %v4953, %v4955
        %v4957 = vadd.f32 %v4953, %v4956
        %vm4958 = vweird.f32 %v4655
        %vm4959 = vweird.f32 %v4953
        %vm4960 = vmor %vm4958, %vm4959
        %v4961 = vsel %vm4960, %v4953, %v4957
        %v4962 = vand.u32 2147483647, %v4655
        %vm4963 = vcmp.eq.f32.partialorder %v4962, 8.507059e+37
        %v4964 = vand.u32 %v4655, 2147483648
        %v4965 = vor.u32 1.1754944e-38, %v4964
        %v4966 = vsel %vm4963, %v4965, %v4961
        %v4967 = vmul.f32 1.0, %v4966
        %v4968 = vrcp.pop %v4656
        %v4969 = vmul.f32 %v4656, %v4968
        %v4970 = vsub.f32 1.0, %v4969
        %v4971 = vmul.f32 %v4968, %v4970
        %v4972 = vadd.f32 %v4968, %v4971
        %vm4973 = vweird.f32 %v4656
        %vm4974 = vweird.f32 %v4968
        %vm4975 = vmor %vm4973, %vm4974
        %v4976 = vsel %vm4975, %v4968, %v4972
        %v4977 = vand.u32 2147483647, %v4656
        %vm4978 = vcmp.eq.f32.partialorder %v4977, 8.507059e+37
        %v4979 = vand.u32 %v4656, 2147483648
        %v4980 = vor.u32 1.1754944e-38, %v4979
        %v4981 = vsel %vm4978, %v4980, %v4976
        %v4982 = vmul.f32 1.0, %v4981
        %v4983 = vrcp.pop %v4657
        %v4984 = vmul.f32 %v4657, %v4983
        %v4985 = vsub.f32 1.0, %v4984
        %v4986 = vmul.f32 %v4983, %v4985
        %v4987 = vadd.f32 %v4983, %v4986
        %vm4988 = vweird.f32 %v4657
        %vm4989 = vweird.f32 %v4983
        %vm4990 = vmor %vm4988, %vm4989
        %v4991 = vsel %vm4990, %v4983, %v4987
        %v4992 = vand.u32 2147483647, %v4657
        %vm4993 = vcmp.eq.f32.partialorder %v4992, 8.507059e+37
        %v4994 = vand.u32 %v4657, 2147483648
        %v4995 = vor.u32 1.1754944e-38, %v4994
        %v4996 = vsel %vm4993, %v4995, %v4991
        %v4997 = vmul.f32 1.0, %v4996
        %v4998 = vrcp.pop %v4658
        %v4999 = vmul.f32 %v4658, %v4998
        %v5000 = vsub.f32 1.0, %v4999
        %v5001 = vmul.f32 %v4998, %v5000
        %v5002 = vadd.f32 %v4998, %v5001
        %vm5003 = vweird.f32 %v4658
        %vm5004 = vweird.f32 %v4998
        %vm5005 = vmor %vm5003, %vm5004
        %v5006 = vsel %vm5005, %v4998, %v5002
        %v5007 = vand.u32 2147483647, %v4658
        %vm5008 = vcmp.eq.f32.partialorder %v5007, 8.507059e+37
        %v5009 = vand.u32 %v4658, 2147483648
        %v5010 = vor.u32 1.1754944e-38, %v5009
        %v5011 = vsel %vm5008, %v5010, %v5006
        %v5012 = vmul.f32 1.0, %v5011
        %v5013 = vrcp.pop %v4659
        %v5014 = vmul.f32 %v4659, %v5013
        %v5015 = vsub.f32 1.0, %v5014
        %v5016 = vmul.f32 %v5013, %v5015
        %v5017 = vadd.f32 %v5013, %v5016
        %vm5018 = vweird.f32 %v4659
        %vm5019 = vweird.f32 %v5013
        %vm5020 = vmor %vm5018, %vm5019
        %v5021 = vsel %vm5020, %v5013, %v5017
        %v5022 = vand.u32 2147483647, %v4659
        %vm5023 = vcmp.eq.f32.partialorder %v5022, 8.507059e+37
        %v5024 = vand.u32 %v4659, 2147483648
        %v5025 = vor.u32 1.1754944e-38, %v5024
        %v5026 = vsel %vm5023, %v5025, %v5021
        %v5027 = vmul.f32 1.0, %v5026
        %v5028 = vrcp.pop %v4660
        %v5029 = vmul.f32 %v4660, %v5028
        %v5030 = vsub.f32 1.0, %v5029
        %v5031 = vmul.f32 %v5028, %v5030
        %v5032 = vadd.f32 %v5028, %v5031
        %vm5033 = vweird.f32 %v4660
        %vm5034 = vweird.f32 %v5028
        %vm5035 = vmor %vm5033, %vm5034
        %v5036 = vsel %vm5035, %v5028, %v5032
        %v5037 = vand.u32 2147483647, %v4660
        %vm5038 = vcmp.eq.f32.partialorder %v5037, 8.507059e+37
        %v5039 = vand.u32 %v4660, 2147483648
        %v5040 = vor.u32 1.1754944e-38, %v5039
        %v5041 = vsel %vm5038, %v5040, %v5036
        %v5042 = vmul.f32 1.0, %v5041
        %v5043 = vrcp.pop %v4661
        %v5044 = vmul.f32 %v4661, %v5043
        %v5045 = vsub.f32 1.0, %v5044
        %v5046 = vmul.f32 %v5043, %v5045
        %v5047 = vadd.f32 %v5043, %v5046
        %vm5048 = vweird.f32 %v4661
        %vm5049 = vweird.f32 %v5043
        %vm5050 = vmor %vm5048, %vm5049
        %v5051 = vsel %vm5050, %v5043, %v5047
        %v5052 = vand.u32 2147483647, %v4661
        %vm5053 = vcmp.eq.f32.partialorder %v5052, 8.507059e+37
        %v5054 = vand.u32 %v4661, 2147483648
        %v5055 = vor.u32 1.1754944e-38, %v5054
        %v5056 = vsel %vm5053, %v5055, %v5051
        %v5057 = vmul.f32 1.0, %v5056
        %v5058 = vrcp.pop %v4662
        %v5059 = vmul.f32 %v4662, %v5058
        %v5060 = vsub.f32 1.0, %v5059
        %v5061 = vmul.f32 %v5058, %v5060
        %v5062 = vadd.f32 %v5058, %v5061
        %vm5063 = vweird.f32 %v4662
        %vm5064 = vweird.f32 %v5058
        %vm5065 = vmor %vm5063, %vm5064
        %v5066 = vsel %vm5065, %v5058, %v5062
        %v5067 = vand.u32 2147483647, %v4662
        %vm5068 = vcmp.eq.f32.partialorder %v5067, 8.507059e+37
        %v5069 = vand.u32 %v4662, 2147483648
        %v5070 = vor.u32 1.1754944e-38, %v5069
        %v5071 = vsel %vm5068, %v5070, %v5066
        %v5072 = vmul.f32 1.0, %v5071
        %v5073 = vrcp.pop %v4663
        %v5074 = vmul.f32 %v4663, %v5073
        %v5075 = vsub.f32 1.0, %v5074
        %v5076 = vmul.f32 %v5073, %v5075
        %v5077 = vadd.f32 %v5073, %v5076
        %vm5078 = vweird.f32 %v4663
        %vm5079 = vweird.f32 %v5073
        %vm5080 = vmor %vm5078, %vm5079
        %v5081 = vsel %vm5080, %v5073, %v5077
        %v5082 = vand.u32 2147483647, %v4663
        %vm5083 = vcmp.eq.f32.partialorder %v5082, 8.507059e+37
        %v5084 = vand.u32 %v4663, 2147483648
        %v5085 = vor.u32 1.1754944e-38, %v5084
        %v5086 = vsel %vm5083, %v5085, %v5081
        %v5087 = vmul.f32 1.0, %v5086
        %v5088 = vrcp.pop %v4664
        %v5089 = vmul.f32 %v4664, %v5088
        %v5090 = vsub.f32 1.0, %v5089
        %v5091 = vmul.f32 %v5088, %v5090
        %v5092 = vadd.f32 %v5088, %v5091
        %vm5093 = vweird.f32 %v4664
        %vm5094 = vweird.f32 %v5088
        %vm5095 = vmor %vm5093, %vm5094
        %v5096 = vsel %vm5095, %v5088, %v5092
        %v5097 = vand.u32 2147483647, %v4664
        %vm5098 = vcmp.eq.f32.partialorder %v5097, 8.507059e+37
        %v5099 = vand.u32 %v4664, 2147483648
        %v5100 = vor.u32 1.1754944e-38, %v5099
        %v5101 = vsel %vm5098, %v5100, %v5096
        %v5102 = vmul.f32 1.0, %v5101
        %v5103 = vrcp.pop %v4665
        %v5104 = vmul.f32 %v4665, %v5103
        %v5105 = vsub.f32 1.0, %v5104
        %v5106 = vmul.f32 %v5103, %v5105
        %v5107 = vadd.f32 %v5103, %v5106
        %vm5108 = vweird.f32 %v4665
        %vm5109 = vweird.f32 %v5103
        %vm5110 = vmor %vm5108, %vm5109
        %v5111 = vsel %vm5110, %v5103, %v5107
        %v5112 = vand.u32 2147483647, %v4665
        %vm5113 = vcmp.eq.f32.partialorder %v5112, 8.507059e+37
        %v5114 = vand.u32 %v4665, 2147483648
        %v5115 = vor.u32 1.1754944e-38, %v5114
        %v5116 = vsel %vm5113, %v5115, %v5111
        %v5117 = vmul.f32 1.0, %v5116
        %v5118 = vrcp.pop %v4666
        %v5119 = vmul.f32 %v4666, %v5118
        %v5120 = vsub.f32 1.0, %v5119
        %v5121 = vmul.f32 %v5118, %v5120
        %v5122 = vadd.f32 %v5118, %v5121
        %vm5123 = vweird.f32 %v4666
        %vm5124 = vweird.f32 %v5118
        %vm5125 = vmor %vm5123, %vm5124
        %v5126 = vsel %vm5125, %v5118, %v5122
        %v5127 = vand.u32 2147483647, %v4666
        %vm5128 = vcmp.eq.f32.partialorder %v5127, 8.507059e+37
        %v5129 = vand.u32 %v4666, 2147483648
        %v5130 = vor.u32 1.1754944e-38, %v5129
        %v5131 = vsel %vm5128, %v5130, %v5126
        %v5132 = vmul.f32 1.0, %v5131
        %v5133 = vrcp.pop %v4667
        %v5134 = vmul.f32 %v4667, %v5133
        %v5135 = vsub.f32 1.0, %v5134
        %v5136 = vmul.f32 %v5133, %v5135
        %v5137 = vadd.f32 %v5133, %v5136
        %vm5138 = vweird.f32 %v4667
        %vm5139 = vweird.f32 %v5133
        %vm5140 = vmor %vm5138, %vm5139
        %v5141 = vsel %vm5140, %v5133, %v5137
        %v5142 = vand.u32 2147483647, %v4667
        %vm5143 = vcmp.eq.f32.partialorder %v5142, 8.507059e+37
        %v5144 = vand.u32 %v4667, 2147483648
        %v5145 = vor.u32 1.1754944e-38, %v5144
        %v5146 = vsel %vm5143, %v5145, %v5141
        %v5147 = vmul.f32 1.0, %v5146
        %v5148 = vrcp.pop %v4668
        %v5149 = vmul.f32 %v4668, %v5148
        %v5150 = vsub.f32 1.0, %v5149
        %v5151 = vmul.f32 %v5148, %v5150
        %v5152 = vadd.f32 %v5148, %v5151
        %vm5153 = vweird.f32 %v4668
        %vm5154 = vweird.f32 %v5148
        %vm5155 = vmor %vm5153, %vm5154
        %v5156 = vsel %vm5155, %v5148, %v5152
        %v5157 = vand.u32 2147483647, %v4668
        %vm5158 = vcmp.eq.f32.partialorder %v5157, 8.507059e+37
        %v5159 = vand.u32 %v4668, 2147483648
        %v5160 = vor.u32 1.1754944e-38, %v5159
        %v5161 = vsel %vm5158, %v5160, %v5156
        %v5162 = vmul.f32 1.0, %v5161
        %v5163 = vrcp.pop %v4669
        %v5164 = vmul.f32 %v4669, %v5163
        %v5165 = vsub.f32 1.0, %v5164
        %v5166 = vmul.f32 %v5163, %v5165
        %v5167 = vadd.f32 %v5163, %v5166
        %vm5168 = vweird.f32 %v4669
        %vm5169 = vweird.f32 %v5163
        %vm5170 = vmor %vm5168, %vm5169
        %v5171 = vsel %vm5170, %v5163, %v5167
        %v5172 = vand.u32 2147483647, %v4669
        %vm5173 = vcmp.eq.f32.partialorder %v5172, 8.507059e+37
        %v5174 = vand.u32 %v4669, 2147483648
        %v5175 = vor.u32 1.1754944e-38, %v5174
        %v5176 = vsel %vm5173, %v5175, %v5171
        %v5177 = vmul.f32 1.0, %v5176
        %v5178 = vrcp.pop %v4670
        %v5179 = vmul.f32 %v4670, %v5178
        %v5180 = vsub.f32 1.0, %v5179
        %v5181 = vmul.f32 %v5178, %v5180
        %v5182 = vadd.f32 %v5178, %v5181
        %vm5183 = vweird.f32 %v4670
        %vm5184 = vweird.f32 %v5178
        %vm5185 = vmor %vm5183, %vm5184
        %v5186 = vsel %vm5185, %v5178, %v5182
        %v5187 = vand.u32 2147483647, %v4670
        %vm5188 = vcmp.eq.f32.partialorder %v5187, 8.507059e+37
        %v5189 = vand.u32 %v4670, 2147483648
        %v5190 = vor.u32 1.1754944e-38, %v5189
        %v5191 = vsel %vm5188, %v5190, %v5186
        %v5192 = vmul.f32 1.0, %v5191
        %v5193 = vrcp.pop %v4671
        %v5194 = vmul.f32 %v4671, %v5193
        %v5195 = vsub.f32 1.0, %v5194
        %v5196 = vmul.f32 %v5193, %v5195
        %v5197 = vadd.f32 %v5193, %v5196
        %vm5198 = vweird.f32 %v4671
        %vm5199 = vweird.f32 %v5193
        %vm5200 = vmor %vm5198, %vm5199
        %v5201 = vsel %vm5200, %v5193, %v5197
        %v5202 = vand.u32 2147483647, %v4671
        %vm5203 = vcmp.eq.f32.partialorder %v5202, 8.507059e+37
        %v5204 = vand.u32 %v4671, 2147483648
        %v5205 = vor.u32 1.1754944e-38, %v5204
        %v5206 = vsel %vm5203, %v5205, %v5201
        %v5207 = vmul.f32 1.0, %v5206
        %v5208 = vrcp.pop %v4672
        %v5209 = vmul.f32 %v4672, %v5208
        %v5210 = vsub.f32 1.0, %v5209
        %v5211 = vmul.f32 %v5208, %v5210
        %v5212 = vadd.f32 %v5208, %v5211
        %vm5213 = vweird.f32 %v4672
        %vm5214 = vweird.f32 %v5208
        %vm5215 = vmor %vm5213, %vm5214
        %v5216 = vsel %vm5215, %v5208, %v5212
        %v5217 = vand.u32 2147483647, %v4672
        %vm5218 = vcmp.eq.f32.partialorder %v5217, 8.507059e+37
        %v5219 = vand.u32 %v4672, 2147483648
        %v5220 = vor.u32 1.1754944e-38, %v5219
        %v5221 = vsel %vm5218, %v5220, %v5216
        %v5222 = vmul.f32 1.0, %v5221
        %v5223 = vrcp.pop %v4673
        %v5224 = vmul.f32 %v4673, %v5223
        %v5225 = vsub.f32 1.0, %v5224
        %v5226 = vmul.f32 %v5223, %v5225
        %v5227 = vadd.f32 %v5223, %v5226
        %vm5228 = vweird.f32 %v4673
        %vm5229 = vweird.f32 %v5223
        %vm5230 = vmor %vm5228, %vm5229
        %v5231 = vsel %vm5230, %v5223, %v5227
        %v5232 = vand.u32 2147483647, %v4673
        %vm5233 = vcmp.eq.f32.partialorder %v5232, 8.507059e+37
        %v5234 = vand.u32 %v4673, 2147483648
        %v5235 = vor.u32 1.1754944e-38, %v5234
        %v5236 = vsel %vm5233, %v5235, %v5231
        %v5237 = vmul.f32 1.0, %v5236
        %v5238 = vrcp.pop %v4674
        %v5239 = vmul.f32 %v4674, %v5238
        %v5240 = vsub.f32 1.0, %v5239
        %v5241 = vmul.f32 %v5238, %v5240
        %v5242 = vadd.f32 %v5238, %v5241
        %vm5243 = vweird.f32 %v4674
        %vm5244 = vweird.f32 %v5238
        %vm5245 = vmor %vm5243, %vm5244
        %v5246 = vsel %vm5245, %v5238, %v5242
        %v5247 = vand.u32 2147483647, %v4674
        %vm5248 = vcmp.eq.f32.partialorder %v5247, 8.507059e+37
        %v5249 = vand.u32 %v4674, 2147483648
        %v5250 = vor.u32 1.1754944e-38, %v5249
        %v5251 = vsel %vm5248, %v5250, %v5246
        %v5252 = vmul.f32 1.0, %v5251
        %v5253 = vrcp.pop %v4675
        %v5254 = vmul.f32 %v4675, %v5253
        %v5255 = vsub.f32 1.0, %v5254
        %v5256 = vmul.f32 %v5253, %v5255
        %v5257 = vadd.f32 %v5253, %v5256
        %vm5258 = vweird.f32 %v4675
        %vm5259 = vweird.f32 %v5253
        %vm5260 = vmor %vm5258, %vm5259
        %v5261 = vsel %vm5260, %v5253, %v5257
        %v5262 = vand.u32 2147483647, %v4675
        %vm5263 = vcmp.eq.f32.partialorder %v5262, 8.507059e+37
        %v5264 = vand.u32 %v4675, 2147483648
        %v5265 = vor.u32 1.1754944e-38, %v5264
        %v5266 = vsel %vm5263, %v5265, %v5261
        %v5267 = vmul.f32 1.0, %v5266
        %v5268 = vrcp.pop %v4676
        %v5269 = vmul.f32 %v4676, %v5268
        %v5270 = vsub.f32 1.0, %v5269
        %v5271 = vmul.f32 %v5268, %v5270
        %v5272 = vadd.f32 %v5268, %v5271
        %vm5273 = vweird.f32 %v4676
        %vm5274 = vweird.f32 %v5268
        %vm5275 = vmor %vm5273, %vm5274
        %v5276 = vsel %vm5275, %v5268, %v5272
        %v5277 = vand.u32 2147483647, %v4676
        %vm5278 = vcmp.eq.f32.partialorder %v5277, 8.507059e+37
        %v5279 = vand.u32 %v4676, 2147483648
        %v5280 = vor.u32 1.1754944e-38, %v5279
        %v5281 = vsel %vm5278, %v5280, %v5276
        %v5282 = vmul.f32 1.0, %v5281
        %v5283 = vrcp.pop %v4677
        %v5284 = vmul.f32 %v4677, %v5283
        %v5285 = vsub.f32 1.0, %v5284
        %v5286 = vmul.f32 %v5283, %v5285
        %v5287 = vadd.f32 %v5283, %v5286
        %vm5288 = vweird.f32 %v4677
        %vm5289 = vweird.f32 %v5283
        %vm5290 = vmor %vm5288, %vm5289
        %v5291 = vsel %vm5290, %v5283, %v5287
        %v5292 = vand.u32 2147483647, %v4677
        %vm5293 = vcmp.eq.f32.partialorder %v5292, 8.507059e+37
        %v5294 = vand.u32 %v4677, 2147483648
        %v5295 = vor.u32 1.1754944e-38, %v5294
        %v5296 = vsel %vm5293, %v5295, %v5291
        %v5297 = vmul.f32 1.0, %v5296
        %v5298 = vrcp.pop %v4678
        %v5299 = vmul.f32 %v4678, %v5298
        %v5300 = vsub.f32 1.0, %v5299
        %v5301 = vmul.f32 %v5298, %v5300
        %v5302 = vadd.f32 %v5298, %v5301
        %vm5303 = vweird.f32 %v4678
        %vm5304 = vweird.f32 %v5298
        %vm5305 = vmor %vm5303, %vm5304
        %v5306 = vsel %vm5305, %v5298, %v5302
        %v5307 = vand.u32 2147483647, %v4678
        %vm5308 = vcmp.eq.f32.partialorder %v5307, 8.507059e+37
        %v5309 = vand.u32 %v4678, 2147483648
        %v5310 = vor.u32 1.1754944e-38, %v5309
        %v5311 = vsel %vm5308, %v5310, %v5306
        %v5312 = vmul.f32 1.0, %v5311
        %v5313 = vrcp.pop %v4679
        %v5314 = vmul.f32 %v4679, %v5313
        %v5315 = vsub.f32 1.0, %v5314
        %v5316 = vmul.f32 %v5313, %v5315
        %v5317 = vadd.f32 %v5313, %v5316
        %vm5318 = vweird.f32 %v4679
        %vm5319 = vweird.f32 %v5313
        %vm5320 = vmor %vm5318, %vm5319
        %v5321 = vsel %vm5320, %v5313, %v5317
        %v5322 = vand.u32 2147483647, %v4679
        %vm5323 = vcmp.eq.f32.partialorder %v5322, 8.507059e+37
        %v5324 = vand.u32 %v4679, 2147483648
        %v5325 = vor.u32 1.1754944e-38, %v5324
        %v5326 = vsel %vm5323, %v5325, %v5321
        %v5327 = vmul.f32 1.0, %v5326
        %v5328 = vrcp.pop %v4680
        %v5329 = vmul.f32 %v4680, %v5328
        %v5330 = vsub.f32 1.0, %v5329
        %v5331 = vmul.f32 %v5328, %v5330
        %v5332 = vadd.f32 %v5328, %v5331
        %vm5333 = vweird.f32 %v4680
        %vm5334 = vweird.f32 %v5328
        %vm5335 = vmor %vm5333, %vm5334
        %v5336 = vsel %vm5335, %v5328, %v5332
        %v5337 = vand.u32 2147483647, %v4680
        %vm5338 = vcmp.eq.f32.partialorder %v5337, 8.507059e+37
        %v5339 = vand.u32 %v4680, 2147483648
        %v5340 = vor.u32 1.1754944e-38, %v5339
        %v5341 = vsel %vm5338, %v5340, %v5336
        %v5342 = vmul.f32 1.0, %v5341
        %v5343 = vrcp.pop %v4681
        %v5344 = vmul.f32 %v4681, %v5343
        %v5345 = vsub.f32 1.0, %v5344
        %v5346 = vmul.f32 %v5343, %v5345
        %v5347 = vadd.f32 %v5343, %v5346
        %vm5348 = vweird.f32 %v4681
        %vm5349 = vweird.f32 %v5343
        %vm5350 = vmor %vm5348, %vm5349
        %v5351 = vsel %vm5350, %v5343, %v5347
        %v5352 = vand.u32 2147483647, %v4681
        %vm5353 = vcmp.eq.f32.partialorder %v5352, 8.507059e+37
        %v5354 = vand.u32 %v4681, 2147483648
        %v5355 = vor.u32 1.1754944e-38, %v5354
        %v5356 = vsel %vm5353, %v5355, %v5351
        %v5357 = vmul.f32 1.0, %v5356
        %v5358 = vrcp.pop %v4682
        %v5359 = vmul.f32 %v4682, %v5358
        %v5360 = vsub.f32 1.0, %v5359
        %v5361 = vmul.f32 %v5358, %v5360
        %v5362 = vadd.f32 %v5358, %v5361
        %vm5363 = vweird.f32 %v4682
        %vm5364 = vweird.f32 %v5358
        %vm5365 = vmor %vm5363, %vm5364
        %v5366 = vsel %vm5365, %v5358, %v5362
        %v5367 = vand.u32 2147483647, %v4682
        %vm5368 = vcmp.eq.f32.partialorder %v5367, 8.507059e+37
        %v5369 = vand.u32 %v4682, 2147483648
        %v5370 = vor.u32 1.1754944e-38, %v5369
        %v5371 = vsel %vm5368, %v5370, %v5366
        %v5372 = vmul.f32 1.0, %v5371
        %v5373 = vrcp.pop %v4683
        %v5374 = vmul.f32 %v4683, %v5373
        %v5375 = vsub.f32 1.0, %v5374
        %v5376 = vmul.f32 %v5373, %v5375
        %v5377 = vadd.f32 %v5373, %v5376
        %vm5378 = vweird.f32 %v4683
        %vm5379 = vweird.f32 %v5373
        %vm5380 = vmor %vm5378, %vm5379
        %v5381 = vsel %vm5380, %v5373, %v5377
        %v5382 = vand.u32 2147483647, %v4683
        %vm5383 = vcmp.eq.f32.partialorder %v5382, 8.507059e+37
        %v5384 = vand.u32 %v4683, 2147483648
        %v5385 = vor.u32 1.1754944e-38, %v5384
        %v5386 = vsel %vm5383, %v5385, %v5381
        %v5387 = vmul.f32 1.0, %v5386
        %v5388 = vrcp.pop %v4684
        %v5389 = vmul.f32 %v4684, %v5388
        %v5390 = vsub.f32 1.0, %v5389
        %v5391 = vmul.f32 %v5388, %v5390
        %v5392 = vadd.f32 %v5388, %v5391
        %vm5393 = vweird.f32 %v4684
        %vm5394 = vweird.f32 %v5388
        %vm5395 = vmor %vm5393, %vm5394
        %v5396 = vsel %vm5395, %v5388, %v5392
        %v5397 = vand.u32 2147483647, %v4684
        %vm5398 = vcmp.eq.f32.partialorder %v5397, 8.507059e+37
        %v5399 = vand.u32 %v4684, 2147483648
        %v5400 = vor.u32 1.1754944e-38, %v5399
        %v5401 = vsel %vm5398, %v5400, %v5396
        %v5402 = vmul.f32 1.0, %v5401
        %v5403 = vrcp.pop %v4685
        %v5404 = vmul.f32 %v4685, %v5403
        %v5405 = vsub.f32 1.0, %v5404
        %v5406 = vmul.f32 %v5403, %v5405
        %v5407 = vadd.f32 %v5403, %v5406
        %vm5408 = vweird.f32 %v4685
        %vm5409 = vweird.f32 %v5403
        %vm5410 = vmor %vm5408, %vm5409
        %v5411 = vsel %vm5410, %v5403, %v5407
        %v5412 = vand.u32 2147483647, %v4685
        %vm5413 = vcmp.eq.f32.partialorder %v5412, 8.507059e+37
        %v5414 = vand.u32 %v4685, 2147483648
        %v5415 = vor.u32 1.1754944e-38, %v5414
        %v5416 = vsel %vm5413, %v5415, %v5411
        %v5417 = vmul.f32 1.0, %v5416
        %v5418 = vrcp.pop %v4686
        %v5419 = vmul.f32 %v4686, %v5418
        %v5420 = vsub.f32 1.0, %v5419
        %v5421 = vmul.f32 %v5418, %v5420
        %v5422 = vadd.f32 %v5418, %v5421
        %vm5423 = vweird.f32 %v4686
        %vm5424 = vweird.f32 %v5418
        %vm5425 = vmor %vm5423, %vm5424
        %v5426 = vsel %vm5425, %v5418, %v5422
        %v5427 = vand.u32 2147483647, %v4686
        %vm5428 = vcmp.eq.f32.partialorder %v5427, 8.507059e+37
        %v5429 = vand.u32 %v4686, 2147483648
        %v5430 = vor.u32 1.1754944e-38, %v5429
        %v5431 = vsel %vm5428, %v5430, %v5426
        %v5432 = vmul.f32 1.0, %v5431
        %v5433 = vrcp.pop %v4687
        %v5434 = vmul.f32 %v4687, %v5433
        %v5435 = vsub.f32 1.0, %v5434
        %v5436 = vmul.f32 %v5433, %v5435
        %v5437 = vadd.f32 %v5433, %v5436
        %vm5438 = vweird.f32 %v4687
        %vm5439 = vweird.f32 %v5433
        %vm5440 = vmor %vm5438, %vm5439
        %v5441 = vsel %vm5440, %v5433, %v5437
        %v5442 = vand.u32 2147483647, %v4687
        %vm5443 = vcmp.eq.f32.partialorder %v5442, 8.507059e+37
        %v5444 = vand.u32 %v4687, 2147483648
        %v5445 = vor.u32 1.1754944e-38, %v5444
        %v5446 = vsel %vm5443, %v5445, %v5441
        %v5447 = vmul.f32 1.0, %v5446
        %v5448 = vrcp.pop %v4688
        %v5449 = vmul.f32 %v4688, %v5448
        %v5450 = vsub.f32 1.0, %v5449
        %v5451 = vmul.f32 %v5448, %v5450
        %v5452 = vadd.f32 %v5448, %v5451
        %vm5453 = vweird.f32 %v4688
        %vm5454 = vweird.f32 %v5448
        %vm5455 = vmor %vm5453, %vm5454
        %v5456 = vsel %vm5455, %v5448, %v5452
        %v5457 = vand.u32 2147483647, %v4688
        %vm5458 = vcmp.eq.f32.partialorder %v5457, 8.507059e+37
        %v5459 = vand.u32 %v4688, 2147483648
        %v5460 = vor.u32 1.1754944e-38, %v5459
        %v5461 = vsel %vm5458, %v5460, %v5456
        %v5462 = vmul.f32 1.0, %v5461
        %v5463 = vrcp.pop %v4689
        %v5464 = vmul.f32 %v4689, %v5463
        %v5465 = vsub.f32 1.0, %v5464
        %v5466 = vmul.f32 %v5463, %v5465
        %v5467 = vadd.f32 %v5463, %v5466
        %vm5468 = vweird.f32 %v4689
        %vm5469 = vweird.f32 %v5463
        %vm5470 = vmor %vm5468, %vm5469
        %v5471 = vsel %vm5470, %v5463, %v5467
        %v5472 = vand.u32 2147483647, %v4689
        %vm5473 = vcmp.eq.f32.partialorder %v5472, 8.507059e+37
        %v5474 = vand.u32 %v4689, 2147483648
        %v5475 = vor.u32 1.1754944e-38, %v5474
        %v5476 = vsel %vm5473, %v5475, %v5471
        %v5477 = vmul.f32 1.0, %v5476
        %v5478 = vrcp.pop %v4690
        %v5479 = vmul.f32 %v4690, %v5478
        %v5480 = vsub.f32 1.0, %v5479
        %v5481 = vmul.f32 %v5478, %v5480
        %v5482 = vadd.f32 %v5478, %v5481
        %vm5483 = vweird.f32 %v4690
        %vm5484 = vweird.f32 %v5478
        %vm5485 = vmor %vm5483, %vm5484
        %v5486 = vsel %vm5485, %v5478, %v5482
        %v5487 = vand.u32 2147483647, %v4690
        %vm5488 = vcmp.eq.f32.partialorder %v5487, 8.507059e+37
        %v5489 = vand.u32 %v4690, 2147483648
        %v5490 = vor.u32 1.1754944e-38, %v5489
        %v5491 = vsel %vm5488, %v5490, %v5486
        %v5492 = vmul.f32 1.0, %v5491
        %v5493 = vrcp.pop %v4691
        %v5494 = vmul.f32 %v4691, %v5493
        %v5495 = vsub.f32 1.0, %v5494
        %v5496 = vmul.f32 %v5493, %v5495
        %v5497 = vadd.f32 %v5493, %v5496
        %vm5498 = vweird.f32 %v4691
        %vm5499 = vweird.f32 %v5493
        %vm5500 = vmor %vm5498, %vm5499
        %v5501 = vsel %vm5500, %v5493, %v5497
        %v5502 = vand.u32 2147483647, %v4691
        %vm5503 = vcmp.eq.f32.partialorder %v5502, 8.507059e+37
        %v5504 = vand.u32 %v4691, 2147483648
        %v5505 = vor.u32 1.1754944e-38, %v5504
        %v5506 = vsel %vm5503, %v5505, %v5501
        %v5507 = vmul.f32 1.0, %v5506
        %v5508 = vrcp.pop %v4692
        %v5509 = vmul.f32 %v4692, %v5508
        %v5510 = vsub.f32 1.0, %v5509
        %v5511 = vmul.f32 %v5508, %v5510
        %v5512 = vadd.f32 %v5508, %v5511
        %vm5513 = vweird.f32 %v4692
        %vm5514 = vweird.f32 %v5508
        %vm5515 = vmor %vm5513, %vm5514
        %v5516 = vsel %vm5515, %v5508, %v5512
        %v5517 = vand.u32 2147483647, %v4692
        %vm5518 = vcmp.eq.f32.partialorder %v5517, 8.507059e+37
        %v5519 = vand.u32 %v4692, 2147483648
        %v5520 = vor.u32 1.1754944e-38, %v5519
        %v5521 = vsel %vm5518, %v5520, %v5516
        %v5522 = vmul.f32 1.0, %v5521
        %v5523 = vrcp.pop %v4693
        %v5524 = vmul.f32 %v4693, %v5523
        %v5525 = vsub.f32 1.0, %v5524
        %v5526 = vmul.f32 %v5523, %v5525
        %v5527 = vadd.f32 %v5523, %v5526
        %vm5528 = vweird.f32 %v4693
        %vm5529 = vweird.f32 %v5523
        %vm5530 = vmor %vm5528, %vm5529
        %v5531 = vsel %vm5530, %v5523, %v5527
        %v5532 = vand.u32 2147483647, %v4693
        %vm5533 = vcmp.eq.f32.partialorder %v5532, 8.507059e+37
        %v5534 = vand.u32 %v4693, 2147483648
        %v5535 = vor.u32 1.1754944e-38, %v5534
        %v5536 = vsel %vm5533, %v5535, %v5531
        %v5537 = vmul.f32 1.0, %v5536
        %v5538 = vrcp.pop %v4694
        %v5539 = vmul.f32 %v4694, %v5538
        %v5540 = vsub.f32 1.0, %v5539
        %v5541 = vmul.f32 %v5538, %v5540
        %v5542 = vadd.f32 %v5538, %v5541
        %vm5543 = vweird.f32 %v4694
        %vm5544 = vweird.f32 %v5538
        %vm5545 = vmor %vm5543, %vm5544
        %v5546 = vsel %vm5545, %v5538, %v5542
        %v5547 = vand.u32 2147483647, %v4694
        %vm5548 = vcmp.eq.f32.partialorder %v5547, 8.507059e+37
        %v5549 = vand.u32 %v4694, 2147483648
        %v5550 = vor.u32 1.1754944e-38, %v5549
        %v5551 = vsel %vm5548, %v5550, %v5546
        %v5552 = vmul.f32 1.0, %v5551
        %v5553 = vrcp.pop %v4695
        %v5554 = vmul.f32 %v4695, %v5553
        %v5555 = vsub.f32 1.0, %v5554
        %v5556 = vmul.f32 %v5553, %v5555
        %v5557 = vadd.f32 %v5553, %v5556
        %vm5558 = vweird.f32 %v4695
        %vm5559 = vweird.f32 %v5553
        %vm5560 = vmor %vm5558, %vm5559
        %v5561 = vsel %vm5560, %v5553, %v5557
        %v5562 = vand.u32 2147483647, %v4695
        %vm5563 = vcmp.eq.f32.partialorder %v5562, 8.507059e+37
        %v5564 = vand.u32 %v4695, 2147483648
        %v5565 = vor.u32 1.1754944e-38, %v5564
        %v5566 = vsel %vm5563, %v5565, %v5561
        %v5567 = vmul.f32 1.0, %v5566
        %v5568 = vrcp.pop %v4696
        %v5569 = vmul.f32 %v4696, %v5568
        %v5570 = vsub.f32 1.0, %v5569
        %v5571 = vmul.f32 %v5568, %v5570
        %v5572 = vadd.f32 %v5568, %v5571
        %vm5573 = vweird.f32 %v4696
        %vm5574 = vweird.f32 %v5568
        %vm5575 = vmor %vm5573, %vm5574
        %v5576 = vsel %vm5575, %v5568, %v5572
        %v5577 = vand.u32 2147483647, %v4696
        %vm5578 = vcmp.eq.f32.partialorder %v5577, 8.507059e+37
        %v5579 = vand.u32 %v4696, 2147483648
        %v5580 = vor.u32 1.1754944e-38, %v5579
        %v5581 = vsel %vm5578, %v5580, %v5576
        %v5582 = vmul.f32 1.0, %v5581
        %v5583 = vrcp.pop %v4697
        %v5584 = vmul.f32 %v4697, %v5583
        %v5585 = vsub.f32 1.0, %v5584
        %v5586 = vmul.f32 %v5583, %v5585
        %v5587 = vadd.f32 %v5583, %v5586
        %vm5588 = vweird.f32 %v4697
        %vm5589 = vweird.f32 %v5583
        %vm5590 = vmor %vm5588, %vm5589
        %v5591 = vsel %vm5590, %v5583, %v5587
        %v5592 = vand.u32 2147483647, %v4697
        %vm5593 = vcmp.eq.f32.partialorder %v5592, 8.507059e+37
        %v5594 = vand.u32 %v4697, 2147483648
        %v5595 = vor.u32 1.1754944e-38, %v5594
        %v5596 = vsel %vm5593, %v5595, %v5591
        %v5597 = vmul.f32 1.0, %v5596
        %v5598 = vrcp.pop %v4698
        %v5599 = vmul.f32 %v4698, %v5598
        %v5600 = vsub.f32 1.0, %v5599
        %v5601 = vmul.f32 %v5598, %v5600
        %v5602 = vadd.f32 %v5598, %v5601
        %vm5603 = vweird.f32 %v4698
        %vm5604 = vweird.f32 %v5598
        %vm5605 = vmor %vm5603, %vm5604
        %v5606 = vsel %vm5605, %v5598, %v5602
        %v5607 = vand.u32 2147483647, %v4698
        %vm5608 = vcmp.eq.f32.partialorder %v5607, 8.507059e+37
        %v5609 = vand.u32 %v4698, 2147483648
        %v5610 = vor.u32 1.1754944e-38, %v5609
        %v5611 = vsel %vm5608, %v5610, %v5606
        %v5612 = vmul.f32 1.0, %v5611
        %v5613 = vrcp.pop %v4699
        %v5614 = vmul.f32 %v4699, %v5613
        %v5615 = vsub.f32 1.0, %v5614
        %v5616 = vmul.f32 %v5613, %v5615
        %v5617 = vadd.f32 %v5613, %v5616
        %vm5618 = vweird.f32 %v4699
        %vm5619 = vweird.f32 %v5613
        %vm5620 = vmor %vm5618, %vm5619
        %v5621 = vsel %vm5620, %v5613, %v5617
        %v5622 = vand.u32 2147483647, %v4699
        %vm5623 = vcmp.eq.f32.partialorder %v5622, 8.507059e+37
        %v5624 = vand.u32 %v4699, 2147483648
        %v5625 = vor.u32 1.1754944e-38, %v5624
        %v5626 = vsel %vm5623, %v5625, %v5621
        %v5627 = vmul.f32 1.0, %v5626
        %v5628 = vrcp.pop %v4700
        %v5629 = vmul.f32 %v4700, %v5628
        %v5630 = vsub.f32 1.0, %v5629
        %v5631 = vmul.f32 %v5628, %v5630
        %v5632 = vadd.f32 %v5628, %v5631
        %vm5633 = vweird.f32 %v4700
        %vm5634 = vweird.f32 %v5628
        %vm5635 = vmor %vm5633, %vm5634
        %v5636 = vsel %vm5635, %v5628, %v5632
        %v5637 = vand.u32 2147483647, %v4700
        %vm5638 = vcmp.eq.f32.partialorder %v5637, 8.507059e+37
        %v5639 = vand.u32 %v4700, 2147483648
        %v5640 = vor.u32 1.1754944e-38, %v5639
        %v5641 = vsel %vm5638, %v5640, %v5636
        %v5642 = vmul.f32 1.0, %v5641
        %v5643 = vrcp.pop %v4701
        %v5644 = vmul.f32 %v4701, %v5643
        %v5645 = vsub.f32 1.0, %v5644
        %v5646 = vmul.f32 %v5643, %v5645
        %v5647 = vadd.f32 %v5643, %v5646
        %vm5648 = vweird.f32 %v4701
        %vm5649 = vweird.f32 %v5643
        %vm5650 = vmor %vm5648, %vm5649
        %v5651 = vsel %vm5650, %v5643, %v5647
        %v5652 = vand.u32 2147483647, %v4701
        %vm5653 = vcmp.eq.f32.partialorder %v5652, 8.507059e+37
        %v5654 = vand.u32 %v4701, 2147483648
        %v5655 = vor.u32 1.1754944e-38, %v5654
        %v5656 = vsel %vm5653, %v5655, %v5651
        %v5657 = vmul.f32 1.0, %v5656
        %v5658 = vrcp.pop %v4702
        %v5659 = vmul.f32 %v4702, %v5658
        %v5660 = vsub.f32 1.0, %v5659
        %v5661 = vmul.f32 %v5658, %v5660
        %v5662 = vadd.f32 %v5658, %v5661
        %vm5663 = vweird.f32 %v4702
        %vm5664 = vweird.f32 %v5658
        %vm5665 = vmor %vm5663, %vm5664
        %v5666 = vsel %vm5665, %v5658, %v5662
        %v5667 = vand.u32 2147483647, %v4702
        %vm5668 = vcmp.eq.f32.partialorder %v5667, 8.507059e+37
        %v5669 = vand.u32 %v4702, 2147483648
        %v5670 = vor.u32 1.1754944e-38, %v5669
        %v5671 = vsel %vm5668, %v5670, %v5666
        %v5672 = vmul.f32 1.0, %v5671
        %v5673 = vrcp.pop %v4703
        %v5674 = vmul.f32 %v4703, %v5673
        %v5675 = vsub.f32 1.0, %v5674
        %v5676 = vmul.f32 %v5673, %v5675
        %v5677 = vadd.f32 %v5673, %v5676
        %vm5678 = vweird.f32 %v4703
        %vm5679 = vweird.f32 %v5673
        %vm5680 = vmor %vm5678, %vm5679
        %v5681 = vsel %vm5680, %v5673, %v5677
        %v5682 = vand.u32 2147483647, %v4703
        %vm5683 = vcmp.eq.f32.partialorder %v5682, 8.507059e+37
        %v5684 = vand.u32 %v4703, 2147483648
        %v5685 = vor.u32 1.1754944e-38, %v5684
        %v5686 = vsel %vm5683, %v5685, %v5681
        %v5687 = vmul.f32 1.0, %v5686
        %v5688 = vrcp.pop %v4704
        %v5689 = vmul.f32 %v4704, %v5688
        %v5690 = vsub.f32 1.0, %v5689
        %v5691 = vmul.f32 %v5688, %v5690
        %v5692 = vadd.f32 %v5688, %v5691
        %vm5693 = vweird.f32 %v4704
        %vm5694 = vweird.f32 %v5688
        %vm5695 = vmor %vm5693, %vm5694
        %v5696 = vsel %vm5695, %v5688, %v5692
        %v5697 = vand.u32 2147483647, %v4704
        %vm5698 = vcmp.eq.f32.partialorder %v5697, 8.507059e+37
        %v5699 = vand.u32 %v4704, 2147483648
        %v5700 = vor.u32 1.1754944e-38, %v5699
        %v5701 = vsel %vm5698, %v5700, %v5696
        %v5702 = vmul.f32 1.0, %v5701
        %v5703 = vrcp.pop %v4705
        %v5704 = vmul.f32 %v4705, %v5703
        %v5705 = vsub.f32 1.0, %v5704
        %v5706 = vmul.f32 %v5703, %v5705
        %v5707 = vadd.f32 %v5703, %v5706
        %vm5708 = vweird.f32 %v4705
        %vm5709 = vweird.f32 %v5703
        %vm5710 = vmor %vm5708, %vm5709
        %v5711 = vsel %vm5710, %v5703, %v5707
        %v5712 = vand.u32 2147483647, %v4705
        %vm5713 = vcmp.eq.f32.partialorder %v5712, 8.507059e+37
        %v5714 = vand.u32 %v4705, 2147483648
        %v5715 = vor.u32 1.1754944e-38, %v5714
        %v5716 = vsel %vm5713, %v5715, %v5711
        %v5717 = vmul.f32 1.0, %v5716
        %v5718 = vrcp.pop %v4706
        %v5719 = vmul.f32 %v4706, %v5718
        %v5720 = vsub.f32 1.0, %v5719
        %v5721 = vmul.f32 %v5718, %v5720
        %v5722 = vadd.f32 %v5718, %v5721
        %vm5723 = vweird.f32 %v4706
        %vm5724 = vweird.f32 %v5718
        %vm5725 = vmor %vm5723, %vm5724
        %v5726 = vsel %vm5725, %v5718, %v5722
        %v5727 = vand.u32 2147483647, %v4706
        %vm5728 = vcmp.eq.f32.partialorder %v5727, 8.507059e+37
        %v5729 = vand.u32 %v4706, 2147483648
        %v5730 = vor.u32 1.1754944e-38, %v5729
        %v5731 = vsel %vm5728, %v5730, %v5726
        %v5732 = vmul.f32 1.0, %v5731
        %v5733 = vrcp.pop %v4707
        %v5734 = vmul.f32 %v4707, %v5733
        %v5735 = vsub.f32 1.0, %v5734
        %v5736 = vmul.f32 %v5733, %v5735
        %v5737 = vadd.f32 %v5733, %v5736
        %vm5738 = vweird.f32 %v4707
        %vm5739 = vweird.f32 %v5733
        %vm5740 = vmor %vm5738, %vm5739
        %v5741 = vsel %vm5740, %v5733, %v5737
        %v5742 = vand.u32 2147483647, %v4707
        %vm5743 = vcmp.eq.f32.partialorder %v5742, 8.507059e+37
        %v5744 = vand.u32 %v4707, 2147483648
        %v5745 = vor.u32 1.1754944e-38, %v5744
        %v5746 = vsel %vm5743, %v5745, %v5741
        %v5747 = vmul.f32 1.0, %v5746
        %v5748 = vrcp.pop %v4708
        %v5749 = vmul.f32 %v4708, %v5748
        %v5750 = vsub.f32 1.0, %v5749
        %v5751 = vmul.f32 %v5748, %v5750
        %v5752 = vadd.f32 %v5748, %v5751
        %vm5753 = vweird.f32 %v4708
        %vm5754 = vweird.f32 %v5748
        %vm5755 = vmor %vm5753, %vm5754
        %v5756 = vsel %vm5755, %v5748, %v5752
        %v5757 = vand.u32 2147483647, %v4708
        %vm5758 = vcmp.eq.f32.partialorder %v5757, 8.507059e+37
        %v5759 = vand.u32 %v4708, 2147483648
        %v5760 = vor.u32 1.1754944e-38, %v5759
        %v5761 = vsel %vm5758, %v5760, %v5756
        %v5762 = vmul.f32 1.0, %v5761
        %v5763 = vrcp.pop %v4709
        %v5764 = vmul.f32 %v4709, %v5763
        %v5765 = vsub.f32 1.0, %v5764
        %v5766 = vmul.f32 %v5763, %v5765
        %v5767 = vadd.f32 %v5763, %v5766
        %vm5768 = vweird.f32 %v4709
        %vm5769 = vweird.f32 %v5763
        %vm5770 = vmor %vm5768, %vm5769
        %v5771 = vsel %vm5770, %v5763, %v5767
        %v5772 = vand.u32 2147483647, %v4709
        %vm5773 = vcmp.eq.f32.partialorder %v5772, 8.507059e+37
        %v5774 = vand.u32 %v4709, 2147483648
        %v5775 = vor.u32 1.1754944e-38, %v5774
        %v5776 = vsel %vm5773, %v5775, %v5771
        %v5777 = vmul.f32 1.0, %v5776
        %v5778 = vrcp.pop %v4710
        %v5779 = vmul.f32 %v4710, %v5778
        %v5780 = vsub.f32 1.0, %v5779
        %v5781 = vmul.f32 %v5778, %v5780
        %v5782 = vadd.f32 %v5778, %v5781
        %vm5783 = vweird.f32 %v4710
        %vm5784 = vweird.f32 %v5778
        %vm5785 = vmor %vm5783, %vm5784
        %v5786 = vsel %vm5785, %v5778, %v5782
        %v5787 = vand.u32 2147483647, %v4710
        %vm5788 = vcmp.eq.f32.partialorder %v5787, 8.507059e+37
        %v5789 = vand.u32 %v4710, 2147483648
        %v5790 = vor.u32 1.1754944e-38, %v5789
        %v5791 = vsel %vm5788, %v5790, %v5786
        %v5792 = vmul.f32 1.0, %v5791
        %v5793 = vrcp.pop %v4711
        %v5794 = vmul.f32 %v4711, %v5793
        %v5795 = vsub.f32 1.0, %v5794
        %v5796 = vmul.f32 %v5793, %v5795
        %v5797 = vadd.f32 %v5793, %v5796
        %vm5798 = vweird.f32 %v4711
        %vm5799 = vweird.f32 %v5793
        %vm5800 = vmor %vm5798, %vm5799
        %v5801 = vsel %vm5800, %v5793, %v5797
        %v5802 = vand.u32 2147483647, %v4711
        %vm5803 = vcmp.eq.f32.partialorder %v5802, 8.507059e+37
        %v5804 = vand.u32 %v4711, 2147483648
        %v5805 = vor.u32 1.1754944e-38, %v5804
        %v5806 = vsel %vm5803, %v5805, %v5801
        %v5807 = vmul.f32 1.0, %v5806
        %v5808 = vrcp.pop %v4712
        %v5809 = vmul.f32 %v4712, %v5808
        %v5810 = vsub.f32 1.0, %v5809
        %v5811 = vmul.f32 %v5808, %v5810
        %v5812 = vadd.f32 %v5808, %v5811
        %vm5813 = vweird.f32 %v4712
        %vm5814 = vweird.f32 %v5808
        %vm5815 = vmor %vm5813, %vm5814
        %v5816 = vsel %vm5815, %v5808, %v5812
        %v5817 = vand.u32 2147483647, %v4712
        %vm5818 = vcmp.eq.f32.partialorder %v5817, 8.507059e+37
        %v5819 = vand.u32 %v4712, 2147483648
        %v5820 = vor.u32 1.1754944e-38, %v5819
        %v5821 = vsel %vm5818, %v5820, %v5816
        %v5822 = vmul.f32 1.0, %v5821
        %v5823 = vrcp.pop %v4713
        %v5824 = vmul.f32 %v4713, %v5823
        %v5825 = vsub.f32 1.0, %v5824
        %v5826 = vmul.f32 %v5823, %v5825
        %v5827 = vadd.f32 %v5823, %v5826
        %vm5828 = vweird.f32 %v4713
        %vm5829 = vweird.f32 %v5823
        %vm5830 = vmor %vm5828, %vm5829
        %v5831 = vsel %vm5830, %v5823, %v5827
        %v5832 = vand.u32 2147483647, %v4713
        %vm5833 = vcmp.eq.f32.partialorder %v5832, 8.507059e+37
        %v5834 = vand.u32 %v4713, 2147483648
        %v5835 = vor.u32 1.1754944e-38, %v5834
        %v5836 = vsel %vm5833, %v5835, %v5831
        %v5837 = vmul.f32 1.0, %v5836
        %v5838 = vrcp.pop %v4714
        %v5839 = vmul.f32 %v4714, %v5838
        %v5840 = vsub.f32 1.0, %v5839
        %v5841 = vmul.f32 %v5838, %v5840
        %v5842 = vadd.f32 %v5838, %v5841
        %vm5843 = vweird.f32 %v4714
        %vm5844 = vweird.f32 %v5838
        %vm5845 = vmor %vm5843, %vm5844
        %v5846 = vsel %vm5845, %v5838, %v5842
        %v5847 = vand.u32 2147483647, %v4714
        %vm5848 = vcmp.eq.f32.partialorder %v5847, 8.507059e+37
        %v5849 = vand.u32 %v4714, 2147483648
        %v5850 = vor.u32 1.1754944e-38, %v5849
        %v5851 = vsel %vm5848, %v5850, %v5846
        %v5852 = vmul.f32 1.0, %v5851
        %v5853 = vrcp.pop %v4715
        %v5854 = vmul.f32 %v4715, %v5853
        %v5855 = vsub.f32 1.0, %v5854
        %v5856 = vmul.f32 %v5853, %v5855
        %v5857 = vadd.f32 %v5853, %v5856
        %vm5858 = vweird.f32 %v4715
        %vm5859 = vweird.f32 %v5853
        %vm5860 = vmor %vm5858, %vm5859
        %v5861 = vsel %vm5860, %v5853, %v5857
        %v5862 = vand.u32 2147483647, %v4715
        %vm5863 = vcmp.eq.f32.partialorder %v5862, 8.507059e+37
        %v5864 = vand.u32 %v4715, 2147483648
        %v5865 = vor.u32 1.1754944e-38, %v5864
        %v5866 = vsel %vm5863, %v5865, %v5861
        %v5867 = vmul.f32 1.0, %v5866
        %v5868 = vrcp.pop %v4716
        %v5869 = vmul.f32 %v4716, %v5868
        %v5870 = vsub.f32 1.0, %v5869
        %v5871 = vmul.f32 %v5868, %v5870
        %v5872 = vadd.f32 %v5868, %v5871
        %vm5873 = vweird.f32 %v4716
        %vm5874 = vweird.f32 %v5868
        %vm5875 = vmor %vm5873, %vm5874
        %v5876 = vsel %vm5875, %v5868, %v5872
        %v5877 = vand.u32 2147483647, %v4716
        %vm5878 = vcmp.eq.f32.partialorder %v5877, 8.507059e+37
        %v5879 = vand.u32 %v4716, 2147483648
        %v5880 = vor.u32 1.1754944e-38, %v5879
        %v5881 = vsel %vm5878, %v5880, %v5876
        %v5882 = vmul.f32 1.0, %v5881
        %v5883 = vrcp.pop %v4717
        %v5884 = vmul.f32 %v4717, %v5883
        %v5885 = vsub.f32 1.0, %v5884
        %v5886 = vmul.f32 %v5883, %v5885
        %v5887 = vadd.f32 %v5883, %v5886
        %vm5888 = vweird.f32 %v4717
        %vm5889 = vweird.f32 %v5883
        %vm5890 = vmor %vm5888, %vm5889
        %v5891 = vsel %vm5890, %v5883, %v5887
        %v5892 = vand.u32 2147483647, %v4717
        %vm5893 = vcmp.eq.f32.partialorder %v5892, 8.507059e+37
        %v5894 = vand.u32 %v4717, 2147483648
        %v5895 = vor.u32 1.1754944e-38, %v5894
        %v5896 = vsel %vm5893, %v5895, %v5891
        %v5897 = vmul.f32 1.0, %v5896
        %v5898 = vrcp.pop %v4718
        %v5899 = vmul.f32 %v4718, %v5898
        %v5900 = vsub.f32 1.0, %v5899
        %v5901 = vmul.f32 %v5898, %v5900
        %v5902 = vadd.f32 %v5898, %v5901
        %vm5903 = vweird.f32 %v4718
        %vm5904 = vweird.f32 %v5898
        %vm5905 = vmor %vm5903, %vm5904
        %v5906 = vsel %vm5905, %v5898, %v5902
        %v5907 = vand.u32 2147483647, %v4718
        %vm5908 = vcmp.eq.f32.partialorder %v5907, 8.507059e+37
        %v5909 = vand.u32 %v4718, 2147483648
        %v5910 = vor.u32 1.1754944e-38, %v5909
        %v5911 = vsel %vm5908, %v5910, %v5906
        %v5912 = vmul.f32 1.0, %v5911
        %v5913 = vrcp.pop %v4719
        %v5914 = vmul.f32 %v4719, %v5913
        %v5915 = vsub.f32 1.0, %v5914
        %v5916 = vmul.f32 %v5913, %v5915
        %v5917 = vadd.f32 %v5913, %v5916
        %vm5918 = vweird.f32 %v4719
        %vm5919 = vweird.f32 %v5913
        %vm5920 = vmor %vm5918, %vm5919
        %v5921 = vsel %vm5920, %v5913, %v5917
        %v5922 = vand.u32 2147483647, %v4719
        %vm5923 = vcmp.eq.f32.partialorder %v5922, 8.507059e+37
        %v5924 = vand.u32 %v4719, 2147483648
        %v5925 = vor.u32 1.1754944e-38, %v5924
        %v5926 = vsel %vm5923, %v5925, %v5921
        %v5927 = vmul.f32 1.0, %v5926
        %v5928 = vrcp.pop %v4720
        %v5929 = vmul.f32 %v4720, %v5928
        %v5930 = vsub.f32 1.0, %v5929
        %v5931 = vmul.f32 %v5928, %v5930
        %v5932 = vadd.f32 %v5928, %v5931
        %vm5933 = vweird.f32 %v4720
        %vm5934 = vweird.f32 %v5928
        %vm5935 = vmor %vm5933, %vm5934
        %v5936 = vsel %vm5935, %v5928, %v5932
        %v5937 = vand.u32 2147483647, %v4720
        %vm5938 = vcmp.eq.f32.partialorder %v5937, 8.507059e+37
        %v5939 = vand.u32 %v4720, 2147483648
        %v5940 = vor.u32 1.1754944e-38, %v5939
        %v5941 = vsel %vm5938, %v5940, %v5936
        %v5942 = vmul.f32 1.0, %v5941
        %v5943 = vrcp.pop %v4721
        %v5944 = vmul.f32 %v4721, %v5943
        %v5945 = vsub.f32 1.0, %v5944
        %v5946 = vmul.f32 %v5943, %v5945
        %v5947 = vadd.f32 %v5943, %v5946
        %vm5948 = vweird.f32 %v4721
        %vm5949 = vweird.f32 %v5943
        %vm5950 = vmor %vm5948, %vm5949
        %v5951 = vsel %vm5950, %v5943, %v5947
        %v5952 = vand.u32 2147483647, %v4721
        %vm5953 = vcmp.eq.f32.partialorder %v5952, 8.507059e+37
        %v5954 = vand.u32 %v4721, 2147483648
        %v5955 = vor.u32 1.1754944e-38, %v5954
        %v5956 = vsel %vm5953, %v5955, %v5951
        %v5957 = vmul.f32 1.0, %v5956
        %v5958 = vrcp.pop %v4722
        %v5959 = vmul.f32 %v4722, %v5958
        %v5960 = vsub.f32 1.0, %v5959
        %v5961 = vmul.f32 %v5958, %v5960
        %v5962 = vadd.f32 %v5958, %v5961
        %vm5963 = vweird.f32 %v4722
        %vm5964 = vweird.f32 %v5958
        %vm5965 = vmor %vm5963, %vm5964
        %v5966 = vsel %vm5965, %v5958, %v5962
        %v5967 = vand.u32 2147483647, %v4722
        %vm5968 = vcmp.eq.f32.partialorder %v5967, 8.507059e+37
        %v5969 = vand.u32 %v4722, 2147483648
        %v5970 = vor.u32 1.1754944e-38, %v5969
        %v5971 = vsel %vm5968, %v5970, %v5966
        %v5972 = vmul.f32 1.0, %v5971
        %v5973 = vrcp.pop %v4723
        %v5974 = vmul.f32 %v4723, %v5973
        %v5975 = vsub.f32 1.0, %v5974
        %v5976 = vmul.f32 %v5973, %v5975
        %v5977 = vadd.f32 %v5973, %v5976
        %vm5978 = vweird.f32 %v4723
        %vm5979 = vweird.f32 %v5973
        %vm5980 = vmor %vm5978, %vm5979
        %v5981 = vsel %vm5980, %v5973, %v5977
        %v5982 = vand.u32 2147483647, %v4723
        %vm5983 = vcmp.eq.f32.partialorder %v5982, 8.507059e+37
        %v5984 = vand.u32 %v4723, 2147483648
        %v5985 = vor.u32 1.1754944e-38, %v5984
        %v5986 = vsel %vm5983, %v5985, %v5981
        %v5987 = vmul.f32 1.0, %v5986
        %v5988 = vrcp.pop %v4724
        %v5989 = vmul.f32 %v4724, %v5988
        %v5990 = vsub.f32 1.0, %v5989
        %v5991 = vmul.f32 %v5988, %v5990
        %v5992 = vadd.f32 %v5988, %v5991
        %vm5993 = vweird.f32 %v4724
        %vm5994 = vweird.f32 %v5988
        %vm5995 = vmor %vm5993, %vm5994
        %v5996 = vsel %vm5995, %v5988, %v5992
        %v5997 = vand.u32 2147483647, %v4724
        %vm5998 = vcmp.eq.f32.partialorder %v5997, 8.507059e+37
        %v5999 = vand.u32 %v4724, 2147483648
        %v6000 = vor.u32 1.1754944e-38, %v5999
        %v6001 = vsel %vm5998, %v6000, %v5996
        %v6002 = vmul.f32 1.0, %v6001
        %v6003 = vrcp.pop %v4725
        %v6004 = vmul.f32 %v4725, %v6003
        %v6005 = vsub.f32 1.0, %v6004
        %v6006 = vmul.f32 %v6003, %v6005
        %v6007 = vadd.f32 %v6003, %v6006
        %vm6008 = vweird.f32 %v4725
        %vm6009 = vweird.f32 %v6003
        %vm6010 = vmor %vm6008, %vm6009
        %v6011 = vsel %vm6010, %v6003, %v6007
        %v6012 = vand.u32 2147483647, %v4725
        %vm6013 = vcmp.eq.f32.partialorder %v6012, 8.507059e+37
        %v6014 = vand.u32 %v4725, 2147483648
        %v6015 = vor.u32 1.1754944e-38, %v6014
        %v6016 = vsel %vm6013, %v6015, %v6011
        %v6017 = vmul.f32 1.0, %v6016
        %v6018 = vrcp.pop %v4726
        %v6019 = vmul.f32 %v4726, %v6018
        %v6020 = vsub.f32 1.0, %v6019
        %v6021 = vmul.f32 %v6018, %v6020
        %v6022 = vadd.f32 %v6018, %v6021
        %vm6023 = vweird.f32 %v4726
        %vm6024 = vweird.f32 %v6018
        %vm6025 = vmor %vm6023, %vm6024
        %v6026 = vsel %vm6025, %v6018, %v6022
        %v6027 = vand.u32 2147483647, %v4726
        %vm6028 = vcmp.eq.f32.partialorder %v6027, 8.507059e+37
        %v6029 = vand.u32 %v4726, 2147483648
        %v6030 = vor.u32 1.1754944e-38, %v6029
        %v6031 = vsel %vm6028, %v6030, %v6026
        %v6032 = vmul.f32 1.0, %v6031
        %v6033 = vrcp.pop %v4727
        %v6034 = vmul.f32 %v4727, %v6033
        %v6035 = vsub.f32 1.0, %v6034
        %v6036 = vmul.f32 %v6033, %v6035
        %v6037 = vadd.f32 %v6033, %v6036
        %vm6038 = vweird.f32 %v4727
        %vm6039 = vweird.f32 %v6033
        %vm6040 = vmor %vm6038, %vm6039
        %v6041 = vsel %vm6040, %v6033, %v6037
        %v6042 = vand.u32 2147483647, %v4727
        %vm6043 = vcmp.eq.f32.partialorder %v6042, 8.507059e+37
        %v6044 = vand.u32 %v4727, 2147483648
        %v6045 = vor.u32 1.1754944e-38, %v6044
        %v6046 = vsel %vm6043, %v6045, %v6041
        %v6047 = vmul.f32 1.0, %v6046
        %v6048 = vrcp.pop %v4728
        %v6049 = vmul.f32 %v4728, %v6048
        %v6050 = vsub.f32 1.0, %v6049
        %v6051 = vmul.f32 %v6048, %v6050
        %v6052 = vadd.f32 %v6048, %v6051
        %vm6053 = vweird.f32 %v4728
        %vm6054 = vweird.f32 %v6048
        %vm6055 = vmor %vm6053, %vm6054
        %v6056 = vsel %vm6055, %v6048, %v6052
        %v6057 = vand.u32 2147483647, %v4728
        %vm6058 = vcmp.eq.f32.partialorder %v6057, 8.507059e+37
        %v6059 = vand.u32 %v4728, 2147483648
        %v6060 = vor.u32 1.1754944e-38, %v6059
        %v6061 = vsel %vm6058, %v6060, %v6056
        %v6062 = vmul.f32 1.0, %v6061
        %v6063 = vrcp.pop %v4729
        %v6064 = vmul.f32 %v4729, %v6063
        %v6065 = vsub.f32 1.0, %v6064
        %v6066 = vmul.f32 %v6063, %v6065
        %v6067 = vadd.f32 %v6063, %v6066
        %vm6068 = vweird.f32 %v4729
        %vm6069 = vweird.f32 %v6063
        %vm6070 = vmor %vm6068, %vm6069
        %v6071 = vsel %vm6070, %v6063, %v6067
        %v6072 = vand.u32 2147483647, %v4729
        %vm6073 = vcmp.eq.f32.partialorder %v6072, 8.507059e+37
        %v6074 = vand.u32 %v4729, 2147483648
        %v6075 = vor.u32 1.1754944e-38, %v6074
        %v6076 = vsel %vm6073, %v6075, %v6071
        %v6077 = vmul.f32 1.0, %v6076
        %v6078 = vrcp.pop %v4730
        %v6079 = vmul.f32 %v4730, %v6078
        %v6080 = vsub.f32 1.0, %v6079
        %v6081 = vmul.f32 %v6078, %v6080
        %v6082 = vadd.f32 %v6078, %v6081
        %vm6083 = vweird.f32 %v4730
        %vm6084 = vweird.f32 %v6078
        %vm6085 = vmor %vm6083, %vm6084
        %v6086 = vsel %vm6085, %v6078, %v6082
        %v6087 = vand.u32 2147483647, %v4730
        %vm6088 = vcmp.eq.f32.partialorder %v6087, 8.507059e+37
        %v6089 = vand.u32 %v4730, 2147483648
        %v6090 = vor.u32 1.1754944e-38, %v6089
        %v6091 = vsel %vm6088, %v6090, %v6086
        %v6092 = vmul.f32 1.0, %v6091
        %v6093 = vrcp.pop %v4731
        %v6094 = vmul.f32 %v4731, %v6093
        %v6095 = vsub.f32 1.0, %v6094
        %v6096 = vmul.f32 %v6093, %v6095
        %v6097 = vadd.f32 %v6093, %v6096
        %vm6098 = vweird.f32 %v4731
        %vm6099 = vweird.f32 %v6093
        %vm6100 = vmor %vm6098, %vm6099
        %v6101 = vsel %vm6100, %v6093, %v6097
        %v6102 = vand.u32 2147483647, %v4731
        %vm6103 = vcmp.eq.f32.partialorder %v6102, 8.507059e+37
        %v6104 = vand.u32 %v4731, 2147483648
        %v6105 = vor.u32 1.1754944e-38, %v6104
        %v6106 = vsel %vm6103, %v6105, %v6101
        %v6107 = vmul.f32 1.0, %v6106
        %v6108 = vrcp.pop %v4732
        %v6109 = vmul.f32 %v4732, %v6108
        %v6110 = vsub.f32 1.0, %v6109
        %v6111 = vmul.f32 %v6108, %v6110
        %v6112 = vadd.f32 %v6108, %v6111
        %vm6113 = vweird.f32 %v4732
        %vm6114 = vweird.f32 %v6108
        %vm6115 = vmor %vm6113, %vm6114
        %v6116 = vsel %vm6115, %v6108, %v6112
        %v6117 = vand.u32 2147483647, %v4732
        %vm6118 = vcmp.eq.f32.partialorder %v6117, 8.507059e+37
        %v6119 = vand.u32 %v4732, 2147483648
        %v6120 = vor.u32 1.1754944e-38, %v6119
        %v6121 = vsel %vm6118, %v6120, %v6116
        %v6122 = vmul.f32 1.0, %v6121
        %v6123 = vrcp.pop %v4733
        %v6124 = vmul.f32 %v4733, %v6123
        %v6125 = vsub.f32 1.0, %v6124
        %v6126 = vmul.f32 %v6123, %v6125
        %v6127 = vadd.f32 %v6123, %v6126
        %vm6128 = vweird.f32 %v4733
        %vm6129 = vweird.f32 %v6123
        %vm6130 = vmor %vm6128, %vm6129
        %v6131 = vsel %vm6130, %v6123, %v6127
        %v6132 = vand.u32 2147483647, %v4733
        %vm6133 = vcmp.eq.f32.partialorder %v6132, 8.507059e+37
        %v6134 = vand.u32 %v4733, 2147483648
        %v6135 = vor.u32 1.1754944e-38, %v6134
        %v6136 = vsel %vm6133, %v6135, %v6131
        %v6137 = vmul.f32 1.0, %v6136
        %v6138 = vrcp.pop %v4734
        %v6139 = vmul.f32 %v4734, %v6138
        %v6140 = vsub.f32 1.0, %v6139
        %v6141 = vmul.f32 %v6138, %v6140
        %v6142 = vadd.f32 %v6138, %v6141
        %vm6143 = vweird.f32 %v4734
        %vm6144 = vweird.f32 %v6138
        %vm6145 = vmor %vm6143, %vm6144
        %v6146 = vsel %vm6145, %v6138, %v6142
        %v6147 = vand.u32 2147483647, %v4734
        %vm6148 = vcmp.eq.f32.partialorder %v6147, 8.507059e+37
        %v6149 = vand.u32 %v4734, 2147483648
        %v6150 = vor.u32 1.1754944e-38, %v6149
        %v6151 = vsel %vm6148, %v6150, %v6146
        %v6152 = vmul.f32 1.0, %v6151
        %v6153 = vrcp.pop %v4735
        %v6154 = vmul.f32 %v4735, %v6153
        %v6155 = vsub.f32 1.0, %v6154
        %v6156 = vmul.f32 %v6153, %v6155
        %v6157 = vadd.f32 %v6153, %v6156
        %vm6158 = vweird.f32 %v4735
        %vm6159 = vweird.f32 %v6153
        %vm6160 = vmor %vm6158, %vm6159
        %v6161 = vsel %vm6160, %v6153, %v6157
        %v6162 = vand.u32 2147483647, %v4735
        %vm6163 = vcmp.eq.f32.partialorder %v6162, 8.507059e+37
        %v6164 = vand.u32 %v4735, 2147483648
        %v6165 = vor.u32 1.1754944e-38, %v6164
        %v6166 = vsel %vm6163, %v6165, %v6161
        %v6167 = vmul.f32 1.0, %v6166
        %v6168 = vrcp.pop %v4736
        %v6169 = vmul.f32 %v4736, %v6168
        %v6170 = vsub.f32 1.0, %v6169
        %v6171 = vmul.f32 %v6168, %v6170
        %v6172 = vadd.f32 %v6168, %v6171
        %vm6173 = vweird.f32 %v4736
        %vm6174 = vweird.f32 %v6168
        %vm6175 = vmor %vm6173, %vm6174
        %v6176 = vsel %vm6175, %v6168, %v6172
        %v6177 = vand.u32 2147483647, %v4736
        %vm6178 = vcmp.eq.f32.partialorder %v6177, 8.507059e+37
        %v6179 = vand.u32 %v4736, 2147483648
        %v6180 = vor.u32 1.1754944e-38, %v6179
        %v6181 = vsel %vm6178, %v6180, %v6176
        %v6182 = vmul.f32 1.0, %v6181
        %v6183 = vrcp.pop %v4737
        %v6184 = vmul.f32 %v4737, %v6183
        %v6185 = vsub.f32 1.0, %v6184
        %v6186 = vmul.f32 %v6183, %v6185
        %v6187 = vadd.f32 %v6183, %v6186
        %vm6188 = vweird.f32 %v4737
        %vm6189 = vweird.f32 %v6183
        %vm6190 = vmor %vm6188, %vm6189
        %v6191 = vsel %vm6190, %v6183, %v6187
        %v6192 = vand.u32 2147483647, %v4737
        %vm6193 = vcmp.eq.f32.partialorder %v6192, 8.507059e+37
        %v6194 = vand.u32 %v4737, 2147483648
        %v6195 = vor.u32 1.1754944e-38, %v6194
        %v6196 = vsel %vm6193, %v6195, %v6191
        %v6197 = vmul.f32 1.0, %v6196
        %v6198 = vrcp.pop %v4738
        %v6199 = vmul.f32 %v4738, %v6198
        %v6200 = vsub.f32 1.0, %v6199
        %v6201 = vmul.f32 %v6198, %v6200
        %v6202 = vadd.f32 %v6198, %v6201
        %vm6203 = vweird.f32 %v4738
        %vm6204 = vweird.f32 %v6198
        %vm6205 = vmor %vm6203, %vm6204
        %v6206 = vsel %vm6205, %v6198, %v6202
        %v6207 = vand.u32 2147483647, %v4738
        %vm6208 = vcmp.eq.f32.partialorder %v6207, 8.507059e+37
        %v6209 = vand.u32 %v4738, 2147483648
        %v6210 = vor.u32 1.1754944e-38, %v6209
        %v6211 = vsel %vm6208, %v6210, %v6206
        %v6212 = vmul.f32 1.0, %v6211
        %v6213 = vrcp.pop %v4739
        %v6214 = vmul.f32 %v4739, %v6213
        %v6215 = vsub.f32 1.0, %v6214
        %v6216 = vmul.f32 %v6213, %v6215
        %v6217 = vadd.f32 %v6213, %v6216
        %vm6218 = vweird.f32 %v4739
        %vm6219 = vweird.f32 %v6213
        %vm6220 = vmor %vm6218, %vm6219
        %v6221 = vsel %vm6220, %v6213, %v6217
        %v6222 = vand.u32 2147483647, %v4739
        %vm6223 = vcmp.eq.f32.partialorder %v6222, 8.507059e+37
        %v6224 = vand.u32 %v4739, 2147483648
        %v6225 = vor.u32 1.1754944e-38, %v6224
        %v6226 = vsel %vm6223, %v6225, %v6221
        %v6227 = vmul.f32 1.0, %v6226
        %v6228 = vrcp.pop %v4740
        %v6229 = vmul.f32 %v4740, %v6228
        %v6230 = vsub.f32 1.0, %v6229
        %v6231 = vmul.f32 %v6228, %v6230
        %v6232 = vadd.f32 %v6228, %v6231
        %vm6233 = vweird.f32 %v4740
        %vm6234 = vweird.f32 %v6228
        %vm6235 = vmor %vm6233, %vm6234
        %v6236 = vsel %vm6235, %v6228, %v6232
        %v6237 = vand.u32 2147483647, %v4740
        %vm6238 = vcmp.eq.f32.partialorder %v6237, 8.507059e+37
        %v6239 = vand.u32 %v4740, 2147483648
        %v6240 = vor.u32 1.1754944e-38, %v6239
        %v6241 = vsel %vm6238, %v6240, %v6236
        %v6242 = vmul.f32 1.0, %v6241
        %v6243 = vrcp.pop %v4741
        %v6244 = vmul.f32 %v4741, %v6243
        %v6245 = vsub.f32 1.0, %v6244
        %v6246 = vmul.f32 %v6243, %v6245
        %v6247 = vadd.f32 %v6243, %v6246
        %vm6248 = vweird.f32 %v4741
        %vm6249 = vweird.f32 %v6243
        %vm6250 = vmor %vm6248, %vm6249
        %v6251 = vsel %vm6250, %v6243, %v6247
        %v6252 = vand.u32 2147483647, %v4741
        %vm6253 = vcmp.eq.f32.partialorder %v6252, 8.507059e+37
        %v6254 = vand.u32 %v4741, 2147483648
        %v6255 = vor.u32 1.1754944e-38, %v6254
        %v6256 = vsel %vm6253, %v6255, %v6251
        %v6257 = vmul.f32 1.0, %v6256
        %v6258 = vrcp.pop %v4742
        %v6259 = vmul.f32 %v4742, %v6258
        %v6260 = vsub.f32 1.0, %v6259
        %v6261 = vmul.f32 %v6258, %v6260
        %v6262 = vadd.f32 %v6258, %v6261
        %vm6263 = vweird.f32 %v4742
        %vm6264 = vweird.f32 %v6258
        %vm6265 = vmor %vm6263, %vm6264
        %v6266 = vsel %vm6265, %v6258, %v6262
        %v6267 = vand.u32 2147483647, %v4742
        %vm6268 = vcmp.eq.f32.partialorder %v6267, 8.507059e+37
        %v6269 = vand.u32 %v4742, 2147483648
        %v6270 = vor.u32 1.1754944e-38, %v6269
        %v6271 = vsel %vm6268, %v6270, %v6266
        %v6272 = vmul.f32 1.0, %v6271
        %v6273 = vrcp.pop %v4743
        %v6274 = vmul.f32 %v4743, %v6273
        %v6275 = vsub.f32 1.0, %v6274
        %v6276 = vmul.f32 %v6273, %v6275
        %v6277 = vadd.f32 %v6273, %v6276
        %vm6278 = vweird.f32 %v4743
        %vm6279 = vweird.f32 %v6273
        %vm6280 = vmor %vm6278, %vm6279
        %v6281 = vsel %vm6280, %v6273, %v6277
        %v6282 = vand.u32 2147483647, %v4743
        %vm6283 = vcmp.eq.f32.partialorder %v6282, 8.507059e+37
        %v6284 = vand.u32 %v4743, 2147483648
        %v6285 = vor.u32 1.1754944e-38, %v6284
        %v6286 = vsel %vm6283, %v6285, %v6281
        %v6287 = vmul.f32 1.0, %v6286
        %v6288 = vrcp.pop %v4744
        %v6289 = vmul.f32 %v4744, %v6288
        %v6290 = vsub.f32 1.0, %v6289
        %v6291 = vmul.f32 %v6288, %v6290
        %v6292 = vadd.f32 %v6288, %v6291
        %vm6293 = vweird.f32 %v4744
        %vm6294 = vweird.f32 %v6288
        %vm6295 = vmor %vm6293, %vm6294
        %v6296 = vsel %vm6295, %v6288, %v6292
        %v6297 = vand.u32 2147483647, %v4744
        %vm6298 = vcmp.eq.f32.partialorder %v6297, 8.507059e+37
        %v6299 = vand.u32 %v4744, 2147483648
        %v6300 = vor.u32 1.1754944e-38, %v6299
        %v6301 = vsel %vm6298, %v6300, %v6296
        %v6302 = vmul.f32 1.0, %v6301
        %v6303 = vrcp.pop %v4745
        %v6304 = vmul.f32 %v4745, %v6303
        %v6305 = vsub.f32 1.0, %v6304
        %v6306 = vmul.f32 %v6303, %v6305
        %v6307 = vadd.f32 %v6303, %v6306
        %vm6308 = vweird.f32 %v4745
        %vm6309 = vweird.f32 %v6303
        %vm6310 = vmor %vm6308, %vm6309
        %v6311 = vsel %vm6310, %v6303, %v6307
        %v6312 = vand.u32 2147483647, %v4745
        %vm6313 = vcmp.eq.f32.partialorder %v6312, 8.507059e+37
        %v6314 = vand.u32 %v4745, 2147483648
        %v6315 = vor.u32 1.1754944e-38, %v6314
        %v6316 = vsel %vm6313, %v6315, %v6311
        %v6317 = vmul.f32 1.0, %v6316
        %v6318 = vrcp.pop %v4746
        %v6319 = vmul.f32 %v4746, %v6318
        %v6320 = vsub.f32 1.0, %v6319
        %v6321 = vmul.f32 %v6318, %v6320
        %v6322 = vadd.f32 %v6318, %v6321
        %vm6323 = vweird.f32 %v4746
        %vm6324 = vweird.f32 %v6318
        %vm6325 = vmor %vm6323, %vm6324
        %v6326 = vsel %vm6325, %v6318, %v6322
        %v6327 = vand.u32 2147483647, %v4746
        %vm6328 = vcmp.eq.f32.partialorder %v6327, 8.507059e+37
        %v6329 = vand.u32 %v4746, 2147483648
        %v6330 = vor.u32 1.1754944e-38, %v6329
        %v6331 = vsel %vm6328, %v6330, %v6326
        %v6332 = vmul.f32 1.0, %v6331
        %v6333 = vrcp.pop %v4747
        %v6334 = vmul.f32 %v4747, %v6333
        %v6335 = vsub.f32 1.0, %v6334
        %v6336 = vmul.f32 %v6333, %v6335
        %v6337 = vadd.f32 %v6333, %v6336
        %vm6338 = vweird.f32 %v4747
        %vm6339 = vweird.f32 %v6333
        %vm6340 = vmor %vm6338, %vm6339
        %v6341 = vsel %vm6340, %v6333, %v6337
        %v6342 = vand.u32 2147483647, %v4747
        %vm6343 = vcmp.eq.f32.partialorder %v6342, 8.507059e+37
        %v6344 = vand.u32 %v4747, 2147483648
        %v6345 = vor.u32 1.1754944e-38, %v6344
        %v6346 = vsel %vm6343, %v6345, %v6341
        %v6347 = vmul.f32 1.0, %v6346
        %v6348 = vrcp.pop %v4748
        %v6349 = vmul.f32 %v4748, %v6348
        %v6350 = vsub.f32 1.0, %v6349
        %v6351 = vmul.f32 %v6348, %v6350
        %v6352 = vadd.f32 %v6348, %v6351
        %vm6353 = vweird.f32 %v4748
        %vm6354 = vweird.f32 %v6348
        %vm6355 = vmor %vm6353, %vm6354
        %v6356 = vsel %vm6355, %v6348, %v6352
        %v6357 = vand.u32 2147483647, %v4748
        %vm6358 = vcmp.eq.f32.partialorder %v6357, 8.507059e+37
        %v6359 = vand.u32 %v4748, 2147483648
        %v6360 = vor.u32 1.1754944e-38, %v6359
        %v6361 = vsel %vm6358, %v6360, %v6356
        %v6362 = vmul.f32 1.0, %v6361
        %v6363 = vrcp.pop %v4749
        %v6364 = vmul.f32 %v4749, %v6363
        %v6365 = vsub.f32 1.0, %v6364
        %v6366 = vmul.f32 %v6363, %v6365
        %v6367 = vadd.f32 %v6363, %v6366
        %vm6368 = vweird.f32 %v4749
        %vm6369 = vweird.f32 %v6363
        %vm6370 = vmor %vm6368, %vm6369
        %v6371 = vsel %vm6370, %v6363, %v6367
        %v6372 = vand.u32 2147483647, %v4749
        %vm6373 = vcmp.eq.f32.partialorder %v6372, 8.507059e+37
        %v6374 = vand.u32 %v4749, 2147483648
        %v6375 = vor.u32 1.1754944e-38, %v6374
        %v6376 = vsel %vm6373, %v6375, %v6371
        %v6377 = vmul.f32 1.0, %v6376
        %v6378 = vrcp.pop %v4750
        %v6379 = vmul.f32 %v4750, %v6378
        %v6380 = vsub.f32 1.0, %v6379
        %v6381 = vmul.f32 %v6378, %v6380
        %v6382 = vadd.f32 %v6378, %v6381
        %vm6383 = vweird.f32 %v4750
        %vm6384 = vweird.f32 %v6378
        %vm6385 = vmor %vm6383, %vm6384
        %v6386 = vsel %vm6385, %v6378, %v6382
        %v6387 = vand.u32 2147483647, %v4750
        %vm6388 = vcmp.eq.f32.partialorder %v6387, 8.507059e+37
        %v6389 = vand.u32 %v4750, 2147483648
        %v6390 = vor.u32 1.1754944e-38, %v6389
        %v6391 = vsel %vm6388, %v6390, %v6386
        %v6392 = vmul.f32 1.0, %v6391
        %v6393 = vrcp.pop %v4751
        %v6394 = vmul.f32 %v4751, %v6393
        %v6395 = vsub.f32 1.0, %v6394
        %v6396 = vmul.f32 %v6393, %v6395
        %v6397 = vadd.f32 %v6393, %v6396
        %vm6398 = vweird.f32 %v4751
        %vm6399 = vweird.f32 %v6393
        %vm6400 = vmor %vm6398, %vm6399
        %v6401 = vsel %vm6400, %v6393, %v6397
        %v6402 = vand.u32 2147483647, %v4751
        %vm6403 = vcmp.eq.f32.partialorder %v6402, 8.507059e+37
        %v6404 = vand.u32 %v4751, 2147483648
        %v6405 = vor.u32 1.1754944e-38, %v6404
        %v6406 = vsel %vm6403, %v6405, %v6401
        %v6407 = vmul.f32 1.0, %v6406
        %v6408 = vrcp.pop %v4752
        %v6409 = vmul.f32 %v4752, %v6408
        %v6410 = vsub.f32 1.0, %v6409
        %v6411 = vmul.f32 %v6408, %v6410
        %v6412 = vadd.f32 %v6408, %v6411
        %vm6413 = vweird.f32 %v4752
        %vm6414 = vweird.f32 %v6408
        %vm6415 = vmor %vm6413, %vm6414
        %v6416 = vsel %vm6415, %v6408, %v6412
        %v6417 = vand.u32 2147483647, %v4752
        %vm6418 = vcmp.eq.f32.partialorder %v6417, 8.507059e+37
        %v6419 = vand.u32 %v4752, 2147483648
        %v6420 = vor.u32 1.1754944e-38, %v6419
        %v6421 = vsel %vm6418, %v6420, %v6416
        %v6422 = vmul.f32 1.0, %v6421
        %v6423 = vrcp.pop %v4753
        %v6424 = vmul.f32 %v4753, %v6423
        %v6425 = vsub.f32 1.0, %v6424
        %v6426 = vmul.f32 %v6423, %v6425
        %v6427 = vadd.f32 %v6423, %v6426
        %vm6428 = vweird.f32 %v4753
        %vm6429 = vweird.f32 %v6423
        %vm6430 = vmor %vm6428, %vm6429
        %v6431 = vsel %vm6430, %v6423, %v6427
        %v6432 = vand.u32 2147483647, %v4753
        %vm6433 = vcmp.eq.f32.partialorder %v6432, 8.507059e+37
        %v6434 = vand.u32 %v4753, 2147483648
        %v6435 = vor.u32 1.1754944e-38, %v6434
        %v6436 = vsel %vm6433, %v6435, %v6431
        %v6437 = vmul.f32 1.0, %v6436
        %v6438 = vrcp.pop %v4754
        %v6439 = vmul.f32 %v4754, %v6438
        %v6440 = vsub.f32 1.0, %v6439
        %v6441 = vmul.f32 %v6438, %v6440
        %v6442 = vadd.f32 %v6438, %v6441
        %vm6443 = vweird.f32 %v4754
        %vm6444 = vweird.f32 %v6438
        %vm6445 = vmor %vm6443, %vm6444
        %v6446 = vsel %vm6445, %v6438, %v6442
        %v6447 = vand.u32 2147483647, %v4754
        %vm6448 = vcmp.eq.f32.partialorder %v6447, 8.507059e+37
        %v6449 = vand.u32 %v4754, 2147483648
        %v6450 = vor.u32 1.1754944e-38, %v6449
        %v6451 = vsel %vm6448, %v6450, %v6446
        %v6452 = vmul.f32 1.0, %v6451
        %v6453 = vrcp.pop %v4755
        %v6454 = vmul.f32 %v4755, %v6453
        %v6455 = vsub.f32 1.0, %v6454
        %v6456 = vmul.f32 %v6453, %v6455
        %v6457 = vadd.f32 %v6453, %v6456
        %vm6458 = vweird.f32 %v4755
        %vm6459 = vweird.f32 %v6453
        %vm6460 = vmor %vm6458, %vm6459
        %v6461 = vsel %vm6460, %v6453, %v6457
        %v6462 = vand.u32 2147483647, %v4755
        %vm6463 = vcmp.eq.f32.partialorder %v6462, 8.507059e+37
        %v6464 = vand.u32 %v4755, 2147483648
        %v6465 = vor.u32 1.1754944e-38, %v6464
        %v6466 = vsel %vm6463, %v6465, %v6461
        %v6467 = vmul.f32 1.0, %v6466
        %v6468 = vrcp.pop %v4756
        %v6469 = vmul.f32 %v4756, %v6468
        %v6470 = vsub.f32 1.0, %v6469
        %v6471 = vmul.f32 %v6468, %v6470
        %v6472 = vadd.f32 %v6468, %v6471
        %vm6473 = vweird.f32 %v4756
        %vm6474 = vweird.f32 %v6468
        %vm6475 = vmor %vm6473, %vm6474
        %v6476 = vsel %vm6475, %v6468, %v6472
        %v6477 = vand.u32 2147483647, %v4756
        %vm6478 = vcmp.eq.f32.partialorder %v6477, 8.507059e+37
        %v6479 = vand.u32 %v4756, 2147483648
        %v6480 = vor.u32 1.1754944e-38, %v6479
        %v6481 = vsel %vm6478, %v6480, %v6476
        %v6482 = vmul.f32 1.0, %v6481
        %v6483 = vrcp.pop %v4757
        %v6484 = vmul.f32 %v4757, %v6483
        %v6485 = vsub.f32 1.0, %v6484
        %v6486 = vmul.f32 %v6483, %v6485
        %v6487 = vadd.f32 %v6483, %v6486
        %vm6488 = vweird.f32 %v4757
        %vm6489 = vweird.f32 %v6483
        %vm6490 = vmor %vm6488, %vm6489
        %v6491 = vsel %vm6490, %v6483, %v6487
        %v6492 = vand.u32 2147483647, %v4757
        %vm6493 = vcmp.eq.f32.partialorder %v6492, 8.507059e+37
        %v6494 = vand.u32 %v4757, 2147483648
        %v6495 = vor.u32 1.1754944e-38, %v6494
        %v6496 = vsel %vm6493, %v6495, %v6491
        %v6497 = vmul.f32 1.0, %v6496
        %v6498 = vrcp.pop %v4758
        %v6499 = vmul.f32 %v4758, %v6498
        %v6500 = vsub.f32 1.0, %v6499
        %v6501 = vmul.f32 %v6498, %v6500
        %v6502 = vadd.f32 %v6498, %v6501
        %vm6503 = vweird.f32 %v4758
        %vm6504 = vweird.f32 %v6498
        %vm6505 = vmor %vm6503, %vm6504
        %v6506 = vsel %vm6505, %v6498, %v6502
        %v6507 = vand.u32 2147483647, %v4758
        %vm6508 = vcmp.eq.f32.partialorder %v6507, 8.507059e+37
        %v6509 = vand.u32 %v4758, 2147483648
        %v6510 = vor.u32 1.1754944e-38, %v6509
        %v6511 = vsel %vm6508, %v6510, %v6506
        %v6512 = vmul.f32 1.0, %v6511
        %v6513 = vrcp.pop %v4759
        %v6514 = vmul.f32 %v4759, %v6513
        %v6515 = vsub.f32 1.0, %v6514
        %v6516 = vmul.f32 %v6513, %v6515
        %v6517 = vadd.f32 %v6513, %v6516
        %vm6518 = vweird.f32 %v4759
        %vm6519 = vweird.f32 %v6513
        %vm6520 = vmor %vm6518, %vm6519
        %v6521 = vsel %vm6520, %v6513, %v6517
        %v6522 = vand.u32 2147483647, %v4759
        %vm6523 = vcmp.eq.f32.partialorder %v6522, 8.507059e+37
        %v6524 = vand.u32 %v4759, 2147483648
        %v6525 = vor.u32 1.1754944e-38, %v6524
        %v6526 = vsel %vm6523, %v6525, %v6521
        %v6527 = vmul.f32 1.0, %v6526
        %v6528 = vrcp.pop %v4760
        %v6529 = vmul.f32 %v4760, %v6528
        %v6530 = vsub.f32 1.0, %v6529
        %v6531 = vmul.f32 %v6528, %v6530
        %v6532 = vadd.f32 %v6528, %v6531
        %vm6533 = vweird.f32 %v4760
        %vm6534 = vweird.f32 %v6528
        %vm6535 = vmor %vm6533, %vm6534
        %v6536 = vsel %vm6535, %v6528, %v6532
        %v6537 = vand.u32 2147483647, %v4760
        %vm6538 = vcmp.eq.f32.partialorder %v6537, 8.507059e+37
        %v6539 = vand.u32 %v4760, 2147483648
        %v6540 = vor.u32 1.1754944e-38, %v6539
        %v6541 = vsel %vm6538, %v6540, %v6536
        %v6542 = vmul.f32 1.0, %v6541
        %v6543 = vrcp.pop %v4761
        %v6544 = vmul.f32 %v4761, %v6543
        %v6545 = vsub.f32 1.0, %v6544
        %v6546 = vmul.f32 %v6543, %v6545
        %v6547 = vadd.f32 %v6543, %v6546
        %vm6548 = vweird.f32 %v4761
        %vm6549 = vweird.f32 %v6543
        %vm6550 = vmor %vm6548, %vm6549
        %v6551 = vsel %vm6550, %v6543, %v6547
        %v6552 = vand.u32 2147483647, %v4761
        %vm6553 = vcmp.eq.f32.partialorder %v6552, 8.507059e+37
        %v6554 = vand.u32 %v4761, 2147483648
        %v6555 = vor.u32 1.1754944e-38, %v6554
        %v6556 = vsel %vm6553, %v6555, %v6551
        %v6557 = vmul.f32 1.0, %v6556
        %v6558 = vrcp.pop %v4762
        %v6559 = vmul.f32 %v4762, %v6558
        %v6560 = vsub.f32 1.0, %v6559
        %v6561 = vmul.f32 %v6558, %v6560
        %v6562 = vadd.f32 %v6558, %v6561
        %vm6563 = vweird.f32 %v4762
        %vm6564 = vweird.f32 %v6558
        %vm6565 = vmor %vm6563, %vm6564
        %v6566 = vsel %vm6565, %v6558, %v6562
        %v6567 = vand.u32 2147483647, %v4762
        %vm6568 = vcmp.eq.f32.partialorder %v6567, 8.507059e+37
        %v6569 = vand.u32 %v4762, 2147483648
        %v6570 = vor.u32 1.1754944e-38, %v6569
        %v6571 = vsel %vm6568, %v6570, %v6566
        %v6572 = vmul.f32 1.0, %v6571
        %v6573 = vrcp.pop %v4763
        %v6574 = vmul.f32 %v4763, %v6573
        %v6575 = vsub.f32 1.0, %v6574
        %v6576 = vmul.f32 %v6573, %v6575
        %v6577 = vadd.f32 %v6573, %v6576
        %vm6578 = vweird.f32 %v4763
        %vm6579 = vweird.f32 %v6573
        %vm6580 = vmor %vm6578, %vm6579
        %v6581 = vsel %vm6580, %v6573, %v6577
        %v6582 = vand.u32 2147483647, %v4763
        %vm6583 = vcmp.eq.f32.partialorder %v6582, 8.507059e+37
        %v6584 = vand.u32 %v4763, 2147483648
        %v6585 = vor.u32 1.1754944e-38, %v6584
        %v6586 = vsel %vm6583, %v6585, %v6581
        %v6587 = vmul.f32 1.0, %v6586
        %v6588 = vrcp.pop %v4764
        %v6589 = vmul.f32 %v4764, %v6588
        %v6590 = vsub.f32 1.0, %v6589
        %v6591 = vmul.f32 %v6588, %v6590
        %v6592 = vadd.f32 %v6588, %v6591
        %vm6593 = vweird.f32 %v4764
        %vm6594 = vweird.f32 %v6588
        %vm6595 = vmor %vm6593, %vm6594
        %v6596 = vsel %vm6595, %v6588, %v6592
        %v6597 = vand.u32 2147483647, %v4764
        %vm6598 = vcmp.eq.f32.partialorder %v6597, 8.507059e+37
        %v6599 = vand.u32 %v4764, 2147483648
        %v6600 = vor.u32 1.1754944e-38, %v6599
        %v6601 = vsel %vm6598, %v6600, %v6596
        %v6602 = vmul.f32 1.0, %v6601
        %v6603 = vrcp.pop %v4765
        %v6604 = vmul.f32 %v4765, %v6603
        %v6605 = vsub.f32 1.0, %v6604
        %v6606 = vmul.f32 %v6603, %v6605
        %v6607 = vadd.f32 %v6603, %v6606
        %vm6608 = vweird.f32 %v4765
        %vm6609 = vweird.f32 %v6603
        %vm6610 = vmor %vm6608, %vm6609
        %v6611 = vsel %vm6610, %v6603, %v6607
        %v6612 = vand.u32 2147483647, %v4765
        %vm6613 = vcmp.eq.f32.partialorder %v6612, 8.507059e+37
        %v6614 = vand.u32 %v4765, 2147483648
        %v6615 = vor.u32 1.1754944e-38, %v6614
        %v6616 = vsel %vm6613, %v6615, %v6611
        %v6617 = vmul.f32 1.0, %v6616
        %v6618 = vrcp.pop %v4766
        %v6619 = vmul.f32 %v4766, %v6618
        %v6620 = vsub.f32 1.0, %v6619
        %v6621 = vmul.f32 %v6618, %v6620
        %v6622 = vadd.f32 %v6618, %v6621
        %vm6623 = vweird.f32 %v4766
        %vm6624 = vweird.f32 %v6618
        %vm6625 = vmor %vm6623, %vm6624
        %v6626 = vsel %vm6625, %v6618, %v6622
        %v6627 = vand.u32 2147483647, %v4766
        %vm6628 = vcmp.eq.f32.partialorder %v6627, 8.507059e+37
        %v6629 = vand.u32 %v4766, 2147483648
        %v6630 = vor.u32 1.1754944e-38, %v6629
        %v6631 = vsel %vm6628, %v6630, %v6626
        %v6632 = vmul.f32 1.0, %v6631
        %v6633 = vrcp.pop %v4767
        %v6634 = vmul.f32 %v4767, %v6633
        %v6635 = vsub.f32 1.0, %v6634
        %v6636 = vmul.f32 %v6633, %v6635
        %v6637 = vadd.f32 %v6633, %v6636
        %vm6638 = vweird.f32 %v4767
        %vm6639 = vweird.f32 %v6633
        %vm6640 = vmor %vm6638, %vm6639
        %v6641 = vsel %vm6640, %v6633, %v6637
        %v6642 = vand.u32 2147483647, %v4767
        %vm6643 = vcmp.eq.f32.partialorder %v6642, 8.507059e+37
        %v6644 = vand.u32 %v4767, 2147483648
        %v6645 = vor.u32 1.1754944e-38, %v6644
        %v6646 = vsel %vm6643, %v6645, %v6641
        %v6647 = vmul.f32 1.0, %v6646
        %v6648 = vrcp.pop %v4768
        %v6649 = vmul.f32 %v4768, %v6648
        %v6650 = vsub.f32 1.0, %v6649
        %v6651 = vmul.f32 %v6648, %v6650
        %v6652 = vadd.f32 %v6648, %v6651
        %vm6653 = vweird.f32 %v4768
        %vm6654 = vweird.f32 %v6648
        %vm6655 = vmor %vm6653, %vm6654
        %v6656 = vsel %vm6655, %v6648, %v6652
        %v6657 = vand.u32 2147483647, %v4768
        %vm6658 = vcmp.eq.f32.partialorder %v6657, 8.507059e+37
        %v6659 = vand.u32 %v4768, 2147483648
        %v6660 = vor.u32 1.1754944e-38, %v6659
        %v6661 = vsel %vm6658, %v6660, %v6656
        %v6662 = vmul.f32 1.0, %v6661
        %v6663 = vrcp.pop %v4769
        %v6664 = vmul.f32 %v4769, %v6663
        %v6665 = vsub.f32 1.0, %v6664
        %v6666 = vmul.f32 %v6663, %v6665
        %v6667 = vadd.f32 %v6663, %v6666
        %vm6668 = vweird.f32 %v4769
        %vm6669 = vweird.f32 %v6663
        %vm6670 = vmor %vm6668, %vm6669
        %v6671 = vsel %vm6670, %v6663, %v6667
        %v6672 = vand.u32 2147483647, %v4769
        %vm6673 = vcmp.eq.f32.partialorder %v6672, 8.507059e+37
        %v6674 = vand.u32 %v4769, 2147483648
        %v6675 = vor.u32 1.1754944e-38, %v6674
        %v6676 = vsel %vm6673, %v6675, %v6671
        %v6677 = vmul.f32 1.0, %v6676
        %v6678 = vrcp.pop %v4770
        %v6679 = vmul.f32 %v4770, %v6678
        %v6680 = vsub.f32 1.0, %v6679
        %v6681 = vmul.f32 %v6678, %v6680
        %v6682 = vadd.f32 %v6678, %v6681
        %vm6683 = vweird.f32 %v4770
        %vm6684 = vweird.f32 %v6678
        %vm6685 = vmor %vm6683, %vm6684
        %v6686 = vsel %vm6685, %v6678, %v6682
        %v6687 = vand.u32 2147483647, %v4770
        %vm6688 = vcmp.eq.f32.partialorder %v6687, 8.507059e+37
        %v6689 = vand.u32 %v4770, 2147483648
        %v6690 = vor.u32 1.1754944e-38, %v6689
        %v6691 = vsel %vm6688, %v6690, %v6686
        %v6692 = vmul.f32 1.0, %v6691
        %v6693 = vrcp.pop %v4771
        %v6694 = vmul.f32 %v4771, %v6693
        %v6695 = vsub.f32 1.0, %v6694
        %v6696 = vmul.f32 %v6693, %v6695
        %v6697 = vadd.f32 %v6693, %v6696
        %vm6698 = vweird.f32 %v4771
        %vm6699 = vweird.f32 %v6693
        %vm6700 = vmor %vm6698, %vm6699
        %v6701 = vsel %vm6700, %v6693, %v6697
        %v6702 = vand.u32 2147483647, %v4771
        %vm6703 = vcmp.eq.f32.partialorder %v6702, 8.507059e+37
        %v6704 = vand.u32 %v4771, 2147483648
        %v6705 = vor.u32 1.1754944e-38, %v6704
        %v6706 = vsel %vm6703, %v6705, %v6701
        %v6707 = vmul.f32 1.0, %v6706
        %v6708 = vrcp.pop %v4772
        %v6709 = vmul.f32 %v4772, %v6708
        %v6710 = vsub.f32 1.0, %v6709
        %v6711 = vmul.f32 %v6708, %v6710
        %v6712 = vadd.f32 %v6708, %v6711
        %vm6713 = vweird.f32 %v4772
        %vm6714 = vweird.f32 %v6708
        %vm6715 = vmor %vm6713, %vm6714
        %v6716 = vsel %vm6715, %v6708, %v6712
        %v6717 = vand.u32 2147483647, %v4772
        %vm6718 = vcmp.eq.f32.partialorder %v6717, 8.507059e+37
        %v6719 = vand.u32 %v4772, 2147483648
        %v6720 = vor.u32 1.1754944e-38, %v6719
        %v6721 = vsel %vm6718, %v6720, %v6716
        %v6722 = vmul.f32 1.0, %v6721
        %v6723 = vrcp.pop %v4773
        %v6724 = vmul.f32 %v4773, %v6723
        %v6725 = vsub.f32 1.0, %v6724
        %v6726 = vmul.f32 %v6723, %v6725
        %v6727 = vadd.f32 %v6723, %v6726
        %vm6728 = vweird.f32 %v4773
        %vm6729 = vweird.f32 %v6723
        %vm6730 = vmor %vm6728, %vm6729
        %v6731 = vsel %vm6730, %v6723, %v6727
        %v6732 = vand.u32 2147483647, %v4773
        %vm6733 = vcmp.eq.f32.partialorder %v6732, 8.507059e+37
        %v6734 = vand.u32 %v4773, 2147483648
        %v6735 = vor.u32 1.1754944e-38, %v6734
        %v6736 = vsel %vm6733, %v6735, %v6731
        %v6737 = vmul.f32 1.0, %v6736
        %v6738 = vrcp.pop %v4774
        %v6739 = vmul.f32 %v4774, %v6738
        %v6740 = vsub.f32 1.0, %v6739
        %v6741 = vmul.f32 %v6738, %v6740
        %v6742 = vadd.f32 %v6738, %v6741
        %vm6743 = vweird.f32 %v4774
        %vm6744 = vweird.f32 %v6738
        %vm6745 = vmor %vm6743, %vm6744
        %v6746 = vsel %vm6745, %v6738, %v6742
        %v6747 = vand.u32 2147483647, %v4774
        %vm6748 = vcmp.eq.f32.partialorder %v6747, 8.507059e+37
        %v6749 = vand.u32 %v4774, 2147483648
        %v6750 = vor.u32 1.1754944e-38, %v6749
        %v6751 = vsel %vm6748, %v6750, %v6746
        %v6752 = vmul.f32 1.0, %v6751
        %v6753 = vrcp.pop %v4775
        %v6754 = vmul.f32 %v4775, %v6753
        %v6755 = vsub.f32 1.0, %v6754
        %v6756 = vmul.f32 %v6753, %v6755
        %v6757 = vadd.f32 %v6753, %v6756
        %vm6758 = vweird.f32 %v4775
        %vm6759 = vweird.f32 %v6753
        %vm6760 = vmor %vm6758, %vm6759
        %v6761 = vsel %vm6760, %v6753, %v6757
        %v6762 = vand.u32 2147483647, %v4775
        %vm6763 = vcmp.eq.f32.partialorder %v6762, 8.507059e+37
        %v6764 = vand.u32 %v4775, 2147483648
        %v6765 = vor.u32 1.1754944e-38, %v6764
        %v6766 = vsel %vm6763, %v6765, %v6761
        %v6767 = vmul.f32 1.0, %v6766
        %v6768 = vrcp.pop %v4776
        %v6769 = vmul.f32 %v4776, %v6768
        %v6770 = vsub.f32 1.0, %v6769
        %v6771 = vmul.f32 %v6768, %v6770
        %v6772 = vadd.f32 %v6768, %v6771
        %vm6773 = vweird.f32 %v4776
        %vm6774 = vweird.f32 %v6768
        %vm6775 = vmor %vm6773, %vm6774
        %v6776 = vsel %vm6775, %v6768, %v6772
        %v6777 = vand.u32 2147483647, %v4776
        %vm6778 = vcmp.eq.f32.partialorder %v6777, 8.507059e+37
        %v6779 = vand.u32 %v4776, 2147483648
        %v6780 = vor.u32 1.1754944e-38, %v6779
        %v6781 = vsel %vm6778, %v6780, %v6776
        %v6782 = vmul.f32 1.0, %v6781
        %v6783 = vrcp.pop %v4777
        %v6784 = vmul.f32 %v4777, %v6783
        %v6785 = vsub.f32 1.0, %v6784
        %v6786 = vmul.f32 %v6783, %v6785
        %v6787 = vadd.f32 %v6783, %v6786
        %vm6788 = vweird.f32 %v4777
        %vm6789 = vweird.f32 %v6783
        %vm6790 = vmor %vm6788, %vm6789
        %v6791 = vsel %vm6790, %v6783, %v6787
        %v6792 = vand.u32 2147483647, %v4777
        %vm6793 = vcmp.eq.f32.partialorder %v6792, 8.507059e+37
        %v6794 = vand.u32 %v4777, 2147483648
        %v6795 = vor.u32 1.1754944e-38, %v6794
        %v6796 = vsel %vm6793, %v6795, %v6791
        %v6797 = vmul.f32 1.0, %v6796
        %v6798 = vrcp.pop %v4778
        %v6799 = vmul.f32 %v4778, %v6798
        %v6800 = vsub.f32 1.0, %v6799
        %v6801 = vmul.f32 %v6798, %v6800
        %v6802 = vadd.f32 %v6798, %v6801
        %vm6803 = vweird.f32 %v4778
        %vm6804 = vweird.f32 %v6798
        %vm6805 = vmor %vm6803, %vm6804
        %v6806 = vsel %vm6805, %v6798, %v6802
        %v6807 = vand.u32 2147483647, %v4778
        %vm6808 = vcmp.eq.f32.partialorder %v6807, 8.507059e+37
        %v6809 = vand.u32 %v4778, 2147483648
        %v6810 = vor.u32 1.1754944e-38, %v6809
        %v6811 = vsel %vm6808, %v6810, %v6806
        %v6812 = vmul.f32 1.0, %v6811
        %v6813 = vrcp.pop %v4779
        %v6814 = vmul.f32 %v4779, %v6813
        %v6815 = vsub.f32 1.0, %v6814
        %v6816 = vmul.f32 %v6813, %v6815
        %v6817 = vadd.f32 %v6813, %v6816
        %vm6818 = vweird.f32 %v4779
        %vm6819 = vweird.f32 %v6813
        %vm6820 = vmor %vm6818, %vm6819
        %v6821 = vsel %vm6820, %v6813, %v6817
        %v6822 = vand.u32 2147483647, %v4779
        %vm6823 = vcmp.eq.f32.partialorder %v6822, 8.507059e+37
        %v6824 = vand.u32 %v4779, 2147483648
        %v6825 = vor.u32 1.1754944e-38, %v6824
        %v6826 = vsel %vm6823, %v6825, %v6821
        %v6827 = vmul.f32 1.0, %v6826
        %v6828 = vrcp.pop %v4780
        %v6829 = vmul.f32 %v4780, %v6828
        %v6830 = vsub.f32 1.0, %v6829
        %v6831 = vmul.f32 %v6828, %v6830
        %v6832 = vadd.f32 %v6828, %v6831
        %vm6833 = vweird.f32 %v4780
        %vm6834 = vweird.f32 %v6828
        %vm6835 = vmor %vm6833, %vm6834
        %v6836 = vsel %vm6835, %v6828, %v6832
        %v6837 = vand.u32 2147483647, %v4780
        %vm6838 = vcmp.eq.f32.partialorder %v6837, 8.507059e+37
        %v6839 = vand.u32 %v4780, 2147483648
        %v6840 = vor.u32 1.1754944e-38, %v6839
        %v6841 = vsel %vm6838, %v6840, %v6836
        %v6842 = vmul.f32 1.0, %v6841
        %v6843 = vrcp.pop %v4781
        %v6844 = vmul.f32 %v4781, %v6843
        %v6845 = vsub.f32 1.0, %v6844
        %v6846 = vmul.f32 %v6843, %v6845
        %v6847 = vadd.f32 %v6843, %v6846
        %vm6848 = vweird.f32 %v4781
        %vm6849 = vweird.f32 %v6843
        %vm6850 = vmor %vm6848, %vm6849
        %v6851 = vsel %vm6850, %v6843, %v6847
        %v6852 = vand.u32 2147483647, %v4781
        %vm6853 = vcmp.eq.f32.partialorder %v6852, 8.507059e+37
        %v6854 = vand.u32 %v4781, 2147483648
        %v6855 = vor.u32 1.1754944e-38, %v6854
        %v6856 = vsel %vm6853, %v6855, %v6851
        %v6857 = vmul.f32 1.0, %v6856
        %v6858 = vrcp.pop %v4782
        %v6859 = vmul.f32 %v4782, %v6858
        %v6860 = vsub.f32 1.0, %v6859
        %v6861 = vmul.f32 %v6858, %v6860
        %v6862 = vadd.f32 %v6858, %v6861
        %vm6863 = vweird.f32 %v4782
        %vm6864 = vweird.f32 %v6858
        %vm6865 = vmor %vm6863, %vm6864
        %v6866 = vsel %vm6865, %v6858, %v6862
        %v6867 = vand.u32 2147483647, %v4782
        %vm6868 = vcmp.eq.f32.partialorder %v6867, 8.507059e+37
        %v6869 = vand.u32 %v4782, 2147483648
        %v6870 = vor.u32 1.1754944e-38, %v6869
        %v6871 = vsel %vm6868, %v6870, %v6866
        %v6872 = vmul.f32 1.0, %v6871
        %v6873 = vrcp.pop %v4783
        %v6874 = vmul.f32 %v4783, %v6873
        %v6875 = vsub.f32 1.0, %v6874
        %v6876 = vmul.f32 %v6873, %v6875
        %v6877 = vadd.f32 %v6873, %v6876
        %vm6878 = vweird.f32 %v4783
        %vm6879 = vweird.f32 %v6873
        %vm6880 = vmor %vm6878, %vm6879
        %v6881 = vsel %vm6880, %v6873, %v6877
        %v6882 = vand.u32 2147483647, %v4783
        %vm6883 = vcmp.eq.f32.partialorder %v6882, 8.507059e+37
        %v6884 = vand.u32 %v4783, 2147483648
        %v6885 = vor.u32 1.1754944e-38, %v6884
        %v6886 = vsel %vm6883, %v6885, %v6881
        %v6887 = vmul.f32 1.0, %v6886
        %v6888 = vrcp.pop %v4784
        %v6889 = vmul.f32 %v4784, %v6888
        %v6890 = vsub.f32 1.0, %v6889
        %v6891 = vmul.f32 %v6888, %v6890
        %v6892 = vadd.f32 %v6888, %v6891
        %vm6893 = vweird.f32 %v4784
        %vm6894 = vweird.f32 %v6888
        %vm6895 = vmor %vm6893, %vm6894
        %v6896 = vsel %vm6895, %v6888, %v6892
        %v6897 = vand.u32 2147483647, %v4784
        %vm6898 = vcmp.eq.f32.partialorder %v6897, 8.507059e+37
        %v6899 = vand.u32 %v4784, 2147483648
        %v6900 = vor.u32 1.1754944e-38, %v6899
        %v6901 = vsel %vm6898, %v6900, %v6896
        %v6902 = vmul.f32 1.0, %v6901
        %v6903 = vrcp.pop %v4785
        %v6904 = vmul.f32 %v4785, %v6903
        %v6905 = vsub.f32 1.0, %v6904
        %v6906 = vmul.f32 %v6903, %v6905
        %v6907 = vadd.f32 %v6903, %v6906
        %vm6908 = vweird.f32 %v4785
        %vm6909 = vweird.f32 %v6903
        %vm6910 = vmor %vm6908, %vm6909
        %v6911 = vsel %vm6910, %v6903, %v6907
        %v6912 = vand.u32 2147483647, %v4785
        %vm6913 = vcmp.eq.f32.partialorder %v6912, 8.507059e+37
        %v6914 = vand.u32 %v4785, 2147483648
        %v6915 = vor.u32 1.1754944e-38, %v6914
        %v6916 = vsel %vm6913, %v6915, %v6911
        %v6917 = vmul.f32 1.0, %v6916
        %v6918 = vrcp.pop %v4786
        %v6919 = vmul.f32 %v4786, %v6918
        %v6920 = vsub.f32 1.0, %v6919
        %v6921 = vmul.f32 %v6918, %v6920
        %v6922 = vadd.f32 %v6918, %v6921
        %vm6923 = vweird.f32 %v4786
        %vm6924 = vweird.f32 %v6918
        %vm6925 = vmor %vm6923, %vm6924
        %v6926 = vsel %vm6925, %v6918, %v6922
        %v6927 = vand.u32 2147483647, %v4786
        %vm6928 = vcmp.eq.f32.partialorder %v6927, 8.507059e+37
        %v6929 = vand.u32 %v4786, 2147483648
        %v6930 = vor.u32 1.1754944e-38, %v6929
        %v6931 = vsel %vm6928, %v6930, %v6926
        %v6932 = vmul.f32 1.0, %v6931
        %v6933 = vrcp.pop %v4787
        %v6934 = vmul.f32 %v4787, %v6933
        %v6935 = vsub.f32 1.0, %v6934
        %v6936 = vmul.f32 %v6933, %v6935
        %v6937 = vadd.f32 %v6933, %v6936
        %vm6938 = vweird.f32 %v4787
        %vm6939 = vweird.f32 %v6933
        %vm6940 = vmor %vm6938, %vm6939
        %v6941 = vsel %vm6940, %v6933, %v6937
        %v6942 = vand.u32 2147483647, %v4787
        %vm6943 = vcmp.eq.f32.partialorder %v6942, 8.507059e+37
        %v6944 = vand.u32 %v4787, 2147483648
        %v6945 = vor.u32 1.1754944e-38, %v6944
        %v6946 = vsel %vm6943, %v6945, %v6941
        %v6947 = vmul.f32 1.0, %v6946
        %v6948 = vrcp.pop %v4788
        %v6949 = vmul.f32 %v4788, %v6948
        %v6950 = vsub.f32 1.0, %v6949
        %v6951 = vmul.f32 %v6948, %v6950
        %v6952 = vadd.f32 %v6948, %v6951
        %vm6953 = vweird.f32 %v4788
        %vm6954 = vweird.f32 %v6948
        %vm6955 = vmor %vm6953, %vm6954
        %v6956 = vsel %vm6955, %v6948, %v6952
        %v6957 = vand.u32 2147483647, %v4788
        %vm6958 = vcmp.eq.f32.partialorder %v6957, 8.507059e+37
        %v6959 = vand.u32 %v4788, 2147483648
        %v6960 = vor.u32 1.1754944e-38, %v6959
        %v6961 = vsel %vm6958, %v6960, %v6956
        %v6962 = vmul.f32 1.0, %v6961
        %v6963 = vrcp.pop %v4789
        %v6964 = vmul.f32 %v4789, %v6963
        %v6965 = vsub.f32 1.0, %v6964
        %v6966 = vmul.f32 %v6963, %v6965
        %v6967 = vadd.f32 %v6963, %v6966
        %vm6968 = vweird.f32 %v4789
        %vm6969 = vweird.f32 %v6963
        %vm6970 = vmor %vm6968, %vm6969
        %v6971 = vsel %vm6970, %v6963, %v6967
        %v6972 = vand.u32 2147483647, %v4789
        %vm6973 = vcmp.eq.f32.partialorder %v6972, 8.507059e+37
        %v6974 = vand.u32 %v4789, 2147483648
        %v6975 = vor.u32 1.1754944e-38, %v6974
        %v6976 = vsel %vm6973, %v6975, %v6971
        %v6977 = vmul.f32 1.0, %v6976
        %v6978 = vrcp.pop %v4790
        %v6979 = vmul.f32 %v4790, %v6978
        %v6980 = vsub.f32 1.0, %v6979
        %v6981 = vmul.f32 %v6978, %v6980
        %v6982 = vadd.f32 %v6978, %v6981
        %vm6983 = vweird.f32 %v4790
        %vm6984 = vweird.f32 %v6978
        %vm6985 = vmor %vm6983, %vm6984
        %v6986 = vsel %vm6985, %v6978, %v6982
        %v6987 = vand.u32 2147483647, %v4790
        %vm6988 = vcmp.eq.f32.partialorder %v6987, 8.507059e+37
        %v6989 = vand.u32 %v4790, 2147483648
        %v6990 = vor.u32 1.1754944e-38, %v6989
        %v6991 = vsel %vm6988, %v6990, %v6986
        %v6992 = vmul.f32 1.0, %v6991
        %v6993 = vrcp.pop %v4791
        %v6994 = vmul.f32 %v4791, %v6993
        %v6995 = vsub.f32 1.0, %v6994
        %v6996 = vmul.f32 %v6993, %v6995
        %v6997 = vadd.f32 %v6993, %v6996
        %vm6998 = vweird.f32 %v4791
        %vm6999 = vweird.f32 %v6993
        %vm7000 = vmor %vm6998, %vm6999
        %v7001 = vsel %vm7000, %v6993, %v6997
        %v7002 = vand.u32 2147483647, %v4791
        %vm7003 = vcmp.eq.f32.partialorder %v7002, 8.507059e+37
        %v7004 = vand.u32 %v4791, 2147483648
        %v7005 = vor.u32 1.1754944e-38, %v7004
        %v7006 = vsel %vm7003, %v7005, %v7001
        %v7007 = vmul.f32 1.0, %v7006
        %v7008 = vrcp.pop %v4792
        %v7009 = vmul.f32 %v4792, %v7008
        %v7010 = vsub.f32 1.0, %v7009
        %v7011 = vmul.f32 %v7008, %v7010
        %v7012 = vadd.f32 %v7008, %v7011
        %vm7013 = vweird.f32 %v4792
        %vm7014 = vweird.f32 %v7008
        %vm7015 = vmor %vm7013, %vm7014
        %v7016 = vsel %vm7015, %v7008, %v7012
        %v7017 = vand.u32 2147483647, %v4792
        %vm7018 = vcmp.eq.f32.partialorder %v7017, 8.507059e+37
        %v7019 = vand.u32 %v4792, 2147483648
        %v7020 = vor.u32 1.1754944e-38, %v7019
        %v7021 = vsel %vm7018, %v7020, %v7016
        %v7022 = vmul.f32 1.0, %v7021
        %v7023 = vrcp.pop %v4793
        %v7024 = vmul.f32 %v4793, %v7023
        %v7025 = vsub.f32 1.0, %v7024
        %v7026 = vmul.f32 %v7023, %v7025
        %v7027 = vadd.f32 %v7023, %v7026
        %vm7028 = vweird.f32 %v4793
        %vm7029 = vweird.f32 %v7023
        %vm7030 = vmor %vm7028, %vm7029
        %v7031 = vsel %vm7030, %v7023, %v7027
        %v7032 = vand.u32 2147483647, %v4793
        %vm7033 = vcmp.eq.f32.partialorder %v7032, 8.507059e+37
        %v7034 = vand.u32 %v4793, 2147483648
        %v7035 = vor.u32 1.1754944e-38, %v7034
        %v7036 = vsel %vm7033, %v7035, %v7031
        %v7037 = vmul.f32 1.0, %v7036
        %v7038 = vrcp.pop %v4794
        %v7039 = vmul.f32 %v4794, %v7038
        %v7040 = vsub.f32 1.0, %v7039
        %v7041 = vmul.f32 %v7038, %v7040
        %v7042 = vadd.f32 %v7038, %v7041
        %vm7043 = vweird.f32 %v4794
        %vm7044 = vweird.f32 %v7038
        %vm7045 = vmor %vm7043, %vm7044
        %v7046 = vsel %vm7045, %v7038, %v7042
        %v7047 = vand.u32 2147483647, %v4794
        %vm7048 = vcmp.eq.f32.partialorder %v7047, 8.507059e+37
        %v7049 = vand.u32 %v4794, 2147483648
        %v7050 = vor.u32 1.1754944e-38, %v7049
        %v7051 = vsel %vm7048, %v7050, %v7046
        %v7052 = vmul.f32 1.0, %v7051
        %v7053 = vrcp.pop %v4795
        %v7054 = vmul.f32 %v4795, %v7053
        %v7055 = vsub.f32 1.0, %v7054
        %v7056 = vmul.f32 %v7053, %v7055
        %v7057 = vadd.f32 %v7053, %v7056
        %vm7058 = vweird.f32 %v4795
        %vm7059 = vweird.f32 %v7053
        %vm7060 = vmor %vm7058, %vm7059
        %v7061 = vsel %vm7060, %v7053, %v7057
        %v7062 = vand.u32 2147483647, %v4795
        %vm7063 = vcmp.eq.f32.partialorder %v7062, 8.507059e+37
        %v7064 = vand.u32 %v4795, 2147483648
        %v7065 = vor.u32 1.1754944e-38, %v7064
        %v7066 = vsel %vm7063, %v7065, %v7061
        %v7067 = vmul.f32 1.0, %v7066
        %v7068 = vrcp.pop %v4796
        %v7069 = vmul.f32 %v4796, %v7068
        %v7070 = vsub.f32 1.0, %v7069
        %v7071 = vmul.f32 %v7068, %v7070
        %v7072 = vadd.f32 %v7068, %v7071
        %vm7073 = vweird.f32 %v4796
        %vm7074 = vweird.f32 %v7068
        %vm7075 = vmor %vm7073, %vm7074
        %v7076 = vsel %vm7075, %v7068, %v7072
        %v7077 = vand.u32 2147483647, %v4796
        %vm7078 = vcmp.eq.f32.partialorder %v7077, 8.507059e+37
        %v7079 = vand.u32 %v4796, 2147483648
        %v7080 = vor.u32 1.1754944e-38, %v7079
        %v7081 = vsel %vm7078, %v7080, %v7076
        %v7082 = vmul.f32 1.0, %v7081
        %v7083 = vrcp.pop %v4797
        %v7084 = vmul.f32 %v4797, %v7083
        %v7085 = vsub.f32 1.0, %v7084
        %v7086 = vmul.f32 %v7083, %v7085
        %v7087 = vadd.f32 %v7083, %v7086
        %vm7088 = vweird.f32 %v4797
        %vm7089 = vweird.f32 %v7083
        %vm7090 = vmor %vm7088, %vm7089
        %v7091 = vsel %vm7090, %v7083, %v7087
        %v7092 = vand.u32 2147483647, %v4797
        %vm7093 = vcmp.eq.f32.partialorder %v7092, 8.507059e+37
        %v7094 = vand.u32 %v4797, 2147483648
        %v7095 = vor.u32 1.1754944e-38, %v7094
        %v7096 = vsel %vm7093, %v7095, %v7091
        %v7097 = vmul.f32 1.0, %v7096
        %v7098 = vrcp.pop %v4798
        %v7099 = vmul.f32 %v4798, %v7098
        %v7100 = vsub.f32 1.0, %v7099
        %v7101 = vmul.f32 %v7098, %v7100
        %v7102 = vadd.f32 %v7098, %v7101
        %vm7103 = vweird.f32 %v4798
        %vm7104 = vweird.f32 %v7098
        %vm7105 = vmor %vm7103, %vm7104
        %v7106 = vsel %vm7105, %v7098, %v7102
        %v7107 = vand.u32 2147483647, %v4798
        %vm7108 = vcmp.eq.f32.partialorder %v7107, 8.507059e+37
        %v7109 = vand.u32 %v4798, 2147483648
        %v7110 = vor.u32 1.1754944e-38, %v7109
        %v7111 = vsel %vm7108, %v7110, %v7106
        %v7112 = vmul.f32 1.0, %v7111
        %v7113 = vrcp.pop %v4799
        %v7114 = vmul.f32 %v4799, %v7113
        %v7115 = vsub.f32 1.0, %v7114
        %v7116 = vmul.f32 %v7113, %v7115
        %v7117 = vadd.f32 %v7113, %v7116
        %vm7118 = vweird.f32 %v4799
        %vm7119 = vweird.f32 %v7113
        %vm7120 = vmor %vm7118, %vm7119
        %v7121 = vsel %vm7120, %v7113, %v7117
        %v7122 = vand.u32 2147483647, %v4799
        %vm7123 = vcmp.eq.f32.partialorder %v7122, 8.507059e+37
        %v7124 = vand.u32 %v4799, 2147483648
        %v7125 = vor.u32 1.1754944e-38, %v7124
        %v7126 = vsel %vm7123, %v7125, %v7121
        %v7127 = vmul.f32 1.0, %v7126
        %v7128 = vrcp.pop %v4800
        %v7129 = vmul.f32 %v4800, %v7128
        %v7130 = vsub.f32 1.0, %v7129
        %v7131 = vmul.f32 %v7128, %v7130
        %v7132 = vadd.f32 %v7128, %v7131
        %vm7133 = vweird.f32 %v4800
        %vm7134 = vweird.f32 %v7128
        %vm7135 = vmor %vm7133, %vm7134
        %v7136 = vsel %vm7135, %v7128, %v7132
        %v7137 = vand.u32 2147483647, %v4800
        %vm7138 = vcmp.eq.f32.partialorder %v7137, 8.507059e+37
        %v7139 = vand.u32 %v4800, 2147483648
        %v7140 = vor.u32 1.1754944e-38, %v7139
        %v7141 = vsel %vm7138, %v7140, %v7136
        %v7142 = vmul.f32 1.0, %v7141
        %v7143 = vrcp.pop %v4801
        %v7144 = vmul.f32 %v4801, %v7143
        %v7145 = vsub.f32 1.0, %v7144
        %v7146 = vmul.f32 %v7143, %v7145
        %v7147 = vadd.f32 %v7143, %v7146
        %vm7148 = vweird.f32 %v4801
        %vm7149 = vweird.f32 %v7143
        %vm7150 = vmor %vm7148, %vm7149
        %v7151 = vsel %vm7150, %v7143, %v7147
        %v7152 = vand.u32 2147483647, %v4801
        %vm7153 = vcmp.eq.f32.partialorder %v7152, 8.507059e+37
        %v7154 = vand.u32 %v4801, 2147483648
        %v7155 = vor.u32 1.1754944e-38, %v7154
        %v7156 = vsel %vm7153, %v7155, %v7151
        %v7157 = vmul.f32 1.0, %v7156
        %v7158 = vrcp.pop %v4802
        %v7159 = vmul.f32 %v4802, %v7158
        %v7160 = vsub.f32 1.0, %v7159
        %v7161 = vmul.f32 %v7158, %v7160
        %v7162 = vadd.f32 %v7158, %v7161
        %vm7163 = vweird.f32 %v4802
        %vm7164 = vweird.f32 %v7158
        %vm7165 = vmor %vm7163, %vm7164
        %v7166 = vsel %vm7165, %v7158, %v7162
        %v7167 = vand.u32 2147483647, %v4802
        %vm7168 = vcmp.eq.f32.partialorder %v7167, 8.507059e+37
        %v7169 = vand.u32 %v4802, 2147483648
        %v7170 = vor.u32 1.1754944e-38, %v7169
        %v7171 = vsel %vm7168, %v7170, %v7166
        %v7172 = vmul.f32 1.0, %v7171
        %v7173 = vrcp.pop %v4803
        %v7174 = vmul.f32 %v4803, %v7173
        %v7175 = vsub.f32 1.0, %v7174
        %v7176 = vmul.f32 %v7173, %v7175
        %v7177 = vadd.f32 %v7173, %v7176
        %vm7178 = vweird.f32 %v4803
        %vm7179 = vweird.f32 %v7173
        %vm7180 = vmor %vm7178, %vm7179
        %v7181 = vsel %vm7180, %v7173, %v7177
        %v7182 = vand.u32 2147483647, %v4803
        %vm7183 = vcmp.eq.f32.partialorder %v7182, 8.507059e+37
        %v7184 = vand.u32 %v4803, 2147483648
        %v7185 = vor.u32 1.1754944e-38, %v7184
        %v7186 = vsel %vm7183, %v7185, %v7181
        %v7187 = vmul.f32 1.0, %v7186
        %v7188 = vrcp.pop %v4804
        %v7189 = vmul.f32 %v4804, %v7188
        %v7190 = vsub.f32 1.0, %v7189
        %v7191 = vmul.f32 %v7188, %v7190
        %v7192 = vadd.f32 %v7188, %v7191
        %vm7193 = vweird.f32 %v4804
        %vm7194 = vweird.f32 %v7188
        %vm7195 = vmor %vm7193, %vm7194
        %v7196 = vsel %vm7195, %v7188, %v7192
        %v7197 = vand.u32 2147483647, %v4804
        %vm7198 = vcmp.eq.f32.partialorder %v7197, 8.507059e+37
        %v7199 = vand.u32 %v4804, 2147483648
        %v7200 = vor.u32 1.1754944e-38, %v7199
        %v7201 = vsel %vm7198, %v7200, %v7196
        %v7202 = vmul.f32 1.0, %v7201
        %v7203 = vrcp.pop %v4805
        %v7204 = vmul.f32 %v4805, %v7203
        %v7205 = vsub.f32 1.0, %v7204
        %v7206 = vmul.f32 %v7203, %v7205
        %v7207 = vadd.f32 %v7203, %v7206
        %vm7208 = vweird.f32 %v4805
        %vm7209 = vweird.f32 %v7203
        %vm7210 = vmor %vm7208, %vm7209
        %v7211 = vsel %vm7210, %v7203, %v7207
        %v7212 = vand.u32 2147483647, %v4805
        %vm7213 = vcmp.eq.f32.partialorder %v7212, 8.507059e+37
        %v7214 = vand.u32 %v4805, 2147483648
        %v7215 = vor.u32 1.1754944e-38, %v7214
        %v7216 = vsel %vm7213, %v7215, %v7211
        %v7217 = vmul.f32 1.0, %v7216
        %v7218 = vrcp.pop %v4806
        %v7219 = vmul.f32 %v4806, %v7218
        %v7220 = vsub.f32 1.0, %v7219
        %v7221 = vmul.f32 %v7218, %v7220
        %v7222 = vadd.f32 %v7218, %v7221
        %vm7223 = vweird.f32 %v4806
        %vm7224 = vweird.f32 %v7218
        %vm7225 = vmor %vm7223, %vm7224
        %v7226 = vsel %vm7225, %v7218, %v7222
        %v7227 = vand.u32 2147483647, %v4806
        %vm7228 = vcmp.eq.f32.partialorder %v7227, 8.507059e+37
        %v7229 = vand.u32 %v4806, 2147483648
        %v7230 = vor.u32 1.1754944e-38, %v7229
        %v7231 = vsel %vm7228, %v7230, %v7226
        %v7232 = vmul.f32 1.0, %v7231
        %v7233 = vrcp.pop %v4807
        %v7234 = vmul.f32 %v4807, %v7233
        %v7235 = vsub.f32 1.0, %v7234
        %v7236 = vmul.f32 %v7233, %v7235
        %v7237 = vadd.f32 %v7233, %v7236
        %vm7238 = vweird.f32 %v4807
        %vm7239 = vweird.f32 %v7233
        %vm7240 = vmor %vm7238, %vm7239
        %v7241 = vsel %vm7240, %v7233, %v7237
        %v7242 = vand.u32 2147483647, %v4807
        %vm7243 = vcmp.eq.f32.partialorder %v7242, 8.507059e+37
        %v7244 = vand.u32 %v4807, 2147483648
        %v7245 = vor.u32 1.1754944e-38, %v7244
        %v7246 = vsel %vm7243, %v7245, %v7241
        %v7247 = vmul.f32 1.0, %v7246
        %v7248 = vrcp.pop %v4808
        %v7249 = vmul.f32 %v4808, %v7248
        %v7250 = vsub.f32 1.0, %v7249
        %v7251 = vmul.f32 %v7248, %v7250
        %v7252 = vadd.f32 %v7248, %v7251
        %vm7253 = vweird.f32 %v4808
        %vm7254 = vweird.f32 %v7248
        %vm7255 = vmor %vm7253, %vm7254
        %v7256 = vsel %vm7255, %v7248, %v7252
        %v7257 = vand.u32 2147483647, %v4808
        %vm7258 = vcmp.eq.f32.partialorder %v7257, 8.507059e+37
        %v7259 = vand.u32 %v4808, 2147483648
        %v7260 = vor.u32 1.1754944e-38, %v7259
        %v7261 = vsel %vm7258, %v7260, %v7256
        %v7262 = vmul.f32 1.0, %v7261
        %v7263 = vrcp.pop %v4809
        %v7264 = vmul.f32 %v4809, %v7263
        %v7265 = vsub.f32 1.0, %v7264
        %v7266 = vmul.f32 %v7263, %v7265
        %v7267 = vadd.f32 %v7263, %v7266
        %vm7268 = vweird.f32 %v4809
        %vm7269 = vweird.f32 %v7263
        %vm7270 = vmor %vm7268, %vm7269
        %v7271 = vsel %vm7270, %v7263, %v7267
        %v7272 = vand.u32 2147483647, %v4809
        %vm7273 = vcmp.eq.f32.partialorder %v7272, 8.507059e+37
        %v7274 = vand.u32 %v4809, 2147483648
        %v7275 = vor.u32 1.1754944e-38, %v7274
        %v7276 = vsel %vm7273, %v7275, %v7271
        %v7277 = vmul.f32 1.0, %v7276
        %v7278 = vrcp.pop %v4810
        %v7279 = vmul.f32 %v4810, %v7278
        %v7280 = vsub.f32 1.0, %v7279
        %v7281 = vmul.f32 %v7278, %v7280
        %v7282 = vadd.f32 %v7278, %v7281
        %vm7283 = vweird.f32 %v4810
        %vm7284 = vweird.f32 %v7278
        %vm7285 = vmor %vm7283, %vm7284
        %v7286 = vsel %vm7285, %v7278, %v7282
        %v7287 = vand.u32 2147483647, %v4810
        %vm7288 = vcmp.eq.f32.partialorder %v7287, 8.507059e+37
        %v7289 = vand.u32 %v4810, 2147483648
        %v7290 = vor.u32 1.1754944e-38, %v7289
        %v7291 = vsel %vm7288, %v7290, %v7286
        %v7292 = vmul.f32 1.0, %v7291
        %v7293 = vrcp.pop %v4811
        %v7294 = vmul.f32 %v4811, %v7293
        %v7295 = vsub.f32 1.0, %v7294
        %v7296 = vmul.f32 %v7293, %v7295
        %v7297 = vadd.f32 %v7293, %v7296
        %vm7298 = vweird.f32 %v4811
        %vm7299 = vweird.f32 %v7293
        %vm7300 = vmor %vm7298, %vm7299
        %v7301 = vsel %vm7300, %v7293, %v7297
        %v7302 = vand.u32 2147483647, %v4811
        %vm7303 = vcmp.eq.f32.partialorder %v7302, 8.507059e+37
        %v7304 = vand.u32 %v4811, 2147483648
        %v7305 = vor.u32 1.1754944e-38, %v7304
        %v7306 = vsel %vm7303, %v7305, %v7301
        %v7307 = vmul.f32 1.0, %v7306
        %v7308 = vrcp.pop %v4812
        %v7309 = vmul.f32 %v4812, %v7308
        %v7310 = vsub.f32 1.0, %v7309
        %v7311 = vmul.f32 %v7308, %v7310
        %v7312 = vadd.f32 %v7308, %v7311
        %vm7313 = vweird.f32 %v4812
        %vm7314 = vweird.f32 %v7308
        %vm7315 = vmor %vm7313, %vm7314
        %v7316 = vsel %vm7315, %v7308, %v7312
        %v7317 = vand.u32 2147483647, %v4812
        %vm7318 = vcmp.eq.f32.partialorder %v7317, 8.507059e+37
        %v7319 = vand.u32 %v4812, 2147483648
        %v7320 = vor.u32 1.1754944e-38, %v7319
        %v7321 = vsel %vm7318, %v7320, %v7316
        %v7322 = vmul.f32 1.0, %v7321
        %v7323 = vrcp.pop %v4813
        %v7324 = vmul.f32 %v4813, %v7323
        %v7325 = vsub.f32 1.0, %v7324
        %v7326 = vmul.f32 %v7323, %v7325
        %v7327 = vadd.f32 %v7323, %v7326
        %vm7328 = vweird.f32 %v4813
        %vm7329 = vweird.f32 %v7323
        %vm7330 = vmor %vm7328, %vm7329
        %v7331 = vsel %vm7330, %v7323, %v7327
        %v7332 = vand.u32 2147483647, %v4813
        %vm7333 = vcmp.eq.f32.partialorder %v7332, 8.507059e+37
        %v7334 = vand.u32 %v4813, 2147483648
        %v7335 = vor.u32 1.1754944e-38, %v7334
        %v7336 = vsel %vm7333, %v7335, %v7331
        %v7337 = vmul.f32 1.0, %v7336
        %v7338 = vrcp.pop %v4814
        %v7339 = vmul.f32 %v4814, %v7338
        %v7340 = vsub.f32 1.0, %v7339
        %v7341 = vmul.f32 %v7338, %v7340
        %v7342 = vadd.f32 %v7338, %v7341
        %vm7343 = vweird.f32 %v4814
        %vm7344 = vweird.f32 %v7338
        %vm7345 = vmor %vm7343, %vm7344
        %v7346 = vsel %vm7345, %v7338, %v7342
        %v7347 = vand.u32 2147483647, %v4814
        %vm7348 = vcmp.eq.f32.partialorder %v7347, 8.507059e+37
        %v7349 = vand.u32 %v4814, 2147483648
        %v7350 = vor.u32 1.1754944e-38, %v7349
        %v7351 = vsel %vm7348, %v7350, %v7346
        %v7352 = vmul.f32 1.0, %v7351
        %v7353 = vrcp.pop %v4815
        %v7354 = vmul.f32 %v4815, %v7353
        %v7355 = vsub.f32 1.0, %v7354
        %v7356 = vmul.f32 %v7353, %v7355
        %v7357 = vadd.f32 %v7353, %v7356
        %vm7358 = vweird.f32 %v4815
        %vm7359 = vweird.f32 %v7353
        %vm7360 = vmor %vm7358, %vm7359
        %v7361 = vsel %vm7360, %v7353, %v7357
        %v7362 = vand.u32 2147483647, %v4815
        %vm7363 = vcmp.eq.f32.partialorder %v7362, 8.507059e+37
        %v7364 = vand.u32 %v4815, 2147483648
        %v7365 = vor.u32 1.1754944e-38, %v7364
        %v7366 = vsel %vm7363, %v7365, %v7361
        %v7367 = vmul.f32 1.0, %v7366
        %v7368 = vrcp.pop %v4816
        %v7369 = vmul.f32 %v4816, %v7368
        %v7370 = vsub.f32 1.0, %v7369
        %v7371 = vmul.f32 %v7368, %v7370
        %v7372 = vadd.f32 %v7368, %v7371
        %vm7373 = vweird.f32 %v4816
        %vm7374 = vweird.f32 %v7368
        %vm7375 = vmor %vm7373, %vm7374
        %v7376 = vsel %vm7375, %v7368, %v7372
        %v7377 = vand.u32 2147483647, %v4816
        %vm7378 = vcmp.eq.f32.partialorder %v7377, 8.507059e+37
        %v7379 = vand.u32 %v4816, 2147483648
        %v7380 = vor.u32 1.1754944e-38, %v7379
        %v7381 = vsel %vm7378, %v7380, %v7376
        %v7382 = vmul.f32 1.0, %v7381
        %v7383 = vrcp.pop %v4817
        %v7384 = vmul.f32 %v4817, %v7383
        %v7385 = vsub.f32 1.0, %v7384
        %v7386 = vmul.f32 %v7383, %v7385
        %v7387 = vadd.f32 %v7383, %v7386
        %vm7388 = vweird.f32 %v4817
        %vm7389 = vweird.f32 %v7383
        %vm7390 = vmor %vm7388, %vm7389
        %v7391 = vsel %vm7390, %v7383, %v7387
        %v7392 = vand.u32 2147483647, %v4817
        %vm7393 = vcmp.eq.f32.partialorder %v7392, 8.507059e+37
        %v7394 = vand.u32 %v4817, 2147483648
        %v7395 = vor.u32 1.1754944e-38, %v7394
        %v7396 = vsel %vm7393, %v7395, %v7391
        %v7397 = vmul.f32 1.0, %v7396
        %v7398 = vrcp.pop %v4818
        %v7399 = vmul.f32 %v4818, %v7398
        %v7400 = vsub.f32 1.0, %v7399
        %v7401 = vmul.f32 %v7398, %v7400
        %v7402 = vadd.f32 %v7398, %v7401
        %vm7403 = vweird.f32 %v4818
        %vm7404 = vweird.f32 %v7398
        %vm7405 = vmor %vm7403, %vm7404
        %v7406 = vsel %vm7405, %v7398, %v7402
        %v7407 = vand.u32 2147483647, %v4818
        %vm7408 = vcmp.eq.f32.partialorder %v7407, 8.507059e+37
        %v7409 = vand.u32 %v4818, 2147483648
        %v7410 = vor.u32 1.1754944e-38, %v7409
        %v7411 = vsel %vm7408, %v7410, %v7406
        %v7412 = vmul.f32 1.0, %v7411
        %v7413 = vrcp.pop %v4819
        %v7414 = vmul.f32 %v4819, %v7413
        %v7415 = vsub.f32 1.0, %v7414
        %v7416 = vmul.f32 %v7413, %v7415
        %v7417 = vadd.f32 %v7413, %v7416
        %vm7418 = vweird.f32 %v4819
        %vm7419 = vweird.f32 %v7413
        %vm7420 = vmor %vm7418, %vm7419
        %v7421 = vsel %vm7420, %v7413, %v7417
        %v7422 = vand.u32 2147483647, %v4819
        %vm7423 = vcmp.eq.f32.partialorder %v7422, 8.507059e+37
        %v7424 = vand.u32 %v4819, 2147483648
        %v7425 = vor.u32 1.1754944e-38, %v7424
        %v7426 = vsel %vm7423, %v7425, %v7421
        %v7427 = vmul.f32 1.0, %v7426
        %v7428 = vrcp.pop %v4820
        %v7429 = vmul.f32 %v4820, %v7428
        %v7430 = vsub.f32 1.0, %v7429
        %v7431 = vmul.f32 %v7428, %v7430
        %v7432 = vadd.f32 %v7428, %v7431
        %vm7433 = vweird.f32 %v4820
        %vm7434 = vweird.f32 %v7428
        %vm7435 = vmor %vm7433, %vm7434
        %v7436 = vsel %vm7435, %v7428, %v7432
        %v7437 = vand.u32 2147483647, %v4820
        %vm7438 = vcmp.eq.f32.partialorder %v7437, 8.507059e+37
        %v7439 = vand.u32 %v4820, 2147483648
        %v7440 = vor.u32 1.1754944e-38, %v7439
        %v7441 = vsel %vm7438, %v7440, %v7436
        %v7442 = vmul.f32 1.0, %v7441
        %v7443 = vrcp.pop %v4821
        %v7444 = vmul.f32 %v4821, %v7443
        %v7445 = vsub.f32 1.0, %v7444
        %v7446 = vmul.f32 %v7443, %v7445
        %v7447 = vadd.f32 %v7443, %v7446
        %vm7448 = vweird.f32 %v4821
        %vm7449 = vweird.f32 %v7443
        %vm7450 = vmor %vm7448, %vm7449
        %v7451 = vsel %vm7450, %v7443, %v7447
        %v7452 = vand.u32 2147483647, %v4821
        %vm7453 = vcmp.eq.f32.partialorder %v7452, 8.507059e+37
        %v7454 = vand.u32 %v4821, 2147483648
        %v7455 = vor.u32 1.1754944e-38, %v7454
        %v7456 = vsel %vm7453, %v7455, %v7451
        %v7457 = vmul.f32 1.0, %v7456
        %v7458 = vrcp.pop %v4822
        %v7459 = vmul.f32 %v4822, %v7458
        %v7460 = vsub.f32 1.0, %v7459
        %v7461 = vmul.f32 %v7458, %v7460
        %v7462 = vadd.f32 %v7458, %v7461
        %vm7463 = vweird.f32 %v4822
        %vm7464 = vweird.f32 %v7458
        %vm7465 = vmor %vm7463, %vm7464
        %v7466 = vsel %vm7465, %v7458, %v7462
        %v7467 = vand.u32 2147483647, %v4822
        %vm7468 = vcmp.eq.f32.partialorder %v7467, 8.507059e+37
        %v7469 = vand.u32 %v4822, 2147483648
        %v7470 = vor.u32 1.1754944e-38, %v7469
        %v7471 = vsel %vm7468, %v7470, %v7466
        %v7472 = vmul.f32 1.0, %v7471
        %v7473 = vrcp.pop %v4823
        %v7474 = vmul.f32 %v4823, %v7473
        %v7475 = vsub.f32 1.0, %v7474
        %v7476 = vmul.f32 %v7473, %v7475
        %v7477 = vadd.f32 %v7473, %v7476
        %vm7478 = vweird.f32 %v4823
        %vm7479 = vweird.f32 %v7473
        %vm7480 = vmor %vm7478, %vm7479
        %v7481 = vsel %vm7480, %v7473, %v7477
        %v7482 = vand.u32 2147483647, %v4823
        %vm7483 = vcmp.eq.f32.partialorder %v7482, 8.507059e+37
        %v7484 = vand.u32 %v4823, 2147483648
        %v7485 = vor.u32 1.1754944e-38, %v7484
        %v7486 = vsel %vm7483, %v7485, %v7481
        %v7487 = vmul.f32 1.0, %v7486
        %v7488 = vrcp.pop %v4824
        %v7489 = vmul.f32 %v4824, %v7488
        %v7490 = vsub.f32 1.0, %v7489
        %v7491 = vmul.f32 %v7488, %v7490
        %v7492 = vadd.f32 %v7488, %v7491
        %vm7493 = vweird.f32 %v4824
        %vm7494 = vweird.f32 %v7488
        %vm7495 = vmor %vm7493, %vm7494
        %v7496 = vsel %vm7495, %v7488, %v7492
        %v7497 = vand.u32 2147483647, %v4824
        %vm7498 = vcmp.eq.f32.partialorder %v7497, 8.507059e+37
        %v7499 = vand.u32 %v4824, 2147483648
        %v7500 = vor.u32 1.1754944e-38, %v7499
        %v7501 = vsel %vm7498, %v7500, %v7496
        %v7502 = vmul.f32 1.0, %v7501
        %v7503 = vrcp.pop %v4825
        %v7504 = vmul.f32 %v4825, %v7503
        %v7505 = vsub.f32 1.0, %v7504
        %v7506 = vmul.f32 %v7503, %v7505
        %v7507 = vadd.f32 %v7503, %v7506
        %vm7508 = vweird.f32 %v4825
        %vm7509 = vweird.f32 %v7503
        %vm7510 = vmor %vm7508, %vm7509
        %v7511 = vsel %vm7510, %v7503, %v7507
        %v7512 = vand.u32 2147483647, %v4825
        %vm7513 = vcmp.eq.f32.partialorder %v7512, 8.507059e+37
        %v7514 = vand.u32 %v4825, 2147483648
        %v7515 = vor.u32 1.1754944e-38, %v7514
        %v7516 = vsel %vm7513, %v7515, %v7511
        %v7517 = vmul.f32 1.0, %v7516
        %v7518 = vrcp.pop %v4826
        %v7519 = vmul.f32 %v4826, %v7518
        %v7520 = vsub.f32 1.0, %v7519
        %v7521 = vmul.f32 %v7518, %v7520
        %v7522 = vadd.f32 %v7518, %v7521
        %vm7523 = vweird.f32 %v4826
        %vm7524 = vweird.f32 %v7518
        %vm7525 = vmor %vm7523, %vm7524
        %v7526 = vsel %vm7525, %v7518, %v7522
        %v7527 = vand.u32 2147483647, %v4826
        %vm7528 = vcmp.eq.f32.partialorder %v7527, 8.507059e+37
        %v7529 = vand.u32 %v4826, 2147483648
        %v7530 = vor.u32 1.1754944e-38, %v7529
        %v7531 = vsel %vm7528, %v7530, %v7526
        %v7532 = vmul.f32 1.0, %v7531
        %v7533 = vrcp.pop %v4827
        %v7534 = vmul.f32 %v4827, %v7533
        %v7535 = vsub.f32 1.0, %v7534
        %v7536 = vmul.f32 %v7533, %v7535
        %v7537 = vadd.f32 %v7533, %v7536
        %vm7538 = vweird.f32 %v4827
        %vm7539 = vweird.f32 %v7533
        %vm7540 = vmor %vm7538, %vm7539
        %v7541 = vsel %vm7540, %v7533, %v7537
        %v7542 = vand.u32 2147483647, %v4827
        %vm7543 = vcmp.eq.f32.partialorder %v7542, 8.507059e+37
        %v7544 = vand.u32 %v4827, 2147483648
        %v7545 = vor.u32 1.1754944e-38, %v7544
        %v7546 = vsel %vm7543, %v7545, %v7541
        %v7547 = vmul.f32 1.0, %v7546
        %v7548 = vrcp.pop %v4828
        %v7549 = vmul.f32 %v4828, %v7548
        %v7550 = vsub.f32 1.0, %v7549
        %v7551 = vmul.f32 %v7548, %v7550
        %v7552 = vadd.f32 %v7548, %v7551
        %vm7553 = vweird.f32 %v4828
        %vm7554 = vweird.f32 %v7548
        %vm7555 = vmor %vm7553, %vm7554
        %v7556 = vsel %vm7555, %v7548, %v7552
        %v7557 = vand.u32 2147483647, %v4828
        %vm7558 = vcmp.eq.f32.partialorder %v7557, 8.507059e+37
        %v7559 = vand.u32 %v4828, 2147483648
        %v7560 = vor.u32 1.1754944e-38, %v7559
        %v7561 = vsel %vm7558, %v7560, %v7556
        %v7562 = vmul.f32 1.0, %v7561
        %v7563 = vrcp.pop %v4829
        %v7564 = vmul.f32 %v4829, %v7563
        %v7565 = vsub.f32 1.0, %v7564
        %v7566 = vmul.f32 %v7563, %v7565
        %v7567 = vadd.f32 %v7563, %v7566
        %vm7568 = vweird.f32 %v4829
        %vm7569 = vweird.f32 %v7563
        %vm7570 = vmor %vm7568, %vm7569
        %v7571 = vsel %vm7570, %v7563, %v7567
        %v7572 = vand.u32 2147483647, %v4829
        %vm7573 = vcmp.eq.f32.partialorder %v7572, 8.507059e+37
        %v7574 = vand.u32 %v4829, 2147483648
        %v7575 = vor.u32 1.1754944e-38, %v7574
        %v7576 = vsel %vm7573, %v7575, %v7571
        %v7577 = vmul.f32 1.0, %v7576
        %v7578 = vrcp.pop %v4830
        %v7579 = vmul.f32 %v4830, %v7578
        %v7580 = vsub.f32 1.0, %v7579
        %v7581 = vmul.f32 %v7578, %v7580
        %v7582 = vadd.f32 %v7578, %v7581
        %vm7583 = vweird.f32 %v4830
        %vm7584 = vweird.f32 %v7578
        %vm7585 = vmor %vm7583, %vm7584
        %v7586 = vsel %vm7585, %v7578, %v7582
        %v7587 = vand.u32 2147483647, %v4830
        %vm7588 = vcmp.eq.f32.partialorder %v7587, 8.507059e+37
        %v7589 = vand.u32 %v4830, 2147483648
        %v7590 = vor.u32 1.1754944e-38, %v7589
        %v7591 = vsel %vm7588, %v7590, %v7586
        %v7592 = vmul.f32 1.0, %v7591
        %v7593 = vrcp.pop %v4831
        %v7594 = vmul.f32 %v4831, %v7593
        %v7595 = vsub.f32 1.0, %v7594
        %v7596 = vmul.f32 %v7593, %v7595
        %v7597 = vadd.f32 %v7593, %v7596
        %vm7598 = vweird.f32 %v4831
        %vm7599 = vweird.f32 %v7593
        %vm7600 = vmor %vm7598, %vm7599
        %v7601 = vsel %vm7600, %v7593, %v7597
        %v7602 = vand.u32 2147483647, %v4831
        %vm7603 = vcmp.eq.f32.partialorder %v7602, 8.507059e+37
        %v7604 = vand.u32 %v4831, 2147483648
        %v7605 = vor.u32 1.1754944e-38, %v7604
        %v7606 = vsel %vm7603, %v7605, %v7601
        %v7607 = vmul.f32 1.0, %v7606
        %v7608 = vrcp.pop %v4832
        %v7609 = vmul.f32 %v4832, %v7608
        %v7610 = vsub.f32 1.0, %v7609
        %v7611 = vmul.f32 %v7608, %v7610
        %v7612 = vadd.f32 %v7608, %v7611
        %vm7613 = vweird.f32 %v4832
        %vm7614 = vweird.f32 %v7608
        %vm7615 = vmor %vm7613, %vm7614
        %v7616 = vsel %vm7615, %v7608, %v7612
        %v7617 = vand.u32 2147483647, %v4832
        %vm7618 = vcmp.eq.f32.partialorder %v7617, 8.507059e+37
        %v7619 = vand.u32 %v4832, 2147483648
        %v7620 = vor.u32 1.1754944e-38, %v7619
        %v7621 = vsel %vm7618, %v7620, %v7616
        %v7622 = vmul.f32 1.0, %v7621
        %v7623 = vrcp.pop %v4833
        %v7624 = vmul.f32 %v4833, %v7623
        %v7625 = vsub.f32 1.0, %v7624
        %v7626 = vmul.f32 %v7623, %v7625
        %v7627 = vadd.f32 %v7623, %v7626
        %vm7628 = vweird.f32 %v4833
        %vm7629 = vweird.f32 %v7623
        %vm7630 = vmor %vm7628, %vm7629
        %v7631 = vsel %vm7630, %v7623, %v7627
        %v7632 = vand.u32 2147483647, %v4833
        %vm7633 = vcmp.eq.f32.partialorder %v7632, 8.507059e+37
        %v7634 = vand.u32 %v4833, 2147483648
        %v7635 = vor.u32 1.1754944e-38, %v7634
        %v7636 = vsel %vm7633, %v7635, %v7631
        %v7637 = vmul.f32 1.0, %v7636
        %v7638 = vrcp.pop %v4834
        %v7639 = vmul.f32 %v4834, %v7638
        %v7640 = vsub.f32 1.0, %v7639
        %v7641 = vmul.f32 %v7638, %v7640
        %v7642 = vadd.f32 %v7638, %v7641
        %vm7643 = vweird.f32 %v4834
        %vm7644 = vweird.f32 %v7638
        %vm7645 = vmor %vm7643, %vm7644
        %v7646 = vsel %vm7645, %v7638, %v7642
        %v7647 = vand.u32 2147483647, %v4834
        %vm7648 = vcmp.eq.f32.partialorder %v7647, 8.507059e+37
        %v7649 = vand.u32 %v4834, 2147483648
        %v7650 = vor.u32 1.1754944e-38, %v7649
        %v7651 = vsel %vm7648, %v7650, %v7646
        %v7652 = vmul.f32 1.0, %v7651
        %v7653 = vrcp.pop %v4835
        %v7654 = vmul.f32 %v4835, %v7653
        %v7655 = vsub.f32 1.0, %v7654
        %v7656 = vmul.f32 %v7653, %v7655
        %v7657 = vadd.f32 %v7653, %v7656
        %vm7658 = vweird.f32 %v4835
        %vm7659 = vweird.f32 %v7653
        %vm7660 = vmor %vm7658, %vm7659
        %v7661 = vsel %vm7660, %v7653, %v7657
        %v7662 = vand.u32 2147483647, %v4835
        %vm7663 = vcmp.eq.f32.partialorder %v7662, 8.507059e+37
        %v7664 = vand.u32 %v4835, 2147483648
        %v7665 = vor.u32 1.1754944e-38, %v7664
        %v7666 = vsel %vm7663, %v7665, %v7661
        %v7667 = vmul.f32 1.0, %v7666
        %v7668 = vrcp.pop %v4836
        %v7669 = vmul.f32 %v4836, %v7668
        %v7670 = vsub.f32 1.0, %v7669
        %v7671 = vmul.f32 %v7668, %v7670
        %v7672 = vadd.f32 %v7668, %v7671
        %vm7673 = vweird.f32 %v4836
        %vm7674 = vweird.f32 %v7668
        %vm7675 = vmor %vm7673, %vm7674
        %v7676 = vsel %vm7675, %v7668, %v7672
        %v7677 = vand.u32 2147483647, %v4836
        %vm7678 = vcmp.eq.f32.partialorder %v7677, 8.507059e+37
        %v7679 = vand.u32 %v4836, 2147483648
        %v7680 = vor.u32 1.1754944e-38, %v7679
        %v7681 = vsel %vm7678, %v7680, %v7676
        %v7682 = vmul.f32 1.0, %v7681
        %v7683 = vrcp.pop %v4837
        %v7684 = vmul.f32 %v4837, %v7683
        %v7685 = vsub.f32 1.0, %v7684
        %v7686 = vmul.f32 %v7683, %v7685
        %v7687 = vadd.f32 %v7683, %v7686
        %vm7688 = vweird.f32 %v4837
        %vm7689 = vweird.f32 %v7683
        %vm7690 = vmor %vm7688, %vm7689
        %v7691 = vsel %vm7690, %v7683, %v7687
        %v7692 = vand.u32 2147483647, %v4837
        %vm7693 = vcmp.eq.f32.partialorder %v7692, 8.507059e+37
        %v7694 = vand.u32 %v4837, 2147483648
        %v7695 = vor.u32 1.1754944e-38, %v7694
        %v7696 = vsel %vm7693, %v7695, %v7691
        %v7697 = vmul.f32 1.0, %v7696
        %v7698 = vrcp.pop %v4838
        %v7699 = vmul.f32 %v4838, %v7698
        %v7700 = vsub.f32 1.0, %v7699
        %v7701 = vmul.f32 %v7698, %v7700
        %v7702 = vadd.f32 %v7698, %v7701
        %vm7703 = vweird.f32 %v4838
        %vm7704 = vweird.f32 %v7698
        %vm7705 = vmor %vm7703, %vm7704
        %v7706 = vsel %vm7705, %v7698, %v7702
        %v7707 = vand.u32 2147483647, %v4838
        %vm7708 = vcmp.eq.f32.partialorder %v7707, 8.507059e+37
        %v7709 = vand.u32 %v4838, 2147483648
        %v7710 = vor.u32 1.1754944e-38, %v7709
        %v7711 = vsel %vm7708, %v7710, %v7706
        %v7712 = vmul.f32 1.0, %v7711
        %v7713 = vrcp.pop %v4839
        %v7714 = vmul.f32 %v4839, %v7713
        %v7715 = vsub.f32 1.0, %v7714
        %v7716 = vmul.f32 %v7713, %v7715
        %v7717 = vadd.f32 %v7713, %v7716
        %vm7718 = vweird.f32 %v4839
        %vm7719 = vweird.f32 %v7713
        %vm7720 = vmor %vm7718, %vm7719
        %v7721 = vsel %vm7720, %v7713, %v7717
        %v7722 = vand.u32 2147483647, %v4839
        %vm7723 = vcmp.eq.f32.partialorder %v7722, 8.507059e+37
        %v7724 = vand.u32 %v4839, 2147483648
        %v7725 = vor.u32 1.1754944e-38, %v7724
        %v7726 = vsel %vm7723, %v7725, %v7721
        %v7727 = vmul.f32 1.0, %v7726
        %v7728 = vrcp.pop %v4840
        %v7729 = vmul.f32 %v4840, %v7728
        %v7730 = vsub.f32 1.0, %v7729
        %v7731 = vmul.f32 %v7728, %v7730
        %v7732 = vadd.f32 %v7728, %v7731
        %vm7733 = vweird.f32 %v4840
        %vm7734 = vweird.f32 %v7728
        %vm7735 = vmor %vm7733, %vm7734
        %v7736 = vsel %vm7735, %v7728, %v7732
        %v7737 = vand.u32 2147483647, %v4840
        %vm7738 = vcmp.eq.f32.partialorder %v7737, 8.507059e+37
        %v7739 = vand.u32 %v4840, 2147483648
        %v7740 = vor.u32 1.1754944e-38, %v7739
        %v7741 = vsel %vm7738, %v7740, %v7736
        %v7742 = vmul.f32 1.0, %v7741
        %v7743 = vrcp.pop %v4841
        %v7744 = vmul.f32 %v4841, %v7743
        %v7745 = vsub.f32 1.0, %v7744
        %v7746 = vmul.f32 %v7743, %v7745
        %v7747 = vadd.f32 %v7743, %v7746
        %vm7748 = vweird.f32 %v4841
        %vm7749 = vweird.f32 %v7743
        %vm7750 = vmor %vm7748, %vm7749
        %v7751 = vsel %vm7750, %v7743, %v7747
        %v7752 = vand.u32 2147483647, %v4841
        %vm7753 = vcmp.eq.f32.partialorder %v7752, 8.507059e+37
        %v7754 = vand.u32 %v4841, 2147483648
        %v7755 = vor.u32 1.1754944e-38, %v7754
        %v7756 = vsel %vm7753, %v7755, %v7751
        %v7757 = vmul.f32 1.0, %v7756
        %v7758 = vrcp.pop %v4842
        %v7759 = vmul.f32 %v4842, %v7758
        %v7760 = vsub.f32 1.0, %v7759
        %v7761 = vmul.f32 %v7758, %v7760
        %v7762 = vadd.f32 %v7758, %v7761
        %vm7763 = vweird.f32 %v4842
        %vm7764 = vweird.f32 %v7758
        %vm7765 = vmor %vm7763, %vm7764
        %v7766 = vsel %vm7765, %v7758, %v7762
        %v7767 = vand.u32 2147483647, %v4842
        %vm7768 = vcmp.eq.f32.partialorder %v7767, 8.507059e+37
        %v7769 = vand.u32 %v4842, 2147483648
        %v7770 = vor.u32 1.1754944e-38, %v7769
        %v7771 = vsel %vm7768, %v7770, %v7766
        %v7772 = vmul.f32 1.0, %v7771
        %v7773 = vrcp.pop %v4843
        %v7774 = vmul.f32 %v4843, %v7773
        %v7775 = vsub.f32 1.0, %v7774
        %v7776 = vmul.f32 %v7773, %v7775
        %v7777 = vadd.f32 %v7773, %v7776
        %vm7778 = vweird.f32 %v4843
        %vm7779 = vweird.f32 %v7773
        %vm7780 = vmor %vm7778, %vm7779
        %v7781 = vsel %vm7780, %v7773, %v7777
        %v7782 = vand.u32 2147483647, %v4843
        %vm7783 = vcmp.eq.f32.partialorder %v7782, 8.507059e+37
        %v7784 = vand.u32 %v4843, 2147483648
        %v7785 = vor.u32 1.1754944e-38, %v7784
        %v7786 = vsel %vm7783, %v7785, %v7781
        %v7787 = vmul.f32 1.0, %v7786
        %v7788 = vrcp.pop %v4844
        %v7789 = vmul.f32 %v4844, %v7788
        %v7790 = vsub.f32 1.0, %v7789
        %v7791 = vmul.f32 %v7788, %v7790
        %v7792 = vadd.f32 %v7788, %v7791
        %vm7793 = vweird.f32 %v4844
        %vm7794 = vweird.f32 %v7788
        %vm7795 = vmor %vm7793, %vm7794
        %v7796 = vsel %vm7795, %v7788, %v7792
        %v7797 = vand.u32 2147483647, %v4844
        %vm7798 = vcmp.eq.f32.partialorder %v7797, 8.507059e+37
        %v7799 = vand.u32 %v4844, 2147483648
        %v7800 = vor.u32 1.1754944e-38, %v7799
        %v7801 = vsel %vm7798, %v7800, %v7796
        %v7802 = vmul.f32 1.0, %v7801
        %v7803 = vrcp.pop %v4845
        %v7804 = vmul.f32 %v4845, %v7803
        %v7805 = vsub.f32 1.0, %v7804
        %v7806 = vmul.f32 %v7803, %v7805
        %v7807 = vadd.f32 %v7803, %v7806
        %vm7808 = vweird.f32 %v4845
        %vm7809 = vweird.f32 %v7803
        %vm7810 = vmor %vm7808, %vm7809
        %v7811 = vsel %vm7810, %v7803, %v7807
        %v7812 = vand.u32 2147483647, %v4845
        %vm7813 = vcmp.eq.f32.partialorder %v7812, 8.507059e+37
        %v7814 = vand.u32 %v4845, 2147483648
        %v7815 = vor.u32 1.1754944e-38, %v7814
        %v7816 = vsel %vm7813, %v7815, %v7811
        %v7817 = vmul.f32 1.0, %v7816
        %v7818 = vrcp.pop %v4846
        %v7819 = vmul.f32 %v4846, %v7818
        %v7820 = vsub.f32 1.0, %v7819
        %v7821 = vmul.f32 %v7818, %v7820
        %v7822 = vadd.f32 %v7818, %v7821
        %vm7823 = vweird.f32 %v4846
        %vm7824 = vweird.f32 %v7818
        %vm7825 = vmor %vm7823, %vm7824
        %v7826 = vsel %vm7825, %v7818, %v7822
        %v7827 = vand.u32 2147483647, %v4846
        %vm7828 = vcmp.eq.f32.partialorder %v7827, 8.507059e+37
        %v7829 = vand.u32 %v4846, 2147483648
        %v7830 = vor.u32 1.1754944e-38, %v7829
        %v7831 = vsel %vm7828, %v7830, %v7826
        %v7832 = vmul.f32 1.0, %v7831
        %v7833 = vrcp.pop %v4847
        %v7834 = vmul.f32 %v4847, %v7833
        %v7835 = vsub.f32 1.0, %v7834
        %v7836 = vmul.f32 %v7833, %v7835
        %v7837 = vadd.f32 %v7833, %v7836
        %vm7838 = vweird.f32 %v4847
        %vm7839 = vweird.f32 %v7833
        %vm7840 = vmor %vm7838, %vm7839
        %v7841 = vsel %vm7840, %v7833, %v7837
        %v7842 = vand.u32 2147483647, %v4847
        %vm7843 = vcmp.eq.f32.partialorder %v7842, 8.507059e+37
        %v7844 = vand.u32 %v4847, 2147483648
        %v7845 = vor.u32 1.1754944e-38, %v7844
        %v7846 = vsel %vm7843, %v7845, %v7841
        %v7847 = vmul.f32 1.0, %v7846
        %v7848 = vrcp.pop %v4848
        %v7849 = vmul.f32 %v4848, %v7848
        %v7850 = vsub.f32 1.0, %v7849
        %v7851 = vmul.f32 %v7848, %v7850
        %v7852 = vadd.f32 %v7848, %v7851
        %vm7853 = vweird.f32 %v4848
        %vm7854 = vweird.f32 %v7848
        %vm7855 = vmor %vm7853, %vm7854
        %v7856 = vsel %vm7855, %v7848, %v7852
        %v7857 = vand.u32 2147483647, %v4848
        %vm7858 = vcmp.eq.f32.partialorder %v7857, 8.507059e+37
        %v7859 = vand.u32 %v4848, 2147483648
        %v7860 = vor.u32 1.1754944e-38, %v7859
        %v7861 = vsel %vm7858, %v7860, %v7856
        %v7862 = vmul.f32 1.0, %v7861
        %v7863 = vrcp.pop %v4849
        %v7864 = vmul.f32 %v4849, %v7863
        %v7865 = vsub.f32 1.0, %v7864
        %v7866 = vmul.f32 %v7863, %v7865
        %v7867 = vadd.f32 %v7863, %v7866
        %vm7868 = vweird.f32 %v4849
        %vm7869 = vweird.f32 %v7863
        %vm7870 = vmor %vm7868, %vm7869
        %v7871 = vsel %vm7870, %v7863, %v7867
        %v7872 = vand.u32 2147483647, %v4849
        %vm7873 = vcmp.eq.f32.partialorder %v7872, 8.507059e+37
        %v7874 = vand.u32 %v4849, 2147483648
        %v7875 = vor.u32 1.1754944e-38, %v7874
        %v7876 = vsel %vm7873, %v7875, %v7871
        %v7877 = vmul.f32 1.0, %v7876
        %v7878 = vrcp.pop %v4850
        %v7879 = vmul.f32 %v4850, %v7878
        %v7880 = vsub.f32 1.0, %v7879
        %v7881 = vmul.f32 %v7878, %v7880
        %v7882 = vadd.f32 %v7878, %v7881
        %vm7883 = vweird.f32 %v4850
        %vm7884 = vweird.f32 %v7878
        %vm7885 = vmor %vm7883, %vm7884
        %v7886 = vsel %vm7885, %v7878, %v7882
        %v7887 = vand.u32 2147483647, %v4850
        %vm7888 = vcmp.eq.f32.partialorder %v7887, 8.507059e+37
        %v7889 = vand.u32 %v4850, 2147483648
        %v7890 = vor.u32 1.1754944e-38, %v7889
        %v7891 = vsel %vm7888, %v7890, %v7886
        %v7892 = vmul.f32 1.0, %v7891
        %v7893 = vrcp.pop %v4851
        %v7894 = vmul.f32 %v4851, %v7893
        %v7895 = vsub.f32 1.0, %v7894
        %v7896 = vmul.f32 %v7893, %v7895
        %v7897 = vadd.f32 %v7893, %v7896
        %vm7898 = vweird.f32 %v4851
        %vm7899 = vweird.f32 %v7893
        %vm7900 = vmor %vm7898, %vm7899
        %v7901 = vsel %vm7900, %v7893, %v7897
        %v7902 = vand.u32 2147483647, %v4851
        %vm7903 = vcmp.eq.f32.partialorder %v7902, 8.507059e+37
        %v7904 = vand.u32 %v4851, 2147483648
        %v7905 = vor.u32 1.1754944e-38, %v7904
        %v7906 = vsel %vm7903, %v7905, %v7901
        %v7907 = vmul.f32 1.0, %v7906
        %v7908 = vrcp.pop %v4852
        %v7909 = vmul.f32 %v4852, %v7908
        %v7910 = vsub.f32 1.0, %v7909
        %v7911 = vmul.f32 %v7908, %v7910
        %v7912 = vadd.f32 %v7908, %v7911
        %vm7913 = vweird.f32 %v4852
        %vm7914 = vweird.f32 %v7908
        %vm7915 = vmor %vm7913, %vm7914
        %v7916 = vsel %vm7915, %v7908, %v7912
        %v7917 = vand.u32 2147483647, %v4852
        %vm7918 = vcmp.eq.f32.partialorder %v7917, 8.507059e+37
        %v7919 = vand.u32 %v4852, 2147483648
        %v7920 = vor.u32 1.1754944e-38, %v7919
        %v7921 = vsel %vm7918, %v7920, %v7916
        %v7922 = vmul.f32 1.0, %v7921
        %v7923 = vrcp.pop %v4853
        %v7924 = vmul.f32 %v4853, %v7923
        %v7925 = vsub.f32 1.0, %v7924
        %v7926 = vmul.f32 %v7923, %v7925
        %v7927 = vadd.f32 %v7923, %v7926
        %vm7928 = vweird.f32 %v4853
        %vm7929 = vweird.f32 %v7923
        %vm7930 = vmor %vm7928, %vm7929
        %v7931 = vsel %vm7930, %v7923, %v7927
        %v7932 = vand.u32 2147483647, %v4853
        %vm7933 = vcmp.eq.f32.partialorder %v7932, 8.507059e+37
        %v7934 = vand.u32 %v4853, 2147483648
        %v7935 = vor.u32 1.1754944e-38, %v7934
        %v7936 = vsel %vm7933, %v7935, %v7931
        %v7937 = vmul.f32 1.0, %v7936
        %v7938 = vrcp.pop %v4854
        %v7939 = vmul.f32 %v4854, %v7938
        %v7940 = vsub.f32 1.0, %v7939
        %v7941 = vmul.f32 %v7938, %v7940
        %v7942 = vadd.f32 %v7938, %v7941
        %vm7943 = vweird.f32 %v4854
        %vm7944 = vweird.f32 %v7938
        %vm7945 = vmor %vm7943, %vm7944
        %v7946 = vsel %vm7945, %v7938, %v7942
        %v7947 = vand.u32 2147483647, %v4854
        %vm7948 = vcmp.eq.f32.partialorder %v7947, 8.507059e+37
        %v7949 = vand.u32 %v4854, 2147483648
        %v7950 = vor.u32 1.1754944e-38, %v7949
        %v7951 = vsel %vm7948, %v7950, %v7946
        %v7952 = vmul.f32 1.0, %v7951
        %v7953 = vrcp.pop %v4855
        %v7954 = vmul.f32 %v4855, %v7953
        %v7955 = vsub.f32 1.0, %v7954
        %v7956 = vmul.f32 %v7953, %v7955
        %v7957 = vadd.f32 %v7953, %v7956
        %vm7958 = vweird.f32 %v4855
        %vm7959 = vweird.f32 %v7953
        %vm7960 = vmor %vm7958, %vm7959
        %v7961 = vsel %vm7960, %v7953, %v7957
        %v7962 = vand.u32 2147483647, %v4855
        %vm7963 = vcmp.eq.f32.partialorder %v7962, 8.507059e+37
        %v7964 = vand.u32 %v4855, 2147483648
        %v7965 = vor.u32 1.1754944e-38, %v7964
        %v7966 = vsel %vm7963, %v7965, %v7961
        %v7967 = vmul.f32 1.0, %v7966
        %v7968 = vrcp.pop %v4856
        %v7969 = vmul.f32 %v4856, %v7968
        %v7970 = vsub.f32 1.0, %v7969
        %v7971 = vmul.f32 %v7968, %v7970
        %v7972 = vadd.f32 %v7968, %v7971
        %vm7973 = vweird.f32 %v4856
        %vm7974 = vweird.f32 %v7968
        %vm7975 = vmor %vm7973, %vm7974
        %v7976 = vsel %vm7975, %v7968, %v7972
        %v7977 = vand.u32 2147483647, %v4856
        %vm7978 = vcmp.eq.f32.partialorder %v7977, 8.507059e+37
        %v7979 = vand.u32 %v4856, 2147483648
        %v7980 = vor.u32 1.1754944e-38, %v7979
        %v7981 = vsel %vm7978, %v7980, %v7976
        %v7982 = vmul.f32 1.0, %v7981
        %v7983 = vrcp.pop %v4857
        %v7984 = vmul.f32 %v4857, %v7983
        %v7985 = vsub.f32 1.0, %v7984
        %v7986 = vmul.f32 %v7983, %v7985
        %v7987 = vadd.f32 %v7983, %v7986
        %vm7988 = vweird.f32 %v4857
        %vm7989 = vweird.f32 %v7983
        %vm7990 = vmor %vm7988, %vm7989
        %v7991 = vsel %vm7990, %v7983, %v7987
        %v7992 = vand.u32 2147483647, %v4857
        %vm7993 = vcmp.eq.f32.partialorder %v7992, 8.507059e+37
        %v7994 = vand.u32 %v4857, 2147483648
        %v7995 = vor.u32 1.1754944e-38, %v7994
        %v7996 = vsel %vm7993, %v7995, %v7991
        %v7997 = vmul.f32 1.0, %v7996
        %v7998 = vrcp.pop %v4858
        %v7999 = vmul.f32 %v4858, %v7998
        %v8000 = vsub.f32 1.0, %v7999
        %v8001 = vmul.f32 %v7998, %v8000
        %v8002 = vadd.f32 %v7998, %v8001
        %vm8003 = vweird.f32 %v4858
        %vm8004 = vweird.f32 %v7998
        %vm8005 = vmor %vm8003, %vm8004
        %v8006 = vsel %vm8005, %v7998, %v8002
        %v8007 = vand.u32 2147483647, %v4858
        %vm8008 = vcmp.eq.f32.partialorder %v8007, 8.507059e+37
        %v8009 = vand.u32 %v4858, 2147483648
        %v8010 = vor.u32 1.1754944e-38, %v8009
        %v8011 = vsel %vm8008, %v8010, %v8006
        %v8012 = vmul.f32 1.0, %v8011
        %v8013 = vrcp.pop %v4859
        %v8014 = vmul.f32 %v4859, %v8013
        %v8015 = vsub.f32 1.0, %v8014
        %v8016 = vmul.f32 %v8013, %v8015
        %v8017 = vadd.f32 %v8013, %v8016
        %vm8018 = vweird.f32 %v4859
        %vm8019 = vweird.f32 %v8013
        %vm8020 = vmor %vm8018, %vm8019
        %v8021 = vsel %vm8020, %v8013, %v8017
        %v8022 = vand.u32 2147483647, %v4859
        %vm8023 = vcmp.eq.f32.partialorder %v8022, 8.507059e+37
        %v8024 = vand.u32 %v4859, 2147483648
        %v8025 = vor.u32 1.1754944e-38, %v8024
        %v8026 = vsel %vm8023, %v8025, %v8021
        %v8027 = vmul.f32 1.0, %v8026
        %v8028 = vrcp.pop %v4860
        %v8029 = vmul.f32 %v4860, %v8028
        %v8030 = vsub.f32 1.0, %v8029
        %v8031 = vmul.f32 %v8028, %v8030
        %v8032 = vadd.f32 %v8028, %v8031
        %vm8033 = vweird.f32 %v4860
        %vm8034 = vweird.f32 %v8028
        %vm8035 = vmor %vm8033, %vm8034
        %v8036 = vsel %vm8035, %v8028, %v8032
        %v8037 = vand.u32 2147483647, %v4860
        %vm8038 = vcmp.eq.f32.partialorder %v8037, 8.507059e+37
        %v8039 = vand.u32 %v4860, 2147483648
        %v8040 = vor.u32 1.1754944e-38, %v8039
        %v8041 = vsel %vm8038, %v8040, %v8036
        %v8042 = vmul.f32 1.0, %v8041
        %v8043 = vrcp.pop %v4861
        %v8044 = vmul.f32 %v4861, %v8043
        %v8045 = vsub.f32 1.0, %v8044
        %v8046 = vmul.f32 %v8043, %v8045
        %v8047 = vadd.f32 %v8043, %v8046
        %vm8048 = vweird.f32 %v4861
        %vm8049 = vweird.f32 %v8043
        %vm8050 = vmor %vm8048, %vm8049
        %v8051 = vsel %vm8050, %v8043, %v8047
        %v8052 = vand.u32 2147483647, %v4861
        %vm8053 = vcmp.eq.f32.partialorder %v8052, 8.507059e+37
        %v8054 = vand.u32 %v4861, 2147483648
        %v8055 = vor.u32 1.1754944e-38, %v8054
        %v8056 = vsel %vm8053, %v8055, %v8051
        %v8057 = vmul.f32 1.0, %v8056
        %v8058 = vrcp.pop %v4862
        %v8059 = vmul.f32 %v4862, %v8058
        %v8060 = vsub.f32 1.0, %v8059
        %v8061 = vmul.f32 %v8058, %v8060
        %v8062 = vadd.f32 %v8058, %v8061
        %vm8063 = vweird.f32 %v4862
        %vm8064 = vweird.f32 %v8058
        %vm8065 = vmor %vm8063, %vm8064
        %v8066 = vsel %vm8065, %v8058, %v8062
        %v8067 = vand.u32 2147483647, %v4862
        %vm8068 = vcmp.eq.f32.partialorder %v8067, 8.507059e+37
        %v8069 = vand.u32 %v4862, 2147483648
        %v8070 = vor.u32 1.1754944e-38, %v8069
        %v8071 = vsel %vm8068, %v8070, %v8066
        %v8072 = vmul.f32 1.0, %v8071
        %v8073 = vrcp.pop %v4863
        %v8074 = vmul.f32 %v4863, %v8073
        %v8075 = vsub.f32 1.0, %v8074
        %v8076 = vmul.f32 %v8073, %v8075
        %v8077 = vadd.f32 %v8073, %v8076
        %vm8078 = vweird.f32 %v4863
        %vm8079 = vweird.f32 %v8073
        %vm8080 = vmor %vm8078, %vm8079
        %v8081 = vsel %vm8080, %v8073, %v8077
        %v8082 = vand.u32 2147483647, %v4863
        %vm8083 = vcmp.eq.f32.partialorder %v8082, 8.507059e+37
        %v8084 = vand.u32 %v4863, 2147483648
        %v8085 = vor.u32 1.1754944e-38, %v8084
        %v8086 = vsel %vm8083, %v8085, %v8081
        %v8087 = vmul.f32 1.0, %v8086
        %v8088 = vrcp.pop %v4864
        %v8089 = vmul.f32 %v4864, %v8088
        %v8090 = vsub.f32 1.0, %v8089
        %v8091 = vmul.f32 %v8088, %v8090
        %v8092 = vadd.f32 %v8088, %v8091
        %vm8093 = vweird.f32 %v4864
        %vm8094 = vweird.f32 %v8088
        %vm8095 = vmor %vm8093, %vm8094
        %v8096 = vsel %vm8095, %v8088, %v8092
        %v8097 = vand.u32 2147483647, %v4864
        %vm8098 = vcmp.eq.f32.partialorder %v8097, 8.507059e+37
        %v8099 = vand.u32 %v4864, 2147483648
        %v8100 = vor.u32 1.1754944e-38, %v8099
        %v8101 = vsel %vm8098, %v8100, %v8096
        %v8102 = vmul.f32 1.0, %v8101
        %v8103 = vrcp.pop %v4865
        %v8104 = vmul.f32 %v4865, %v8103
        %v8105 = vsub.f32 1.0, %v8104
        %v8106 = vmul.f32 %v8103, %v8105
        %v8107 = vadd.f32 %v8103, %v8106
        %vm8108 = vweird.f32 %v4865
        %vm8109 = vweird.f32 %v8103
        %vm8110 = vmor %vm8108, %vm8109
        %v8111 = vsel %vm8110, %v8103, %v8107
        %v8112 = vand.u32 2147483647, %v4865
        %vm8113 = vcmp.eq.f32.partialorder %v8112, 8.507059e+37
        %v8114 = vand.u32 %v4865, 2147483648
        %v8115 = vor.u32 1.1754944e-38, %v8114
        %v8116 = vsel %vm8113, %v8115, %v8111
        %v8117 = vmul.f32 1.0, %v8116
        %v8118 = vrcp.pop %v4866
        %v8119 = vmul.f32 %v4866, %v8118
        %v8120 = vsub.f32 1.0, %v8119
        %v8121 = vmul.f32 %v8118, %v8120
        %v8122 = vadd.f32 %v8118, %v8121
        %vm8123 = vweird.f32 %v4866
        %vm8124 = vweird.f32 %v8118
        %vm8125 = vmor %vm8123, %vm8124
        %v8126 = vsel %vm8125, %v8118, %v8122
        %v8127 = vand.u32 2147483647, %v4866
        %vm8128 = vcmp.eq.f32.partialorder %v8127, 8.507059e+37
        %v8129 = vand.u32 %v4866, 2147483648
        %v8130 = vor.u32 1.1754944e-38, %v8129
        %v8131 = vsel %vm8128, %v8130, %v8126
        %v8132 = vmul.f32 1.0, %v8131
        %v8133 = vrcp.pop %v4867
        %v8134 = vmul.f32 %v4867, %v8133
        %v8135 = vsub.f32 1.0, %v8134
        %v8136 = vmul.f32 %v8133, %v8135
        %v8137 = vadd.f32 %v8133, %v8136
        %vm8138 = vweird.f32 %v4867
        %vm8139 = vweird.f32 %v8133
        %vm8140 = vmor %vm8138, %vm8139
        %v8141 = vsel %vm8140, %v8133, %v8137
        %v8142 = vand.u32 2147483647, %v4867
        %vm8143 = vcmp.eq.f32.partialorder %v8142, 8.507059e+37
        %v8144 = vand.u32 %v4867, 2147483648
        %v8145 = vor.u32 1.1754944e-38, %v8144
        %v8146 = vsel %vm8143, %v8145, %v8141
        %v8147 = vmul.f32 1.0, %v8146
        %v8148 = vrcp.pop %v4868
        %v8149 = vmul.f32 %v4868, %v8148
        %v8150 = vsub.f32 1.0, %v8149
        %v8151 = vmul.f32 %v8148, %v8150
        %v8152 = vadd.f32 %v8148, %v8151
        %vm8153 = vweird.f32 %v4868
        %vm8154 = vweird.f32 %v8148
        %vm8155 = vmor %vm8153, %vm8154
        %v8156 = vsel %vm8155, %v8148, %v8152
        %v8157 = vand.u32 2147483647, %v4868
        %vm8158 = vcmp.eq.f32.partialorder %v8157, 8.507059e+37
        %v8159 = vand.u32 %v4868, 2147483648
        %v8160 = vor.u32 1.1754944e-38, %v8159
        %v8161 = vsel %vm8158, %v8160, %v8156
        %v8162 = vmul.f32 1.0, %v8161
        %v8163 = vrcp.pop %v4869
        %v8164 = vmul.f32 %v4869, %v8163
        %v8165 = vsub.f32 1.0, %v8164
        %v8166 = vmul.f32 %v8163, %v8165
        %v8167 = vadd.f32 %v8163, %v8166
        %vm8168 = vweird.f32 %v4869
        %vm8169 = vweird.f32 %v8163
        %vm8170 = vmor %vm8168, %vm8169
        %v8171 = vsel %vm8170, %v8163, %v8167
        %v8172 = vand.u32 2147483647, %v4869
        %vm8173 = vcmp.eq.f32.partialorder %v8172, 8.507059e+37
        %v8174 = vand.u32 %v4869, 2147483648
        %v8175 = vor.u32 1.1754944e-38, %v8174
        %v8176 = vsel %vm8173, %v8175, %v8171
        %v8177 = vmul.f32 1.0, %v8176
        %v8178 = vrcp.pop %v4870
        %v8179 = vmul.f32 %v4870, %v8178
        %v8180 = vsub.f32 1.0, %v8179
        %v8181 = vmul.f32 %v8178, %v8180
        %v8182 = vadd.f32 %v8178, %v8181
        %vm8183 = vweird.f32 %v4870
        %vm8184 = vweird.f32 %v8178
        %vm8185 = vmor %vm8183, %vm8184
        %v8186 = vsel %vm8185, %v8178, %v8182
        %v8187 = vand.u32 2147483647, %v4870
        %vm8188 = vcmp.eq.f32.partialorder %v8187, 8.507059e+37
        %v8189 = vand.u32 %v4870, 2147483648
        %v8190 = vor.u32 1.1754944e-38, %v8189
        %v8191 = vsel %vm8188, %v8190, %v8186
        %v8192 = vmul.f32 1.0, %v8191
        %v8193 = vrcp.pop %v4871
        %v8194 = vmul.f32 %v4871, %v8193
        %v8195 = vsub.f32 1.0, %v8194
        %v8196 = vmul.f32 %v8193, %v8195
        %v8197 = vadd.f32 %v8193, %v8196
        %vm8198 = vweird.f32 %v4871
        %vm8199 = vweird.f32 %v8193
        %vm8200 = vmor %vm8198, %vm8199
        %v8201 = vsel %vm8200, %v8193, %v8197
        %v8202 = vand.u32 2147483647, %v4871
        %vm8203 = vcmp.eq.f32.partialorder %v8202, 8.507059e+37
        %v8204 = vand.u32 %v4871, 2147483648
        %v8205 = vor.u32 1.1754944e-38, %v8204
        %v8206 = vsel %vm8203, %v8205, %v8201
        %v8207 = vmul.f32 1.0, %v8206
        %v8208 = vrcp.pop %v4872
        %v8209 = vmul.f32 %v4872, %v8208
        %v8210 = vsub.f32 1.0, %v8209
        %v8211 = vmul.f32 %v8208, %v8210
        %v8212 = vadd.f32 %v8208, %v8211
        %vm8213 = vweird.f32 %v4872
        %vm8214 = vweird.f32 %v8208
        %vm8215 = vmor %vm8213, %vm8214
        %v8216 = vsel %vm8215, %v8208, %v8212
        %v8217 = vand.u32 2147483647, %v4872
        %vm8218 = vcmp.eq.f32.partialorder %v8217, 8.507059e+37
        %v8219 = vand.u32 %v4872, 2147483648
        %v8220 = vor.u32 1.1754944e-38, %v8219
        %v8221 = vsel %vm8218, %v8220, %v8216
        %v8222 = vmul.f32 1.0, %v8221
        %v8223 = vrcp.pop %v4873
        %v8224 = vmul.f32 %v4873, %v8223
        %v8225 = vsub.f32 1.0, %v8224
        %v8226 = vmul.f32 %v8223, %v8225
        %v8227 = vadd.f32 %v8223, %v8226
        %vm8228 = vweird.f32 %v4873
        %vm8229 = vweird.f32 %v8223
        %vm8230 = vmor %vm8228, %vm8229
        %v8231 = vsel %vm8230, %v8223, %v8227
        %v8232 = vand.u32 2147483647, %v4873
        %vm8233 = vcmp.eq.f32.partialorder %v8232, 8.507059e+37
        %v8234 = vand.u32 %v4873, 2147483648
        %v8235 = vor.u32 1.1754944e-38, %v8234
        %v8236 = vsel %vm8233, %v8235, %v8231
        %v8237 = vmul.f32 1.0, %v8236
        %v8238 = vrcp.pop %v4874
        %v8239 = vmul.f32 %v4874, %v8238
        %v8240 = vsub.f32 1.0, %v8239
        %v8241 = vmul.f32 %v8238, %v8240
        %v8242 = vadd.f32 %v8238, %v8241
        %vm8243 = vweird.f32 %v4874
        %vm8244 = vweird.f32 %v8238
        %vm8245 = vmor %vm8243, %vm8244
        %v8246 = vsel %vm8245, %v8238, %v8242
        %v8247 = vand.u32 2147483647, %v4874
        %vm8248 = vcmp.eq.f32.partialorder %v8247, 8.507059e+37
        %v8249 = vand.u32 %v4874, 2147483648
        %v8250 = vor.u32 1.1754944e-38, %v8249
        %v8251 = vsel %vm8248, %v8250, %v8246
        %v8252 = vmul.f32 1.0, %v8251
        %v8253 = vrcp.pop %v4875
        %v8254 = vmul.f32 %v4875, %v8253
        %v8255 = vsub.f32 1.0, %v8254
        %v8256 = vmul.f32 %v8253, %v8255
        %v8257 = vadd.f32 %v8253, %v8256
        %vm8258 = vweird.f32 %v4875
        %vm8259 = vweird.f32 %v8253
        %vm8260 = vmor %vm8258, %vm8259
        %v8261 = vsel %vm8260, %v8253, %v8257
        %v8262 = vand.u32 2147483647, %v4875
        %vm8263 = vcmp.eq.f32.partialorder %v8262, 8.507059e+37
        %v8264 = vand.u32 %v4875, 2147483648
        %v8265 = vor.u32 1.1754944e-38, %v8264
        %v8266 = vsel %vm8263, %v8265, %v8261
        %v8267 = vmul.f32 1.0, %v8266
        %v8268 = vrcp.pop %v4876
        %v8269 = vmul.f32 %v4876, %v8268
        %v8270 = vsub.f32 1.0, %v8269
        %v8271 = vmul.f32 %v8268, %v8270
        %v8272 = vadd.f32 %v8268, %v8271
        %vm8273 = vweird.f32 %v4876
        %vm8274 = vweird.f32 %v8268
        %vm8275 = vmor %vm8273, %vm8274
        %v8276 = vsel %vm8275, %v8268, %v8272
        %v8277 = vand.u32 2147483647, %v4876
        %vm8278 = vcmp.eq.f32.partialorder %v8277, 8.507059e+37
        %v8279 = vand.u32 %v4876, 2147483648
        %v8280 = vor.u32 1.1754944e-38, %v8279
        %v8281 = vsel %vm8278, %v8280, %v8276
        %v8282 = vmul.f32 1.0, %v8281
        %v8283 = vrcp.pop %v4877
        %v8284 = vmul.f32 %v4877, %v8283
        %v8285 = vsub.f32 1.0, %v8284
        %v8286 = vmul.f32 %v8283, %v8285
        %v8287 = vadd.f32 %v8283, %v8286
        %vm8288 = vweird.f32 %v4877
        %vm8289 = vweird.f32 %v8283
        %vm8290 = vmor %vm8288, %vm8289
        %v8291 = vsel %vm8290, %v8283, %v8287
        %v8292 = vand.u32 2147483647, %v4877
        %vm8293 = vcmp.eq.f32.partialorder %v8292, 8.507059e+37
        %v8294 = vand.u32 %v4877, 2147483648
        %v8295 = vor.u32 1.1754944e-38, %v8294
        %v8296 = vsel %vm8293, %v8295, %v8291
        %v8297 = vmul.f32 1.0, %v8296
        %v8298 = vrcp.pop %v4878
        %v8299 = vmul.f32 %v4878, %v8298
        %v8300 = vsub.f32 1.0, %v8299
        %v8301 = vmul.f32 %v8298, %v8300
        %v8302 = vadd.f32 %v8298, %v8301
        %vm8303 = vweird.f32 %v4878
        %vm8304 = vweird.f32 %v8298
        %vm8305 = vmor %vm8303, %vm8304
        %v8306 = vsel %vm8305, %v8298, %v8302
        %v8307 = vand.u32 2147483647, %v4878
        %vm8308 = vcmp.eq.f32.partialorder %v8307, 8.507059e+37
        %v8309 = vand.u32 %v4878, 2147483648
        %v8310 = vor.u32 1.1754944e-38, %v8309
        %v8311 = vsel %vm8308, %v8310, %v8306
        %v8312 = vmul.f32 1.0, %v8311
        %v8313 = vrcp.pop %v4879
        %v8314 = vmul.f32 %v4879, %v8313
        %v8315 = vsub.f32 1.0, %v8314
        %v8316 = vmul.f32 %v8313, %v8315
        %v8317 = vadd.f32 %v8313, %v8316
        %vm8318 = vweird.f32 %v4879
        %vm8319 = vweird.f32 %v8313
        %vm8320 = vmor %vm8318, %vm8319
        %v8321 = vsel %vm8320, %v8313, %v8317
        %v8322 = vand.u32 2147483647, %v4879
        %vm8323 = vcmp.eq.f32.partialorder %v8322, 8.507059e+37
        %v8324 = vand.u32 %v4879, 2147483648
        %v8325 = vor.u32 1.1754944e-38, %v8324
        %v8326 = vsel %vm8323, %v8325, %v8321
        %v8327 = vmul.f32 1.0, %v8326
        %v8328 = vrcp.pop %v4880
        %v8329 = vmul.f32 %v4880, %v8328
        %v8330 = vsub.f32 1.0, %v8329
        %v8331 = vmul.f32 %v8328, %v8330
        %v8332 = vadd.f32 %v8328, %v8331
        %vm8333 = vweird.f32 %v4880
        %vm8334 = vweird.f32 %v8328
        %vm8335 = vmor %vm8333, %vm8334
        %v8336 = vsel %vm8335, %v8328, %v8332
        %v8337 = vand.u32 2147483647, %v4880
        %vm8338 = vcmp.eq.f32.partialorder %v8337, 8.507059e+37
        %v8339 = vand.u32 %v4880, 2147483648
        %v8340 = vor.u32 1.1754944e-38, %v8339
        %v8341 = vsel %vm8338, %v8340, %v8336
        %v8342 = vmul.f32 1.0, %v8341
        %v8343 = vrcp.pop %v4881
        %v8344 = vmul.f32 %v4881, %v8343
        %v8345 = vsub.f32 1.0, %v8344
        %v8346 = vmul.f32 %v8343, %v8345
        %v8347 = vadd.f32 %v8343, %v8346
        %vm8348 = vweird.f32 %v4881
        %vm8349 = vweird.f32 %v8343
        %vm8350 = vmor %vm8348, %vm8349
        %v8351 = vsel %vm8350, %v8343, %v8347
        %v8352 = vand.u32 2147483647, %v4881
        %vm8353 = vcmp.eq.f32.partialorder %v8352, 8.507059e+37
        %v8354 = vand.u32 %v4881, 2147483648
        %v8355 = vor.u32 1.1754944e-38, %v8354
        %v8356 = vsel %vm8353, %v8355, %v8351
        %v8357 = vmul.f32 1.0, %v8356
        %v8358 = vrcp.pop %v4882
        %v8359 = vmul.f32 %v4882, %v8358
        %v8360 = vsub.f32 1.0, %v8359
        %v8361 = vmul.f32 %v8358, %v8360
        %v8362 = vadd.f32 %v8358, %v8361
        %vm8363 = vweird.f32 %v4882
        %vm8364 = vweird.f32 %v8358
        %vm8365 = vmor %vm8363, %vm8364
        %v8366 = vsel %vm8365, %v8358, %v8362
        %v8367 = vand.u32 2147483647, %v4882
        %vm8368 = vcmp.eq.f32.partialorder %v8367, 8.507059e+37
        %v8369 = vand.u32 %v4882, 2147483648
        %v8370 = vor.u32 1.1754944e-38, %v8369
        %v8371 = vsel %vm8368, %v8370, %v8366
        %v8372 = vmul.f32 1.0, %v8371
        %v8373 = vrcp.pop %v4883
        %v8374 = vmul.f32 %v4883, %v8373
        %v8375 = vsub.f32 1.0, %v8374
        %v8376 = vmul.f32 %v8373, %v8375
        %v8377 = vadd.f32 %v8373, %v8376
        %vm8378 = vweird.f32 %v4883
        %vm8379 = vweird.f32 %v8373
        %vm8380 = vmor %vm8378, %vm8379
        %v8381 = vsel %vm8380, %v8373, %v8377
        %v8382 = vand.u32 2147483647, %v4883
        %vm8383 = vcmp.eq.f32.partialorder %v8382, 8.507059e+37
        %v8384 = vand.u32 %v4883, 2147483648
        %v8385 = vor.u32 1.1754944e-38, %v8384
        %v8386 = vsel %vm8383, %v8385, %v8381
        %v8387 = vmul.f32 1.0, %v8386
        %v8388 = vrcp.pop %v4884
        %v8389 = vmul.f32 %v4884, %v8388
        %v8390 = vsub.f32 1.0, %v8389
        %v8391 = vmul.f32 %v8388, %v8390
        %v8392 = vadd.f32 %v8388, %v8391
        %vm8393 = vweird.f32 %v4884
        %vm8394 = vweird.f32 %v8388
        %vm8395 = vmor %vm8393, %vm8394
        %v8396 = vsel %vm8395, %v8388, %v8392
        %v8397 = vand.u32 2147483647, %v4884
        %vm8398 = vcmp.eq.f32.partialorder %v8397, 8.507059e+37
        %v8399 = vand.u32 %v4884, 2147483648
        %v8400 = vor.u32 1.1754944e-38, %v8399
        %v8401 = vsel %vm8398, %v8400, %v8396
        %v8402 = vmul.f32 1.0, %v8401
        %v8403 = vrcp.pop %v4885
        %v8404 = vmul.f32 %v4885, %v8403
        %v8405 = vsub.f32 1.0, %v8404
        %v8406 = vmul.f32 %v8403, %v8405
        %v8407 = vadd.f32 %v8403, %v8406
        %vm8408 = vweird.f32 %v4885
        %vm8409 = vweird.f32 %v8403
        %vm8410 = vmor %vm8408, %vm8409
        %v8411 = vsel %vm8410, %v8403, %v8407
        %v8412 = vand.u32 2147483647, %v4885
        %vm8413 = vcmp.eq.f32.partialorder %v8412, 8.507059e+37
        %v8414 = vand.u32 %v4885, 2147483648
        %v8415 = vor.u32 1.1754944e-38, %v8414
        %v8416 = vsel %vm8413, %v8415, %v8411
        %v8417 = vmul.f32 1.0, %v8416
        %v8418 = vrcp.pop %v4886
        %v8419 = vmul.f32 %v4886, %v8418
        %v8420 = vsub.f32 1.0, %v8419
        %v8421 = vmul.f32 %v8418, %v8420
        %v8422 = vadd.f32 %v8418, %v8421
        %vm8423 = vweird.f32 %v4886
        %vm8424 = vweird.f32 %v8418
        %vm8425 = vmor %vm8423, %vm8424
        %v8426 = vsel %vm8425, %v8418, %v8422
        %v8427 = vand.u32 2147483647, %v4886
        %vm8428 = vcmp.eq.f32.partialorder %v8427, 8.507059e+37
        %v8429 = vand.u32 %v4886, 2147483648
        %v8430 = vor.u32 1.1754944e-38, %v8429
        %v8431 = vsel %vm8428, %v8430, %v8426
        %v8432 = vmul.f32 1.0, %v8431
        %v8433 = vrcp.pop %v4887
        %v8434 = vmul.f32 %v4887, %v8433
        %v8435 = vsub.f32 1.0, %v8434
        %v8436 = vmul.f32 %v8433, %v8435
        %v8437 = vadd.f32 %v8433, %v8436
        %vm8438 = vweird.f32 %v4887
        %vm8439 = vweird.f32 %v8433
        %vm8440 = vmor %vm8438, %vm8439
        %v8441 = vsel %vm8440, %v8433, %v8437
        %v8442 = vand.u32 2147483647, %v4887
        %vm8443 = vcmp.eq.f32.partialorder %v8442, 8.507059e+37
        %v8444 = vand.u32 %v4887, 2147483648
        %v8445 = vor.u32 1.1754944e-38, %v8444
        %v8446 = vsel %vm8443, %v8445, %v8441
        %v8447 = vmul.f32 1.0, %v8446
        %v8448 = vrcp.pop %v4888
        %v8449 = vmul.f32 %v4888, %v8448
        %v8450 = vsub.f32 1.0, %v8449
        %v8451 = vmul.f32 %v8448, %v8450
        %v8452 = vadd.f32 %v8448, %v8451
        %vm8453 = vweird.f32 %v4888
        %vm8454 = vweird.f32 %v8448
        %vm8455 = vmor %vm8453, %vm8454
        %v8456 = vsel %vm8455, %v8448, %v8452
        %v8457 = vand.u32 2147483647, %v4888
        %vm8458 = vcmp.eq.f32.partialorder %v8457, 8.507059e+37
        %v8459 = vand.u32 %v4888, 2147483648
        %v8460 = vor.u32 1.1754944e-38, %v8459
        %v8461 = vsel %vm8458, %v8460, %v8456
        %v8462 = vmul.f32 1.0, %v8461
        %v8463 = vrcp.pop %v4889
        %v8464 = vmul.f32 %v4889, %v8463
        %v8465 = vsub.f32 1.0, %v8464
        %v8466 = vmul.f32 %v8463, %v8465
        %v8467 = vadd.f32 %v8463, %v8466
        %vm8468 = vweird.f32 %v4889
        %vm8469 = vweird.f32 %v8463
        %vm8470 = vmor %vm8468, %vm8469
        %v8471 = vsel %vm8470, %v8463, %v8467
        %v8472 = vand.u32 2147483647, %v4889
        %vm8473 = vcmp.eq.f32.partialorder %v8472, 8.507059e+37
        %v8474 = vand.u32 %v4889, 2147483648
        %v8475 = vor.u32 1.1754944e-38, %v8474
        %v8476 = vsel %vm8473, %v8475, %v8471
        %v8477 = vmul.f32 1.0, %v8476
        %v8478 = vrcp.pop %v4890
        %v8479 = vmul.f32 %v4890, %v8478
        %v8480 = vsub.f32 1.0, %v8479
        %v8481 = vmul.f32 %v8478, %v8480
        %v8482 = vadd.f32 %v8478, %v8481
        %vm8483 = vweird.f32 %v4890
        %vm8484 = vweird.f32 %v8478
        %vm8485 = vmor %vm8483, %vm8484
        %v8486 = vsel %vm8485, %v8478, %v8482
        %v8487 = vand.u32 2147483647, %v4890
        %vm8488 = vcmp.eq.f32.partialorder %v8487, 8.507059e+37
        %v8489 = vand.u32 %v4890, 2147483648
        %v8490 = vor.u32 1.1754944e-38, %v8489
        %v8491 = vsel %vm8488, %v8490, %v8486
        %v8492 = vmul.f32 1.0, %v8491
        %v8493 = vrcp.pop %v4891
        %v8494 = vmul.f32 %v4891, %v8493
        %v8495 = vsub.f32 1.0, %v8494
        %v8496 = vmul.f32 %v8493, %v8495
        %v8497 = vadd.f32 %v8493, %v8496
        %vm8498 = vweird.f32 %v4891
        %vm8499 = vweird.f32 %v8493
        %vm8500 = vmor %vm8498, %vm8499
        %v8501 = vsel %vm8500, %v8493, %v8497
        %v8502 = vand.u32 2147483647, %v4891
        %vm8503 = vcmp.eq.f32.partialorder %v8502, 8.507059e+37
        %v8504 = vand.u32 %v4891, 2147483648
        %v8505 = vor.u32 1.1754944e-38, %v8504
        %v8506 = vsel %vm8503, %v8505, %v8501
        %v8507 = vmul.f32 1.0, %v8506
        %v8508 = vrcp.pop %v4892
        %v8509 = vmul.f32 %v4892, %v8508
        %v8510 = vsub.f32 1.0, %v8509
        %v8511 = vmul.f32 %v8508, %v8510
        %v8512 = vadd.f32 %v8508, %v8511
        %vm8513 = vweird.f32 %v4892
        %vm8514 = vweird.f32 %v8508
        %vm8515 = vmor %vm8513, %vm8514
        %v8516 = vsel %vm8515, %v8508, %v8512
        %v8517 = vand.u32 2147483647, %v4892
        %vm8518 = vcmp.eq.f32.partialorder %v8517, 8.507059e+37
        %v8519 = vand.u32 %v4892, 2147483648
        %v8520 = vor.u32 1.1754944e-38, %v8519
        %v8521 = vsel %vm8518, %v8520, %v8516
        %v8522 = vmul.f32 1.0, %v8521
        %v8523 = vrcp.pop %v4893
        %v8524 = vmul.f32 %v4893, %v8523
        %v8525 = vsub.f32 1.0, %v8524
        %v8526 = vmul.f32 %v8523, %v8525
        %v8527 = vadd.f32 %v8523, %v8526
        %vm8528 = vweird.f32 %v4893
        %vm8529 = vweird.f32 %v8523
        %vm8530 = vmor %vm8528, %vm8529
        %v8531 = vsel %vm8530, %v8523, %v8527
        %v8532 = vand.u32 2147483647, %v4893
        %vm8533 = vcmp.eq.f32.partialorder %v8532, 8.507059e+37
        %v8534 = vand.u32 %v4893, 2147483648
        %v8535 = vor.u32 1.1754944e-38, %v8534
        %v8536 = vsel %vm8533, %v8535, %v8531
        %v8537 = vmul.f32 1.0, %v8536
        %v8538 = vrcp.pop %v4894
        %v8539 = vmul.f32 %v4894, %v8538
        %v8540 = vsub.f32 1.0, %v8539
        %v8541 = vmul.f32 %v8538, %v8540
        %v8542 = vadd.f32 %v8538, %v8541
        %vm8543 = vweird.f32 %v4894
        %vm8544 = vweird.f32 %v8538
        %vm8545 = vmor %vm8543, %vm8544
        %v8546 = vsel %vm8545, %v8538, %v8542
        %v8547 = vand.u32 2147483647, %v4894
        %vm8548 = vcmp.eq.f32.partialorder %v8547, 8.507059e+37
        %v8549 = vand.u32 %v4894, 2147483648
        %v8550 = vor.u32 1.1754944e-38, %v8549
        %v8551 = vsel %vm8548, %v8550, %v8546
        %v8552 = vmul.f32 1.0, %v8551
        %v8553 = vrcp.pop %v4895
        %v8554 = vmul.f32 %v4895, %v8553
        %v8555 = vsub.f32 1.0, %v8554
        %v8556 = vmul.f32 %v8553, %v8555
        %v8557 = vadd.f32 %v8553, %v8556
        %vm8558 = vweird.f32 %v4895
        %vm8559 = vweird.f32 %v8553
        %vm8560 = vmor %vm8558, %vm8559
        %v8561 = vsel %vm8560, %v8553, %v8557
        %v8562 = vand.u32 2147483647, %v4895
        %vm8563 = vcmp.eq.f32.partialorder %v8562, 8.507059e+37
        %v8564 = vand.u32 %v4895, 2147483648
        %v8565 = vor.u32 1.1754944e-38, %v8564
        %v8566 = vsel %vm8563, %v8565, %v8561
        %v8567 = vmul.f32 1.0, %v8566
        %v8568 = vrcp.pop %v4896
        %v8569 = vmul.f32 %v4896, %v8568
        %v8570 = vsub.f32 1.0, %v8569
        %v8571 = vmul.f32 %v8568, %v8570
        %v8572 = vadd.f32 %v8568, %v8571
        %vm8573 = vweird.f32 %v4896
        %vm8574 = vweird.f32 %v8568
        %vm8575 = vmor %vm8573, %vm8574
        %v8576 = vsel %vm8575, %v8568, %v8572
        %v8577 = vand.u32 2147483647, %v4896
        %vm8578 = vcmp.eq.f32.partialorder %v8577, 8.507059e+37
        %v8579 = vand.u32 %v4896, 2147483648
        %v8580 = vor.u32 1.1754944e-38, %v8579
        %v8581 = vsel %vm8578, %v8580, %v8576
        %v8582 = vmul.f32 1.0, %v8581
        %v8583 = vrcp.pop %v4897
        %v8584 = vmul.f32 %v4897, %v8583
        %v8585 = vsub.f32 1.0, %v8584
        %v8586 = vmul.f32 %v8583, %v8585
        %v8587 = vadd.f32 %v8583, %v8586
        %vm8588 = vweird.f32 %v4897
        %vm8589 = vweird.f32 %v8583
        %vm8590 = vmor %vm8588, %vm8589
        %v8591 = vsel %vm8590, %v8583, %v8587
        %v8592 = vand.u32 2147483647, %v4897
        %vm8593 = vcmp.eq.f32.partialorder %v8592, 8.507059e+37
        %v8594 = vand.u32 %v4897, 2147483648
        %v8595 = vor.u32 1.1754944e-38, %v8594
        %v8596 = vsel %vm8593, %v8595, %v8591
        %v8597 = vmul.f32 1.0, %v8596
        %v8598 = vrcp.pop %v4898
        %v8599 = vmul.f32 %v4898, %v8598
        %v8600 = vsub.f32 1.0, %v8599
        %v8601 = vmul.f32 %v8598, %v8600
        %v8602 = vadd.f32 %v8598, %v8601
        %vm8603 = vweird.f32 %v4898
        %vm8604 = vweird.f32 %v8598
        %vm8605 = vmor %vm8603, %vm8604
        %v8606 = vsel %vm8605, %v8598, %v8602
        %v8607 = vand.u32 2147483647, %v4898
        %vm8608 = vcmp.eq.f32.partialorder %v8607, 8.507059e+37
        %v8609 = vand.u32 %v4898, 2147483648
        %v8610 = vor.u32 1.1754944e-38, %v8609
        %v8611 = vsel %vm8608, %v8610, %v8606
        %v8612 = vmul.f32 1.0, %v8611
        %v8613 = vrcp.pop %v4899
        %v8614 = vmul.f32 %v4899, %v8613
        %v8615 = vsub.f32 1.0, %v8614
        %v8616 = vmul.f32 %v8613, %v8615
        %v8617 = vadd.f32 %v8613, %v8616
        %vm8618 = vweird.f32 %v4899
        %vm8619 = vweird.f32 %v8613
        %vm8620 = vmor %vm8618, %vm8619
        %v8621 = vsel %vm8620, %v8613, %v8617
        %v8622 = vand.u32 2147483647, %v4899
        %vm8623 = vcmp.eq.f32.partialorder %v8622, 8.507059e+37
        %v8624 = vand.u32 %v4899, 2147483648
        %v8625 = vor.u32 1.1754944e-38, %v8624
        %v8626 = vsel %vm8623, %v8625, %v8621
        %v8627 = vmul.f32 1.0, %v8626
        %v8628 = vrcp.pop %v4900
        %v8629 = vmul.f32 %v4900, %v8628
        %v8630 = vsub.f32 1.0, %v8629
        %v8631 = vmul.f32 %v8628, %v8630
        %v8632 = vadd.f32 %v8628, %v8631
        %vm8633 = vweird.f32 %v4900
        %vm8634 = vweird.f32 %v8628
        %vm8635 = vmor %vm8633, %vm8634
        %v8636 = vsel %vm8635, %v8628, %v8632
        %v8637 = vand.u32 2147483647, %v4900
        %vm8638 = vcmp.eq.f32.partialorder %v8637, 8.507059e+37
        %v8639 = vand.u32 %v4900, 2147483648
        %v8640 = vor.u32 1.1754944e-38, %v8639
        %v8641 = vsel %vm8638, %v8640, %v8636
        %v8642 = vmul.f32 1.0, %v8641
        %v8643 = vrcp.pop %v4901
        %v8644 = vmul.f32 %v4901, %v8643
        %v8645 = vsub.f32 1.0, %v8644
        %v8646 = vmul.f32 %v8643, %v8645
        %v8647 = vadd.f32 %v8643, %v8646
        %vm8648 = vweird.f32 %v4901
        %vm8649 = vweird.f32 %v8643
        %vm8650 = vmor %vm8648, %vm8649
        %v8651 = vsel %vm8650, %v8643, %v8647
        %v8652 = vand.u32 2147483647, %v4901
        %vm8653 = vcmp.eq.f32.partialorder %v8652, 8.507059e+37
        %v8654 = vand.u32 %v4901, 2147483648
        %v8655 = vor.u32 1.1754944e-38, %v8654
        %v8656 = vsel %vm8653, %v8655, %v8651
        %v8657 = vmul.f32 1.0, %v8656
        %v8658 = vrcp.pop %v4902
        %v8659 = vmul.f32 %v4902, %v8658
        %v8660 = vsub.f32 1.0, %v8659
        %v8661 = vmul.f32 %v8658, %v8660
        %v8662 = vadd.f32 %v8658, %v8661
        %vm8663 = vweird.f32 %v4902
        %vm8664 = vweird.f32 %v8658
        %vm8665 = vmor %vm8663, %vm8664
        %v8666 = vsel %vm8665, %v8658, %v8662
        %v8667 = vand.u32 2147483647, %v4902
        %vm8668 = vcmp.eq.f32.partialorder %v8667, 8.507059e+37
        %v8669 = vand.u32 %v4902, 2147483648
        %v8670 = vor.u32 1.1754944e-38, %v8669
        %v8671 = vsel %vm8668, %v8670, %v8666
        %v8672 = vmul.f32 1.0, %v8671
        %v8673 = vrcp.pop %v4903
        %v8674 = vmul.f32 %v4903, %v8673
        %v8675 = vsub.f32 1.0, %v8674
        %v8676 = vmul.f32 %v8673, %v8675
        %v8677 = vadd.f32 %v8673, %v8676
        %vm8678 = vweird.f32 %v4903
        %vm8679 = vweird.f32 %v8673
        %vm8680 = vmor %vm8678, %vm8679
        %v8681 = vsel %vm8680, %v8673, %v8677
        %v8682 = vand.u32 2147483647, %v4903
        %vm8683 = vcmp.eq.f32.partialorder %v8682, 8.507059e+37
        %v8684 = vand.u32 %v4903, 2147483648
        %v8685 = vor.u32 1.1754944e-38, %v8684
        %v8686 = vsel %vm8683, %v8685, %v8681
        %v8687 = vmul.f32 1.0, %v8686
        %v8688 = vrcp.pop %v4904
        %v8689 = vmul.f32 %v4904, %v8688
        %v8690 = vsub.f32 1.0, %v8689
        %v8691 = vmul.f32 %v8688, %v8690
        %v8692 = vadd.f32 %v8688, %v8691
        %vm8693 = vweird.f32 %v4904
        %vm8694 = vweird.f32 %v8688
        %vm8695 = vmor %vm8693, %vm8694
        %v8696 = vsel %vm8695, %v8688, %v8692
        %v8697 = vand.u32 2147483647, %v4904
        %vm8698 = vcmp.eq.f32.partialorder %v8697, 8.507059e+37
        %v8699 = vand.u32 %v4904, 2147483648
        %v8700 = vor.u32 1.1754944e-38, %v8699
        %v8701 = vsel %vm8698, %v8700, %v8696
        %v8702 = vmul.f32 1.0, %v8701
        %v8703 = vrcp.pop %v4905
        %v8704 = vmul.f32 %v4905, %v8703
        %v8705 = vsub.f32 1.0, %v8704
        %v8706 = vmul.f32 %v8703, %v8705
        %v8707 = vadd.f32 %v8703, %v8706
        %vm8708 = vweird.f32 %v4905
        %vm8709 = vweird.f32 %v8703
        %vm8710 = vmor %vm8708, %vm8709
        %v8711 = vsel %vm8710, %v8703, %v8707
        %v8712 = vand.u32 2147483647, %v4905
        %vm8713 = vcmp.eq.f32.partialorder %v8712, 8.507059e+37
        %v8714 = vand.u32 %v4905, 2147483648
        %v8715 = vor.u32 1.1754944e-38, %v8714
        %v8716 = vsel %vm8713, %v8715, %v8711
        %v8717 = vmul.f32 1.0, %v8716
        %v8718 = vrcp.pop %v4906
        %v8719 = vmul.f32 %v4906, %v8718
        %v8720 = vsub.f32 1.0, %v8719
        %v8721 = vmul.f32 %v8718, %v8720
        %v8722 = vadd.f32 %v8718, %v8721
        %vm8723 = vweird.f32 %v4906
        %vm8724 = vweird.f32 %v8718
        %vm8725 = vmor %vm8723, %vm8724
        %v8726 = vsel %vm8725, %v8718, %v8722
        %v8727 = vand.u32 2147483647, %v4906
        %vm8728 = vcmp.eq.f32.partialorder %v8727, 8.507059e+37
        %v8729 = vand.u32 %v4906, 2147483648
        %v8730 = vor.u32 1.1754944e-38, %v8729
        %v8731 = vsel %vm8728, %v8730, %v8726
        %v8732 = vmul.f32 1.0, %v8731
        %v8733 = vrcp.pop %v4907
        %v8734 = vmul.f32 %v4907, %v8733
        %v8735 = vsub.f32 1.0, %v8734
        %v8736 = vmul.f32 %v8733, %v8735
        %v8737 = vadd.f32 %v8733, %v8736
        %vm8738 = vweird.f32 %v4907
        %vm8739 = vweird.f32 %v8733
        %vm8740 = vmor %vm8738, %vm8739
        %v8741 = vsel %vm8740, %v8733, %v8737
        %v8742 = vand.u32 2147483647, %v4907
        %vm8743 = vcmp.eq.f32.partialorder %v8742, 8.507059e+37
        %v8744 = vand.u32 %v4907, 2147483648
        %v8745 = vor.u32 1.1754944e-38, %v8744
        %v8746 = vsel %vm8743, %v8745, %v8741
        %v8747 = vmul.f32 1.0, %v8746
        %v8748 = vmul.f32 %v3066, %v4922
        %v8749 = vmul.f32 %v3275, %v4937
        %v8750 = vmul.f32 %v3484, %v4952
        %v8751 = vmul.f32 %v3693, %v4967
        %v8752 = vmul.f32 %v3069, %v4982
        %v8753 = vmul.f32 %v3278, %v4997
        %v8754 = vmul.f32 %v3487, %v5012
        %v8755 = vmul.f32 %v3696, %v5027
        %v8756 = vmul.f32 %v3072, %v5042
        %v8757 = vmul.f32 %v3281, %v5057
        %v8758 = vmul.f32 %v3490, %v5072
        %v8759 = vmul.f32 %v3699, %v5087
        %v8760 = vmul.f32 %v3075, %v5102
        %v8761 = vmul.f32 %v3284, %v5117
        %v8762 = vmul.f32 %v3493, %v5132
        %v8763 = vmul.f32 %v3702, %v5147
        %v8764 = vmul.f32 %v3078, %v5162
        %v8765 = vmul.f32 %v3287, %v5177
        %v8766 = vmul.f32 %v3496, %v5192
        %v8767 = vmul.f32 %v3705, %v5207
        %v8768 = vmul.f32 %v3081, %v5222
        %v8769 = vmul.f32 %v3290, %v5237
        %v8770 = vmul.f32 %v3499, %v5252
        %v8771 = vmul.f32 %v3708, %v5267
        %v8772 = vmul.f32 %v3084, %v5282
        %v8773 = vmul.f32 %v3293, %v5297
        %v8774 = vmul.f32 %v3502, %v5312
        %v8775 = vmul.f32 %v3711, %v5327
        %v8776 = vmul.f32 %v3087, %v5342
        %v8777 = vmul.f32 %v3296, %v5357
        %v8778 = vmul.f32 %v3505, %v5372
        %v8779 = vmul.f32 %v3714, %v5387
        %v8780 = vmul.f32 %v3090, %v5402
        %v8781 = vmul.f32 %v3299, %v5417
        %v8782 = vmul.f32 %v3508, %v5432
        %v8783 = vmul.f32 %v3717, %v5447
        %v8784 = vmul.f32 %v3093, %v5462
        %v8785 = vmul.f32 %v3302, %v5477
        %v8786 = vmul.f32 %v3511, %v5492
        %v8787 = vmul.f32 %v3720, %v5507
        %v8788 = vmul.f32 %v3096, %v5522
        %v8789 = vmul.f32 %v3305, %v5537
        %v8790 = vmul.f32 %v3514, %v5552
        %v8791 = vmul.f32 %v3723, %v5567
        %v8792 = vmul.f32 %v3099, %v5582
        %v8793 = vmul.f32 %v3308, %v5597
        %v8794 = vmul.f32 %v3517, %v5612
        %v8795 = vmul.f32 %v3726, %v5627
        %v8796 = vmul.f32 %v3102, %v5642
        %v8797 = vmul.f32 %v3311, %v5657
        %v8798 = vmul.f32 %v3520, %v5672
        %v8799 = vmul.f32 %v3729, %v5687
        %v8800 = vmul.f32 %v3105, %v5702
        %v8801 = vmul.f32 %v3314, %v5717
        %v8802 = vmul.f32 %v3523, %v5732
        %v8803 = vmul.f32 %v3732, %v5747
        %v8804 = vmul.f32 %v3108, %v5762
        %v8805 = vmul.f32 %v3317, %v5777
        %v8806 = vmul.f32 %v3526, %v5792
        %v8807 = vmul.f32 %v3735, %v5807
        %v8808 = vmul.f32 %v3111, %v5822
        %v8809 = vmul.f32 %v3320, %v5837
        %v8810 = vmul.f32 %v3529, %v5852
        %v8811 = vmul.f32 %v3738, %v5867
        %v8812 = vmul.f32 %v3114, %v5882
        %v8813 = vmul.f32 %v3323, %v5897
        %v8814 = vmul.f32 %v3532, %v5912
        %v8815 = vmul.f32 %v3741, %v5927
        %v8816 = vmul.f32 %v3117, %v5942
        %v8817 = vmul.f32 %v3326, %v5957
        %v8818 = vmul.f32 %v3535, %v5972
        %v8819 = vmul.f32 %v3744, %v5987
        %v8820 = vmul.f32 %v3120, %v6002
        %v8821 = vmul.f32 %v3329, %v6017
        %v8822 = vmul.f32 %v3538, %v6032
        %v8823 = vmul.f32 %v3747, %v6047
        %v8824 = vmul.f32 %v3123, %v6062
        %v8825 = vmul.f32 %v3332, %v6077
        %v8826 = vmul.f32 %v3541, %v6092
        %v8827 = vmul.f32 %v3750, %v6107
        %v8828 = vmul.f32 %v3126, %v6122
        %v8829 = vmul.f32 %v3335, %v6137
        %v8830 = vmul.f32 %v3544, %v6152
        %v8831 = vmul.f32 %v3753, %v6167
        %v8832 = vmul.f32 %v3129, %v6182
        %v8833 = vmul.f32 %v3338, %v6197
        %v8834 = vmul.f32 %v3547, %v6212
        %v8835 = vmul.f32 %v3756, %v6227
        %v8836 = vmul.f32 %v3132, %v6242
        %v8837 = vmul.f32 %v3341, %v6257
        %v8838 = vmul.f32 %v3550, %v6272
        %v8839 = vmul.f32 %v3759, %v6287
        %v8840 = vmul.f32 %v3135, %v6302
        %v8841 = vmul.f32 %v3344, %v6317
        %v8842 = vmul.f32 %v3553, %v6332
        %v8843 = vmul.f32 %v3762, %v6347
        %v8844 = vmul.f32 %v3138, %v6362
        %v8845 = vmul.f32 %v3347, %v6377
        %v8846 = vmul.f32 %v3556, %v6392
        %v8847 = vmul.f32 %v3765, %v6407
        %v8848 = vmul.f32 %v3141, %v6422
        %v8849 = vmul.f32 %v3350, %v6437
        %v8850 = vmul.f32 %v3559, %v6452
        %v8851 = vmul.f32 %v3768, %v6467
        %v8852 = vmul.f32 %v3144, %v6482
        %v8853 = vmul.f32 %v3353, %v6497
        %v8854 = vmul.f32 %v3562, %v6512
        %v8855 = vmul.f32 %v3771, %v6527
        %v8856 = vmul.f32 %v3147, %v6542
        %v8857 = vmul.f32 %v3356, %v6557
        %v8858 = vmul.f32 %v3565, %v6572
        %v8859 = vmul.f32 %v3774, %v6587
        %v8860 = vmul.f32 %v3150, %v6602
        %v8861 = vmul.f32 %v3359, %v6617
        %v8862 = vmul.f32 %v3568, %v6632
        %v8863 = vmul.f32 %v3777, %v6647
        %v8864 = vmul.f32 %v3153, %v6662
        %v8865 = vmul.f32 %v3362, %v6677
        %v8866 = vmul.f32 %v3571, %v6692
        %v8867 = vmul.f32 %v3780, %v6707
        %v8868 = vmul.f32 %v3156, %v6722
        %v8869 = vmul.f32 %v3365, %v6737
        %v8870 = vmul.f32 %v3574, %v6752
        %v8871 = vmul.f32 %v3783, %v6767
        %v8872 = vmul.f32 %v3159, %v6782
        %v8873 = vmul.f32 %v3368, %v6797
        %v8874 = vmul.f32 %v3577, %v6812
        %v8875 = vmul.f32 %v3786, %v6827
        %v8876 = vmul.f32 %v3162, %v6842
        %v8877 = vmul.f32 %v3371, %v6857
        %v8878 = vmul.f32 %v3580, %v6872
        %v8879 = vmul.f32 %v3789, %v6887
        %v8880 = vmul.f32 %v3165, %v6902
        %v8881 = vmul.f32 %v3374, %v6917
        %v8882 = vmul.f32 %v3583, %v6932
        %v8883 = vmul.f32 %v3792, %v6947
        %v8884 = vmul.f32 %v3168, %v6962
        %v8885 = vmul.f32 %v3377, %v6977
        %v8886 = vmul.f32 %v3586, %v6992
        %v8887 = vmul.f32 %v3795, %v7007
        %v8888 = vmul.f32 %v3171, %v7022
        %v8889 = vmul.f32 %v3380, %v7037
        %v8890 = vmul.f32 %v3589, %v7052
        %v8891 = vmul.f32 %v3798, %v7067
        %v8892 = vmul.f32 %v3174, %v7082
        %v8893 = vmul.f32 %v3383, %v7097
        %v8894 = vmul.f32 %v3592, %v7112
        %v8895 = vmul.f32 %v3801, %v7127
        %v8896 = vmul.f32 %v3177, %v7142
        %v8897 = vmul.f32 %v3386, %v7157
        %v8898 = vmul.f32 %v3595, %v7172
        %v8899 = vmul.f32 %v3804, %v7187
        %v8900 = vmul.f32 %v3180, %v7202
        %v8901 = vmul.f32 %v3389, %v7217
        %v8902 = vmul.f32 %v3598, %v7232
        %v8903 = vmul.f32 %v3807, %v7247
        %v8904 = vmul.f32 %v3183, %v7262
        %v8905 = vmul.f32 %v3392, %v7277
        %v8906 = vmul.f32 %v3601, %v7292
        %v8907 = vmul.f32 %v3810, %v7307
        %v8908 = vmul.f32 %v3186, %v7322
        %v8909 = vmul.f32 %v3395, %v7337
        %v8910 = vmul.f32 %v3604, %v7352
        %v8911 = vmul.f32 %v3813, %v7367
        %v8912 = vmul.f32 %v3189, %v7382
        %v8913 = vmul.f32 %v3398, %v7397
        %v8914 = vmul.f32 %v3607, %v7412
        %v8915 = vmul.f32 %v3816, %v7427
        %v8916 = vmul.f32 %v3192, %v7442
        %v8917 = vmul.f32 %v3401, %v7457
        %v8918 = vmul.f32 %v3610, %v7472
        %v8919 = vmul.f32 %v3819, %v7487
        %v8920 = vmul.f32 %v3195, %v7502
        %v8921 = vmul.f32 %v3404, %v7517
        %v8922 = vmul.f32 %v3613, %v7532
        %v8923 = vmul.f32 %v3822, %v7547
        %v8924 = vmul.f32 %v3198, %v7562
        %v8925 = vmul.f32 %v3407, %v7577
        %v8926 = vmul.f32 %v3616, %v7592
        %v8927 = vmul.f32 %v3825, %v7607
        %v8928 = vmul.f32 %v3201, %v7622
        %v8929 = vmul.f32 %v3410, %v7637
        %v8930 = vmul.f32 %v3619, %v7652
        %v8931 = vmul.f32 %v3828, %v7667
        %v8932 = vmul.f32 %v3204, %v7682
        %v8933 = vmul.f32 %v3413, %v7697
        %v8934 = vmul.f32 %v3622, %v7712
        %v8935 = vmul.f32 %v3831, %v7727
        %v8936 = vmul.f32 %v3207, %v7742
        %v8937 = vmul.f32 %v3416, %v7757
        %v8938 = vmul.f32 %v3625, %v7772
        %v8939 = vmul.f32 %v3834, %v7787
        %v8940 = vmul.f32 %v3210, %v7802
        %v8941 = vmul.f32 %v3419, %v7817
        %v8942 = vmul.f32 %v3628, %v7832
        %v8943 = vmul.f32 %v3837, %v7847
        %v8944 = vmul.f32 %v3213, %v7862
        %v8945 = vmul.f32 %v3422, %v7877
        %v8946 = vmul.f32 %v3631, %v7892
        %v8947 = vmul.f32 %v3840, %v7907
        %v8948 = vmul.f32 %v3216, %v7922
        %v8949 = vmul.f32 %v3425, %v7937
        %v8950 = vmul.f32 %v3634, %v7952
        %v8951 = vmul.f32 %v3843, %v7967
        %v8952 = vmul.f32 %v3219, %v7982
        %v8953 = vmul.f32 %v3428, %v7997
        %v8954 = vmul.f32 %v3637, %v8012
        %v8955 = vmul.f32 %v3846, %v8027
        %v8956 = vmul.f32 %v3222, %v8042
        %v8957 = vmul.f32 %v3431, %v8057
        %v8958 = vmul.f32 %v3640, %v8072
        %v8959 = vmul.f32 %v3849, %v8087
        %v8960 = vmul.f32 %v3225, %v8102
        %v8961 = vmul.f32 %v3434, %v8117
        %v8962 = vmul.f32 %v3643, %v8132
        %v8963 = vmul.f32 %v3852, %v8147
        %v8964 = vmul.f32 %v3228, %v8162
        %v8965 = vmul.f32 %v3437, %v8177
        %v8966 = vmul.f32 %v3646, %v8192
        %v8967 = vmul.f32 %v3855, %v8207
        %v8968 = vmul.f32 %v3231, %v8222
        %v8969 = vmul.f32 %v3440, %v8237
        %v8970 = vmul.f32 %v3649, %v8252
        %v8971 = vmul.f32 %v3858, %v8267
        %v8972 = vmul.f32 %v3234, %v8282
        %v8973 = vmul.f32 %v3443, %v8297
        %v8974 = vmul.f32 %v3652, %v8312
        %v8975 = vmul.f32 %v3861, %v8327
        %v8976 = vmul.f32 %v3237, %v8342
        %v8977 = vmul.f32 %v3446, %v8357
        %v8978 = vmul.f32 %v3655, %v8372
        %v8979 = vmul.f32 %v3864, %v8387
        %v8980 = vmul.f32 %v3240, %v8402
        %v8981 = vmul.f32 %v3449, %v8417
        %v8982 = vmul.f32 %v3658, %v8432
        %v8983 = vmul.f32 %v3867, %v8447
        %v8984 = vmul.f32 %v3243, %v8462
        %v8985 = vmul.f32 %v3452, %v8477
        %v8986 = vmul.f32 %v3661, %v8492
        %v8987 = vmul.f32 %v3870, %v8507
        %v8988 = vmul.f32 %v3246, %v8522
        %v8989 = vmul.f32 %v3455, %v8537
        %v8990 = vmul.f32 %v3664, %v8552
        %v8991 = vmul.f32 %v3873, %v8567
        %v8992 = vmul.f32 %v3249, %v8582
        %v8993 = vmul.f32 %v3458, %v8597
        %v8994 = vmul.f32 %v3667, %v8612
        %v8995 = vmul.f32 %v3876, %v8627
        %v8996 = vmul.f32 %v3252, %v8642
        %v8997 = vmul.f32 %v3461, %v8657
        %v8998 = vmul.f32 %v3670, %v8672
        %v8999 = vmul.f32 %v3879, %v8687
        %v9000 = vmul.f32 %v3255, %v8702
        %v9001 = vmul.f32 %v3464, %v8717
        %v9002 = vmul.f32 %v3673, %v8732
        %v9003 = vmul.f32 %v3882, %v8747
        %v9004 = vmul.f32 %v2166, %v8748
        %v9005 = vmul.f32 %v2375, %v8749
        %v9006 = vmul.f32 %v2584, %v8750
        %v9007 = vmul.f32 %v2793, %v8751
        %v9008 = vmul.f32 %v2169, %v8752
        %v9009 = vmul.f32 %v2378, %v8753
        %v9010 = vmul.f32 %v2587, %v8754
        %v9011 = vmul.f32 %v2796, %v8755
        %v9012 = vmul.f32 %v2172, %v8756
        %v9013 = vmul.f32 %v2381, %v8757
        %v9014 = vmul.f32 %v2590, %v8758
        %v9015 = vmul.f32 %v2799, %v8759
        %v9016 = vmul.f32 %v2175, %v8760
        %v9017 = vmul.f32 %v2384, %v8761
        %v9018 = vmul.f32 %v2593, %v8762
        %v9019 = vmul.f32 %v2802, %v8763
        %v9020 = vmul.f32 %v2178, %v8764
        %v9021 = vmul.f32 %v2387, %v8765
        %v9022 = vmul.f32 %v2596, %v8766
        %v9023 = vmul.f32 %v2805, %v8767
        %v9024 = vmul.f32 %v2181, %v8768
        %v9025 = vmul.f32 %v2390, %v8769
        %v9026 = vmul.f32 %v2599, %v8770
        %v9027 = vmul.f32 %v2808, %v8771
        %v9028 = vmul.f32 %v2184, %v8772
        %v9029 = vmul.f32 %v2393, %v8773
        %v9030 = vmul.f32 %v2602, %v8774
        %v9031 = vmul.f32 %v2811, %v8775
        %v9032 = vmul.f32 %v2187, %v8776
        %v9033 = vmul.f32 %v2396, %v8777
        %v9034 = vmul.f32 %v2605, %v8778
        %v9035 = vmul.f32 %v2814, %v8779
        %v9036 = vmul.f32 %v2190, %v8780
        %v9037 = vmul.f32 %v2399, %v8781
        %v9038 = vmul.f32 %v2608, %v8782
        %v9039 = vmul.f32 %v2817, %v8783
        %v9040 = vmul.f32 %v2193, %v8784
        %v9041 = vmul.f32 %v2402, %v8785
        %v9042 = vmul.f32 %v2611, %v8786
        %v9043 = vmul.f32 %v2820, %v8787
        %v9044 = vmul.f32 %v2196, %v8788
        %v9045 = vmul.f32 %v2405, %v8789
        %v9046 = vmul.f32 %v2614, %v8790
        %v9047 = vmul.f32 %v2823, %v8791
        %v9048 = vmul.f32 %v2199, %v8792
        %v9049 = vmul.f32 %v2408, %v8793
        %v9050 = vmul.f32 %v2617, %v8794
        %v9051 = vmul.f32 %v2826, %v8795
        %v9052 = vmul.f32 %v2202, %v8796
        %v9053 = vmul.f32 %v2411, %v8797
        %v9054 = vmul.f32 %v2620, %v8798
        %v9055 = vmul.f32 %v2829, %v8799
        %v9056 = vmul.f32 %v2205, %v8800
        %v9057 = vmul.f32 %v2414, %v8801
        %v9058 = vmul.f32 %v2623, %v8802
        %v9059 = vmul.f32 %v2832, %v8803
        %v9060 = vmul.f32 %v2208, %v8804
        %v9061 = vmul.f32 %v2417, %v8805
        %v9062 = vmul.f32 %v2626, %v8806
        %v9063 = vmul.f32 %v2835, %v8807
        %v9064 = vmul.f32 %v2211, %v8808
        %v9065 = vmul.f32 %v2420, %v8809
        %v9066 = vmul.f32 %v2629, %v8810
        %v9067 = vmul.f32 %v2838, %v8811
        %v9068 = vmul.f32 %v2214, %v8812
        %v9069 = vmul.f32 %v2423, %v8813
        %v9070 = vmul.f32 %v2632, %v8814
        %v9071 = vmul.f32 %v2841, %v8815
        %v9072 = vmul.f32 %v2217, %v8816
        %v9073 = vmul.f32 %v2426, %v8817
        %v9074 = vmul.f32 %v2635, %v8818
        %v9075 = vmul.f32 %v2844, %v8819
        %v9076 = vmul.f32 %v2220, %v8820
        %v9077 = vmul.f32 %v2429, %v8821
        %v9078 = vmul.f32 %v2638, %v8822
        %v9079 = vmul.f32 %v2847, %v8823
        %v9080 = vmul.f32 %v2223, %v8824
        %v9081 = vmul.f32 %v2432, %v8825
        %v9082 = vmul.f32 %v2641, %v8826
        %v9083 = vmul.f32 %v2850, %v8827
        %v9084 = vmul.f32 %v2226, %v8828
        %v9085 = vmul.f32 %v2435, %v8829
        %v9086 = vmul.f32 %v2644, %v8830
        %v9087 = vmul.f32 %v2853, %v8831
        %v9088 = vmul.f32 %v2229, %v8832
        %v9089 = vmul.f32 %v2438, %v8833
        %v9090 = vmul.f32 %v2647, %v8834
        %v9091 = vmul.f32 %v2856, %v8835
        %v9092 = vmul.f32 %v2232, %v8836
        %v9093 = vmul.f32 %v2441, %v8837
        %v9094 = vmul.f32 %v2650, %v8838
        %v9095 = vmul.f32 %v2859, %v8839
        %v9096 = vmul.f32 %v2235, %v8840
        %v9097 = vmul.f32 %v2444, %v8841
        %v9098 = vmul.f32 %v2653, %v8842
        %v9099 = vmul.f32 %v2862, %v8843
        %v9100 = vmul.f32 %v2238, %v8844
        %v9101 = vmul.f32 %v2447, %v8845
        %v9102 = vmul.f32 %v2656, %v8846
        %v9103 = vmul.f32 %v2865, %v8847
        %v9104 = vmul.f32 %v2241, %v8848
        %v9105 = vmul.f32 %v2450, %v8849
        %v9106 = vmul.f32 %v2659, %v8850
        %v9107 = vmul.f32 %v2868, %v8851
        %v9108 = vmul.f32 %v2244, %v8852
        %v9109 = vmul.f32 %v2453, %v8853
        %v9110 = vmul.f32 %v2662, %v8854
        %v9111 = vmul.f32 %v2871, %v8855
        %v9112 = vmul.f32 %v2247, %v8856
        %v9113 = vmul.f32 %v2456, %v8857
        %v9114 = vmul.f32 %v2665, %v8858
        %v9115 = vmul.f32 %v2874, %v8859
        %v9116 = vmul.f32 %v2250, %v8860
        %v9117 = vmul.f32 %v2459, %v8861
        %v9118 = vmul.f32 %v2668, %v8862
        %v9119 = vmul.f32 %v2877, %v8863
        %v9120 = vmul.f32 %v2253, %v8864
        %v9121 = vmul.f32 %v2462, %v8865
        %v9122 = vmul.f32 %v2671, %v8866
        %v9123 = vmul.f32 %v2880, %v8867
        %v9124 = vmul.f32 %v2256, %v8868
        %v9125 = vmul.f32 %v2465, %v8869
        %v9126 = vmul.f32 %v2674, %v8870
        %v9127 = vmul.f32 %v2883, %v8871
        %v9128 = vmul.f32 %v2259, %v8872
        %v9129 = vmul.f32 %v2468, %v8873
        %v9130 = vmul.f32 %v2677, %v8874
        %v9131 = vmul.f32 %v2886, %v8875
        %v9132 = vmul.f32 %v2262, %v8876
        %v9133 = vmul.f32 %v2471, %v8877
        %v9134 = vmul.f32 %v2680, %v8878
        %v9135 = vmul.f32 %v2889, %v8879
        %v9136 = vmul.f32 %v2265, %v8880
        %v9137 = vmul.f32 %v2474, %v8881
        %v9138 = vmul.f32 %v2683, %v8882
        %v9139 = vmul.f32 %v2892, %v8883
        %v9140 = vmul.f32 %v2268, %v8884
        %v9141 = vmul.f32 %v2477, %v8885
        %v9142 = vmul.f32 %v2686, %v8886
        %v9143 = vmul.f32 %v2895, %v8887
        %v9144 = vmul.f32 %v2271, %v8888
        %v9145 = vmul.f32 %v2480, %v8889
        %v9146 = vmul.f32 %v2689, %v8890
        %v9147 = vmul.f32 %v2898, %v8891
        %v9148 = vmul.f32 %v2274, %v8892
        %v9149 = vmul.f32 %v2483, %v8893
        %v9150 = vmul.f32 %v2692, %v8894
        %v9151 = vmul.f32 %v2901, %v8895
        %v9152 = vmul.f32 %v2277, %v8896
        %v9153 = vmul.f32 %v2486, %v8897
        %v9154 = vmul.f32 %v2695, %v8898
        %v9155 = vmul.f32 %v2904, %v8899
        %v9156 = vmul.f32 %v2280, %v8900
        %v9157 = vmul.f32 %v2489, %v8901
        %v9158 = vmul.f32 %v2698, %v8902
        %v9159 = vmul.f32 %v2907, %v8903
        %v9160 = vmul.f32 %v2283, %v8904
        %v9161 = vmul.f32 %v2492, %v8905
        %v9162 = vmul.f32 %v2701, %v8906
        %v9163 = vmul.f32 %v2910, %v8907
        %v9164 = vmul.f32 %v2286, %v8908
        %v9165 = vmul.f32 %v2495, %v8909
        %v9166 = vmul.f32 %v2704, %v8910
        %v9167 = vmul.f32 %v2913, %v8911
        %v9168 = vmul.f32 %v2289, %v8912
        %v9169 = vmul.f32 %v2498, %v8913
        %v9170 = vmul.f32 %v2707, %v8914
        %v9171 = vmul.f32 %v2916, %v8915
        %v9172 = vmul.f32 %v2292, %v8916
        %v9173 = vmul.f32 %v2501, %v8917
        %v9174 = vmul.f32 %v2710, %v8918
        %v9175 = vmul.f32 %v2919, %v8919
        %v9176 = vmul.f32 %v2295, %v8920
        %v9177 = vmul.f32 %v2504, %v8921
        %v9178 = vmul.f32 %v2713, %v8922
        %v9179 = vmul.f32 %v2922, %v8923
        %v9180 = vmul.f32 %v2298, %v8924
        %v9181 = vmul.f32 %v2507, %v8925
        %v9182 = vmul.f32 %v2716, %v8926
        %v9183 = vmul.f32 %v2925, %v8927
        %v9184 = vmul.f32 %v2301, %v8928
        %v9185 = vmul.f32 %v2510, %v8929
        %v9186 = vmul.f32 %v2719, %v8930
        %v9187 = vmul.f32 %v2928, %v8931
        %v9188 = vmul.f32 %v2304, %v8932
        %v9189 = vmul.f32 %v2513, %v8933
        %v9190 = vmul.f32 %v2722, %v8934
        %v9191 = vmul.f32 %v2931, %v8935
        %v9192 = vmul.f32 %v2307, %v8936
        %v9193 = vmul.f32 %v2516, %v8937
        %v9194 = vmul.f32 %v2725, %v8938
        %v9195 = vmul.f32 %v2934, %v8939
        %v9196 = vmul.f32 %v2310, %v8940
        %v9197 = vmul.f32 %v2519, %v8941
        %v9198 = vmul.f32 %v2728, %v8942
        %v9199 = vmul.f32 %v2937, %v8943
        %v9200 = vmul.f32 %v2313, %v8944
        %v9201 = vmul.f32 %v2522, %v8945
        %v9202 = vmul.f32 %v2731, %v8946
        %v9203 = vmul.f32 %v2940, %v8947
        %v9204 = vmul.f32 %v2316, %v8948
        %v9205 = vmul.f32 %v2525, %v8949
        %v9206 = vmul.f32 %v2734, %v8950
        %v9207 = vmul.f32 %v2943, %v8951
        %v9208 = vmul.f32 %v2319, %v8952
        %v9209 = vmul.f32 %v2528, %v8953
        %v9210 = vmul.f32 %v2737, %v8954
        %v9211 = vmul.f32 %v2946, %v8955
        %v9212 = vmul.f32 %v2322, %v8956
        %v9213 = vmul.f32 %v2531, %v8957
        %v9214 = vmul.f32 %v2740, %v8958
        %v9215 = vmul.f32 %v2949, %v8959
        %v9216 = vmul.f32 %v2325, %v8960
        %v9217 = vmul.f32 %v2534, %v8961
        %v9218 = vmul.f32 %v2743, %v8962
        %v9219 = vmul.f32 %v2952, %v8963
        %v9220 = vmul.f32 %v2328, %v8964
        %v9221 = vmul.f32 %v2537, %v8965
        %v9222 = vmul.f32 %v2746, %v8966
        %v9223 = vmul.f32 %v2955, %v8967
        %v9224 = vmul.f32 %v2331, %v8968
        %v9225 = vmul.f32 %v2540, %v8969
        %v9226 = vmul.f32 %v2749, %v8970
        %v9227 = vmul.f32 %v2958, %v8971
        %v9228 = vmul.f32 %v2334, %v8972
        %v9229 = vmul.f32 %v2543, %v8973
        %v9230 = vmul.f32 %v2752, %v8974
        %v9231 = vmul.f32 %v2961, %v8975
        %v9232 = vmul.f32 %v2337, %v8976
        %v9233 = vmul.f32 %v2546, %v8977
        %v9234 = vmul.f32 %v2755, %v8978
        %v9235 = vmul.f32 %v2964, %v8979
        %v9236 = vmul.f32 %v2340, %v8980
        %v9237 = vmul.f32 %v2549, %v8981
        %v9238 = vmul.f32 %v2758, %v8982
        %v9239 = vmul.f32 %v2967, %v8983
        %v9240 = vmul.f32 %v2343, %v8984
        %v9241 = vmul.f32 %v2552, %v8985
        %v9242 = vmul.f32 %v2761, %v8986
        %v9243 = vmul.f32 %v2970, %v8987
        %v9244 = vmul.f32 %v2346, %v8988
        %v9245 = vmul.f32 %v2555, %v8989
        %v9246 = vmul.f32 %v2764, %v8990
        %v9247 = vmul.f32 %v2973, %v8991
        %v9248 = vmul.f32 %v2349, %v8992
        %v9249 = vmul.f32 %v2558, %v8993
        %v9250 = vmul.f32 %v2767, %v8994
        %v9251 = vmul.f32 %v2976, %v8995
        %v9252 = vmul.f32 %v2352, %v8996
        %v9253 = vmul.f32 %v2561, %v8997
        %v9254 = vmul.f32 %v2770, %v8998
        %v9255 = vmul.f32 %v2979, %v8999
        %v9256 = vmul.f32 %v2355, %v9000
        %v9257 = vmul.f32 %v2564, %v9001
        %v9258 = vmul.f32 %v2773, %v9002
        %v9259 = vmul.f32 %v2982, %v9003
        %v9260 = vld [vmem:[#allocation3] sm:$0xff]
        %v9261 = vld [vmem:[#allocation3 + $0x8] sm:$0xff]
        %v9262 = vld [vmem:[#allocation3 + $0x10] sm:$0xff]
        %v9263 = vld [vmem:[#allocation3 + $0x18] sm:$0xff]
        %v9264 = vld [vmem:[#allocation3 + $0x20] sm:$0xff]
        %v9265 = vld [vmem:[#allocation3 + $0x28] sm:$0xff]
        %v9266 = vld [vmem:[#allocation3 + $0x30] sm:$0xff]
        %v9267 = vld [vmem:[#allocation3 + $0x38] sm:$0xff]
        %v9268 = vld [vmem:[#allocation3 + $0x40] sm:$0xff]
        %v9269 = vld [vmem:[#allocation3 + $0x48] sm:$0xff]
        %v9270 = vld [vmem:[#allocation3 + $0x50] sm:$0xff]
        %v9271 = vld [vmem:[#allocation3 + $0x58] sm:$0xff]
        %v9272 = vld [vmem:[#allocation3 + $0x60] sm:$0xff]
        %v9273 = vld [vmem:[#allocation3 + $0x68] sm:$0xff]
        %v9274 = vld [vmem:[#allocation3 + $0x70] sm:$0xff]
        %v9275 = vld [vmem:[#allocation3 + $0x78] sm:$0xff]
        %v9276 = vld [vmem:[#allocation3 + $0x80] sm:$0xff]
        %v9277 = vld [vmem:[#allocation3 + $0x88] sm:$0xff]
        %v9278 = vld [vmem:[#allocation3 + $0x90] sm:$0xff]
        %v9279 = vld [vmem:[#allocation3 + $0x98] sm:$0xff]
        %v9280 = vld [vmem:[#allocation3 + $0xa0] sm:$0xff]
        %v9281 = vld [vmem:[#allocation3 + $0xa8] sm:$0xff]
        %v9282 = vld [vmem:[#allocation3 + $0xb0] sm:$0xff]
        %v9283 = vld [vmem:[#allocation3 + $0xb8] sm:$0xff]
        %v9284 = vld [vmem:[#allocation3 + $0xc0] sm:$0xff]
        %v9285 = vld [vmem:[#allocation3 + $0xc8] sm:$0xff]
        %v9286 = vld [vmem:[#allocation3 + $0xd0] sm:$0xff]
        %v9287 = vld [vmem:[#allocation3 + $0xd8] sm:$0xff]
        %v9288 = vld [vmem:[#allocation3 + $0xe0] sm:$0xff]
        %v9289 = vld [vmem:[#allocation3 + $0xe8] sm:$0xff]
        %v9290 = vld [vmem:[#allocation3 + $0xf0] sm:$0xff]
        %v9291 = vld [vmem:[#allocation3 + $0xf8] sm:$0xff]
        %v9292 = vld [vmem:[#allocation3 + $0x100] sm:$0xff]
        %v9293 = vld [vmem:[#allocation3 + $0x108] sm:$0xff]
        %v9294 = vld [vmem:[#allocation3 + $0x110] sm:$0xff]
        %v9295 = vld [vmem:[#allocation3 + $0x118] sm:$0xff]
        %v9296 = vld [vmem:[#allocation3 + $0x120] sm:$0xff]
        %v9297 = vld [vmem:[#allocation3 + $0x128] sm:$0xff]
        %v9298 = vld [vmem:[#allocation3 + $0x130] sm:$0xff]
        %v9299 = vld [vmem:[#allocation3 + $0x138] sm:$0xff]
        %v9300 = vld [vmem:[#allocation3 + $0x140] sm:$0xff]
        %v9301 = vld [vmem:[#allocation3 + $0x148] sm:$0xff]
        %v9302 = vld [vmem:[#allocation3 + $0x150] sm:$0xff]
        %v9303 = vld [vmem:[#allocation3 + $0x158] sm:$0xff]
        %v9304 = vld [vmem:[#allocation3 + $0x160] sm:$0xff]
        %v9305 = vld [vmem:[#allocation3 + $0x168] sm:$0xff]
        %v9306 = vld [vmem:[#allocation3 + $0x170] sm:$0xff]
        %v9307 = vld [vmem:[#allocation3 + $0x178] sm:$0xff]
        %v9308 = vld [vmem:[#allocation3 + $0x180] sm:$0xff]
        %v9309 = vld [vmem:[#allocation3 + $0x188] sm:$0xff]
        %v9310 = vld [vmem:[#allocation3 + $0x190] sm:$0xff]
        %v9311 = vld [vmem:[#allocation3 + $0x198] sm:$0xff]
        %v9312 = vld [vmem:[#allocation3 + $0x1a0] sm:$0xff]
        %v9313 = vld [vmem:[#allocation3 + $0x1a8] sm:$0xff]
        %v9314 = vld [vmem:[#allocation3 + $0x1b0] sm:$0xff]
        %v9315 = vld [vmem:[#allocation3 + $0x1b8] sm:$0xff]
        %v9316 = vld [vmem:[#allocation3 + $0x1c0] sm:$0xff]
        %v9317 = vld [vmem:[#allocation3 + $0x1c8] sm:$0xff]
        %v9318 = vld [vmem:[#allocation3 + $0x1d0] sm:$0xff]
        %v9319 = vld [vmem:[#allocation3 + $0x1d8] sm:$0xff]
        %v9320 = vld [vmem:[#allocation3 + $0x1e0] sm:$0xff]
        %v9321 = vld [vmem:[#allocation3 + $0x1e8] sm:$0xff]
        %v9322 = vld [vmem:[#allocation3 + $0x1f0] sm:$0xff]
        %v9323 = vld [vmem:[#allocation3 + $0x1f8] sm:$0xff]
        %v9324 = vld [vmem:[%s360] sm:$0xff]
        %v9325 = vld [vmem:[%s360 + $0x8] sm:$0xff]
        %v9326 = vld [vmem:[%s360 + $0x10] sm:$0xff]
        %v9327 = vld [vmem:[%s360 + $0x18] sm:$0xff]
        %v9328 = vld [vmem:[%s360 + $0x20] sm:$0xff]
        %v9329 = vld [vmem:[%s360 + $0x28] sm:$0xff]
        %v9330 = vld [vmem:[%s360 + $0x30] sm:$0xff]
        %v9331 = vld [vmem:[%s360 + $0x38] sm:$0xff]
        %v9332 = vld [vmem:[%s360 + $0x40] sm:$0xff]
        %v9333 = vld [vmem:[%s360 + $0x48] sm:$0xff]
        %v9334 = vld [vmem:[%s360 + $0x50] sm:$0xff]
        %v9335 = vld [vmem:[%s360 + $0x58] sm:$0xff]
        %v9336 = vld [vmem:[%s360 + $0x60] sm:$0xff]
        %v9337 = vld [vmem:[%s360 + $0x68] sm:$0xff]
        %v9338 = vld [vmem:[%s360 + $0x70] sm:$0xff]
        %v9339 = vld [vmem:[%s360 + $0x78] sm:$0xff]
        %v9340 = vld [vmem:[%s360 + $0x80] sm:$0xff]
        %v9341 = vld [vmem:[%s360 + $0x88] sm:$0xff]
        %v9342 = vld [vmem:[%s360 + $0x90] sm:$0xff]
        %v9343 = vld [vmem:[%s360 + $0x98] sm:$0xff]
        %v9344 = vld [vmem:[%s360 + $0xa0] sm:$0xff]
        %v9345 = vld [vmem:[%s360 + $0xa8] sm:$0xff]
        %v9346 = vld [vmem:[%s360 + $0xb0] sm:$0xff]
        %v9347 = vld [vmem:[%s360 + $0xb8] sm:$0xff]
        %v9348 = vld [vmem:[%s360 + $0xc0] sm:$0xff]
        %v9349 = vld [vmem:[%s360 + $0xc8] sm:$0xff]
        %v9350 = vld [vmem:[%s360 + $0xd0] sm:$0xff]
        %v9351 = vld [vmem:[%s360 + $0xd8] sm:$0xff]
        %v9352 = vld [vmem:[%s360 + $0xe0] sm:$0xff]
        %v9353 = vld [vmem:[%s360 + $0xe8] sm:$0xff]
        %v9354 = vld [vmem:[%s360 + $0xf0] sm:$0xff]
        %v9355 = vld [vmem:[%s360 + $0xf8] sm:$0xff]
        %v9356 = vld [vmem:[%s360 + $0x100] sm:$0xff]
        %v9357 = vld [vmem:[%s360 + $0x108] sm:$0xff]
        %v9358 = vld [vmem:[%s360 + $0x110] sm:$0xff]
        %v9359 = vld [vmem:[%s360 + $0x118] sm:$0xff]
        %v9360 = vld [vmem:[%s360 + $0x120] sm:$0xff]
        %v9361 = vld [vmem:[%s360 + $0x128] sm:$0xff]
        %v9362 = vld [vmem:[%s360 + $0x130] sm:$0xff]
        %v9363 = vld [vmem:[%s360 + $0x138] sm:$0xff]
        %v9364 = vld [vmem:[%s360 + $0x140] sm:$0xff]
        %v9365 = vld [vmem:[%s360 + $0x148] sm:$0xff]
        %v9366 = vld [vmem:[%s360 + $0x150] sm:$0xff]
        %v9367 = vld [vmem:[%s360 + $0x158] sm:$0xff]
        %v9368 = vld [vmem:[%s360 + $0x160] sm:$0xff]
        %v9369 = vld [vmem:[%s360 + $0x168] sm:$0xff]
        %v9370 = vld [vmem:[%s360 + $0x170] sm:$0xff]
        %v9371 = vld [vmem:[%s360 + $0x178] sm:$0xff]
        %v9372 = vld [vmem:[%s360 + $0x180] sm:$0xff]
        %v9373 = vld [vmem:[%s360 + $0x188] sm:$0xff]
        %v9374 = vld [vmem:[%s360 + $0x190] sm:$0xff]
        %v9375 = vld [vmem:[%s360 + $0x198] sm:$0xff]
        %v9376 = vld [vmem:[%s360 + $0x1a0] sm:$0xff]
        %v9377 = vld [vmem:[%s360 + $0x1a8] sm:$0xff]
        %v9378 = vld [vmem:[%s360 + $0x1b0] sm:$0xff]
        %v9379 = vld [vmem:[%s360 + $0x1b8] sm:$0xff]
        %v9380 = vld [vmem:[%s360 + $0x1c0] sm:$0xff]
        %v9381 = vld [vmem:[%s360 + $0x1c8] sm:$0xff]
        %v9382 = vld [vmem:[%s360 + $0x1d0] sm:$0xff]
        %v9383 = vld [vmem:[%s360 + $0x1d8] sm:$0xff]
        %v9384 = vld [vmem:[%s360 + $0x1e0] sm:$0xff]
        %v9385 = vld [vmem:[%s360 + $0x1e8] sm:$0xff]
        %v9386 = vld [vmem:[%s360 + $0x1f0] sm:$0xff]
        %v9387 = vld [vmem:[%s360 + $0x1f8] sm:$0xff]
        %9388 = vmatpush.msra.mxu0 %v9339
        %9389 = vmatpush.msra.mxu0 %v9338
        %9390 = vmatpush.msra.mxu0 %v9337
        %9391 = vmatpush.msra.mxu0 %v9336
        %9392 = vmatpush.msra.mxu0 %v9335
        %9393 = vmatpush.msra.mxu0 %v9334
        %9394 = vmatpush.msra.mxu0 %v9333
        %9395 = vmatpush.msra.mxu0 %v9332
        %9396 = vmatpush.msra.mxu0 %v9331
        %9397 = vmatpush.msra.mxu0 %v9330
        %9398 = vmatpush.msra.mxu0 %v9329
        %9399 = vmatpush.msra.mxu0 %v9328
        %9400 = vmatpush.msra.mxu0 %v9327
        %9401 = vmatpush.msra.mxu0 %v9326
        %9402 = vmatpush.msra.mxu0 %v9325
        %9403 = vmatpush.msra.mxu0 %v9324
        %9404 = vmatmul.f32.gmra.mxu0 %v9004
        %v9405 = vpop.f32.mrf.mxu0
        %v9406 = vadd.f32 0.0, %v9405
        %9407 = vmatmul.f32.gmra.mxu0 %v9008
        %v9408 = vpop.f32.mrf.mxu0
        %v9409 = vadd.f32 0.0, %v9408
        %9410 = vmatmul.f32.gmra.mxu0 %v9012
        %v9411 = vpop.f32.mrf.mxu0
        %v9412 = vadd.f32 0.0, %v9411
        %9413 = vmatmul.f32.gmra.mxu0 %v9016
        %v9414 = vpop.f32.mrf.mxu0
        %v9415 = vadd.f32 0.0, %v9414
        %9416 = vmatmul.f32.gmra.mxu0 %v9020
        %v9417 = vpop.f32.mrf.mxu0
        %v9418 = vadd.f32 0.0, %v9417
        %9419 = vmatmul.f32.gmra.mxu0 %v9024
        %v9420 = vpop.f32.mrf.mxu0
        %v9421 = vadd.f32 0.0, %v9420
        %9422 = vmatmul.f32.gmra.mxu0 %v9028
        %v9423 = vpop.f32.mrf.mxu0
        %v9424 = vadd.f32 0.0, %v9423
        %9425 = vmatmul.f32.gmra.mxu0 %v9032
        %v9426 = vpop.f32.mrf.mxu0
        %v9427 = vadd.f32 0.0, %v9426
        %9428 = vmatmul.f32.gmra.mxu0 %v9036
        %v9429 = vpop.f32.mrf.mxu0
        %v9430 = vadd.f32 0.0, %v9429
        %9431 = vmatmul.f32.gmra.mxu0 %v9040
        %v9432 = vpop.f32.mrf.mxu0
        %v9433 = vadd.f32 0.0, %v9432
        %9434 = vmatmul.f32.gmra.mxu0 %v9044
        %v9435 = vpop.f32.mrf.mxu0
        %v9436 = vadd.f32 0.0, %v9435
        %9437 = vmatmul.f32.gmra.mxu0 %v9048
        %v9438 = vpop.f32.mrf.mxu0
        %v9439 = vadd.f32 0.0, %v9438
        %9440 = vmatmul.f32.gmra.mxu0 %v9052
        %v9441 = vpop.f32.mrf.mxu0
        %v9442 = vadd.f32 0.0, %v9441
        %9443 = vmatmul.f32.gmra.mxu0 %v9056
        %v9444 = vpop.f32.mrf.mxu0
        %v9445 = vadd.f32 0.0, %v9444
        %9446 = vmatmul.f32.gmra.mxu0 %v9060
        %v9447 = vpop.f32.mrf.mxu0
        %v9448 = vadd.f32 0.0, %v9447
        %9449 = vmatmul.f32.gmra.mxu0 %v9064
        %v9450 = vpop.f32.mrf.mxu0
        %v9451 = vadd.f32 0.0, %v9450
        %9452 = vmatmul.f32.gmra.mxu0 %v9068
        %v9453 = vpop.f32.mrf.mxu0
        %v9454 = vadd.f32 0.0, %v9453
        %9455 = vmatmul.f32.gmra.mxu0 %v9072
        %v9456 = vpop.f32.mrf.mxu0
        %v9457 = vadd.f32 0.0, %v9456
        %9458 = vmatmul.f32.gmra.mxu0 %v9076
        %v9459 = vpop.f32.mrf.mxu0
        %v9460 = vadd.f32 0.0, %v9459
        %9461 = vmatmul.f32.gmra.mxu0 %v9080
        %v9462 = vpop.f32.mrf.mxu0
        %v9463 = vadd.f32 0.0, %v9462
        %9464 = vmatmul.f32.gmra.mxu0 %v9084
        %v9465 = vpop.f32.mrf.mxu0
        %v9466 = vadd.f32 0.0, %v9465
        %9467 = vmatmul.f32.gmra.mxu0 %v9088
        %v9468 = vpop.f32.mrf.mxu0
        %v9469 = vadd.f32 0.0, %v9468
        %9470 = vmatmul.f32.gmra.mxu0 %v9092
        %v9471 = vpop.f32.mrf.mxu0
        %v9472 = vadd.f32 0.0, %v9471
        %9473 = vmatmul.f32.gmra.mxu0 %v9096
        %v9474 = vpop.f32.mrf.mxu0
        %v9475 = vadd.f32 0.0, %v9474
        %9476 = vmatmul.f32.gmra.mxu0 %v9100
        %v9477 = vpop.f32.mrf.mxu0
        %v9478 = vadd.f32 0.0, %v9477
        %9479 = vmatmul.f32.gmra.mxu0 %v9104
        %v9480 = vpop.f32.mrf.mxu0
        %v9481 = vadd.f32 0.0, %v9480
        %9482 = vmatmul.f32.gmra.mxu0 %v9108
        %v9483 = vpop.f32.mrf.mxu0
        %v9484 = vadd.f32 0.0, %v9483
        %9485 = vmatmul.f32.gmra.mxu0 %v9112
        %v9486 = vpop.f32.mrf.mxu0
        %v9487 = vadd.f32 0.0, %v9486
        %9488 = vmatmul.f32.gmra.mxu0 %v9116
        %v9489 = vpop.f32.mrf.mxu0
        %v9490 = vadd.f32 0.0, %v9489
        %9491 = vmatmul.f32.gmra.mxu0 %v9120
        %v9492 = vpop.f32.mrf.mxu0
        %v9493 = vadd.f32 0.0, %v9492
        %9494 = vmatmul.f32.gmra.mxu0 %v9124
        %v9495 = vpop.f32.mrf.mxu0
        %v9496 = vadd.f32 0.0, %v9495
        %9497 = vmatmul.f32.gmra.mxu0 %v9128
        %v9498 = vpop.f32.mrf.mxu0
        %v9499 = vadd.f32 0.0, %v9498
        %9500 = vmatmul.f32.gmra.mxu0 %v9132
        %v9501 = vpop.f32.mrf.mxu0
        %v9502 = vadd.f32 0.0, %v9501
        %9503 = vmatmul.f32.gmra.mxu0 %v9136
        %v9504 = vpop.f32.mrf.mxu0
        %v9505 = vadd.f32 0.0, %v9504
        %9506 = vmatmul.f32.gmra.mxu0 %v9140
        %v9507 = vpop.f32.mrf.mxu0
        %v9508 = vadd.f32 0.0, %v9507
        %9509 = vmatmul.f32.gmra.mxu0 %v9144
        %v9510 = vpop.f32.mrf.mxu0
        %v9511 = vadd.f32 0.0, %v9510
        %9512 = vmatmul.f32.gmra.mxu0 %v9148
        %v9513 = vpop.f32.mrf.mxu0
        %v9514 = vadd.f32 0.0, %v9513
        %9515 = vmatmul.f32.gmra.mxu0 %v9152
        %v9516 = vpop.f32.mrf.mxu0
        %v9517 = vadd.f32 0.0, %v9516
        %9518 = vmatmul.f32.gmra.mxu0 %v9156
        %v9519 = vpop.f32.mrf.mxu0
        %v9520 = vadd.f32 0.0, %v9519
        %9521 = vmatmul.f32.gmra.mxu0 %v9160
        %v9522 = vpop.f32.mrf.mxu0
        %v9523 = vadd.f32 0.0, %v9522
        %9524 = vmatmul.f32.gmra.mxu0 %v9164
        %v9525 = vpop.f32.mrf.mxu0
        %v9526 = vadd.f32 0.0, %v9525
        %9527 = vmatmul.f32.gmra.mxu0 %v9168
        %v9528 = vpop.f32.mrf.mxu0
        %v9529 = vadd.f32 0.0, %v9528
        %9530 = vmatmul.f32.gmra.mxu0 %v9172
        %v9531 = vpop.f32.mrf.mxu0
        %v9532 = vadd.f32 0.0, %v9531
        %9533 = vmatmul.f32.gmra.mxu0 %v9176
        %v9534 = vpop.f32.mrf.mxu0
        %v9535 = vadd.f32 0.0, %v9534
        %9536 = vmatmul.f32.gmra.mxu0 %v9180
        %v9537 = vpop.f32.mrf.mxu0
        %v9538 = vadd.f32 0.0, %v9537
        %9539 = vmatmul.f32.gmra.mxu0 %v9184
        %v9540 = vpop.f32.mrf.mxu0
        %v9541 = vadd.f32 0.0, %v9540
        %9542 = vmatmul.f32.gmra.mxu0 %v9188
        %v9543 = vpop.f32.mrf.mxu0
        %v9544 = vadd.f32 0.0, %v9543
        %9545 = vmatmul.f32.gmra.mxu0 %v9192
        %v9546 = vpop.f32.mrf.mxu0
        %v9547 = vadd.f32 0.0, %v9546
        %9548 = vmatmul.f32.gmra.mxu0 %v9196
        %v9549 = vpop.f32.mrf.mxu0
        %v9550 = vadd.f32 0.0, %v9549
        %9551 = vmatmul.f32.gmra.mxu0 %v9200
        %v9552 = vpop.f32.mrf.mxu0
        %v9553 = vadd.f32 0.0, %v9552
        %9554 = vmatmul.f32.gmra.mxu0 %v9204
        %v9555 = vpop.f32.mrf.mxu0
        %v9556 = vadd.f32 0.0, %v9555
        %9557 = vmatmul.f32.gmra.mxu0 %v9208
        %v9558 = vpop.f32.mrf.mxu0
        %v9559 = vadd.f32 0.0, %v9558
        %9560 = vmatmul.f32.gmra.mxu0 %v9212
        %v9561 = vpop.f32.mrf.mxu0
        %v9562 = vadd.f32 0.0, %v9561
        %9563 = vmatmul.f32.gmra.mxu0 %v9216
        %v9564 = vpop.f32.mrf.mxu0
        %v9565 = vadd.f32 0.0, %v9564
        %9566 = vmatmul.f32.gmra.mxu0 %v9220
        %v9567 = vpop.f32.mrf.mxu0
        %v9568 = vadd.f32 0.0, %v9567
        %9569 = vmatmul.f32.gmra.mxu0 %v9224
        %v9570 = vpop.f32.mrf.mxu0
        %v9571 = vadd.f32 0.0, %v9570
        %9572 = vmatmul.f32.gmra.mxu0 %v9228
        %v9573 = vpop.f32.mrf.mxu0
        %v9574 = vadd.f32 0.0, %v9573
        %9575 = vmatmul.f32.gmra.mxu0 %v9232
        %v9576 = vpop.f32.mrf.mxu0
        %v9577 = vadd.f32 0.0, %v9576
        %9578 = vmatmul.f32.gmra.mxu0 %v9236
        %v9579 = vpop.f32.mrf.mxu0
        %v9580 = vadd.f32 0.0, %v9579
        %9581 = vmatmul.f32.gmra.mxu0 %v9240
        %v9582 = vpop.f32.mrf.mxu0
        %v9583 = vadd.f32 0.0, %v9582
        %9584 = vmatmul.f32.gmra.mxu0 %v9244
        %v9585 = vpop.f32.mrf.mxu0
        %v9586 = vadd.f32 0.0, %v9585
        %9587 = vmatmul.f32.gmra.mxu0 %v9248
        %v9588 = vpop.f32.mrf.mxu0
        %v9589 = vadd.f32 0.0, %v9588
        %9590 = vmatmul.f32.gmra.mxu0 %v9252
        %v9591 = vpop.f32.mrf.mxu0
        %v9592 = vadd.f32 0.0, %v9591
        %9593 = vmatmul.f32.gmra.mxu0 %v9256
        %v9594 = vpop.f32.mrf.mxu0
        %v9595 = vadd.f32 0.0, %v9594
        %9596 = vdwg.mxu0
        %9597 = vmatpush.msra.mxu0 %v9355
        %9598 = vmatpush.msra.mxu0 %v9354
        %9599 = vmatpush.msra.mxu0 %v9353
        %9600 = vmatpush.msra.mxu0 %v9352
        %9601 = vmatpush.msra.mxu0 %v9351
        %9602 = vmatpush.msra.mxu0 %v9350
        %9603 = vmatpush.msra.mxu0 %v9349
        %9604 = vmatpush.msra.mxu0 %v9348
        %9605 = vmatpush.msra.mxu0 %v9347
        %9606 = vmatpush.msra.mxu0 %v9346
        %9607 = vmatpush.msra.mxu0 %v9345
        %9608 = vmatpush.msra.mxu0 %v9344
        %9609 = vmatpush.msra.mxu0 %v9343
        %9610 = vmatpush.msra.mxu0 %v9342
        %9611 = vmatpush.msra.mxu0 %v9341
        %9612 = vmatpush.msra.mxu0 %v9340
        %9613 = vmatmul.f32.gmra.mxu0 %v9005
        %v9614 = vpop.f32.mrf.mxu0
        %v9615 = vadd.f32 %v9406, %v9614
        %9616 = vmatmul.f32.gmra.mxu0 %v9009
        %v9617 = vpop.f32.mrf.mxu0
        %v9618 = vadd.f32 %v9409, %v9617
        %9619 = vmatmul.f32.gmra.mxu0 %v9013
        %v9620 = vpop.f32.mrf.mxu0
        %v9621 = vadd.f32 %v9412, %v9620
        %9622 = vmatmul.f32.gmra.mxu0 %v9017
        %v9623 = vpop.f32.mrf.mxu0
        %v9624 = vadd.f32 %v9415, %v9623
        %9625 = vmatmul.f32.gmra.mxu0 %v9021
        %v9626 = vpop.f32.mrf.mxu0
        %v9627 = vadd.f32 %v9418, %v9626
        %9628 = vmatmul.f32.gmra.mxu0 %v9025
        %v9629 = vpop.f32.mrf.mxu0
        %v9630 = vadd.f32 %v9421, %v9629
        %9631 = vmatmul.f32.gmra.mxu0 %v9029
        %v9632 = vpop.f32.mrf.mxu0
        %v9633 = vadd.f32 %v9424, %v9632
        %9634 = vmatmul.f32.gmra.mxu0 %v9033
        %v9635 = vpop.f32.mrf.mxu0
        %v9636 = vadd.f32 %v9427, %v9635
        %9637 = vmatmul.f32.gmra.mxu0 %v9037
        %v9638 = vpop.f32.mrf.mxu0
        %v9639 = vadd.f32 %v9430, %v9638
        %9640 = vmatmul.f32.gmra.mxu0 %v9041
        %v9641 = vpop.f32.mrf.mxu0
        %v9642 = vadd.f32 %v9433, %v9641
        %9643 = vmatmul.f32.gmra.mxu0 %v9045
        %v9644 = vpop.f32.mrf.mxu0
        %v9645 = vadd.f32 %v9436, %v9644
        %9646 = vmatmul.f32.gmra.mxu0 %v9049
        %v9647 = vpop.f32.mrf.mxu0
        %v9648 = vadd.f32 %v9439, %v9647
        %9649 = vmatmul.f32.gmra.mxu0 %v9053
        %v9650 = vpop.f32.mrf.mxu0
        %v9651 = vadd.f32 %v9442, %v9650
        %9652 = vmatmul.f32.gmra.mxu0 %v9057
        %v9653 = vpop.f32.mrf.mxu0
        %v9654 = vadd.f32 %v9445, %v9653
        %9655 = vmatmul.f32.gmra.mxu0 %v9061
        %v9656 = vpop.f32.mrf.mxu0
        %v9657 = vadd.f32 %v9448, %v9656
        %9658 = vmatmul.f32.gmra.mxu0 %v9065
        %v9659 = vpop.f32.mrf.mxu0
        %v9660 = vadd.f32 %v9451, %v9659
        %9661 = vmatmul.f32.gmra.mxu0 %v9069
        %v9662 = vpop.f32.mrf.mxu0
        %v9663 = vadd.f32 %v9454, %v9662
        %9664 = vmatmul.f32.gmra.mxu0 %v9073
        %v9665 = vpop.f32.mrf.mxu0
        %v9666 = vadd.f32 %v9457, %v9665
        %9667 = vmatmul.f32.gmra.mxu0 %v9077
        %v9668 = vpop.f32.mrf.mxu0
        %v9669 = vadd.f32 %v9460, %v9668
        %9670 = vmatmul.f32.gmra.mxu0 %v9081
        %v9671 = vpop.f32.mrf.mxu0
        %v9672 = vadd.f32 %v9463, %v9671
        %9673 = vmatmul.f32.gmra.mxu0 %v9085
        %v9674 = vpop.f32.mrf.mxu0
        %v9675 = vadd.f32 %v9466, %v9674
        %9676 = vmatmul.f32.gmra.mxu0 %v9089
        %v9677 = vpop.f32.mrf.mxu0
        %v9678 = vadd.f32 %v9469, %v9677
        %9679 = vmatmul.f32.gmra.mxu0 %v9093
        %v9680 = vpop.f32.mrf.mxu0
        %v9681 = vadd.f32 %v9472, %v9680
        %9682 = vmatmul.f32.gmra.mxu0 %v9097
        %v9683 = vpop.f32.mrf.mxu0
        %v9684 = vadd.f32 %v9475, %v9683
        %9685 = vmatmul.f32.gmra.mxu0 %v9101
        %v9686 = vpop.f32.mrf.mxu0
        %v9687 = vadd.f32 %v9478, %v9686
        %9688 = vmatmul.f32.gmra.mxu0 %v9105
        %v9689 = vpop.f32.mrf.mxu0
        %v9690 = vadd.f32 %v9481, %v9689
        %9691 = vmatmul.f32.gmra.mxu0 %v9109
        %v9692 = vpop.f32.mrf.mxu0
        %v9693 = vadd.f32 %v9484, %v9692
        %9694 = vmatmul.f32.gmra.mxu0 %v9113
        %v9695 = vpop.f32.mrf.mxu0
        %v9696 = vadd.f32 %v9487, %v9695
        %9697 = vmatmul.f32.gmra.mxu0 %v9117
        %v9698 = vpop.f32.mrf.mxu0
        %v9699 = vadd.f32 %v9490, %v9698
        %9700 = vmatmul.f32.gmra.mxu0 %v9121
        %v9701 = vpop.f32.mrf.mxu0
        %v9702 = vadd.f32 %v9493, %v9701
        %9703 = vmatmul.f32.gmra.mxu0 %v9125
        %v9704 = vpop.f32.mrf.mxu0
        %v9705 = vadd.f32 %v9496, %v9704
        %9706 = vmatmul.f32.gmra.mxu0 %v9129
        %v9707 = vpop.f32.mrf.mxu0
        %v9708 = vadd.f32 %v9499, %v9707
        %9709 = vmatmul.f32.gmra.mxu0 %v9133
        %v9710 = vpop.f32.mrf.mxu0
        %v9711 = vadd.f32 %v9502, %v9710
        %9712 = vmatmul.f32.gmra.mxu0 %v9137
        %v9713 = vpop.f32.mrf.mxu0
        %v9714 = vadd.f32 %v9505, %v9713
        %9715 = vmatmul.f32.gmra.mxu0 %v9141
        %v9716 = vpop.f32.mrf.mxu0
        %v9717 = vadd.f32 %v9508, %v9716
        %9718 = vmatmul.f32.gmra.mxu0 %v9145
        %v9719 = vpop.f32.mrf.mxu0
        %v9720 = vadd.f32 %v9511, %v9719
        %9721 = vmatmul.f32.gmra.mxu0 %v9149
        %v9722 = vpop.f32.mrf.mxu0
        %v9723 = vadd.f32 %v9514, %v9722
        %9724 = vmatmul.f32.gmra.mxu0 %v9153
        %v9725 = vpop.f32.mrf.mxu0
        %v9726 = vadd.f32 %v9517, %v9725
        %9727 = vmatmul.f32.gmra.mxu0 %v9157
        %v9728 = vpop.f32.mrf.mxu0
        %v9729 = vadd.f32 %v9520, %v9728
        %9730 = vmatmul.f32.gmra.mxu0 %v9161
        %v9731 = vpop.f32.mrf.mxu0
        %v9732 = vadd.f32 %v9523, %v9731
        %9733 = vmatmul.f32.gmra.mxu0 %v9165
        %v9734 = vpop.f32.mrf.mxu0
        %v9735 = vadd.f32 %v9526, %v9734
        %9736 = vmatmul.f32.gmra.mxu0 %v9169
        %v9737 = vpop.f32.mrf.mxu0
        %v9738 = vadd.f32 %v9529, %v9737
        %9739 = vmatmul.f32.gmra.mxu0 %v9173
        %v9740 = vpop.f32.mrf.mxu0
        %v9741 = vadd.f32 %v9532, %v9740
        %9742 = vmatmul.f32.gmra.mxu0 %v9177
        %v9743 = vpop.f32.mrf.mxu0
        %v9744 = vadd.f32 %v9535, %v9743
        %9745 = vmatmul.f32.gmra.mxu0 %v9181
        %v9746 = vpop.f32.mrf.mxu0
        %v9747 = vadd.f32 %v9538, %v9746
        %9748 = vmatmul.f32.gmra.mxu0 %v9185
        %v9749 = vpop.f32.mrf.mxu0
        %v9750 = vadd.f32 %v9541, %v9749
        %9751 = vmatmul.f32.gmra.mxu0 %v9189
        %v9752 = vpop.f32.mrf.mxu0
        %v9753 = vadd.f32 %v9544, %v9752
        %9754 = vmatmul.f32.gmra.mxu0 %v9193
        %v9755 = vpop.f32.mrf.mxu0
        %v9756 = vadd.f32 %v9547, %v9755
        %9757 = vmatmul.f32.gmra.mxu0 %v9197
        %v9758 = vpop.f32.mrf.mxu0
        %v9759 = vadd.f32 %v9550, %v9758
        %9760 = vmatmul.f32.gmra.mxu0 %v9201
        %v9761 = vpop.f32.mrf.mxu0
        %v9762 = vadd.f32 %v9553, %v9761
        %9763 = vmatmul.f32.gmra.mxu0 %v9205
        %v9764 = vpop.f32.mrf.mxu0
        %v9765 = vadd.f32 %v9556, %v9764
        %9766 = vmatmul.f32.gmra.mxu0 %v9209
        %v9767 = vpop.f32.mrf.mxu0
        %v9768 = vadd.f32 %v9559, %v9767
        %9769 = vmatmul.f32.gmra.mxu0 %v9213
        %v9770 = vpop.f32.mrf.mxu0
        %v9771 = vadd.f32 %v9562, %v9770
        %9772 = vmatmul.f32.gmra.mxu0 %v9217
        %v9773 = vpop.f32.mrf.mxu0
        %v9774 = vadd.f32 %v9565, %v9773
        %9775 = vmatmul.f32.gmra.mxu0 %v9221
        %v9776 = vpop.f32.mrf.mxu0
        %v9777 = vadd.f32 %v9568, %v9776
        %9778 = vmatmul.f32.gmra.mxu0 %v9225
        %v9779 = vpop.f32.mrf.mxu0
        %v9780 = vadd.f32 %v9571, %v9779
        %9781 = vmatmul.f32.gmra.mxu0 %v9229
        %v9782 = vpop.f32.mrf.mxu0
        %v9783 = vadd.f32 %v9574, %v9782
        %9784 = vmatmul.f32.gmra.mxu0 %v9233
        %v9785 = vpop.f32.mrf.mxu0
        %v9786 = vadd.f32 %v9577, %v9785
        %9787 = vmatmul.f32.gmra.mxu0 %v9237
        %v9788 = vpop.f32.mrf.mxu0
        %v9789 = vadd.f32 %v9580, %v9788
        %9790 = vmatmul.f32.gmra.mxu0 %v9241
        %v9791 = vpop.f32.mrf.mxu0
        %v9792 = vadd.f32 %v9583, %v9791
        %9793 = vmatmul.f32.gmra.mxu0 %v9245
        %v9794 = vpop.f32.mrf.mxu0
        %v9795 = vadd.f32 %v9586, %v9794
        %9796 = vmatmul.f32.gmra.mxu0 %v9249
        %v9797 = vpop.f32.mrf.mxu0
        %v9798 = vadd.f32 %v9589, %v9797
        %9799 = vmatmul.f32.gmra.mxu0 %v9253
        %v9800 = vpop.f32.mrf.mxu0
        %v9801 = vadd.f32 %v9592, %v9800
        %9802 = vmatmul.f32.gmra.mxu0 %v9257
        %v9803 = vpop.f32.mrf.mxu0
        %v9804 = vadd.f32 %v9595, %v9803
        %9805 = vdwg.mxu0
        %9806 = vmatpush.msra.mxu0 %v9371
        %9807 = vmatpush.msra.mxu0 %v9370
        %9808 = vmatpush.msra.mxu0 %v9369
        %9809 = vmatpush.msra.mxu0 %v9368
        %9810 = vmatpush.msra.mxu0 %v9367
        %9811 = vmatpush.msra.mxu0 %v9366
        %9812 = vmatpush.msra.mxu0 %v9365
        %9813 = vmatpush.msra.mxu0 %v9364
        %9814 = vmatpush.msra.mxu0 %v9363
        %9815 = vmatpush.msra.mxu0 %v9362
        %9816 = vmatpush.msra.mxu0 %v9361
        %9817 = vmatpush.msra.mxu0 %v9360
        %9818 = vmatpush.msra.mxu0 %v9359
        %9819 = vmatpush.msra.mxu0 %v9358
        %9820 = vmatpush.msra.mxu0 %v9357
        %9821 = vmatpush.msra.mxu0 %v9356
        %9822 = vmatmul.f32.gmra.mxu0 %v9006
        %v9823 = vpop.f32.mrf.mxu0
        %v9824 = vadd.f32 %v9615, %v9823
        %9825 = vmatmul.f32.gmra.mxu0 %v9010
        %v9826 = vpop.f32.mrf.mxu0
        %v9827 = vadd.f32 %v9618, %v9826
        %9828 = vmatmul.f32.gmra.mxu0 %v9014
        %v9829 = vpop.f32.mrf.mxu0
        %v9830 = vadd.f32 %v9621, %v9829
        %9831 = vmatmul.f32.gmra.mxu0 %v9018
        %v9832 = vpop.f32.mrf.mxu0
        %v9833 = vadd.f32 %v9624, %v9832
        %9834 = vmatmul.f32.gmra.mxu0 %v9022
        %v9835 = vpop.f32.mrf.mxu0
        %v9836 = vadd.f32 %v9627, %v9835
        %9837 = vmatmul.f32.gmra.mxu0 %v9026
        %v9838 = vpop.f32.mrf.mxu0
        %v9839 = vadd.f32 %v9630, %v9838
        %9840 = vmatmul.f32.gmra.mxu0 %v9030
        %v9841 = vpop.f32.mrf.mxu0
        %v9842 = vadd.f32 %v9633, %v9841
        %9843 = vmatmul.f32.gmra.mxu0 %v9034
        %v9844 = vpop.f32.mrf.mxu0
        %v9845 = vadd.f32 %v9636, %v9844
        %9846 = vmatmul.f32.gmra.mxu0 %v9038
        %v9847 = vpop.f32.mrf.mxu0
        %v9848 = vadd.f32 %v9639, %v9847
        %9849 = vmatmul.f32.gmra.mxu0 %v9042
        %v9850 = vpop.f32.mrf.mxu0
        %v9851 = vadd.f32 %v9642, %v9850
        %9852 = vmatmul.f32.gmra.mxu0 %v9046
        %v9853 = vpop.f32.mrf.mxu0
        %v9854 = vadd.f32 %v9645, %v9853
        %9855 = vmatmul.f32.gmra.mxu0 %v9050
        %v9856 = vpop.f32.mrf.mxu0
        %v9857 = vadd.f32 %v9648, %v9856
        %9858 = vmatmul.f32.gmra.mxu0 %v9054
        %v9859 = vpop.f32.mrf.mxu0
        %v9860 = vadd.f32 %v9651, %v9859
        %9861 = vmatmul.f32.gmra.mxu0 %v9058
        %v9862 = vpop.f32.mrf.mxu0
        %v9863 = vadd.f32 %v9654, %v9862
        %9864 = vmatmul.f32.gmra.mxu0 %v9062
        %v9865 = vpop.f32.mrf.mxu0
        %v9866 = vadd.f32 %v9657, %v9865
        %9867 = vmatmul.f32.gmra.mxu0 %v9066
        %v9868 = vpop.f32.mrf.mxu0
        %v9869 = vadd.f32 %v9660, %v9868
        %9870 = vmatmul.f32.gmra.mxu0 %v9070
        %v9871 = vpop.f32.mrf.mxu0
        %v9872 = vadd.f32 %v9663, %v9871
        %9873 = vmatmul.f32.gmra.mxu0 %v9074
        %v9874 = vpop.f32.mrf.mxu0
        %v9875 = vadd.f32 %v9666, %v9874
        %9876 = vmatmul.f32.gmra.mxu0 %v9078
        %v9877 = vpop.f32.mrf.mxu0
        %v9878 = vadd.f32 %v9669, %v9877
        %9879 = vmatmul.f32.gmra.mxu0 %v9082
        %v9880 = vpop.f32.mrf.mxu0
        %v9881 = vadd.f32 %v9672, %v9880
        %9882 = vmatmul.f32.gmra.mxu0 %v9086
        %v9883 = vpop.f32.mrf.mxu0
        %v9884 = vadd.f32 %v9675, %v9883
        %9885 = vmatmul.f32.gmra.mxu0 %v9090
        %v9886 = vpop.f32.mrf.mxu0
        %v9887 = vadd.f32 %v9678, %v9886
        %9888 = vmatmul.f32.gmra.mxu0 %v9094
        %v9889 = vpop.f32.mrf.mxu0
        %v9890 = vadd.f32 %v9681, %v9889
        %9891 = vmatmul.f32.gmra.mxu0 %v9098
        %v9892 = vpop.f32.mrf.mxu0
        %v9893 = vadd.f32 %v9684, %v9892
        %9894 = vmatmul.f32.gmra.mxu0 %v9102
        %v9895 = vpop.f32.mrf.mxu0
        %v9896 = vadd.f32 %v9687, %v9895
        %9897 = vmatmul.f32.gmra.mxu0 %v9106
        %v9898 = vpop.f32.mrf.mxu0
        %v9899 = vadd.f32 %v9690, %v9898
        %9900 = vmatmul.f32.gmra.mxu0 %v9110
        %v9901 = vpop.f32.mrf.mxu0
        %v9902 = vadd.f32 %v9693, %v9901
        %9903 = vmatmul.f32.gmra.mxu0 %v9114
        %v9904 = vpop.f32.mrf.mxu0
        %v9905 = vadd.f32 %v9696, %v9904
        %9906 = vmatmul.f32.gmra.mxu0 %v9118
        %v9907 = vpop.f32.mrf.mxu0
        %v9908 = vadd.f32 %v9699, %v9907
        %9909 = vmatmul.f32.gmra.mxu0 %v9122
        %v9910 = vpop.f32.mrf.mxu0
        %v9911 = vadd.f32 %v9702, %v9910
        %9912 = vmatmul.f32.gmra.mxu0 %v9126
        %v9913 = vpop.f32.mrf.mxu0
        %v9914 = vadd.f32 %v9705, %v9913
        %9915 = vmatmul.f32.gmra.mxu0 %v9130
        %v9916 = vpop.f32.mrf.mxu0
        %v9917 = vadd.f32 %v9708, %v9916
        %9918 = vmatmul.f32.gmra.mxu0 %v9134
        %v9919 = vpop.f32.mrf.mxu0
        %v9920 = vadd.f32 %v9711, %v9919
        %9921 = vmatmul.f32.gmra.mxu0 %v9138
        %v9922 = vpop.f32.mrf.mxu0
        %v9923 = vadd.f32 %v9714, %v9922
        %9924 = vmatmul.f32.gmra.mxu0 %v9142
        %v9925 = vpop.f32.mrf.mxu0
        %v9926 = vadd.f32 %v9717, %v9925
        %9927 = vmatmul.f32.gmra.mxu0 %v9146
        %v9928 = vpop.f32.mrf.mxu0
        %v9929 = vadd.f32 %v9720, %v9928
        %9930 = vmatmul.f32.gmra.mxu0 %v9150
        %v9931 = vpop.f32.mrf.mxu0
        %v9932 = vadd.f32 %v9723, %v9931
        %9933 = vmatmul.f32.gmra.mxu0 %v9154
        %v9934 = vpop.f32.mrf.mxu0
        %v9935 = vadd.f32 %v9726, %v9934
        %9936 = vmatmul.f32.gmra.mxu0 %v9158
        %v9937 = vpop.f32.mrf.mxu0
        %v9938 = vadd.f32 %v9729, %v9937
        %9939 = vmatmul.f32.gmra.mxu0 %v9162
        %v9940 = vpop.f32.mrf.mxu0
        %v9941 = vadd.f32 %v9732, %v9940
        %9942 = vmatmul.f32.gmra.mxu0 %v9166
        %v9943 = vpop.f32.mrf.mxu0
        %v9944 = vadd.f32 %v9735, %v9943
        %9945 = vmatmul.f32.gmra.mxu0 %v9170
        %v9946 = vpop.f32.mrf.mxu0
        %v9947 = vadd.f32 %v9738, %v9946
        %9948 = vmatmul.f32.gmra.mxu0 %v9174
        %v9949 = vpop.f32.mrf.mxu0
        %v9950 = vadd.f32 %v9741, %v9949
        %9951 = vmatmul.f32.gmra.mxu0 %v9178
        %v9952 = vpop.f32.mrf.mxu0
        %v9953 = vadd.f32 %v9744, %v9952
        %9954 = vmatmul.f32.gmra.mxu0 %v9182
        %v9955 = vpop.f32.mrf.mxu0
        %v9956 = vadd.f32 %v9747, %v9955
        %9957 = vmatmul.f32.gmra.mxu0 %v9186
        %v9958 = vpop.f32.mrf.mxu0
        %v9959 = vadd.f32 %v9750, %v9958
        %9960 = vmatmul.f32.gmra.mxu0 %v9190
        %v9961 = vpop.f32.mrf.mxu0
        %v9962 = vadd.f32 %v9753, %v9961
        %9963 = vmatmul.f32.gmra.mxu0 %v9194
        %v9964 = vpop.f32.mrf.mxu0
        %v9965 = vadd.f32 %v9756, %v9964
        %9966 = vmatmul.f32.gmra.mxu0 %v9198
        %v9967 = vpop.f32.mrf.mxu0
        %v9968 = vadd.f32 %v9759, %v9967
        %9969 = vmatmul.f32.gmra.mxu0 %v9202
        %v9970 = vpop.f32.mrf.mxu0
        %v9971 = vadd.f32 %v9762, %v9970
        %9972 = vmatmul.f32.gmra.mxu0 %v9206
        %v9973 = vpop.f32.mrf.mxu0
        %v9974 = vadd.f32 %v9765, %v9973
        %9975 = vmatmul.f32.gmra.mxu0 %v9210
        %v9976 = vpop.f32.mrf.mxu0
        %v9977 = vadd.f32 %v9768, %v9976
        %9978 = vmatmul.f32.gmra.mxu0 %v9214
        %v9979 = vpop.f32.mrf.mxu0
        %v9980 = vadd.f32 %v9771, %v9979
        %9981 = vmatmul.f32.gmra.mxu0 %v9218
        %v9982 = vpop.f32.mrf.mxu0
        %v9983 = vadd.f32 %v9774, %v9982
        %9984 = vmatmul.f32.gmra.mxu0 %v9222
        %v9985 = vpop.f32.mrf.mxu0
        %v9986 = vadd.f32 %v9777, %v9985
        %9987 = vmatmul.f32.gmra.mxu0 %v9226
        %v9988 = vpop.f32.mrf.mxu0
        %v9989 = vadd.f32 %v9780, %v9988
        %9990 = vmatmul.f32.gmra.mxu0 %v9230
        %v9991 = vpop.f32.mrf.mxu0
        %v9992 = vadd.f32 %v9783, %v9991
        %9993 = vmatmul.f32.gmra.mxu0 %v9234
        %v9994 = vpop.f32.mrf.mxu0
        %v9995 = vadd.f32 %v9786, %v9994
        %9996 = vmatmul.f32.gmra.mxu0 %v9238
        %v9997 = vpop.f32.mrf.mxu0
        %v9998 = vadd.f32 %v9789, %v9997
        %9999 = vmatmul.f32.gmra.mxu0 %v9242
        %v10000 = vpop.f32.mrf.mxu0
        %v10001 = vadd.f32 %v9792, %v10000
        %10002 = vmatmul.f32.gmra.mxu0 %v9246
        %v10003 = vpop.f32.mrf.mxu0
        %v10004 = vadd.f32 %v9795, %v10003
        %10005 = vmatmul.f32.gmra.mxu0 %v9250
        %v10006 = vpop.f32.mrf.mxu0
        %v10007 = vadd.f32 %v9798, %v10006
        %10008 = vmatmul.f32.gmra.mxu0 %v9254
        %v10009 = vpop.f32.mrf.mxu0
        %v10010 = vadd.f32 %v9801, %v10009
        %10011 = vmatmul.f32.gmra.mxu0 %v9258
        %v10012 = vpop.f32.mrf.mxu0
        %v10013 = vadd.f32 %v9804, %v10012
        %10014 = vdwg.mxu0
        %10015 = vmatpush.msra.mxu0 %v9387
        %10016 = vmatpush.msra.mxu0 %v9386
        %10017 = vmatpush.msra.mxu0 %v9385
        %10018 = vmatpush.msra.mxu0 %v9384
        %10019 = vmatpush.msra.mxu0 %v9383
        %10020 = vmatpush.msra.mxu0 %v9382
        %10021 = vmatpush.msra.mxu0 %v9381
        %10022 = vmatpush.msra.mxu0 %v9380
        %10023 = vmatpush.msra.mxu0 %v9379
        %10024 = vmatpush.msra.mxu0 %v9378
        %10025 = vmatpush.msra.mxu0 %v9377
        %10026 = vmatpush.msra.mxu0 %v9376
        %10027 = vmatpush.msra.mxu0 %v9375
        %10028 = vmatpush.msra.mxu0 %v9374
        %10029 = vmatpush.msra.mxu0 %v9373
        %10030 = vmatpush.msra.mxu0 %v9372
        %10031 = vmatmul.f32.gmra.mxu0 %v9007
        %v10032 = vpop.f32.mrf.mxu0
        %v10033 = vadd.f32 %v9824, %v10032
        %10034 = vmatmul.f32.gmra.mxu0 %v9011
        %v10035 = vpop.f32.mrf.mxu0
        %v10036 = vadd.f32 %v9827, %v10035
        %10037 = vmatmul.f32.gmra.mxu0 %v9015
        %v10038 = vpop.f32.mrf.mxu0
        %v10039 = vadd.f32 %v9830, %v10038
        %10040 = vmatmul.f32.gmra.mxu0 %v9019
        %v10041 = vpop.f32.mrf.mxu0
        %v10042 = vadd.f32 %v9833, %v10041
        %10043 = vmatmul.f32.gmra.mxu0 %v9023
        %v10044 = vpop.f32.mrf.mxu0
        %v10045 = vadd.f32 %v9836, %v10044
        %10046 = vmatmul.f32.gmra.mxu0 %v9027
        %v10047 = vpop.f32.mrf.mxu0
        %v10048 = vadd.f32 %v9839, %v10047
        %10049 = vmatmul.f32.gmra.mxu0 %v9031
        %v10050 = vpop.f32.mrf.mxu0
        %v10051 = vadd.f32 %v9842, %v10050
        %10052 = vmatmul.f32.gmra.mxu0 %v9035
        %v10053 = vpop.f32.mrf.mxu0
        %v10054 = vadd.f32 %v9845, %v10053
        %10055 = vmatmul.f32.gmra.mxu0 %v9039
        %v10056 = vpop.f32.mrf.mxu0
        %v10057 = vadd.f32 %v9848, %v10056
        %10058 = vmatmul.f32.gmra.mxu0 %v9043
        %v10059 = vpop.f32.mrf.mxu0
        %v10060 = vadd.f32 %v9851, %v10059
        %10061 = vmatmul.f32.gmra.mxu0 %v9047
        %v10062 = vpop.f32.mrf.mxu0
        %v10063 = vadd.f32 %v9854, %v10062
        %10064 = vmatmul.f32.gmra.mxu0 %v9051
        %v10065 = vpop.f32.mrf.mxu0
        %v10066 = vadd.f32 %v9857, %v10065
        %10067 = vmatmul.f32.gmra.mxu0 %v9055
        %v10068 = vpop.f32.mrf.mxu0
        %v10069 = vadd.f32 %v9860, %v10068
        %10070 = vmatmul.f32.gmra.mxu0 %v9059
        %v10071 = vpop.f32.mrf.mxu0
        %v10072 = vadd.f32 %v9863, %v10071
        %10073 = vmatmul.f32.gmra.mxu0 %v9063
        %v10074 = vpop.f32.mrf.mxu0
        %v10075 = vadd.f32 %v9866, %v10074
        %10076 = vmatmul.f32.gmra.mxu0 %v9067
        %v10077 = vpop.f32.mrf.mxu0
        %v10078 = vadd.f32 %v9869, %v10077
        %10079 = vmatmul.f32.gmra.mxu0 %v9071
        %v10080 = vpop.f32.mrf.mxu0
        %v10081 = vadd.f32 %v9872, %v10080
        %10082 = vmatmul.f32.gmra.mxu0 %v9075
        %v10083 = vpop.f32.mrf.mxu0
        %v10084 = vadd.f32 %v9875, %v10083
        %10085 = vmatmul.f32.gmra.mxu0 %v9079
        %v10086 = vpop.f32.mrf.mxu0
        %v10087 = vadd.f32 %v9878, %v10086
        %10088 = vmatmul.f32.gmra.mxu0 %v9083
        %v10089 = vpop.f32.mrf.mxu0
        %v10090 = vadd.f32 %v9881, %v10089
        %10091 = vmatmul.f32.gmra.mxu0 %v9087
        %v10092 = vpop.f32.mrf.mxu0
        %v10093 = vadd.f32 %v9884, %v10092
        %10094 = vmatmul.f32.gmra.mxu0 %v9091
        %v10095 = vpop.f32.mrf.mxu0
        %v10096 = vadd.f32 %v9887, %v10095
        %10097 = vmatmul.f32.gmra.mxu0 %v9095
        %v10098 = vpop.f32.mrf.mxu0
        %v10099 = vadd.f32 %v9890, %v10098
        %10100 = vmatmul.f32.gmra.mxu0 %v9099
        %v10101 = vpop.f32.mrf.mxu0
        %v10102 = vadd.f32 %v9893, %v10101
        %10103 = vmatmul.f32.gmra.mxu0 %v9103
        %v10104 = vpop.f32.mrf.mxu0
        %v10105 = vadd.f32 %v9896, %v10104
        %10106 = vmatmul.f32.gmra.mxu0 %v9107
        %v10107 = vpop.f32.mrf.mxu0
        %v10108 = vadd.f32 %v9899, %v10107
        %10109 = vmatmul.f32.gmra.mxu0 %v9111
        %v10110 = vpop.f32.mrf.mxu0
        %v10111 = vadd.f32 %v9902, %v10110
        %10112 = vmatmul.f32.gmra.mxu0 %v9115
        %v10113 = vpop.f32.mrf.mxu0
        %v10114 = vadd.f32 %v9905, %v10113
        %10115 = vmatmul.f32.gmra.mxu0 %v9119
        %v10116 = vpop.f32.mrf.mxu0
        %v10117 = vadd.f32 %v9908, %v10116
        %10118 = vmatmul.f32.gmra.mxu0 %v9123
        %v10119 = vpop.f32.mrf.mxu0
        %v10120 = vadd.f32 %v9911, %v10119
        %10121 = vmatmul.f32.gmra.mxu0 %v9127
        %v10122 = vpop.f32.mrf.mxu0
        %v10123 = vadd.f32 %v9914, %v10122
        %10124 = vmatmul.f32.gmra.mxu0 %v9131
        %v10125 = vpop.f32.mrf.mxu0
        %v10126 = vadd.f32 %v9917, %v10125
        %10127 = vmatmul.f32.gmra.mxu0 %v9135
        %v10128 = vpop.f32.mrf.mxu0
        %v10129 = vadd.f32 %v9920, %v10128
        %10130 = vmatmul.f32.gmra.mxu0 %v9139
        %v10131 = vpop.f32.mrf.mxu0
        %v10132 = vadd.f32 %v9923, %v10131
        %10133 = vmatmul.f32.gmra.mxu0 %v9143
        %v10134 = vpop.f32.mrf.mxu0
        %v10135 = vadd.f32 %v9926, %v10134
        %10136 = vmatmul.f32.gmra.mxu0 %v9147
        %v10137 = vpop.f32.mrf.mxu0
        %v10138 = vadd.f32 %v9929, %v10137
        %10139 = vmatmul.f32.gmra.mxu0 %v9151
        %v10140 = vpop.f32.mrf.mxu0
        %v10141 = vadd.f32 %v9932, %v10140
        %10142 = vmatmul.f32.gmra.mxu0 %v9155
        %v10143 = vpop.f32.mrf.mxu0
        %v10144 = vadd.f32 %v9935, %v10143
        %10145 = vmatmul.f32.gmra.mxu0 %v9159
        %v10146 = vpop.f32.mrf.mxu0
        %v10147 = vadd.f32 %v9938, %v10146
        %10148 = vmatmul.f32.gmra.mxu0 %v9163
        %v10149 = vpop.f32.mrf.mxu0
        %v10150 = vadd.f32 %v9941, %v10149
        %10151 = vmatmul.f32.gmra.mxu0 %v9167
        %v10152 = vpop.f32.mrf.mxu0
        %v10153 = vadd.f32 %v9944, %v10152
        %10154 = vmatmul.f32.gmra.mxu0 %v9171
        %v10155 = vpop.f32.mrf.mxu0
        %v10156 = vadd.f32 %v9947, %v10155
        %10157 = vmatmul.f32.gmra.mxu0 %v9175
        %v10158 = vpop.f32.mrf.mxu0
        %v10159 = vadd.f32 %v9950, %v10158
        %10160 = vmatmul.f32.gmra.mxu0 %v9179
        %v10161 = vpop.f32.mrf.mxu0
        %v10162 = vadd.f32 %v9953, %v10161
        %10163 = vmatmul.f32.gmra.mxu0 %v9183
        %v10164 = vpop.f32.mrf.mxu0
        %v10165 = vadd.f32 %v9956, %v10164
        %10166 = vmatmul.f32.gmra.mxu0 %v9187
        %v10167 = vpop.f32.mrf.mxu0
        %v10168 = vadd.f32 %v9959, %v10167
        %10169 = vmatmul.f32.gmra.mxu0 %v9191
        %v10170 = vpop.f32.mrf.mxu0
        %v10171 = vadd.f32 %v9962, %v10170
        %10172 = vmatmul.f32.gmra.mxu0 %v9195
        %v10173 = vpop.f32.mrf.mxu0
        %v10174 = vadd.f32 %v9965, %v10173
        %10175 = vmatmul.f32.gmra.mxu0 %v9199
        %v10176 = vpop.f32.mrf.mxu0
        %v10177 = vadd.f32 %v9968, %v10176
        %10178 = vmatmul.f32.gmra.mxu0 %v9203
        %v10179 = vpop.f32.mrf.mxu0
        %v10180 = vadd.f32 %v9971, %v10179
        %10181 = vmatmul.f32.gmra.mxu0 %v9207
        %v10182 = vpop.f32.mrf.mxu0
        %v10183 = vadd.f32 %v9974, %v10182
        %10184 = vmatmul.f32.gmra.mxu0 %v9211
        %v10185 = vpop.f32.mrf.mxu0
        %v10186 = vadd.f32 %v9977, %v10185
        %10187 = vmatmul.f32.gmra.mxu0 %v9215
        %v10188 = vpop.f32.mrf.mxu0
        %v10189 = vadd.f32 %v9980, %v10188
        %10190 = vmatmul.f32.gmra.mxu0 %v9219
        %v10191 = vpop.f32.mrf.mxu0
        %v10192 = vadd.f32 %v9983, %v10191
        %10193 = vmatmul.f32.gmra.mxu0 %v9223
        %v10194 = vpop.f32.mrf.mxu0
        %v10195 = vadd.f32 %v9986, %v10194
        %10196 = vmatmul.f32.gmra.mxu0 %v9227
        %v10197 = vpop.f32.mrf.mxu0
        %v10198 = vadd.f32 %v9989, %v10197
        %10199 = vmatmul.f32.gmra.mxu0 %v9231
        %v10200 = vpop.f32.mrf.mxu0
        %v10201 = vadd.f32 %v9992, %v10200
        %10202 = vmatmul.f32.gmra.mxu0 %v9235
        %v10203 = vpop.f32.mrf.mxu0
        %v10204 = vadd.f32 %v9995, %v10203
        %10205 = vmatmul.f32.gmra.mxu0 %v9239
        %v10206 = vpop.f32.mrf.mxu0
        %v10207 = vadd.f32 %v9998, %v10206
        %10208 = vmatmul.f32.gmra.mxu0 %v9243
        %v10209 = vpop.f32.mrf.mxu0
        %v10210 = vadd.f32 %v10001, %v10209
        %10211 = vmatmul.f32.gmra.mxu0 %v9247
        %v10212 = vpop.f32.mrf.mxu0
        %v10213 = vadd.f32 %v10004, %v10212
        %10214 = vmatmul.f32.gmra.mxu0 %v9251
        %v10215 = vpop.f32.mrf.mxu0
        %v10216 = vadd.f32 %v10007, %v10215
        %10217 = vmatmul.f32.gmra.mxu0 %v9255
        %v10218 = vpop.f32.mrf.mxu0
        %v10219 = vadd.f32 %v10010, %v10218
        %10220 = vmatmul.f32.gmra.mxu0 %v9259
        %v10221 = vpop.f32.mrf.mxu0
        %v10222 = vadd.f32 %v10013, %v10221
        %10223 = vdwg.mxu0
        %v10224 = vadd.f32 %v9260, %v10033
        %v10225 = vadd.f32 %v9261, %v10036
        %v10226 = vadd.f32 %v9262, %v10039
        %v10227 = vadd.f32 %v9263, %v10042
        %v10228 = vadd.f32 %v9264, %v10045
        %v10229 = vadd.f32 %v9265, %v10048
        %v10230 = vadd.f32 %v9266, %v10051
        %v10231 = vadd.f32 %v9267, %v10054
        %v10232 = vadd.f32 %v9268, %v10057
        %v10233 = vadd.f32 %v9269, %v10060
        %v10234 = vadd.f32 %v9270, %v10063
        %v10235 = vadd.f32 %v9271, %v10066
        %v10236 = vadd.f32 %v9272, %v10069
        %v10237 = vadd.f32 %v9273, %v10072
        %v10238 = vadd.f32 %v9274, %v10075
        %v10239 = vadd.f32 %v9275, %v10078
        %v10240 = vadd.f32 %v9276, %v10081
        %v10241 = vadd.f32 %v9277, %v10084
        %v10242 = vadd.f32 %v9278, %v10087
        %v10243 = vadd.f32 %v9279, %v10090
        %v10244 = vadd.f32 %v9280, %v10093
        %v10245 = vadd.f32 %v9281, %v10096
        %v10246 = vadd.f32 %v9282, %v10099
        %v10247 = vadd.f32 %v9283, %v10102
        %v10248 = vadd.f32 %v9284, %v10105
        %v10249 = vadd.f32 %v9285, %v10108
        %v10250 = vadd.f32 %v9286, %v10111
        %v10251 = vadd.f32 %v9287, %v10114
        %v10252 = vadd.f32 %v9288, %v10117
        %v10253 = vadd.f32 %v9289, %v10120
        %v10254 = vadd.f32 %v9290, %v10123
        %v10255 = vadd.f32 %v9291, %v10126
        %v10256 = vadd.f32 %v9292, %v10129
        %v10257 = vadd.f32 %v9293, %v10132
        %v10258 = vadd.f32 %v9294, %v10135
        %v10259 = vadd.f32 %v9295, %v10138
        %v10260 = vadd.f32 %v9296, %v10141
        %v10261 = vadd.f32 %v9297, %v10144
        %v10262 = vadd.f32 %v9298, %v10147
        %v10263 = vadd.f32 %v9299, %v10150
        %v10264 = vadd.f32 %v9300, %v10153
        %v10265 = vadd.f32 %v9301, %v10156
        %v10266 = vadd.f32 %v9302, %v10159
        %v10267 = vadd.f32 %v9303, %v10162
        %v10268 = vadd.f32 %v9304, %v10165
        %v10269 = vadd.f32 %v9305, %v10168
        %v10270 = vadd.f32 %v9306, %v10171
        %v10271 = vadd.f32 %v9307, %v10174
        %v10272 = vadd.f32 %v9308, %v10177
        %v10273 = vadd.f32 %v9309, %v10180
        %v10274 = vadd.f32 %v9310, %v10183
        %v10275 = vadd.f32 %v9311, %v10186
        %v10276 = vadd.f32 %v9312, %v10189
        %v10277 = vadd.f32 %v9313, %v10192
        %v10278 = vadd.f32 %v9314, %v10195
        %v10279 = vadd.f32 %v9315, %v10198
        %v10280 = vadd.f32 %v9316, %v10201
        %v10281 = vadd.f32 %v9317, %v10204
        %v10282 = vadd.f32 %v9318, %v10207
        %v10283 = vadd.f32 %v9319, %v10210
        %v10284 = vadd.f32 %v9320, %v10213
        %v10285 = vadd.f32 %v9321, %v10216
        %v10286 = vadd.f32 %v9322, %v10219
        %v10287 = vadd.f32 %v9323, %v10222
        %10288 = vst [vmem:[#allocation3] sm:$0xff] %v10224
        %10289 = vst [vmem:[#allocation3 + $0x8] sm:$0xff] %v10225
        %10290 = vst [vmem:[#allocation3 + $0x10] sm:$0xff] %v10226
        %10291 = vst [vmem:[#allocation3 + $0x18] sm:$0xff] %v10227
        %10292 = vst [vmem:[#allocation3 + $0x20] sm:$0xff] %v10228
        %10293 = vst [vmem:[#allocation3 + $0x28] sm:$0xff] %v10229
        %10294 = vst [vmem:[#allocation3 + $0x30] sm:$0xff] %v10230
        %10295 = vst [vmem:[#allocation3 + $0x38] sm:$0xff] %v10231
        %10296 = vst [vmem:[#allocation3 + $0x40] sm:$0xff] %v10232
        %10297 = vst [vmem:[#allocation3 + $0x48] sm:$0xff] %v10233
        %10298 = vst [vmem:[#allocation3 + $0x50] sm:$0xff] %v10234
        %10299 = vst [vmem:[#allocation3 + $0x58] sm:$0xff] %v10235
        %10300 = vst [vmem:[#allocation3 + $0x60] sm:$0xff] %v10236
        %10301 = vst [vmem:[#allocation3 + $0x68] sm:$0xff] %v10237
        %10302 = vst [vmem:[#allocation3 + $0x70] sm:$0xff] %v10238
        %10303 = vst [vmem:[#allocation3 + $0x78] sm:$0xff] %v10239
        %10304 = vst [vmem:[#allocation3 + $0x80] sm:$0xff] %v10240
        %10305 = vst [vmem:[#allocation3 + $0x88] sm:$0xff] %v10241
        %10306 = vst [vmem:[#allocation3 + $0x90] sm:$0xff] %v10242
        %10307 = vst [vmem:[#allocation3 + $0x98] sm:$0xff] %v10243
        %10308 = vst [vmem:[#allocation3 + $0xa0] sm:$0xff] %v10244
        %10309 = vst [vmem:[#allocation3 + $0xa8] sm:$0xff] %v10245
        %10310 = vst [vmem:[#allocation3 + $0xb0] sm:$0xff] %v10246
        %10311 = vst [vmem:[#allocation3 + $0xb8] sm:$0xff] %v10247
        %10312 = vst [vmem:[#allocation3 + $0xc0] sm:$0xff] %v10248
        %10313 = vst [vmem:[#allocation3 + $0xc8] sm:$0xff] %v10249
        %10314 = vst [vmem:[#allocation3 + $0xd0] sm:$0xff] %v10250
        %10315 = vst [vmem:[#allocation3 + $0xd8] sm:$0xff] %v10251
        %10316 = vst [vmem:[#allocation3 + $0xe0] sm:$0xff] %v10252
        %10317 = vst [vmem:[#allocation3 + $0xe8] sm:$0xff] %v10253
        %10318 = vst [vmem:[#allocation3 + $0xf0] sm:$0xff] %v10254
        %10319 = vst [vmem:[#allocation3 + $0xf8] sm:$0xff] %v10255
        %10320 = vst [vmem:[#allocation3 + $0x100] sm:$0xff] %v10256
        %10321 = vst [vmem:[#allocation3 + $0x108] sm:$0xff] %v10257
        %10322 = vst [vmem:[#allocation3 + $0x110] sm:$0xff] %v10258
        %10323 = vst [vmem:[#allocation3 + $0x118] sm:$0xff] %v10259
        %10324 = vst [vmem:[#allocation3 + $0x120] sm:$0xff] %v10260
        %10325 = vst [vmem:[#allocation3 + $0x128] sm:$0xff] %v10261
        %10326 = vst [vmem:[#allocation3 + $0x130] sm:$0xff] %v10262
        %10327 = vst [vmem:[#allocation3 + $0x138] sm:$0xff] %v10263
        %10328 = vst [vmem:[#allocation3 + $0x140] sm:$0xff] %v10264
        %10329 = vst [vmem:[#allocation3 + $0x148] sm:$0xff] %v10265
        %10330 = vst [vmem:[#allocation3 + $0x150] sm:$0xff] %v10266
        %10331 = vst [vmem:[#allocation3 + $0x158] sm:$0xff] %v10267
        %10332 = vst [vmem:[#allocation3 + $0x160] sm:$0xff] %v10268
        %10333 = vst [vmem:[#allocation3 + $0x168] sm:$0xff] %v10269
        %10334 = vst [vmem:[#allocation3 + $0x170] sm:$0xff] %v10270
        %10335 = vst [vmem:[#allocation3 + $0x178] sm:$0xff] %v10271
        %10336 = vst [vmem:[#allocation3 + $0x180] sm:$0xff] %v10272
        %10337 = vst [vmem:[#allocation3 + $0x188] sm:$0xff] %v10273
        %10338 = vst [vmem:[#allocation3 + $0x190] sm:$0xff] %v10274
        %10339 = vst [vmem:[#allocation3 + $0x198] sm:$0xff] %v10275
        %10340 = vst [vmem:[#allocation3 + $0x1a0] sm:$0xff] %v10276
        %10341 = vst [vmem:[#allocation3 + $0x1a8] sm:$0xff] %v10277
        %10342 = vst [vmem:[#allocation3 + $0x1b0] sm:$0xff] %v10278
        %10343 = vst [vmem:[#allocation3 + $0x1b8] sm:$0xff] %v10279
        %10344 = vst [vmem:[#allocation3 + $0x1c0] sm:$0xff] %v10280
        %10345 = vst [vmem:[#allocation3 + $0x1c8] sm:$0xff] %v10281
        %10346 = vst [vmem:[#allocation3 + $0x1d0] sm:$0xff] %v10282
        %10347 = vst [vmem:[#allocation3 + $0x1d8] sm:$0xff] %v10283
        %10348 = vst [vmem:[#allocation3 + $0x1e0] sm:$0xff] %v10284
        %10349 = vst [vmem:[#allocation3 + $0x1e8] sm:$0xff] %v10285
        %10350 = vst [vmem:[#allocation3 + $0x1f0] sm:$0xff] %v10286
        %10351 = vst [vmem:[#allocation3 + $0x1f8] sm:$0xff] %v10287
        %p10352 = scmp.eq.s32.totalorder %s25, 1
        // Predicated region
        $region69: #{tpu_custom_call.1} parent=43 // pred_check
          %p10353 = pneg %p10352
        $region70: #{tpu_custom_call.1} parent=43 // pred_check_branch
          %10355 = sbr.rel (%p10353) target = $region72
        $region71: #{tpu_custom_call.1} parent=43 // pred_region
          %v10356 = vld [vmem:[#allocation3] sm:$0xff]
          %v10357 = vld [vmem:[#allocation3 + $0x8] sm:$0xff]
          %v10358 = vld [vmem:[#allocation3 + $0x10] sm:$0xff]
          %v10359 = vld [vmem:[#allocation3 + $0x18] sm:$0xff]
          %v10360 = vld [vmem:[#allocation3 + $0x20] sm:$0xff]
          %v10361 = vld [vmem:[#allocation3 + $0x28] sm:$0xff]
          %v10362 = vld [vmem:[#allocation3 + $0x30] sm:$0xff]
          %v10363 = vld [vmem:[#allocation3 + $0x38] sm:$0xff]
          %v10364 = vld [vmem:[#allocation3 + $0x40] sm:$0xff]
          %v10365 = vld [vmem:[#allocation3 + $0x48] sm:$0xff]
          %v10366 = vld [vmem:[#allocation3 + $0x50] sm:$0xff]
          %v10367 = vld [vmem:[#allocation3 + $0x58] sm:$0xff]
          %v10368 = vld [vmem:[#allocation3 + $0x60] sm:$0xff]
          %v10369 = vld [vmem:[#allocation3 + $0x68] sm:$0xff]
          %v10370 = vld [vmem:[#allocation3 + $0x70] sm:$0xff]
          %v10371 = vld [vmem:[#allocation3 + $0x78] sm:$0xff]
          %v10372 = vld [vmem:[#allocation3 + $0x80] sm:$0xff]
          %v10373 = vld [vmem:[#allocation3 + $0x88] sm:$0xff]
          %v10374 = vld [vmem:[#allocation3 + $0x90] sm:$0xff]
          %v10375 = vld [vmem:[#allocation3 + $0x98] sm:$0xff]
          %v10376 = vld [vmem:[#allocation3 + $0xa0] sm:$0xff]
          %v10377 = vld [vmem:[#allocation3 + $0xa8] sm:$0xff]
          %v10378 = vld [vmem:[#allocation3 + $0xb0] sm:$0xff]
          %v10379 = vld [vmem:[#allocation3 + $0xb8] sm:$0xff]
          %v10380 = vld [vmem:[#allocation3 + $0xc0] sm:$0xff]
          %v10381 = vld [vmem:[#allocation3 + $0xc8] sm:$0xff]
          %v10382 = vld [vmem:[#allocation3 + $0xd0] sm:$0xff]
          %v10383 = vld [vmem:[#allocation3 + $0xd8] sm:$0xff]
          %v10384 = vld [vmem:[#allocation3 + $0xe0] sm:$0xff]
          %v10385 = vld [vmem:[#allocation3 + $0xe8] sm:$0xff]
          %v10386 = vld [vmem:[#allocation3 + $0xf0] sm:$0xff]
          %v10387 = vld [vmem:[#allocation3 + $0xf8] sm:$0xff]
          %v10388 = vld [vmem:[#allocation3 + $0x100] sm:$0xff]
          %v10389 = vld [vmem:[#allocation3 + $0x108] sm:$0xff]
          %v10390 = vld [vmem:[#allocation3 + $0x110] sm:$0xff]
          %v10391 = vld [vmem:[#allocation3 + $0x118] sm:$0xff]
          %v10392 = vld [vmem:[#allocation3 + $0x120] sm:$0xff]
          %v10393 = vld [vmem:[#allocation3 + $0x128] sm:$0xff]
          %v10394 = vld [vmem:[#allocation3 + $0x130] sm:$0xff]
          %v10395 = vld [vmem:[#allocation3 + $0x138] sm:$0xff]
          %v10396 = vld [vmem:[#allocation3 + $0x140] sm:$0xff]
          %v10397 = vld [vmem:[#allocation3 + $0x148] sm:$0xff]
          %v10398 = vld [vmem:[#allocation3 + $0x150] sm:$0xff]
          %v10399 = vld [vmem:[#allocation3 + $0x158] sm:$0xff]
          %v10400 = vld [vmem:[#allocation3 + $0x160] sm:$0xff]
          %v10401 = vld [vmem:[#allocation3 + $0x168] sm:$0xff]
          %v10402 = vld [vmem:[#allocation3 + $0x170] sm:$0xff]
          %v10403 = vld [vmem:[#allocation3 + $0x178] sm:$0xff]
          %v10404 = vld [vmem:[#allocation3 + $0x180] sm:$0xff]
          %v10405 = vld [vmem:[#allocation3 + $0x188] sm:$0xff]
          %v10406 = vld [vmem:[#allocation3 + $0x190] sm:$0xff]
          %v10407 = vld [vmem:[#allocation3 + $0x198] sm:$0xff]
          %v10408 = vld [vmem:[#allocation3 + $0x1a0] sm:$0xff]
          %v10409 = vld [vmem:[#allocation3 + $0x1a8] sm:$0xff]
          %v10410 = vld [vmem:[#allocation3 + $0x1b0] sm:$0xff]
          %v10411 = vld [vmem:[#allocation3 + $0x1b8] sm:$0xff]
          %v10412 = vld [vmem:[#allocation3 + $0x1c0] sm:$0xff]
          %v10413 = vld [vmem:[#allocation3 + $0x1c8] sm:$0xff]
          %v10414 = vld [vmem:[#allocation3 + $0x1d0] sm:$0xff]
          %v10415 = vld [vmem:[#allocation3 + $0x1d8] sm:$0xff]
          %v10416 = vld [vmem:[#allocation3 + $0x1e0] sm:$0xff]
          %v10417 = vld [vmem:[#allocation3 + $0x1e8] sm:$0xff]
          %v10418 = vld [vmem:[#allocation3 + $0x1f0] sm:$0xff]
          %v10419 = vld [vmem:[#allocation3 + $0x1f8] sm:$0xff]
          %10420 = vst [vmem:[#allocation12] sm:$0xff] %v10356
          %10421 = vst [vmem:[#allocation12 + $0x8] sm:$0xff] %v10357
          %10422 = vst [vmem:[#allocation12 + $0x10] sm:$0xff] %v10358
          %10423 = vst [vmem:[#allocation12 + $0x18] sm:$0xff] %v10359
          %10424 = vst [vmem:[#allocation12 + $0x20] sm:$0xff] %v10360
          %10425 = vst [vmem:[#allocation12 + $0x28] sm:$0xff] %v10361
          %10426 = vst [vmem:[#allocation12 + $0x30] sm:$0xff] %v10362
          %10427 = vst [vmem:[#allocation12 + $0x38] sm:$0xff] %v10363
          %10428 = vst [vmem:[#allocation12 + $0x40] sm:$0xff] %v10364
          %10429 = vst [vmem:[#allocation12 + $0x48] sm:$0xff] %v10365
          %10430 = vst [vmem:[#allocation12 + $0x50] sm:$0xff] %v10366
          %10431 = vst [vmem:[#allocation12 + $0x58] sm:$0xff] %v10367
          %10432 = vst [vmem:[#allocation12 + $0x60] sm:$0xff] %v10368
          %10433 = vst [vmem:[#allocation12 + $0x68] sm:$0xff] %v10369
          %10434 = vst [vmem:[#allocation12 + $0x70] sm:$0xff] %v10370
          %10435 = vst [vmem:[#allocation12 + $0x78] sm:$0xff] %v10371
          %10436 = vst [vmem:[#allocation12 + $0x80] sm:$0xff] %v10372
          %10437 = vst [vmem:[#allocation12 + $0x88] sm:$0xff] %v10373
          %10438 = vst [vmem:[#allocation12 + $0x90] sm:$0xff] %v10374
          %10439 = vst [vmem:[#allocation12 + $0x98] sm:$0xff] %v10375
          %10440 = vst [vmem:[#allocation12 + $0xa0] sm:$0xff] %v10376
          %10441 = vst [vmem:[#allocation12 + $0xa8] sm:$0xff] %v10377
          %10442 = vst [vmem:[#allocation12 + $0xb0] sm:$0xff] %v10378
          %10443 = vst [vmem:[#allocation12 + $0xb8] sm:$0xff] %v10379
          %10444 = vst [vmem:[#allocation12 + $0xc0] sm:$0xff] %v10380
          %10445 = vst [vmem:[#allocation12 + $0xc8] sm:$0xff] %v10381
          %10446 = vst [vmem:[#allocation12 + $0xd0] sm:$0xff] %v10382
          %10447 = vst [vmem:[#allocation12 + $0xd8] sm:$0xff] %v10383
          %10448 = vst [vmem:[#allocation12 + $0xe0] sm:$0xff] %v10384
          %10449 = vst [vmem:[#allocation12 + $0xe8] sm:$0xff] %v10385
          %10450 = vst [vmem:[#allocation12 + $0xf0] sm:$0xff] %v10386
          %10451 = vst [vmem:[#allocation12 + $0xf8] sm:$0xff] %v10387
          %10452 = vst [vmem:[#allocation12 + $0x100] sm:$0xff] %v10388
          %10453 = vst [vmem:[#allocation12 + $0x108] sm:$0xff] %v10389
          %10454 = vst [vmem:[#allocation12 + $0x110] sm:$0xff] %v10390
          %10455 = vst [vmem:[#allocation12 + $0x118] sm:$0xff] %v10391
          %10456 = vst [vmem:[#allocation12 + $0x120] sm:$0xff] %v10392
          %10457 = vst [vmem:[#allocation12 + $0x128] sm:$0xff] %v10393
          %10458 = vst [vmem:[#allocation12 + $0x130] sm:$0xff] %v10394
          %10459 = vst [vmem:[#allocation12 + $0x138] sm:$0xff] %v10395
          %10460 = vst [vmem:[#allocation12 + $0x140] sm:$0xff] %v10396
          %10461 = vst [vmem:[#allocation12 + $0x148] sm:$0xff] %v10397
          %10462 = vst [vmem:[#allocation12 + $0x150] sm:$0xff] %v10398
          %10463 = vst [vmem:[#allocation12 + $0x158] sm:$0xff] %v10399
          %10464 = vst [vmem:[#allocation12 + $0x160] sm:$0xff] %v10400
          %10465 = vst [vmem:[#allocation12 + $0x168] sm:$0xff] %v10401
          %10466 = vst [vmem:[#allocation12 + $0x170] sm:$0xff] %v10402
          %10467 = vst [vmem:[#allocation12 + $0x178] sm:$0xff] %v10403
          %10468 = vst [vmem:[#allocation12 + $0x180] sm:$0xff] %v10404
          %10469 = vst [vmem:[#allocation12 + $0x188] sm:$0xff] %v10405
          %10470 = vst [vmem:[#allocation12 + $0x190] sm:$0xff] %v10406
          %10471 = vst [vmem:[#allocation12 + $0x198] sm:$0xff] %v10407
          %10472 = vst [vmem:[#allocation12 + $0x1a0] sm:$0xff] %v10408
          %10473 = vst [vmem:[#allocation12 + $0x1a8] sm:$0xff] %v10409
          %10474 = vst [vmem:[#allocation12 + $0x1b0] sm:$0xff] %v10410
          %10475 = vst [vmem:[#allocation12 + $0x1b8] sm:$0xff] %v10411
          %10476 = vst [vmem:[#allocation12 + $0x1c0] sm:$0xff] %v10412
          %10477 = vst [vmem:[#allocation12 + $0x1c8] sm:$0xff] %v10413
          %10478 = vst [vmem:[#allocation12 + $0x1d0] sm:$0xff] %v10414
          %10479 = vst [vmem:[#allocation12 + $0x1d8] sm:$0xff] %v10415
          %10480 = vst [vmem:[#allocation12 + $0x1e0] sm:$0xff] %v10416
          %10481 = vst [vmem:[#allocation12 + $0x1e8] sm:$0xff] %v10417
          %10482 = vst [vmem:[#allocation12 + $0x1f0] sm:$0xff] %v10418
          %10483 = vst [vmem:[#allocation12 + $0x1f8] sm:$0xff] %v10419
        $region72: #{tpu_custom_call.1} parent=43 // pred_fallthru
          _
        // Predicated region
        $region73: #{tpu_custom_call.1} parent=43 // pred_check
          %p10484 = pneg %p198
        $region74: #{tpu_custom_call.1} parent=43 // pred_check_branch
          %10486 = sbr.rel (%p10484) target = $region76
        $region75: #{tpu_custom_call.1} parent=43 // pred_region
          %s10487 = smul.u32 64, %s24
          %10489 = vsyncadd [#allocation6], 0
          %s10490 = smul.addr %s10487, 8
          %s10491 = scalar_lea.hbm %s6, %s10490
          %s10492 = sshll.u32 [#allocation12], 4
          %s10493 = int_to_ptr.vmem [resolvable:$true] %s10492
          %s10494 = sshll.u32 %s10491, 4
          %s10495 = int_to_ptr.hbm [resolvable:$true] %s10494
          %10500 = dma.vmem_to_hbm [thread:$0]  %s10493, 8192, %s10495, [#allocation6], 128, 128, 8
        $region76: #{tpu_custom_call.1} parent=43 // pred_fallthru
          _
        // Predicated region
        $region77: #{tpu_custom_call.1} parent=43 // pred_check
          %p10501 = pneg %p198
        $region78: #{tpu_custom_call.1} parent=43 // pred_check_branch
          %10503 = sbr.rel (%p10501) target = $region80
        $region79: #{tpu_custom_call.1} parent=43 // pred_region
          %10505 = dma.done [#allocation6], 8192
        $region80: #{tpu_custom_call.1} parent=43 // pred_fallthru
          _
      $region44: #{tpu_custom_call.1} parent=5 // pred_fallthru
        _
      %p10506 = scmp.le.s32.totalorder 2, %s15
      // Predicated region
      $region81: #{tpu_custom_call.1} parent=5 // pred_check
        %p10507 = pneg %p10506
      $region82: #{tpu_custom_call.1} parent=5 // pred_check_branch
        %10509 = sbr.rel (%p10507) target = $region84
      $region83: #{tpu_custom_call.1} parent=5 // pred_region
        %s10510 = ssub.s32 %s15, 2
      $region84: #{tpu_custom_call.1} parent=5 // pred_fallthru
        _
    $region6: #{tpu_custom_call.1} parent=1 // loop_footer
      %s19 = sadd.s32 1, %s15
    $region7: #{tpu_custom_call.1} parent=1 // loop_footer_branch
      %14 = sbr.rel target = $region3
    $region8: #{tpu_custom_call.1} parent=1 // loop_exit
      _
    %10511 = vsyncpa [#allocation5], 1
    %s10512 = scalar_lea.sflag [#allocation5], 1
    %10513 = vsyncpa %s10512, 1
    %10514 = vsyncpa [#allocation8], 1
    %10515 = vsyncpa [#allocation6], 1
    %s10516 = scalar_lea.sflag [#allocation6], 1
    %10517 = vsyncpa %s10516, 1

</llo_original>
